<compile_context>
chip_gen: v5e
topology: v5e:2x2
jax: 0.10.0
libtpu: 0.0.40
codegen_flags: <defaults>
</compile_context>

<pallas_src>
import functools

import jax
import jax.numpy as jnp
from jax import lax
from jax.experimental import pallas as pl
from jax.experimental.pallas import tpu as pltpu


_VGG19_SLICE_CFG = [
    ("conv", 3, 64), ("conv", 64, 64), ("pool",),
    ("conv", 64, 128), ("conv", 128, 128), ("pool",),
    ("conv", 128, 256), ("conv", 256, 256), ("conv", 256, 256), ("conv", 256, 256),
]

_VMEM_BUDGET = 20 * 1024 * 1024   # target per-step working set for TM selection


def _vmem_limit_bytes():
    cap = 128 * 1024 * 1024
    try:
        cap = int(pltpu.get_tpu_info().vmem_capacity_bytes)
    except Exception:
        pass
    return max(min(48 * 1024 * 1024, cap - 16 * 1024 * 1024), 32 * 1024 * 1024)


# ---------------------------------------------------------------------------
# VMEM footprint estimates (rough, for band-height selection only).
# ---------------------------------------------------------------------------
def _band_tmp_bytes(r2, w, cin, cout, n_rows):
    # _conv_band temporaries: shifted copies + channel-concat window (bf16)
    # plus the f32 matmul accumulator.
    return 5 * r2 * w * cin * 2 + n_rows * w * cout * 4


def _est_single(tm, w, cin, cout, pool):
    oh, ow = (tm // 2, w // 2) if pool else (tm, w)
    io = 2 * tm * w * cin * 2 + 4 * w * cin * 2 + 2 * oh * ow * cout * 2
    wts = 2 * (9 * cin * cout * 2 + cout * 4)
    col = (tm + 2) * w * cin * 2
    return io + wts + col + _band_tmp_bytes(tm + 2, w, cin, cout, tm)


def _est_pair(tm, h, w, cin, cmid, cout):
    io = 2 * (h + 4) * w * cin * 2 + 2 * (tm // 2) * (w // 2) * cout * 2
    wts = 2 * (9 * cin * cmid * 2 + 9 * cmid * cout * 2 + (cmid + cout) * 4)
    xwin = (tm + 4) * w * cin * 2
    mid = (tm + 2) * w * cmid * 2
    return (io + wts + xwin + mid
            + _band_tmp_bytes(tm + 4, w, cin, cmid, tm + 2)
            + _band_tmp_bytes(tm + 2, w, cmid, cout, tm))


def _pick_tm(n, h, need_even, est_fn):
    """Largest row-band height dividing H that fits the VMEM budget."""
    cands = [d for d in range(h, 0, -1)
             if h % d == 0 and (not need_even or d % 2 == 0)]
    tm = cands[-1]
    for d in cands:
        if est_fn(d) <= _VMEM_BUDGET:
            tm = d
            break
    # Keep both TensorCores (v7x megacore) busy when batch*bands would be < 2.
    if n * (h // tm) < 2:
        for d in cands:
            if d <= max(h // 2, 1) and est_fn(d) <= _VMEM_BUDGET:
                tm = d
                break
    return tm


# ---------------------------------------------------------------------------
# In-kernel 3x3 conv on a row window, taps folded into the contraction dim.
# ---------------------------------------------------------------------------
def _conv_band(col, w3, bias, n_rows):
    """3x3 SAME conv + bias + ReLU of a row window.

    col:  (n_rows+2, W, Cin) bf16 — band plus one halo row above/below; rows
          that fall outside the image must already be zero.
    w3:   (3, 3*Cin, Cout) bf16 — per kernel row, the three horizontal taps
          stacked along K (kx-major, Cin-minor).
    bias: (1, Cout) f32.
    Returns (n_rows, W, Cout) f32 (post bias + ReLU).
    """
    r2, w, cin = col.shape
    cout = w3.shape[-1]
    n = n_rows
    zc = jnp.zeros((r2, 1, cin), col.dtype)
    left = jnp.concatenate([zc, col[:, :w - 1, :]], axis=1)    # x[.., w-1, ..]
    right = jnp.concatenate([col[:, 1:, :], zc], axis=1)       # x[.., w+1, ..]
    wch = jnp.concatenate([left, col, right], axis=-1)         # (r2, W, 3*Cin)
    if 3 * cin < 128:
        # Tiny-Cin first layer: also fold the 3 row taps -> one K=9*Cin matmul.
        patch = jnp.concatenate([wch[dy:dy + n] for dy in range(3)], axis=-1)
        acc = jnp.dot(patch.reshape(n * w, 9 * cin),
                      w3.reshape(9 * cin, cout),
                      preferred_element_type=jnp.float32)
    else:
        # One MXU pass per kernel row, K = 3*Cin, chained f32 accumulation.
        acc = jnp.dot(wch[0:n].reshape(n * w, 3 * cin), w3[0],
                      preferred_element_type=jnp.float32)
        acc = acc + jnp.dot(wch[1:n + 1].reshape(n * w, 3 * cin), w3[1],
                            preferred_element_type=jnp.float32)
        acc = acc + jnp.dot(wch[2:n + 2].reshape(n * w, 3 * cin), w3[2],
                            preferred_element_type=jnp.float32)
    acc = jnp.maximum(acc + bias, 0.0)
    return acc.reshape(n, w, cout)


def _pool2x2(y):
    tm, w, c = y.shape
    y = jnp.max(y.reshape(tm // 2, 2, w, c), axis=1)
    return jnp.max(y.reshape(tm // 2, w // 2, 2, c), axis=2)


# ---------------------------------------------------------------------------
# Kernels.
# ---------------------------------------------------------------------------
def _conv_kernel(x_ref, top_ref, bot_ref, w_ref, b_ref, o_ref, *, pool):
    """One 3x3 conv (+bias+ReLU, optional fused 2x2 maxpool) on a row band."""
    _, tm, _, _ = x_ref.shape
    j = pl.program_id(1)
    nb = pl.num_programs(1)
    top = jnp.where(j > 0, top_ref[0], jnp.zeros_like(top_ref[0]))
    bot = jnp.where(j < nb - 1, bot_ref[0], jnp.zeros_like(bot_ref[0]))
    col = jnp.concatenate([top, x_ref[0], bot], axis=0)        # (TM+2, W, Cin)
    y = _conv_band(col, w_ref[...], b_ref[...], tm)            # (TM, W, Cout) f32
    if pool:
        y = _pool2x2(y)
    o_ref[0] = y.astype(o_ref.dtype)


def _conv_pair_kernel(x_ref, w1_ref, b1_ref, w2_ref, b2_ref, o_ref, *, tm, h):
    """Fused conv->ReLU->conv->ReLU->2x2 maxpool on one row band.

    x_ref holds the whole (already 2-row zero-padded) image, so the first conv
    is evaluated on TM+2 rows and the intermediate never touches HBM.
    """
    j = pl.program_id(1)
    # rows j*TM-2 .. j*TM+TM+1 in image coords (zero padded outside the image).
    xwin = x_ref[0, pl.ds(j * tm, tm + 4), :, :]
    mid = _conv_band(xwin, w1_ref[...], b1_ref[...], tm + 2)   # (TM+2, W, Cmid)
    # Rows of the first conv output that lie outside the image act as the
    # second conv's SAME zero padding (ReLU(bias) != 0 in general).
    row = lax.broadcasted_iota(jnp.int32, (tm + 2, 1, 1), 0) + (j * tm - 1)
    mid = jnp.where((row >= 0) & (row < h), mid, 0.0)
    y = _conv_band(mid.astype(jnp.bfloat16), w2_ref[...], b2_ref[...], tm)
    o_ref[0] = _pool2x2(y).astype(o_ref.dtype)


# ---------------------------------------------------------------------------
# pallas_call wrappers.
# ---------------------------------------------------------------------------
def _prep_wb(w_hwio, b):
    cin, cout = w_hwio.shape[2], w_hwio.shape[3]
    w3 = w_hwio.reshape(3, 3 * cin, cout).astype(jnp.bfloat16)
    b2 = b.reshape(1, cout).astype(jnp.float32)
    return w3, b2


def conv3x3_bias_relu(x, w_hwio, b, *, pool):
    """x: (N,H,W,Cin) bf16 -> (N,H',W',Cout) bf16 (H'=H/2, W'=W/2 if pool)."""
    n, h, width, cin = x.shape
    cout = w_hwio.shape[-1]
    if pool:
        assert h % 2 == 0 and width % 2 == 0
    tm = _pick_tm(n, h, pool, lambda t: _est_single(t, width, cin, cout, pool))
    nb = h // tm
    out_h, out_w = (h // 2, width // 2) if pool else (h, width)
    blk_h = tm // 2 if pool else tm
    w3, b2 = _prep_wb(w_hwio, b)

    flops = 2 * n * h * width * 9 * cin * cout
    bytes_accessed = (n * h * width * cin * 2 + 9 * cin * cout * 2 + cout * 4
                      + n * out_h * out_w * cout * 2)

    kernel = functools.partial(_conv_kernel, pool=pool)
    return pl.pallas_call(
        kernel,
        out_shape=jax.ShapeDtypeStruct((n, out_h, out_w, cout), jnp.bfloat16),
        grid=(n, nb),
        in_specs=[
            pl.BlockSpec((1, tm, width, cin), lambda i, j: (i, j, 0, 0)),
            # Halo rows: block size 1 along H -> block index == row index,
            # clamped at the image edge and zeroed in-kernel.
            pl.BlockSpec((1, 1, width, cin),
                         lambda i, j: (i, jnp.maximum(j * tm - 1, 0), 0, 0)),
            pl.BlockSpec((1, 1, width, cin),
                         lambda i, j: (i, jnp.minimum(j * tm + tm, h - 1), 0, 0)),
            pl.BlockSpec((3, 3 * cin, cout), lambda i, j: (0, 0, 0)),
            pl.BlockSpec((1, cout), lambda i, j: (0, 0)),
        ],
        out_specs=pl.BlockSpec((1, blk_h, out_w, cout), lambda i, j: (i, j, 0, 0)),
        compiler_params=pltpu.CompilerParams(
            dimension_semantics=("parallel", "parallel"),
            vmem_limit_bytes=_vmem_limit_bytes()),
        cost_estimate=pl.CostEstimate(flops=flops, transcendentals=0,
                                      bytes_accessed=bytes_accessed),
    )(x, x, x, w3, b2)


def conv_pair_pool(x, w1_hwio, b1, w2_hwio, b2):
    """Fused conv3x3+ReLU -> conv3x3+ReLU -> 2x2 maxpool.

    x: (N,H,W,Cin) bf16 -> (N,H/2,W/2,Cout) bf16.
    """
    n, h, width, cin = x.shape
    cmid = w1_hwio.shape[-1]
    cout = w2_hwio.shape[-1]
    assert h % 2 == 0 and width % 2 == 0
    tm = _pick_tm(n, h, True, lambda t: _est_pair(t, h, width, cin, cmid, cout))
    nb = h // tm
    w13, b13 = _prep_wb(w1_hwio, b1)
    w23, b23 = _prep_wb(w2_hwio, b2)
    # Two zero rows of padding top+bottom so every band reads TM+4 rows
    # without clamping (tiny compared to the fused-stage HBM savings).
    xp = jnp.pad(x, ((0, 0), (2, 2), (0, 0), (0, 0)))

    flops = 2 * n * h * width * 9 * (cin * cmid + cmid * cout)
    bytes_accessed = (n * (h + 4) * width * cin * 2
                      + 9 * (cin * cmid + cmid * cout) * 2 + (cmid + cout) * 4
                      + n * (h // 2) * (width // 2) * cout * 2)

    kernel = functools.partial(_conv_pair_kernel, tm=tm, h=h)
    return pl.pallas_call(
        kernel,
        out_shape=jax.ShapeDtypeStruct((n, h // 2, width // 2, cout), jnp.bfloat16),
        grid=(n, nb),
        in_specs=[
            # Whole padded image per batch element (block index constant in j,
            # so it is fetched once per image); the band slices it in-kernel.
            pl.BlockSpec((1, h + 4, width, cin), lambda i, j: (i, 0, 0, 0)),
            pl.BlockSpec((3, 3 * cin, cmid), lambda i, j: (0, 0, 0)),
            pl.BlockSpec((1, cmid), lambda i, j: (0, 0)),
            pl.BlockSpec((3, 3 * cmid, cout), lambda i, j: (0, 0, 0)),
            pl.BlockSpec((1, cout), lambda i, j: (0, 0)),
        ],
        out_specs=pl.BlockSpec((1, tm // 2, width // 2, cout),
                               lambda i, j: (i, j, 0, 0)),
        compiler_params=pltpu.CompilerParams(
            dimension_semantics=("parallel", "parallel"),
            vmem_limit_bytes=_vmem_limit_bytes()),
        cost_estimate=pl.CostEstimate(flops=flops, transcendentals=0,
                                      bytes_accessed=bytes_accessed),
    )(xp, w13, b13, w23, b23)


# ---------------------------------------------------------------------------
# Parameters, plan, forward, reference.
# ---------------------------------------------------------------------------
def init_params(key):
    """Deterministic He-init for the 8 conv layers of VGG19.features[:18]."""
    params = []
    for cfg in _VGG19_SLICE_CFG:
        if cfg[0] == "pool":
            params.append(None)
            continue
        _, c_in, c_out = cfg
        key, wk = jax.random.split(key)
        scale = (2.0 / (9.0 * c_in)) ** 0.5
        w = scale * jax.random.normal(wk, (3, 3, c_in, c_out), jnp.float32)  # HWIO
        b = jnp.zeros((c_out,), jnp.float32)
        params.append((w, b))
    return params


def _build_plan(params):
    """[('pair',(w1,b1),(w2,b2))] for conv-conv-pool groups, else ('single',(w,b),pool)."""
    plan = []
    i = 0
    cfg = _VGG19_SLICE_CFG
    while i < len(cfg):
        assert cfg[i][0] == "conv"
        if (i + 2 < len(cfg) and cfg[i + 1][0] == "conv"
                and cfg[i + 2][0] == "pool"):
            plan.append(("pair", params[i], params[i + 1]))
            i += 3
        elif i + 1 < len(cfg) and cfg[i + 1][0] == "pool":
            plan.append(("single", params[i], True))
            i += 2
        else:
            plan.append(("single", params[i], False))
            i += 1
    return plan


def feature_extractor(img_nchw, params):
    """VGG19 features[:18] forward pass. NCHW f32 in -> NCHW f32 out."""
    x = jnp.transpose(img_nchw, (0, 2, 3, 1)).astype(jnp.bfloat16)  # NCHW -> NHWC
    for step in _build_plan(params):
        if step[0] == "pair":
            _, (w1, b1), (w2, b2) = step
            x = conv_pair_pool(x, w1, b1, w2, b2)
        else:
            _, (w, b), fuse_pool = step
            x = conv3x3_bias_relu(x, w, b, pool=fuse_pool)
    return jnp.transpose(x, (0, 3, 1, 2)).astype(jnp.float32)       # NHWC -> NCHW


def feature_extractor_ref(img_nchw, params):
    """Pure-JAX reference mirroring the kernel's dtype flow (bf16 acts, f32 accum)."""
    x = jnp.transpose(img_nchw, (0, 2, 3, 1)).astype(jnp.bfloat16)
    for cfg, p in zip(_VGG19_SLICE_CFG, params):
        if cfg[0] == "pool":
            x = lax.reduce_window(x.astype(jnp.float32), -jnp.inf, lax.max,
                                  (1, 2, 2, 1), (1, 2, 2, 1), "VALID")
            x = x.astype(jnp.bfloat16)
            continue
        w, b = p
        y = lax.conv_general_dilated(
            x, w.astype(jnp.bfloat16), (1, 1), "SAME",
            dimension_numbers=("NHWC", "HWIO", "NHWC"),
            preferred_element_type=jnp.float32) + b
        x = jnp.maximum(y, 0.0).astype(jnp.bfloat16)
    return jnp.transpose(x, (0, 3, 1, 2)).astype(jnp.float32)


if __name__ == "__main__":
    key = jax.random.PRNGKey(0)
    pkey, xkey = jax.random.split(key)
    params = init_params(pkey)

    fwd = jax.jit(feature_extractor)

    # Small NCHW RGB input (single-band path on every layer).
    img = jax.random.normal(xkey, (2, 3, 16, 16), jnp.float32)
    out = jax.block_until_ready(fwd(img, params))
    assert out.shape == (2, 256, 4, 4), out.shape
    assert out.dtype == jnp.float32
    ref = jax.block_until_ready(feature_extractor_ref(img, params))
    err = float(jnp.max(jnp.abs(out - ref)))
    assert jnp.allclose(out, ref, atol=2e-2, rtol=2e-2), err

    # Batch-1 32x32 input: the >=2-bands heuristic forces multi-band grids,
    # exercising the halo reads and band-edge zero masking.
    img2 = jax.random.normal(jax.random.PRNGKey(1), (1, 3, 32, 32), jnp.float32)
    out2 = jax.block_until_ready(fwd(img2, params))
    assert out2.shape == (1, 256, 8, 8), out2.shape
    ref2 = jax.block_until_ready(feature_extractor_ref(img2, params))
    err2 = float(jnp.max(jnp.abs(out2 - ref2)))
    assert jnp.allclose(out2, ref2, atol=2e-2, rtol=2e-2), err2

    print("KERNEL_OK")
</pallas_src>

<mosaic_0001>
module attributes {stable_mosaic.version = 11 : i64} {
  func.func @_conv_pair_kernel(%arg0: i32, %arg1: i32, %arg2: memref<1x12x8x64xbf16, #tpu.memory_space<vmem>>, %arg3: memref<3x192x128xbf16, #tpu.memory_space<vmem>>, %arg4: memref<1x128xf32, #tpu.memory_space<vmem>>, %arg5: memref<3x384x128xbf16, #tpu.memory_space<vmem>>, %arg6: memref<1x128xf32, #tpu.memory_space<vmem>>, %arg7: memref<1x4x4x128xbf16, #tpu.memory_space<vmem>>) attributes {dimension_semantics = [#tpu.dimension_semantics<parallel>, #tpu.dimension_semantics<parallel>], iteration_bounds = array<i64: 2, 1>, scalar_prefetch = 0 : i64, scratch_operands = 0 : i64, tpu.core_type = #tpu.core_type<tc>, window_params = [{transform_indices = @transform_0, window_bounds = array<i64: 1, 12, 8, 64>}, {pipeline_mode = #tpu.pipeline_mode<synchronous>, transform_indices = @transform_1, window_bounds = array<i64: 3, 192, 128>}, {pipeline_mode = #tpu.pipeline_mode<synchronous>, transform_indices = @transform_2, window_bounds = array<i64: 1, 128>}, {pipeline_mode = #tpu.pipeline_mode<synchronous>, transform_indices = @transform_3, window_bounds = array<i64: 3, 384, 128>}, {pipeline_mode = #tpu.pipeline_mode<synchronous>, transform_indices = @transform_4, window_bounds = array<i64: 1, 128>}, {transform_indices = @transform_5, window_bounds = array<i64: 1, 4, 4, 128>}]} {
    %c8_i32 = arith.constant 8 : i32
    %0 = arith.muli %arg1, %c8_i32 : i32
    %c0 = arith.constant 0 : index
    %1 = arith.index_cast %0 : i32 to index
    %c0_0 = arith.constant 0 : index
    %c0_1 = arith.constant 0 : index
    %2 = vector.load %arg2[%c0, %1, %c0_0, %c0_1] : memref<1x12x8x64xbf16, #tpu.memory_space<vmem>>, vector<1x12x8x64xbf16>
    %3 = vector.shape_cast %2 : vector<1x12x8x64xbf16> to vector<12x8x64xbf16>
    %c0_2 = arith.constant 0 : index
    %c0_3 = arith.constant 0 : index
    %c0_4 = arith.constant 0 : index
    %4 = vector.load %arg3[%c0_2, %c0_3, %c0_4] : memref<3x192x128xbf16, #tpu.memory_space<vmem>>, vector<3x192x128xbf16>
    %c0_5 = arith.constant 0 : index
    %c0_6 = arith.constant 0 : index
    %5 = vector.load %arg4[%c0_5, %c0_6] : memref<1x128xf32, #tpu.memory_space<vmem>>, vector<1x128xf32>
    %cst = arith.constant 0.000000e+00 : bf16
    %6 = vector.broadcast %cst : bf16 to vector<12x1x64xbf16>
    %7 = vector.extract_strided_slice %3 {offsets = [0, 0, 0], sizes = [12, 7, 64], strides = [1, 1, 1]} : vector<12x8x64xbf16> to vector<12x7x64xbf16>
    %8 = tpu.concatenate %6, %7 in 1 : vector<12x1x64xbf16>, vector<12x7x64xbf16> -> vector<12x8x64xbf16>
    %9 = vector.extract_strided_slice %3 {offsets = [0, 1, 0], sizes = [12, 7, 64], strides = [1, 1, 1]} : vector<12x8x64xbf16> to vector<12x7x64xbf16>
    %10 = tpu.concatenate %9, %6 in 1 : vector<12x7x64xbf16>, vector<12x1x64xbf16> -> vector<12x8x64xbf16>
    %11 = tpu.concatenate %8, %3, %10 in 2 : vector<12x8x64xbf16>, vector<12x8x64xbf16>, vector<12x8x64xbf16> -> vector<12x8x192xbf16>
    %12 = vector.extract_strided_slice %11 {offsets = [0, 0, 0], sizes = [10, 8, 192], strides = [1, 1, 1]} : vector<12x8x192xbf16> to vector<10x8x192xbf16>
    %13 = vector.shape_cast %12 : vector<10x8x192xbf16> to vector<80x192xbf16>
    %14 = vector.extract_strided_slice %4 {offsets = [0, 0, 0], sizes = [1, 192, 128], strides = [1, 1, 1]} : vector<3x192x128xbf16> to vector<1x192x128xbf16>
    %15 = vector.shape_cast %14 : vector<1x192x128xbf16> to vector<192x128xbf16>
    %cst_7 = arith.constant dense<0.000000e+00> : vector<80x128xf32>
    %16 = tpu.matmul %13, %15, %cst_7 {dimension_numbers = #tpu.dot_dimension_numbers<[1], [0], [0], [1], [0, 0, 1, 1], [], []>} : vector<80x192xbf16>, vector<192x128xbf16>, vector<80x128xf32> -> vector<80x128xf32>
    %17 = vector.extract_strided_slice %11 {offsets = [1, 0, 0], sizes = [10, 8, 192], strides = [1, 1, 1]} : vector<12x8x192xbf16> to vector<10x8x192xbf16>
    %18 = vector.shape_cast %17 : vector<10x8x192xbf16> to vector<80x192xbf16>
    %19 = vector.extract_strided_slice %4 {offsets = [1, 0, 0], sizes = [1, 192, 128], strides = [1, 1, 1]} : vector<3x192x128xbf16> to vector<1x192x128xbf16>
    %20 = vector.shape_cast %19 : vector<1x192x128xbf16> to vector<192x128xbf16>
    %cst_8 = arith.constant dense<0.000000e+00> : vector<80x128xf32>
    %21 = tpu.matmul %18, %20, %cst_8 {dimension_numbers = #tpu.dot_dimension_numbers<[1], [0], [0], [1], [0, 0, 1, 1], [], []>} : vector<80x192xbf16>, vector<192x128xbf16>, vector<80x128xf32> -> vector<80x128xf32>
    %22 = arith.addf %16, %21 : vector<80x128xf32>
    %23 = vector.extract_strided_slice %11 {offsets = [2, 0, 0], sizes = [10, 8, 192], strides = [1, 1, 1]} : vector<12x8x192xbf16> to vector<10x8x192xbf16>
    %24 = vector.shape_cast %23 : vector<10x8x192xbf16> to vector<80x192xbf16>
    %25 = vector.extract_strided_slice %4 {offsets = [2, 0, 0], sizes = [1, 192, 128], strides = [1, 1, 1]} : vector<3x192x128xbf16> to vector<1x192x128xbf16>
    %26 = vector.shape_cast %25 : vector<1x192x128xbf16> to vector<192x128xbf16>
    %cst_9 = arith.constant dense<0.000000e+00> : vector<80x128xf32>
    %27 = tpu.matmul %24, %26, %cst_9 {dimension_numbers = #tpu.dot_dimension_numbers<[1], [0], [0], [1], [0, 0, 1, 1], [], []>} : vector<80x192xbf16>, vector<192x128xbf16>, vector<80x128xf32> -> vector<80x128xf32>
    %28 = arith.addf %22, %27 : vector<80x128xf32>
    %29 = vector.broadcast %5 : vector<1x128xf32> to vector<80x128xf32>
    %30 = arith.addf %28, %29 : vector<80x128xf32>
    %cst_10 = arith.constant 0.000000e+00 : f32
    %31 = vector.broadcast %cst_10 : f32 to vector<80x128xf32>
    %32 = arith.maximumf %30, %31 : vector<80x128xf32>
    %33 = vector.shape_cast %32 : vector<80x128xf32> to vector<10x8x128xf32>
    %34 = tpu.iota {dimensions = array<i32: 0>} : vector<10x1x1xi32>
    %c8_i32_11 = arith.constant 8 : i32
    %35 = arith.muli %arg1, %c8_i32_11 : i32
    %c1_i32 = arith.constant 1 : i32
    %36 = arith.subi %35, %c1_i32 : i32
    %37 = vector.broadcast %36 : i32 to vector<10x1x1xi32>
    %38 = arith.addi %34, %37 : vector<10x1x1xi32>
    %c0_i32 = arith.constant 0 : i32
    %39 = vector.broadcast %c0_i32 : i32 to vector<10x1x1xi32>
    %40 = arith.cmpi sge, %38, %39 : vector<10x1x1xi32>
    %c8_i32_12 = arith.constant 8 : i32
    %41 = vector.broadcast %c8_i32_12 : i32 to vector<10x1x1xi32>
    %42 = arith.cmpi slt, %38, %41 : vector<10x1x1xi32>
    %43 = arith.andi %40, %42 : vector<10x1x1xi1>
    %cst_13 = arith.constant 0.000000e+00 : f32
    %44 = vector.shape_cast %43 : vector<10x1x1xi1> to vector<10x1x1xi1>
    %45 = vector.broadcast %44 : vector<10x1x1xi1> to vector<10x8x128xi1>
    %46 = vector.broadcast %cst_13 : f32 to vector<10x8x128xf32>
    %47 = arith.select %45, %33, %46 : vector<10x8x128xi1>, vector<10x8x128xf32>
    %48 = arith.truncf %47 : vector<10x8x128xf32> to vector<10x8x128xbf16>
    %c0_14 = arith.constant 0 : index
    %c0_15 = arith.constant 0 : index
    %c0_16 = arith.constant 0 : index
    %49 = vector.load %arg5[%c0_14, %c0_15, %c0_16] : memref<3x384x128xbf16, #tpu.memory_space<vmem>>, vector<3x384x128xbf16>
    %c0_17 = arith.constant 0 : index
    %c0_18 = arith.constant 0 : index
    %50 = vector.load %arg6[%c0_17, %c0_18] : memref<1x128xf32, #tpu.memory_space<vmem>>, vector<1x128xf32>
    %cst_19 = arith.constant 0.000000e+00 : bf16
    %51 = vector.broadcast %cst_19 : bf16 to vector<10x1x128xbf16>
    %52 = vector.extract_strided_slice %48 {offsets = [0, 0, 0], sizes = [10, 7, 128], strides = [1, 1, 1]} : vector<10x8x128xbf16> to vector<10x7x128xbf16>
    %53 = tpu.concatenate %51, %52 in 1 : vector<10x1x128xbf16>, vector<10x7x128xbf16> -> vector<10x8x128xbf16>
    %54 = vector.extract_strided_slice %48 {offsets = [0, 1, 0], sizes = [10, 7, 128], strides = [1, 1, 1]} : vector<10x8x128xbf16> to vector<10x7x128xbf16>
    %55 = tpu.concatenate %54, %51 in 1 : vector<10x7x128xbf16>, vector<10x1x128xbf16> -> vector<10x8x128xbf16>
    %56 = tpu.concatenate %53, %48, %55 in 2 : vector<10x8x128xbf16>, vector<10x8x128xbf16>, vector<10x8x128xbf16> -> vector<10x8x384xbf16>
    %57 = vector.extract_strided_slice %56 {offsets = [0, 0, 0], sizes = [8, 8, 384], strides = [1, 1, 1]} : vector<10x8x384xbf16> to vector<8x8x384xbf16>
    %58 = vector.shape_cast %57 : vector<8x8x384xbf16> to vector<64x384xbf16>
    %59 = vector.extract_strided_slice %49 {offsets = [0, 0, 0], sizes = [1, 384, 128], strides = [1, 1, 1]} : vector<3x384x128xbf16> to vector<1x384x128xbf16>
    %60 = vector.shape_cast %59 : vector<1x384x128xbf16> to vector<384x128xbf16>
    %cst_20 = arith.constant dense<0.000000e+00> : vector<64x128xf32>
    %61 = tpu.matmul %58, %60, %cst_20 {dimension_numbers = #tpu.dot_dimension_numbers<[1], [0], [0], [1], [0, 0, 1, 1], [], []>} : vector<64x384xbf16>, vector<384x128xbf16>, vector<64x128xf32> -> vector<64x128xf32>
    %62 = vector.extract_strided_slice %56 {offsets = [1, 0, 0], sizes = [8, 8, 384], strides = [1, 1, 1]} : vector<10x8x384xbf16> to vector<8x8x384xbf16>
    %63 = vector.shape_cast %62 : vector<8x8x384xbf16> to vector<64x384xbf16>
    %64 = vector.extract_strided_slice %49 {offsets = [1, 0, 0], sizes = [1, 384, 128], strides = [1, 1, 1]} : vector<3x384x128xbf16> to vector<1x384x128xbf16>
    %65 = vector.shape_cast %64 : vector<1x384x128xbf16> to vector<384x128xbf16>
    %cst_21 = arith.constant dense<0.000000e+00> : vector<64x128xf32>
    %66 = tpu.matmul %63, %65, %cst_21 {dimension_numbers = #tpu.dot_dimension_numbers<[1], [0], [0], [1], [0, 0, 1, 1], [], []>} : vector<64x384xbf16>, vector<384x128xbf16>, vector<64x128xf32> -> vector<64x128xf32>
    %67 = arith.addf %61, %66 : vector<64x128xf32>
    %68 = vector.extract_strided_slice %56 {offsets = [2, 0, 0], sizes = [8, 8, 384], strides = [1, 1, 1]} : vector<10x8x384xbf16> to vector<8x8x384xbf16>
    %69 = vector.shape_cast %68 : vector<8x8x384xbf16> to vector<64x384xbf16>
    %70 = vector.extract_strided_slice %49 {offsets = [2, 0, 0], sizes = [1, 384, 128], strides = [1, 1, 1]} : vector<3x384x128xbf16> to vector<1x384x128xbf16>
    %71 = vector.shape_cast %70 : vector<1x384x128xbf16> to vector<384x128xbf16>
    %cst_22 = arith.constant dense<0.000000e+00> : vector<64x128xf32>
    %72 = tpu.matmul %69, %71, %cst_22 {dimension_numbers = #tpu.dot_dimension_numbers<[1], [0], [0], [1], [0, 0, 1, 1], [], []>} : vector<64x384xbf16>, vector<384x128xbf16>, vector<64x128xf32> -> vector<64x128xf32>
    %73 = arith.addf %67, %72 : vector<64x128xf32>
    %74 = vector.broadcast %50 : vector<1x128xf32> to vector<64x128xf32>
    %75 = arith.addf %73, %74 : vector<64x128xf32>
    %cst_23 = arith.constant 0.000000e+00 : f32
    %76 = vector.broadcast %cst_23 : f32 to vector<64x128xf32>
    %77 = arith.maximumf %75, %76 : vector<64x128xf32>
    %78 = vector.shape_cast %77 : vector<64x128xf32> to vector<8x8x128xf32>
    %79 = vector.shape_cast %78 : vector<8x8x128xf32> to vector<4x2x8x128xf32>
    %cst_24 = arith.constant dense<0xFF800000> : vector<4x8x128xf32>
    %80 = vector.multi_reduction <maximumf>, %79, %cst_24 [1] : vector<4x2x8x128xf32> to vector<4x8x128xf32>
    %81 = vector.shape_cast %80 : vector<4x8x128xf32> to vector<4x4x2x128xf32>
    %cst_25 = arith.constant dense<0xFF800000> : vector<4x4x128xf32>
    %82 = vector.multi_reduction <maximumf>, %81, %cst_25 [2] : vector<4x4x2x128xf32> to vector<4x4x128xf32>
    %83 = arith.truncf %82 : vector<4x4x128xf32> to vector<4x4x128xbf16>
    %c0_26 = arith.constant 0 : index
    %c0_27 = arith.constant 0 : index
    %c0_28 = arith.constant 0 : index
    %c0_29 = arith.constant 0 : index
    %84 = vector.load %arg7[%c0_26, %c0_27, %c0_28, %c0_29] : memref<1x4x4x128xbf16, #tpu.memory_space<vmem>>, vector<1x4x4x128xbf16>
    %85 = vector.shape_cast %84 : vector<1x4x4x128xbf16> to vector<4x4x128xbf16>
    %86 = vector.shape_cast %83 : vector<4x4x128xbf16> to vector<1x4x4x128xbf16>
    tpu.vector_store %arg7[%c0_26, %c0_27, %c0_28, %c0_29], %86 {strides = array<i32>} : memref<1x4x4x128xbf16, #tpu.memory_space<vmem>>, vector<1x4x4x128xbf16>,
    return
  }
  func.func @transform_0(%arg0: i32, %arg1: i32) -> (i32, i32, i32, i32) {
    %c0_i32 = arith.constant 0 : i32
    %c0_i32_0 = arith.constant 0 : i32
    %c0_i32_1 = arith.constant 0 : i32
    %c0_i32_2 = arith.constant 0 : i32
    return %arg0, %c0_i32, %c0_i32_0, %c0_i32_1 : i32, i32, i32, i32
  }
  func.func @transform_1(%arg0: i32, %arg1: i32) -> (i32, i32, i32) {
    %c0_i32 = arith.constant 0 : i32
    %c0_i32_0 = arith.constant 0 : i32
    %c0_i32_1 = arith.constant 0 : i32
    %c0_i32_2 = arith.constant 0 : i32
    return %c0_i32, %c0_i32_0, %c0_i32_1 : i32, i32, i32
  }
  func.func @transform_2(%arg0: i32, %arg1: i32) -> (i32, i32) {
    %c0_i32 = arith.constant 0 : i32
    %c0_i32_0 = arith.constant 0 : i32
    %c0_i32_1 = arith.constant 0 : i32
    return %c0_i32, %c0_i32_0 : i32, i32
  }
  func.func @transform_3(%arg0: i32, %arg1: i32) -> (i32, i32, i32) {
    %c0_i32 = arith.constant 0 : i32
    %c0_i32_0 = arith.constant 0 : i32
    %c0_i32_1 = arith.constant 0 : i32
    %c0_i32_2 = arith.constant 0 : i32
    return %c0_i32, %c0_i32_0, %c0_i32_1 : i32, i32, i32
  }
  func.func @transform_4(%arg0: i32, %arg1: i32) -> (i32, i32) {
    %c0_i32 = arith.constant 0 : i32
    %c0_i32_0 = arith.constant 0 : i32
    %c0_i32_1 = arith.constant 0 : i32
    return %c0_i32, %c0_i32_0 : i32, i32
  }
  func.func @transform_5(%arg0: i32, %arg1: i32) -> (i32, i32, i32, i32) {
    %c0_i32 = arith.constant 0 : i32
    %c0_i32_0 = arith.constant 0 : i32
    %c0_i32_1 = arith.constant 0 : i32
    return %arg0, %arg1, %c0_i32, %c0_i32_0 : i32, i32, i32, i32
  }
}

module attributes {stable_mosaic.version = 11 : i64} {
  func.func @_conv_pair_kernel(%arg0: i32, %arg1: i32, %arg2: memref<1x20x16x3xbf16, #tpu.memory_space<vmem>>, %arg3: memref<3x9x64xbf16, #tpu.memory_space<vmem>>, %arg4: memref<1x64xf32, #tpu.memory_space<vmem>>, %arg5: memref<3x192x64xbf16, #tpu.memory_space<vmem>>, %arg6: memref<1x64xf32, #tpu.memory_space<vmem>>, %arg7: memref<1x8x8x64xbf16, #tpu.memory_space<vmem>>) attributes {dimension_semantics = [#tpu.dimension_semantics<parallel>, #tpu.dimension_semantics<parallel>], iteration_bounds = array<i64: 2, 1>, scalar_prefetch = 0 : i64, scratch_operands = 0 : i64, tpu.core_type = #tpu.core_type<tc>, window_params = [{transform_indices = @transform_0, window_bounds = array<i64: 1, 20, 16, 3>}, {pipeline_mode = #tpu.pipeline_mode<synchronous>, transform_indices = @transform_1, window_bounds = array<i64: 3, 9, 64>}, {pipeline_mode = #tpu.pipeline_mode<synchronous>, transform_indices = @transform_2, window_bounds = array<i64: 1, 64>}, {pipeline_mode = #tpu.pipeline_mode<synchronous>, transform_indices = @transform_3, window_bounds = array<i64: 3, 192, 64>}, {pipeline_mode = #tpu.pipeline_mode<synchronous>, transform_indices = @transform_4, window_bounds = array<i64: 1, 64>}, {transform_indices = @transform_5, window_bounds = array<i64: 1, 8, 8, 64>}]} {
    %c16_i32 = arith.constant 16 : i32
    %0 = arith.muli %arg1, %c16_i32 : i32
    %c0 = arith.constant 0 : index
    %1 = arith.index_cast %0 : i32 to index
    %c0_0 = arith.constant 0 : index
    %c0_1 = arith.constant 0 : index
    %2 = vector.load %arg2[%c0, %1, %c0_0, %c0_1] : memref<1x20x16x3xbf16, #tpu.memory_space<vmem>>, vector<1x20x16x3xbf16>
    %3 = vector.shape_cast %2 : vector<1x20x16x3xbf16> to vector<20x16x3xbf16>
    %c0_2 = arith.constant 0 : index
    %c0_3 = arith.constant 0 : index
    %c0_4 = arith.constant 0 : index
    %4 = vector.load %arg3[%c0_2, %c0_3, %c0_4] : memref<3x9x64xbf16, #tpu.memory_space<vmem>>, vector<3x9x64xbf16>
    %c0_5 = arith.constant 0 : index
    %c0_6 = arith.constant 0 : index
    %5 = vector.load %arg4[%c0_5, %c0_6] : memref<1x64xf32, #tpu.memory_space<vmem>>, vector<1x64xf32>
    %cst = arith.constant 0.000000e+00 : bf16
    %6 = vector.broadcast %cst : bf16 to vector<20x1x3xbf16>
    %7 = vector.extract_strided_slice %3 {offsets = [0, 0, 0], sizes = [20, 15, 3], strides = [1, 1, 1]} : vector<20x16x3xbf16> to vector<20x15x3xbf16>
    %8 = tpu.concatenate %6, %7 in 1 : vector<20x1x3xbf16>, vector<20x15x3xbf16> -> vector<20x16x3xbf16>
    %9 = vector.extract_strided_slice %3 {offsets = [0, 1, 0], sizes = [20, 15, 3], strides = [1, 1, 1]} : vector<20x16x3xbf16> to vector<20x15x3xbf16>
    %10 = tpu.concatenate %9, %6 in 1 : vector<20x15x3xbf16>, vector<20x1x3xbf16> -> vector<20x16x3xbf16>
    %11 = tpu.concatenate %8, %3, %10 in 2 : vector<20x16x3xbf16>, vector<20x16x3xbf16>, vector<20x16x3xbf16> -> vector<20x16x9xbf16>
    %12 = vector.extract_strided_slice %11 {offsets = [0, 0, 0], sizes = [18, 16, 9], strides = [1, 1, 1]} : vector<20x16x9xbf16> to vector<18x16x9xbf16>
    %13 = vector.extract_strided_slice %11 {offsets = [1, 0, 0], sizes = [18, 16, 9], strides = [1, 1, 1]} : vector<20x16x9xbf16> to vector<18x16x9xbf16>
    %14 = vector.extract_strided_slice %11 {offsets = [2, 0, 0], sizes = [18, 16, 9], strides = [1, 1, 1]} : vector<20x16x9xbf16> to vector<18x16x9xbf16>
    %15 = tpu.concatenate %12, %13, %14 in 2 : vector<18x16x9xbf16>, vector<18x16x9xbf16>, vector<18x16x9xbf16> -> vector<18x16x27xbf16>
    %16 = vector.shape_cast %15 : vector<18x16x27xbf16> to vector<288x27xbf16>
    %17 = vector.shape_cast %4 : vector<3x9x64xbf16> to vector<27x64xbf16>
    %cst_7 = arith.constant dense<0.000000e+00> : vector<288x64xf32>
    %18 = tpu.matmul %16, %17, %cst_7 {dimension_numbers = #tpu.dot_dimension_numbers<[1], [0], [0], [1], [0, 0, 1, 1], [], []>} : vector<288x27xbf16>, vector<27x64xbf16>, vector<288x64xf32> -> vector<288x64xf32>
    %19 = vector.broadcast %5 : vector<1x64xf32> to vector<288x64xf32>
    %20 = arith.addf %18, %19 : vector<288x64xf32>
    %cst_8 = arith.constant 0.000000e+00 : f32
    %21 = vector.broadcast %cst_8 : f32 to vector<288x64xf32>
    %22 = arith.maximumf %20, %21 : vector<288x64xf32>
    %23 = vector.shape_cast %22 : vector<288x64xf32> to vector<18x16x64xf32>
    %24 = tpu.iota {dimensions = array<i32: 0>} : vector<18x1x1xi32>
    %c16_i32_9 = arith.constant 16 : i32
    %25 = arith.muli %arg1, %c16_i32_9 : i32
    %c1_i32 = arith.constant 1 : i32
    %26 = arith.subi %25, %c1_i32 : i32
    %27 = vector.broadcast %26 : i32 to vector<18x1x1xi32>
    %28 = arith.addi %24, %27 : vector<18x1x1xi32>
    %c0_i32 = arith.constant 0 : i32
    %29 = vector.broadcast %c0_i32 : i32 to vector<18x1x1xi32>
    %30 = arith.cmpi sge, %28, %29 : vector<18x1x1xi32>
    %c16_i32_10 = arith.constant 16 : i32
    %31 = vector.broadcast %c16_i32_10 : i32 to vector<18x1x1xi32>
    %32 = arith.cmpi slt, %28, %31 : vector<18x1x1xi32>
    %33 = arith.andi %30, %32 : vector<18x1x1xi1>
    %cst_11 = arith.constant 0.000000e+00 : f32
    %34 = vector.shape_cast %33 : vector<18x1x1xi1> to vector<18x1x1xi1>
    %35 = vector.broadcast %34 : vector<18x1x1xi1> to vector<18x16x64xi1>
    %36 = vector.broadcast %cst_11 : f32 to vector<18x16x64xf32>
    %37 = arith.select %35, %23, %36 : vector<18x16x64xi1>, vector<18x16x64xf32>
    %38 = arith.truncf %37 : vector<18x16x64xf32> to vector<18x16x64xbf16>
    %c0_12 = arith.constant 0 : index
    %c0_13 = arith.constant 0 : index
    %c0_14 = arith.constant 0 : index
    %39 = vector.load %arg5[%c0_12, %c0_13, %c0_14] : memref<3x192x64xbf16, #tpu.memory_space<vmem>>, vector<3x192x64xbf16>
    %c0_15 = arith.constant 0 : index
    %c0_16 = arith.constant 0 : index
    %40 = vector.load %arg6[%c0_15, %c0_16] : memref<1x64xf32, #tpu.memory_space<vmem>>, vector<1x64xf32>
    %cst_17 = arith.constant 0.000000e+00 : bf16
    %41 = vector.broadcast %cst_17 : bf16 to vector<18x1x64xbf16>
    %42 = vector.extract_strided_slice %38 {offsets = [0, 0, 0], sizes = [18, 15, 64], strides = [1, 1, 1]} : vector<18x16x64xbf16> to vector<18x15x64xbf16>
    %43 = tpu.concatenate %41, %42 in 1 : vector<18x1x64xbf16>, vector<18x15x64xbf16> -> vector<18x16x64xbf16>
    %44 = vector.extract_strided_slice %38 {offsets = [0, 1, 0], sizes = [18, 15, 64], strides = [1, 1, 1]} : vector<18x16x64xbf16> to vector<18x15x64xbf16>
    %45 = tpu.concatenate %44, %41 in 1 : vector<18x15x64xbf16>, vector<18x1x64xbf16> -> vector<18x16x64xbf16>
    %46 = tpu.concatenate %43, %38, %45 in 2 : vector<18x16x64xbf16>, vector<18x16x64xbf16>, vector<18x16x64xbf16> -> vector<18x16x192xbf16>
    %47 = vector.extract_strided_slice %46 {offsets = [0, 0, 0], sizes = [16, 16, 192], strides = [1, 1, 1]} : vector<18x16x192xbf16> to vector<16x16x192xbf16>
    %48 = vector.shape_cast %47 : vector<16x16x192xbf16> to vector<256x192xbf16>
    %49 = vector.extract_strided_slice %39 {offsets = [0, 0, 0], sizes = [1, 192, 64], strides = [1, 1, 1]} : vector<3x192x64xbf16> to vector<1x192x64xbf16>
    %50 = vector.shape_cast %49 : vector<1x192x64xbf16> to vector<192x64xbf16>
    %cst_18 = arith.constant dense<0.000000e+00> : vector<256x64xf32>
    %51 = tpu.matmul %48, %50, %cst_18 {dimension_numbers = #tpu.dot_dimension_numbers<[1], [0], [0], [1], [0, 0, 1, 1], [], []>} : vector<256x192xbf16>, vector<192x64xbf16>, vector<256x64xf32> -> vector<256x64xf32>
    %52 = vector.extract_strided_slice %46 {offsets = [1, 0, 0], sizes = [16, 16, 192], strides = [1, 1, 1]} : vector<18x16x192xbf16> to vector<16x16x192xbf16>
    %53 = vector.shape_cast %52 : vector<16x16x192xbf16> to vector<256x192xbf16>
    %54 = vector.extract_strided_slice %39 {offsets = [1, 0, 0], sizes = [1, 192, 64], strides = [1, 1, 1]} : vector<3x192x64xbf16> to vector<1x192x64xbf16>
    %55 = vector.shape_cast %54 : vector<1x192x64xbf16> to vector<192x64xbf16>
    %cst_19 = arith.constant dense<0.000000e+00> : vector<256x64xf32>
    %56 = tpu.matmul %53, %55, %cst_19 {dimension_numbers = #tpu.dot_dimension_numbers<[1], [0], [0], [1], [0, 0, 1, 1], [], []>} : vector<256x192xbf16>, vector<192x64xbf16>, vector<256x64xf32> -> vector<256x64xf32>
    %57 = arith.addf %51, %56 : vector<256x64xf32>
    %58 = vector.extract_strided_slice %46 {offsets = [2, 0, 0], sizes = [16, 16, 192], strides = [1, 1, 1]} : vector<18x16x192xbf16> to vector<16x16x192xbf16>
    %59 = vector.shape_cast %58 : vector<16x16x192xbf16> to vector<256x192xbf16>
    %60 = vector.extract_strided_slice %39 {offsets = [2, 0, 0], sizes = [1, 192, 64], strides = [1, 1, 1]} : vector<3x192x64xbf16> to vector<1x192x64xbf16>
    %61 = vector.shape_cast %60 : vector<1x192x64xbf16> to vector<192x64xbf16>
    %cst_20 = arith.constant dense<0.000000e+00> : vector<256x64xf32>
    %62 = tpu.matmul %59, %61, %cst_20 {dimension_numbers = #tpu.dot_dimension_numbers<[1], [0], [0], [1], [0, 0, 1, 1], [], []>} : vector<256x192xbf16>, vector<192x64xbf16>, vector<256x64xf32> -> vector<256x64xf32>
    %63 = arith.addf %57, %62 : vector<256x64xf32>
    %64 = vector.broadcast %40 : vector<1x64xf32> to vector<256x64xf32>
    %65 = arith.addf %63, %64 : vector<256x64xf32>
    %cst_21 = arith.constant 0.000000e+00 : f32
    %66 = vector.broadcast %cst_21 : f32 to vector<256x64xf32>
    %67 = arith.maximumf %65, %66 : vector<256x64xf32>
    %68 = vector.shape_cast %67 : vector<256x64xf32> to vector<16x16x64xf32>
    %69 = vector.shape_cast %68 : vector<16x16x64xf32> to vector<8x2x16x64xf32>
    %cst_22 = arith.constant dense<0xFF800000> : vector<8x16x64xf32>
    %70 = vector.multi_reduction <maximumf>, %69, %cst_22 [1] : vector<8x2x16x64xf32> to vector<8x16x64xf32>
    %71 = vector.shape_cast %70 : vector<8x16x64xf32> to vector<8x8x2x64xf32>
    %cst_23 = arith.constant dense<0xFF800000> : vector<8x8x64xf32>
    %72 = vector.multi_reduction <maximumf>, %71, %cst_23 [2] : vector<8x8x2x64xf32> to vector<8x8x64xf32>
    %73 = arith.truncf %72 : vector<8x8x64xf32> to vector<8x8x64xbf16>
    %c0_24 = arith.constant 0 : index
    %c0_25 = arith.constant 0 : index
    %c0_26 = arith.constant 0 : index
    %c0_27 = arith.constant 0 : index
    %74 = vector.load %arg7[%c0_24, %c0_25, %c0_26, %c0_27] : memref<1x8x8x64xbf16, #tpu.memory_space<vmem>>, vector<1x8x8x64xbf16>
    %75 = vector.shape_cast %74 : vector<1x8x8x64xbf16> to vector<8x8x64xbf16>
    %76 = vector.shape_cast %73 : vector<8x8x64xbf16> to vector<1x8x8x64xbf16>
    tpu.vector_store %arg7[%c0_24, %c0_25, %c0_26, %c0_27], %76 {strides = array<i32>} : memref<1x8x8x64xbf16, #tpu.memory_space<vmem>>, vector<1x8x8x64xbf16>,
    return
  }
  func.func @transform_0(%arg0: i32, %arg1: i32) -> (i32, i32, i32, i32) {
    %c0_i32 = arith.constant 0 : i32
    %c0_i32_0 = arith.constant 0 : i32
    %c0_i32_1 = arith.constant 0 : i32
    %c0_i32_2 = arith.constant 0 : i32
    return %arg0, %c0_i32, %c0_i32_0, %c0_i32_1 : i32, i32, i32, i32
  }
  func.func @transform_1(%arg0: i32, %arg1: i32) -> (i32, i32, i32) {
    %c0_i32 = arith.constant 0 : i32
    %c0_i32_0 = arith.constant 0 : i32
    %c0_i32_1 = arith.constant 0 : i32
    %c0_i32_2 = arith.constant 0 : i32
    return %c0_i32, %c0_i32_0, %c0_i32_1 : i32, i32, i32
  }
  func.func @transform_2(%arg0: i32, %arg1: i32) -> (i32, i32) {
    %c0_i32 = arith.constant 0 : i32
    %c0_i32_0 = arith.constant 0 : i32
    %c0_i32_1 = arith.constant 0 : i32
    return %c0_i32, %c0_i32_0 : i32, i32
  }
  func.func @transform_3(%arg0: i32, %arg1: i32) -> (i32, i32, i32) {
    %c0_i32 = arith.constant 0 : i32
    %c0_i32_0 = arith.constant 0 : i32
    %c0_i32_1 = arith.constant 0 : i32
    %c0_i32_2 = arith.constant 0 : i32
    return %c0_i32, %c0_i32_0, %c0_i32_1 : i32, i32, i32
  }
  func.func @transform_4(%arg0: i32, %arg1: i32) -> (i32, i32) {
    %c0_i32 = arith.constant 0 : i32
    %c0_i32_0 = arith.constant 0 : i32
    %c0_i32_1 = arith.constant 0 : i32
    return %c0_i32, %c0_i32_0 : i32, i32
  }
  func.func @transform_5(%arg0: i32, %arg1: i32) -> (i32, i32, i32, i32) {
    %c0_i32 = arith.constant 0 : i32
    %c0_i32_0 = arith.constant 0 : i32
    %c0_i32_1 = arith.constant 0 : i32
    return %arg0, %arg1, %c0_i32, %c0_i32_0 : i32, i32, i32, i32
  }
}

module attributes {stable_mosaic.version = 11 : i64} {
  func.func @_conv_kernel(%arg0: i32, %arg1: i32, %arg2: memref<1x4x4x128xbf16, #tpu.memory_space<vmem>>, %arg3: memref<1x1x4x128xbf16, #tpu.memory_space<vmem>>, %arg4: memref<1x1x4x128xbf16, #tpu.memory_space<vmem>>, %arg5: memref<3x384x256xbf16, #tpu.memory_space<vmem>>, %arg6: memref<1x256xf32, #tpu.memory_space<vmem>>, %arg7: memref<1x4x4x256xbf16, #tpu.memory_space<vmem>>) attributes {dimension_semantics = [#tpu.dimension_semantics<parallel>, #tpu.dimension_semantics<parallel>], iteration_bounds = array<i64: 2, 1>, scalar_prefetch = 0 : i64, scratch_operands = 0 : i64, tpu.core_type = #tpu.core_type<tc>, window_params = [{transform_indices = @transform_0, window_bounds = array<i64: 1, 4, 4, 128>}, {transform_indices = @transform_1, window_bounds = array<i64: 1, 1, 4, 128>}, {transform_indices = @transform_2, window_bounds = array<i64: 1, 1, 4, 128>}, {pipeline_mode = #tpu.pipeline_mode<synchronous>, transform_indices = @transform_3, window_bounds = array<i64: 3, 384, 256>}, {pipeline_mode = #tpu.pipeline_mode<synchronous>, transform_indices = @transform_4, window_bounds = array<i64: 1, 256>}, {transform_indices = @transform_5, window_bounds = array<i64: 1, 4, 4, 256>}]} {
    %c0_i32 = arith.constant 0 : i32
    %0 = arith.cmpi sgt, %arg1, %c0_i32 : i32
    %c0 = arith.constant 0 : index
    %c0_0 = arith.constant 0 : index
    %c0_1 = arith.constant 0 : index
    %c0_2 = arith.constant 0 : index
    %1 = vector.load %arg3[%c0, %c0_0, %c0_1, %c0_2] : memref<1x1x4x128xbf16, #tpu.memory_space<vmem>>, vector<1x1x4x128xbf16>
    %2 = vector.shape_cast %1 : vector<1x1x4x128xbf16> to vector<1x4x128xbf16>
    %cst = arith.constant 0.000000e+00 : bf16
    %3 = vector.broadcast %cst : bf16 to vector<1x4x128xbf16>
    %4 = arith.select %0, %2, %3 : vector<1x4x128xbf16>
    %c0_i32_3 = arith.constant 0 : i32
    %5 = arith.cmpi slt, %arg1, %c0_i32_3 : i32
    %c0_4 = arith.constant 0 : index
    %c0_5 = arith.constant 0 : index
    %c0_6 = arith.constant 0 : index
    %c0_7 = arith.constant 0 : index
    %6 = vector.load %arg4[%c0_4, %c0_5, %c0_6, %c0_7] : memref<1x1x4x128xbf16, #tpu.memory_space<vmem>>, vector<1x1x4x128xbf16>
    %7 = vector.shape_cast %6 : vector<1x1x4x128xbf16> to vector<1x4x128xbf16>
    %cst_8 = arith.constant 0.000000e+00 : bf16
    %8 = vector.broadcast %cst_8 : bf16 to vector<1x4x128xbf16>
    %9 = arith.select %5, %7, %8 : vector<1x4x128xbf16>
    %c0_9 = arith.constant 0 : index
    %c0_10 = arith.constant 0 : index
    %c0_11 = arith.constant 0 : index
    %c0_12 = arith.constant 0 : index
    %10 = vector.load %arg2[%c0_9, %c0_10, %c0_11, %c0_12] : memref<1x4x4x128xbf16, #tpu.memory_space<vmem>>, vector<1x4x4x128xbf16>
    %11 = vector.shape_cast %10 : vector<1x4x4x128xbf16> to vector<4x4x128xbf16>
    %12 = tpu.concatenate %4, %11, %9 in 0 : vector<1x4x128xbf16>, vector<4x4x128xbf16>, vector<1x4x128xbf16> -> vector<6x4x128xbf16>
    %c0_13 = arith.constant 0 : index
    %c0_14 = arith.constant 0 : index
    %c0_15 = arith.constant 0 : index
    %13 = vector.load %arg5[%c0_13, %c0_14, %c0_15] : memref<3x384x256xbf16, #tpu.memory_space<vmem>>, vector<3x384x256xbf16>
    %c0_16 = arith.constant 0 : index
    %c0_17 = arith.constant 0 : index
    %14 = vector.load %arg6[%c0_16, %c0_17] : memref<1x256xf32, #tpu.memory_space<vmem>>, vector<1x256xf32>
    %cst_18 = arith.constant 0.000000e+00 : bf16
    %15 = vector.broadcast %cst_18 : bf16 to vector<6x1x128xbf16>
    %16 = vector.extract_strided_slice %12 {offsets = [0, 0, 0], sizes = [6, 3, 128], strides = [1, 1, 1]} : vector<6x4x128xbf16> to vector<6x3x128xbf16>
    %17 = tpu.concatenate %15, %16 in 1 : vector<6x1x128xbf16>, vector<6x3x128xbf16> -> vector<6x4x128xbf16>
    %18 = vector.extract_strided_slice %12 {offsets = [0, 1, 0], sizes = [6, 3, 128], strides = [1, 1, 1]} : vector<6x4x128xbf16> to vector<6x3x128xbf16>
    %19 = tpu.concatenate %18, %15 in 1 : vector<6x3x128xbf16>, vector<6x1x128xbf16> -> vector<6x4x128xbf16>
    %20 = tpu.concatenate %17, %12, %19 in 2 : vector<6x4x128xbf16>, vector<6x4x128xbf16>, vector<6x4x128xbf16> -> vector<6x4x384xbf16>
    %21 = vector.extract_strided_slice %20 {offsets = [0, 0, 0], sizes = [4, 4, 384], strides = [1, 1, 1]} : vector<6x4x384xbf16> to vector<4x4x384xbf16>
    %22 = vector.shape_cast %21 : vector<4x4x384xbf16> to vector<16x384xbf16>
    %23 = vector.extract_strided_slice %13 {offsets = [0, 0, 0], sizes = [1, 384, 256], strides = [1, 1, 1]} : vector<3x384x256xbf16> to vector<1x384x256xbf16>
    %24 = vector.shape_cast %23 : vector<1x384x256xbf16> to vector<384x256xbf16>
    %cst_19 = arith.constant dense<0.000000e+00> : vector<16x256xf32>
    %25 = tpu.matmul %22, %24, %cst_19 {dimension_numbers = #tpu.dot_dimension_numbers<[1], [0], [0], [1], [0, 0, 1, 1], [], []>} : vector<16x384xbf16>, vector<384x256xbf16>, vector<16x256xf32> -> vector<16x256xf32>
    %26 = vector.extract_strided_slice %20 {offsets = [1, 0, 0], sizes = [4, 4, 384], strides = [1, 1, 1]} : vector<6x4x384xbf16> to vector<4x4x384xbf16>
    %27 = vector.shape_cast %26 : vector<4x4x384xbf16> to vector<16x384xbf16>
    %28 = vector.extract_strided_slice %13 {offsets = [1, 0, 0], sizes = [1, 384, 256], strides = [1, 1, 1]} : vector<3x384x256xbf16> to vector<1x384x256xbf16>
    %29 = vector.shape_cast %28 : vector<1x384x256xbf16> to vector<384x256xbf16>
    %cst_20 = arith.constant dense<0.000000e+00> : vector<16x256xf32>
    %30 = tpu.matmul %27, %29, %cst_20 {dimension_numbers = #tpu.dot_dimension_numbers<[1], [0], [0], [1], [0, 0, 1, 1], [], []>} : vector<16x384xbf16>, vector<384x256xbf16>, vector<16x256xf32> -> vector<16x256xf32>
    %31 = arith.addf %25, %30 : vector<16x256xf32>
    %32 = vector.extract_strided_slice %20 {offsets = [2, 0, 0], sizes = [4, 4, 384], strides = [1, 1, 1]} : vector<6x4x384xbf16> to vector<4x4x384xbf16>
    %33 = vector.shape_cast %32 : vector<4x4x384xbf16> to vector<16x384xbf16>
    %34 = vector.extract_strided_slice %13 {offsets = [2, 0, 0], sizes = [1, 384, 256], strides = [1, 1, 1]} : vector<3x384x256xbf16> to vector<1x384x256xbf16>
    %35 = vector.shape_cast %34 : vector<1x384x256xbf16> to vector<384x256xbf16>
    %cst_21 = arith.constant dense<0.000000e+00> : vector<16x256xf32>
    %36 = tpu.matmul %33, %35, %cst_21 {dimension_numbers = #tpu.dot_dimension_numbers<[1], [0], [0], [1], [0, 0, 1, 1], [], []>} : vector<16x384xbf16>, vector<384x256xbf16>, vector<16x256xf32> -> vector<16x256xf32>
    %37 = arith.addf %31, %36 : vector<16x256xf32>
    %38 = vector.broadcast %14 : vector<1x256xf32> to vector<16x256xf32>
    %39 = arith.addf %37, %38 : vector<16x256xf32>
    %cst_22 = arith.constant 0.000000e+00 : f32
    %40 = vector.broadcast %cst_22 : f32 to vector<16x256xf32>
    %41 = arith.maximumf %39, %40 : vector<16x256xf32>
    %42 = vector.shape_cast %41 : vector<16x256xf32> to vector<4x4x256xf32>
    %43 = arith.truncf %42 : vector<4x4x256xf32> to vector<4x4x256xbf16>
    %c0_23 = arith.constant 0 : index
    %c0_24 = arith.constant 0 : index
    %c0_25 = arith.constant 0 : index
    %c0_26 = arith.constant 0 : index
    %44 = vector.load %arg7[%c0_23, %c0_24, %c0_25, %c0_26] : memref<1x4x4x256xbf16, #tpu.memory_space<vmem>>, vector<1x4x4x256xbf16>
    %45 = vector.shape_cast %44 : vector<1x4x4x256xbf16> to vector<4x4x256xbf16>
    %46 = vector.shape_cast %43 : vector<4x4x256xbf16> to vector<1x4x4x256xbf16>
    tpu.vector_store %arg7[%c0_23, %c0_24, %c0_25, %c0_26], %46 {strides = array<i32>} : memref<1x4x4x256xbf16, #tpu.memory_space<vmem>>, vector<1x4x4x256xbf16>,
    return
  }
  func.func @transform_0(%arg0: i32, %arg1: i32) -> (i32, i32, i32, i32) {
    %c0_i32 = arith.constant 0 : i32
    %c0_i32_0 = arith.constant 0 : i32
    %c0_i32_1 = arith.constant 0 : i32
    return %arg0, %arg1, %c0_i32, %c0_i32_0 : i32, i32, i32, i32
  }
  func.func @transform_1(%arg0: i32, %arg1: i32) -> (i32, i32, i32, i32) {
    %c4_i32 = arith.constant 4 : i32
    %0 = arith.muli %arg1, %c4_i32 : i32
    %c1_i32 = arith.constant 1 : i32
    %1 = arith.subi %0, %c1_i32 : i32
    %c0_i32 = arith.constant 0 : i32
    %2 = arith.maxsi %1, %c0_i32 : i32
    %c0_i32_0 = arith.constant 0 : i32
    %c0_i32_1 = arith.constant 0 : i32
    %c0_i32_2 = arith.constant 0 : i32
    return %arg0, %2, %c0_i32_0, %c0_i32_1 : i32, i32, i32, i32
  }
  func.func @transform_2(%arg0: i32, %arg1: i32) -> (i32, i32, i32, i32) {
    %c4_i32 = arith.constant 4 : i32
    %0 = arith.muli %arg1, %c4_i32 : i32
    %c4_i32_0 = arith.constant 4 : i32
    %1 = arith.addi %0, %c4_i32_0 : i32
    %c3_i32 = arith.constant 3 : i32
    %2 = arith.minsi %1, %c3_i32 : i32
    %c0_i32 = arith.constant 0 : i32
    %c0_i32_1 = arith.constant 0 : i32
    %c0_i32_2 = arith.constant 0 : i32
    return %arg0, %2, %c0_i32, %c0_i32_1 : i32, i32, i32, i32
  }
  func.func @transform_3(%arg0: i32, %arg1: i32) -> (i32, i32, i32) {
    %c0_i32 = arith.constant 0 : i32
    %c0_i32_0 = arith.constant 0 : i32
    %c0_i32_1 = arith.constant 0 : i32
    %c0_i32_2 = arith.constant 0 : i32
    return %c0_i32, %c0_i32_0, %c0_i32_1 : i32, i32, i32
  }
  func.func @transform_4(%arg0: i32, %arg1: i32) -> (i32, i32) {
    %c0_i32 = arith.constant 0 : i32
    %c0_i32_0 = arith.constant 0 : i32
    %c0_i32_1 = arith.constant 0 : i32
    return %c0_i32, %c0_i32_0 : i32, i32
  }
  func.func @transform_5(%arg0: i32, %arg1: i32) -> (i32, i32, i32, i32) {
    %c0_i32 = arith.constant 0 : i32
    %c0_i32_0 = arith.constant 0 : i32
    %c0_i32_1 = arith.constant 0 : i32
    return %arg0, %arg1, %c0_i32, %c0_i32_0 : i32, i32, i32, i32
  }
}

module attributes {stable_mosaic.version = 11 : i64} {
  func.func @_conv_kernel(%arg0: i32, %arg1: i32, %arg2: memref<1x4x4x256xbf16, #tpu.memory_space<vmem>>, %arg3: memref<1x1x4x256xbf16, #tpu.memory_space<vmem>>, %arg4: memref<1x1x4x256xbf16, #tpu.memory_space<vmem>>, %arg5: memref<3x768x256xbf16, #tpu.memory_space<vmem>>, %arg6: memref<1x256xf32, #tpu.memory_space<vmem>>, %arg7: memref<1x4x4x256xbf16, #tpu.memory_space<vmem>>) attributes {dimension_semantics = [#tpu.dimension_semantics<parallel>, #tpu.dimension_semantics<parallel>], iteration_bounds = array<i64: 2, 1>, scalar_prefetch = 0 : i64, scratch_operands = 0 : i64, tpu.core_type = #tpu.core_type<tc>, window_params = [{transform_indices = @transform_0, window_bounds = array<i64: 1, 4, 4, 256>}, {transform_indices = @transform_1, window_bounds = array<i64: 1, 1, 4, 256>}, {transform_indices = @transform_2, window_bounds = array<i64: 1, 1, 4, 256>}, {pipeline_mode = #tpu.pipeline_mode<synchronous>, transform_indices = @transform_3, window_bounds = array<i64: 3, 768, 256>}, {pipeline_mode = #tpu.pipeline_mode<synchronous>, transform_indices = @transform_4, window_bounds = array<i64: 1, 256>}, {transform_indices = @transform_5, window_bounds = array<i64: 1, 4, 4, 256>}]} {
    %c0_i32 = arith.constant 0 : i32
    %0 = arith.cmpi sgt, %arg1, %c0_i32 : i32
    %c0 = arith.constant 0 : index
    %c0_0 = arith.constant 0 : index
    %c0_1 = arith.constant 0 : index
    %c0_2 = arith.constant 0 : index
    %1 = vector.load %arg3[%c0, %c0_0, %c0_1, %c0_2] : memref<1x1x4x256xbf16, #tpu.memory_space<vmem>>, vector<1x1x4x256xbf16>
    %2 = vector.shape_cast %1 : vector<1x1x4x256xbf16> to vector<1x4x256xbf16>
    %cst = arith.constant 0.000000e+00 : bf16
    %3 = vector.broadcast %cst : bf16 to vector<1x4x256xbf16>
    %4 = arith.select %0, %2, %3 : vector<1x4x256xbf16>
    %c0_i32_3 = arith.constant 0 : i32
    %5 = arith.cmpi slt, %arg1, %c0_i32_3 : i32
    %c0_4 = arith.constant 0 : index
    %c0_5 = arith.constant 0 : index
    %c0_6 = arith.constant 0 : index
    %c0_7 = arith.constant 0 : index
    %6 = vector.load %arg4[%c0_4, %c0_5, %c0_6, %c0_7] : memref<1x1x4x256xbf16, #tpu.memory_space<vmem>>, vector<1x1x4x256xbf16>
    %7 = vector.shape_cast %6 : vector<1x1x4x256xbf16> to vector<1x4x256xbf16>
    %cst_8 = arith.constant 0.000000e+00 : bf16
    %8 = vector.broadcast %cst_8 : bf16 to vector<1x4x256xbf16>
    %9 = arith.select %5, %7, %8 : vector<1x4x256xbf16>
    %c0_9 = arith.constant 0 : index
    %c0_10 = arith.constant 0 : index
    %c0_11 = arith.constant 0 : index
    %c0_12 = arith.constant 0 : index
    %10 = vector.load %arg2[%c0_9, %c0_10, %c0_11, %c0_12] : memref<1x4x4x256xbf16, #tpu.memory_space<vmem>>, vector<1x4x4x256xbf16>
    %11 = vector.shape_cast %10 : vector<1x4x4x256xbf16> to vector<4x4x256xbf16>
    %12 = tpu.concatenate %4, %11, %9 in 0 : vector<1x4x256xbf16>, vector<4x4x256xbf16>, vector<1x4x256xbf16> -> vector<6x4x256xbf16>
    %c0_13 = arith.constant 0 : index
    %c0_14 = arith.constant 0 : index
    %c0_15 = arith.constant 0 : index
    %13 = vector.load %arg5[%c0_13, %c0_14, %c0_15] : memref<3x768x256xbf16, #tpu.memory_space<vmem>>, vector<3x768x256xbf16>
    %c0_16 = arith.constant 0 : index
    %c0_17 = arith.constant 0 : index
    %14 = vector.load %arg6[%c0_16, %c0_17] : memref<1x256xf32, #tpu.memory_space<vmem>>, vector<1x256xf32>
    %cst_18 = arith.constant 0.000000e+00 : bf16
    %15 = vector.broadcast %cst_18 : bf16 to vector<6x1x256xbf16>
    %16 = vector.extract_strided_slice %12 {offsets = [0, 0, 0], sizes = [6, 3, 256], strides = [1, 1, 1]} : vector<6x4x256xbf16> to vector<6x3x256xbf16>
    %17 = tpu.concatenate %15, %16 in 1 : vector<6x1x256xbf16>, vector<6x3x256xbf16> -> vector<6x4x256xbf16>
    %18 = vector.extract_strided_slice %12 {offsets = [0, 1, 0], sizes = [6, 3, 256], strides = [1, 1, 1]} : vector<6x4x256xbf16> to vector<6x3x256xbf16>
    %19 = tpu.concatenate %18, %15 in 1 : vector<6x3x256xbf16>, vector<6x1x256xbf16> -> vector<6x4x256xbf16>
    %20 = tpu.concatenate %17, %12, %19 in 2 : vector<6x4x256xbf16>, vector<6x4x256xbf16>, vector<6x4x256xbf16> -> vector<6x4x768xbf16>
    %21 = vector.extract_strided_slice %20 {offsets = [0, 0, 0], sizes = [4, 4, 768], strides = [1, 1, 1]} : vector<6x4x768xbf16> to vector<4x4x768xbf16>
    %22 = vector.shape_cast %21 : vector<4x4x768xbf16> to vector<16x768xbf16>
    %23 = vector.extract_strided_slice %13 {offsets = [0, 0, 0], sizes = [1, 768, 256], strides = [1, 1, 1]} : vector<3x768x256xbf16> to vector<1x768x256xbf16>
    %24 = vector.shape_cast %23 : vector<1x768x256xbf16> to vector<768x256xbf16>
    %cst_19 = arith.constant dense<0.000000e+00> : vector<16x256xf32>
    %25 = tpu.matmul %22, %24, %cst_19 {dimension_numbers = #tpu.dot_dimension_numbers<[1], [0], [0], [1], [0, 0, 1, 1], [], []>} : vector<16x768xbf16>, vector<768x256xbf16>, vector<16x256xf32> -> vector<16x256xf32>
    %26 = vector.extract_strided_slice %20 {offsets = [1, 0, 0], sizes = [4, 4, 768], strides = [1, 1, 1]} : vector<6x4x768xbf16> to vector<4x4x768xbf16>
    %27 = vector.shape_cast %26 : vector<4x4x768xbf16> to vector<16x768xbf16>
    %28 = vector.extract_strided_slice %13 {offsets = [1, 0, 0], sizes = [1, 768, 256], strides = [1, 1, 1]} : vector<3x768x256xbf16> to vector<1x768x256xbf16>
    %29 = vector.shape_cast %28 : vector<1x768x256xbf16> to vector<768x256xbf16>
    %cst_20 = arith.constant dense<0.000000e+00> : vector<16x256xf32>
    %30 = tpu.matmul %27, %29, %cst_20 {dimension_numbers = #tpu.dot_dimension_numbers<[1], [0], [0], [1], [0, 0, 1, 1], [], []>} : vector<16x768xbf16>, vector<768x256xbf16>, vector<16x256xf32> -> vector<16x256xf32>
    %31 = arith.addf %25, %30 : vector<16x256xf32>
    %32 = vector.extract_strided_slice %20 {offsets = [2, 0, 0], sizes = [4, 4, 768], strides = [1, 1, 1]} : vector<6x4x768xbf16> to vector<4x4x768xbf16>
    %33 = vector.shape_cast %32 : vector<4x4x768xbf16> to vector<16x768xbf16>
    %34 = vector.extract_strided_slice %13 {offsets = [2, 0, 0], sizes = [1, 768, 256], strides = [1, 1, 1]} : vector<3x768x256xbf16> to vector<1x768x256xbf16>
    %35 = vector.shape_cast %34 : vector<1x768x256xbf16> to vector<768x256xbf16>
    %cst_21 = arith.constant dense<0.000000e+00> : vector<16x256xf32>
    %36 = tpu.matmul %33, %35, %cst_21 {dimension_numbers = #tpu.dot_dimension_numbers<[1], [0], [0], [1], [0, 0, 1, 1], [], []>} : vector<16x768xbf16>, vector<768x256xbf16>, vector<16x256xf32> -> vector<16x256xf32>
    %37 = arith.addf %31, %36 : vector<16x256xf32>
    %38 = vector.broadcast %14 : vector<1x256xf32> to vector<16x256xf32>
    %39 = arith.addf %37, %38 : vector<16x256xf32>
    %cst_22 = arith.constant 0.000000e+00 : f32
    %40 = vector.broadcast %cst_22 : f32 to vector<16x256xf32>
    %41 = arith.maximumf %39, %40 : vector<16x256xf32>
    %42 = vector.shape_cast %41 : vector<16x256xf32> to vector<4x4x256xf32>
    %43 = arith.truncf %42 : vector<4x4x256xf32> to vector<4x4x256xbf16>
    %c0_23 = arith.constant 0 : index
    %c0_24 = arith.constant 0 : index
    %c0_25 = arith.constant 0 : index
    %c0_26 = arith.constant 0 : index
    %44 = vector.load %arg7[%c0_23, %c0_24, %c0_25, %c0_26] : memref<1x4x4x256xbf16, #tpu.memory_space<vmem>>, vector<1x4x4x256xbf16>
    %45 = vector.shape_cast %44 : vector<1x4x4x256xbf16> to vector<4x4x256xbf16>
    %46 = vector.shape_cast %43 : vector<4x4x256xbf16> to vector<1x4x4x256xbf16>
    tpu.vector_store %arg7[%c0_23, %c0_24, %c0_25, %c0_26], %46 {strides = array<i32>} : memref<1x4x4x256xbf16, #tpu.memory_space<vmem>>, vector<1x4x4x256xbf16>,
    return
  }
  func.func @transform_0(%arg0: i32, %arg1: i32) -> (i32, i32, i32, i32) {
    %c0_i32 = arith.constant 0 : i32
    %c0_i32_0 = arith.constant 0 : i32
    %c0_i32_1 = arith.constant 0 : i32
    return %arg0, %arg1, %c0_i32, %c0_i32_0 : i32, i32, i32, i32
  }
  func.func @transform_1(%arg0: i32, %arg1: i32) -> (i32, i32, i32, i32) {
    %c4_i32 = arith.constant 4 : i32
    %0 = arith.muli %arg1, %c4_i32 : i32
    %c1_i32 = arith.constant 1 : i32
    %1 = arith.subi %0, %c1_i32 : i32
    %c0_i32 = arith.constant 0 : i32
    %2 = arith.maxsi %1, %c0_i32 : i32
    %c0_i32_0 = arith.constant 0 : i32
    %c0_i32_1 = arith.constant 0 : i32
    %c0_i32_2 = arith.constant 0 : i32
    return %arg0, %2, %c0_i32_0, %c0_i32_1 : i32, i32, i32, i32
  }
  func.func @transform_2(%arg0: i32, %arg1: i32) -> (i32, i32, i32, i32) {
    %c4_i32 = arith.constant 4 : i32
    %0 = arith.muli %arg1, %c4_i32 : i32
    %c4_i32_0 = arith.constant 4 : i32
    %1 = arith.addi %0, %c4_i32_0 : i32
    %c3_i32 = arith.constant 3 : i32
    %2 = arith.minsi %1, %c3_i32 : i32
    %c0_i32 = arith.constant 0 : i32
    %c0_i32_1 = arith.constant 0 : i32
    %c0_i32_2 = arith.constant 0 : i32
    return %arg0, %2, %c0_i32, %c0_i32_1 : i32, i32, i32, i32
  }
  func.func @transform_3(%arg0: i32, %arg1: i32) -> (i32, i32, i32) {
    %c0_i32 = arith.constant 0 : i32
    %c0_i32_0 = arith.constant 0 : i32
    %c0_i32_1 = arith.constant 0 : i32
    %c0_i32_2 = arith.constant 0 : i32
    return %c0_i32, %c0_i32_0, %c0_i32_1 : i32, i32, i32
  }
  func.func @transform_4(%arg0: i32, %arg1: i32) -> (i32, i32) {
    %c0_i32 = arith.constant 0 : i32
    %c0_i32_0 = arith.constant 0 : i32
    %c0_i32_1 = arith.constant 0 : i32
    return %c0_i32, %c0_i32_0 : i32, i32
  }
  func.func @transform_5(%arg0: i32, %arg1: i32) -> (i32, i32, i32, i32) {
    %c0_i32 = arith.constant 0 : i32
    %c0_i32_0 = arith.constant 0 : i32
    %c0_i32_1 = arith.constant 0 : i32
    return %arg0, %arg1, %c0_i32, %c0_i32_0 : i32, i32, i32, i32
  }
}

</mosaic_0001>

<llo_original>
// kernel: feature_extractor.8
$region0: #{feature_extractor.8}
  #allocation0 [shape = 'u32[]', space=smem, size = 0x4, offset = 0x4, fixed_abs, tag = 'smem constant byte address 0x4 - core index']
  #allocation1 [shape = 'u32[72,128]{1,0:T(1,128)}', space=vmem, size = 0x9000, scoped, tag = 'internal scratch']
  %s0 = inlined_call_operand.vmem [shape: bf16[2,4,4,128], index: 0, kind: input, shape index: {}, may-alias: {0,1,2}]
  %s1 = inlined_call_operand.vmem [shape: bf16[2,4,4,128], index: 1, kind: input, shape index: {}, may-alias: {0,1,2}]
  %s2 = inlined_call_operand.vmem [shape: bf16[2,4,4,128], index: 2, kind: input, shape index: {}, may-alias: {0,1,2}]
  %s3 = inlined_call_operand.vmem [shape: bf16[3,384,256], index: 3, kind: input, shape index: {}]
  %s4 = inlined_call_operand.vmem [shape: f32[1,256], index: 4, kind: input, shape index: {}]
  %s5 = inlined_call_operand.vmem [shape: bf16[2,4,4,256], index: 5, kind: output, shape index: {}]
  %s6 = sld [smem:[#allocation0]]
  $region53: #{feature_extractor.8} parent=0
    _
  %s8 = ssub.s32 1, %s6
  %s9 = scalar_select 0, %s8, %s6
  loop: start=0, step=1, limit=4
  $region2: #{feature_extractor.8} parent=0 // loop_pre_header
    _
  $region3: #{feature_extractor.8} parent=0 // loop_header
    %s11 = sphi 0, %s15
    %p12 = scmp.ge.s32.totalorder %s11, 4
    %s18 = sphi 0, %s30
    %s19 = sphi 0, %s26
    %s20 = sphi 0, %s18
    %s21 = sphi 0, %s19
    %s22 = sphi 0, %s20
    %s23 = sphi 0, %s21
    %s35 = sphi 0, %s37
    %s38 = sphi 0, %s35
    %s39 = sphi 0, %s38
    %s55 = sphi 0, %s39
    %s71 = sphi 0, %s73
    %s74 = sphi 0, %s71
    %s75 = sphi 0, %s74
    %s91 = sphi 0, %s75
    %s107 = sphi 0, %s109
    %s110 = sphi 0, %s107
    %s111 = sphi 0, %s110
    %s127 = sphi 0, %s111
    %s131 = sphi 0, %s131
    %s133 = sphi 0, %s131
    %s134 = sphi 0, %s133
    %s148 = sphi 0, %s134
    %s152 = sphi 0, %s152
    %s154 = sphi 0, %s152
    %s155 = sphi 0, %s154
    %s169 = sphi 0, %s155
    %s177 = sphi 0, %s179
    %s180 = sphi 0, %s177
    %s181 = sphi 0, %s180
    %s197 = sphi 0, %s181
  $region4: #{feature_extractor.8} parent=0 // loop_header_branch
    %14 = sbr.rel (%p12) target = $region8
  $region5: #{feature_extractor.8} parent=0 // loop_body
    %s16 = ssub.s32 %s11, 1
    %s17 = ssub.s32 %s11, 2
    %s24 = sadd.s32 1, %s19
    %p25 = scmp.ge.s32.totalorder %s24, 1
    %s26 = scalar_select %p25, 0, %s24
    %s27 = sadd.s32 1, %s18
    %s28 = scalar_select %p25, %s27, %s18
    %p29 = scmp.ge.s32.totalorder %s28, 2
    %s30 = scalar_select %p29, 0, %s28
    %s31 = ssub.s32 %s18, %s30
    %s32 = ssub.s32 %s19, %s26
    %s33 = sor.u32 %s31, %s32
    %p34 = scmp.eq.s32.totalorder %s33, 0
    %s36 = sadd.s32 %s35, 1
    %s37 = scalar_select %p34, %s35, %s36
    %p40 = pneg %p34
    %p41 = scmp.eq.s32.totalorder %s11, 1
    %p42 = por %p40, %p41
    %p43 = scmp.ne.s32.totalorder %s35, %s38
    %p44 = scmp.eq.s32.totalorder %s11, 0
    %p45 = por %p43, %p44
    %p46 = scmp.ne.s32.totalorder %s35, %s38
    %p47 = scmp.eq.s32.totalorder %s16, 1
    %p48 = por %p46, %p47
    %p49 = scmp.ne.s32.totalorder %s38, %s39
    %p50 = scmp.eq.s32.totalorder %s16, 0
    %p51 = por %p49, %p50
    %p52 = scmp.ne.s32.totalorder %s38, %s39
    %p53 = scmp.eq.s32.totalorder %s17, 1
    %p54 = por %p52, %p53
    %p56 = scmp.ne.s32.totalorder %s39, %s55
    %p57 = scmp.eq.s32.totalorder %s17, 0
    %p58 = por %p56, %p57
    %s59 = smul.u32 %s19, 4
    %s60 = ssub.s32 %s59, 1
    %p61 = scmp.gt.s32.totalorder %s60, 0
    %s62 = scalar_select %p61, %s60, 0
    %s63 = smul.u32 %s26, 4
    %s64 = ssub.s32 %s63, 1
    %p65 = scmp.gt.s32.totalorder %s64, 0
    %s66 = scalar_select %p65, %s64, 0
    %s67 = ssub.s32 %s18, %s30
    %s68 = ssub.s32 %s62, %s66
    %s69 = sor.u32 %s67, %s68
    %p70 = scmp.eq.s32.totalorder %s69, 0
    %s72 = sadd.s32 %s71, 1
    %s73 = scalar_select %p70, %s71, %s72
    %p76 = pneg %p70
    %p77 = scmp.eq.s32.totalorder %s11, 1
    %p78 = por %p76, %p77
    %p79 = scmp.ne.s32.totalorder %s71, %s74
    %p80 = scmp.eq.s32.totalorder %s11, 0
    %p81 = por %p79, %p80
    %p82 = scmp.ne.s32.totalorder %s71, %s74
    %p83 = scmp.eq.s32.totalorder %s16, 1
    %p84 = por %p82, %p83
    %p85 = scmp.ne.s32.totalorder %s74, %s75
    %p86 = scmp.eq.s32.totalorder %s16, 0
    %p87 = por %p85, %p86
    %p88 = scmp.ne.s32.totalorder %s74, %s75
    %p89 = scmp.eq.s32.totalorder %s17, 1
    %p90 = por %p88, %p89
    %p92 = scmp.ne.s32.totalorder %s75, %s91
    %p93 = scmp.eq.s32.totalorder %s17, 0
    %p94 = por %p92, %p93
    %s95 = smul.u32 %s19, 4
    %s96 = sadd.s32 %s95, 4
    %p97 = scmp.lt.s32.totalorder %s96, 3
    %s98 = scalar_select %p97, %s96, 3
    %s99 = smul.u32 %s26, 4
    %s100 = sadd.s32 %s99, 4
    %p101 = scmp.lt.s32.totalorder %s100, 3
    %s102 = scalar_select %p101, %s100, 3
    %s103 = ssub.s32 %s18, %s30
    %s104 = ssub.s32 %s98, %s102
    %s105 = sor.u32 %s103, %s104
    %p106 = scmp.eq.s32.totalorder %s105, 0
    %s108 = sadd.s32 %s107, 1
    %s109 = scalar_select %p106, %s107, %s108
    %p112 = pneg %p106
    %p113 = scmp.eq.s32.totalorder %s11, 1
    %p114 = por %p112, %p113
    %p115 = scmp.ne.s32.totalorder %s107, %s110
    %p116 = scmp.eq.s32.totalorder %s11, 0
    %p117 = por %p115, %p116
    %p118 = scmp.ne.s32.totalorder %s107, %s110
    %p119 = scmp.eq.s32.totalorder %s16, 1
    %p120 = por %p118, %p119
    %p121 = scmp.ne.s32.totalorder %s110, %s111
    %p122 = scmp.eq.s32.totalorder %s16, 0
    %p123 = por %p121, %p122
    %p124 = scmp.ne.s32.totalorder %s110, %s111
    %p125 = scmp.eq.s32.totalorder %s17, 1
    %p126 = por %p124, %p125
    %p128 = scmp.ne.s32.totalorder %s111, %s127
    %p129 = scmp.eq.s32.totalorder %s17, 0
    %p130 = por %p128, %p129
    %s132 = sadd.s32 %s131, 1
    %p135 = scmp.eq.s32.totalorder %s11, 1
    %p136 = scmp.ne.s32.totalorder %s131, %s133
    %p137 = scmp.eq.s32.totalorder %s11, 0
    %p138 = por %p136, %p137
    %p139 = scmp.ne.s32.totalorder %s131, %s133
    %p140 = scmp.eq.s32.totalorder %s16, 1
    %p141 = por %p139, %p140
    %p142 = scmp.ne.s32.totalorder %s133, %s134
    %p143 = scmp.eq.s32.totalorder %s16, 0
    %p144 = por %p142, %p143
    %p145 = scmp.ne.s32.totalorder %s133, %s134
    %p146 = scmp.eq.s32.totalorder %s17, 1
    %p147 = por %p145, %p146
    %p149 = scmp.ne.s32.totalorder %s134, %s148
    %p150 = scmp.eq.s32.totalorder %s17, 0
    %p151 = por %p149, %p150
    %s153 = sadd.s32 %s152, 1
    %p156 = scmp.eq.s32.totalorder %s11, 1
    %p157 = scmp.ne.s32.totalorder %s152, %s154
    %p158 = scmp.eq.s32.totalorder %s11, 0
    %p159 = por %p157, %p158
    %p160 = scmp.ne.s32.totalorder %s152, %s154
    %p161 = scmp.eq.s32.totalorder %s16, 1
    %p162 = por %p160, %p161
    %p163 = scmp.ne.s32.totalorder %s154, %s155
    %p164 = scmp.eq.s32.totalorder %s16, 0
    %p165 = por %p163, %p164
    %p166 = scmp.ne.s32.totalorder %s154, %s155
    %p167 = scmp.eq.s32.totalorder %s17, 1
    %p168 = por %p166, %p167
    %p170 = scmp.ne.s32.totalorder %s155, %s169
    %p171 = scmp.eq.s32.totalorder %s17, 0
    %p172 = por %p170, %p171
    %s173 = ssub.s32 %s18, %s30
    %s174 = ssub.s32 %s19, %s26
    %s175 = sor.u32 %s173, %s174
    %p176 = scmp.eq.s32.totalorder %s175, 0
    %s178 = sadd.s32 %s177, 1
    %s179 = scalar_select %p176, %s177, %s178
    %p182 = pneg %p176
    %p183 = scmp.eq.s32.totalorder %s11, 1
    %p184 = por %p182, %p183
    %p185 = scmp.ne.s32.totalorder %s177, %s180
    %p186 = scmp.eq.s32.totalorder %s11, 0
    %p187 = por %p185, %p186
    %p188 = scmp.ne.s32.totalorder %s177, %s180
    %p189 = scmp.eq.s32.totalorder %s16, 1
    %p190 = por %p188, %p189
    %p191 = scmp.ne.s32.totalorder %s180, %s181
    %p192 = scmp.eq.s32.totalorder %s16, 0
    %p193 = por %p191, %p192
    %p194 = scmp.ne.s32.totalorder %s180, %s181
    %p195 = scmp.eq.s32.totalorder %s17, 1
    %p196 = por %p194, %p195
    %p198 = scmp.ne.s32.totalorder %s181, %s197
    %p199 = scmp.eq.s32.totalorder %s17, 0
    %p200 = por %p198, %p199
    %p201 = scmp.le.s32.totalorder 1, %s11
    %p202 = scmp.lt.s32.totalorder %s11, 3
    %p203 = pnand %p201, %p202
    %p204 = pneg %p203
    // Predicated region
    $region9: #{feature_extractor.8} parent=5 // pred_check
      _
    $region10: #{feature_extractor.8} parent=5 // pred_check_branch
      %206 = sbr.rel (%p203) target = $region12
    $region11: #{feature_extractor.8} parent=5 // pred_region
      %s207 = ssub.s32 %s11, 1
      // Predicated region
      $region13: #{feature_extractor.8} parent=11 // pred_check
        %p208 = pneg %p144
      $region14: #{feature_extractor.8} parent=11 // pred_check_branch
        %210 = sbr.rel (%p208) target = $region16
      $region15: #{feature_extractor.8} parent=11 // pred_region
        _
      $region16: #{feature_extractor.8} parent=11 // pred_fallthru
        _
      // Predicated region
      $region17: #{feature_extractor.8} parent=11 // pred_check
        %p211 = pneg %p165
      $region18: #{feature_extractor.8} parent=11 // pred_check_branch
        %213 = sbr.rel (%p211) target = $region20
      $region19: #{feature_extractor.8} parent=11 // pred_region
        _
      $region20: #{feature_extractor.8} parent=11 // pred_fallthru
        _
    $region12: #{feature_extractor.8} parent=5 // pred_fallthru
      _
    %p214 = scmp.lt.s32.totalorder %s11, 2
    // Predicated region
    $region21: #{feature_extractor.8} parent=5 // pred_check
      %p215 = pneg %p214
    $region22: #{feature_extractor.8} parent=5 // pred_check_branch
      %217 = sbr.rel (%p215) target = $region24
    $region23: #{feature_extractor.8} parent=5 // pred_region
      // Predicated region
      $region25: #{feature_extractor.8} parent=23 // pred_check
        %p218 = pneg %p45
      $region26: #{feature_extractor.8} parent=23 // pred_check_branch
        %220 = sbr.rel (%p218) target = $region28
      $region27: #{feature_extractor.8} parent=23 // pred_region
        %s221 = smul.u32 4, %s19
        %p222 = scmp.lt.s32.totalorder %s18, 1
        %s223 = scalar_select %p222, %s18, 1
        %p224 = scmp.lt.s32.totalorder %s221, 3
        %s225 = scalar_select %p224, %s221, 3
        %s226 = smul.addr %s223, 4
        %s227 = sadd.s32 %s225, %s226
        %s228 = smul.addr %s227, 2
        %s229 = scalar_lea.vmem %s0, %s228
        %s230 = smul.u32 4, %s19
      $region28: #{feature_extractor.8} parent=23 // pred_fallthru
        _
      // Predicated region
      $region29: #{feature_extractor.8} parent=23 // pred_check
        %p231 = pneg %p81
      $region30: #{feature_extractor.8} parent=23 // pred_check_branch
        %233 = sbr.rel (%p231) target = $region32
      $region31: #{feature_extractor.8} parent=23 // pred_region
        %s234 = smul.u32 %s19, 4
        %s235 = ssub.s32 %s234, 1
        %p236 = scmp.gt.s32.totalorder %s235, 0
        %s237 = scalar_select %p236, %s235, 0
        %p238 = scmp.lt.s32.totalorder %s18, 1
        %s239 = scalar_select %p238, %s18, 1
        %p240 = scmp.lt.s32.totalorder %s237, 3
        %s241 = scalar_select %p240, %s237, 3
        %s242 = smul.addr %s239, 4
        %s243 = sadd.s32 %s241, %s242
        %s244 = smul.addr %s243, 2
        %s245 = scalar_lea.vmem %s1, %s244
        %s246 = smul.u32 %s19, 4
        %s247 = ssub.s32 %s246, 1
        %p248 = scmp.gt.s32.totalorder %s247, 0
        %s249 = scalar_select %p248, %s247, 0
      $region32: #{feature_extractor.8} parent=23 // pred_fallthru
        _
      // Predicated region
      $region33: #{feature_extractor.8} parent=23 // pred_check
        %p250 = pneg %p117
      $region34: #{feature_extractor.8} parent=23 // pred_check_branch
        %252 = sbr.rel (%p250) target = $region36
      $region35: #{feature_extractor.8} parent=23 // pred_region
        %s253 = smul.u32 %s19, 4
        %s254 = sadd.s32 %s253, 4
        %p255 = scmp.lt.s32.totalorder %s254, 3
        %s256 = scalar_select %p255, %s254, 3
        %p257 = scmp.lt.s32.totalorder %s18, 1
        %s258 = scalar_select %p257, %s18, 1
        %p259 = scmp.lt.s32.totalorder %s256, 3
        %s260 = scalar_select %p259, %s256, 3
        %s261 = smul.addr %s258, 4
        %s262 = sadd.s32 %s260, %s261
        %s263 = smul.addr %s262, 2
        %s264 = scalar_lea.vmem %s2, %s263
        %s265 = smul.u32 %s19, 4
        %s266 = sadd.s32 %s265, 4
        %p267 = scmp.lt.s32.totalorder %s266, 3
        %s268 = scalar_select %p267, %s266, 3
      $region36: #{feature_extractor.8} parent=23 // pred_fallthru
        _
    $region24: #{feature_extractor.8} parent=5 // pred_fallthru
      _
    %p269 = scmp.le.s32.totalorder 1, %s11
    %p270 = scmp.lt.s32.totalorder %s11, 3
    %p271 = pnand %p269, %p270
    %p272 = pneg %p271
    // Predicated region
    $region37: #{feature_extractor.8} parent=5 // pred_check
      _
    $region38: #{feature_extractor.8} parent=5 // pred_check_branch
      %274 = sbr.rel (%p271) target = $region40
    $region39: #{feature_extractor.8} parent=5 // pred_region
      %s275 = ssub.s32 %s11, 1
      %s276 = smul.u32 4, %s21
      %p277 = scmp.lt.s32.totalorder %s20, 1
      %s278 = scalar_select %p277, %s20, 1
      %p279 = scmp.lt.s32.totalorder %s276, 3
      %s280 = scalar_select %p279, %s276, 3
      %s281 = smul.addr %s278, 4
      %s282 = sadd.s32 %s280, %s281
      %s283 = smul.addr %s282, 2
      %s284 = scalar_lea.vmem %s0, %s283
      %p285 = pneg %p51
      %p286 = pneg %p48
      %s287 = smul.u32 %s21, 4
      %s288 = ssub.s32 %s287, 1
      %p289 = scmp.gt.s32.totalorder %s288, 0
      %s290 = scalar_select %p289, %s288, 0
      %p291 = scmp.lt.s32.totalorder %s20, 1
      %s292 = scalar_select %p291, %s20, 1
      %p293 = scmp.lt.s32.totalorder %s290, 3
      %s294 = scalar_select %p293, %s290, 3
      %s295 = smul.addr %s292, 4
      %s296 = sadd.s32 %s294, %s295
      %s297 = smul.addr %s296, 2
      %s298 = scalar_lea.vmem %s1, %s297
      %p299 = pneg %p87
      %p300 = pneg %p84
      %s301 = smul.u32 %s21, 4
      %s302 = sadd.s32 %s301, 4
      %p303 = scmp.lt.s32.totalorder %s302, 3
      %s304 = scalar_select %p303, %s302, 3
      %p305 = scmp.lt.s32.totalorder %s20, 1
      %s306 = scalar_select %p305, %s20, 1
      %p307 = scmp.lt.s32.totalorder %s304, 3
      %s308 = scalar_select %p307, %s304, 3
      %s309 = smul.addr %s306, 4
      %s310 = sadd.s32 %s308, %s309
      %s311 = smul.addr %s310, 2
      %s312 = scalar_lea.vmem %s2, %s311
      %p313 = pneg %p123
      %p314 = pneg %p120
      %p315 = pneg %p144
      %p316 = pneg %p141
      %p317 = pneg %p165
      %p318 = pneg %p162
      %p319 = pneg %p193
      %p320 = pneg %p190
      %s321 = smul.u32 4, %s21
      %p322 = scmp.lt.s32.totalorder %s20, 1
      %s323 = scalar_select %p322, %s20, 1
      %p324 = scmp.lt.s32.totalorder %s321, 3
      %s325 = scalar_select %p324, %s321, 3
      %s326 = smul.addr %s325, 2
      %s327 = smul.addr %s323, 8
      %s328 = sadd.s32 %s326, %s327
      %s329 = smul.addr %s328, 2
      %s330 = scalar_lea.vmem %s5, %s329
      %s331 = smul.u32 4, %s21
      %p332 = scmp.lt.s32.totalorder %s20, 1
      %s333 = scalar_select %p332, %s20, 1
      %p334 = scmp.lt.s32.totalorder %s331, 3
      %s335 = scalar_select %p334, %s331, 3
      %s336 = smul.addr %s333, 4
      %s337 = sadd.s32 %s335, %s336
      %s338 = smul.addr %s337, 2
      %s339 = scalar_lea.vmem %s0, %s338
      %s340 = smul.u32 4, %s21
      %s341 = smul.u32 %s21, 4
      %s342 = ssub.s32 %s341, 1
      %p343 = scmp.gt.s32.totalorder %s342, 0
      %s344 = scalar_select %p343, %s342, 0
      %p345 = scmp.lt.s32.totalorder %s20, 1
      %s346 = scalar_select %p345, %s20, 1
      %p347 = scmp.lt.s32.totalorder %s344, 3
      %s348 = scalar_select %p347, %s344, 3
      %s349 = smul.addr %s346, 4
      %s350 = sadd.s32 %s348, %s349
      %s351 = smul.addr %s350, 2
      %s352 = scalar_lea.vmem %s1, %s351
      %s353 = smul.u32 %s21, 4
      %s354 = ssub.s32 %s353, 1
      %p355 = scmp.gt.s32.totalorder %s354, 0
      %s356 = scalar_select %p355, %s354, 0
      %s357 = smul.u32 %s21, 4
      %s358 = sadd.s32 %s357, 4
      %p359 = scmp.lt.s32.totalorder %s358, 3
      %s360 = scalar_select %p359, %s358, 3
      %p361 = scmp.lt.s32.totalorder %s20, 1
      %s362 = scalar_select %p361, %s20, 1
      %p363 = scmp.lt.s32.totalorder %s360, 3
      %s364 = scalar_select %p363, %s360, 3
      %s365 = smul.addr %s362, 4
      %s366 = sadd.s32 %s364, %s365
      %s367 = smul.addr %s366, 2
      %s368 = scalar_lea.vmem %s2, %s367
      %s369 = smul.u32 %s21, 4
      %s370 = sadd.s32 %s369, 4
      %p371 = scmp.lt.s32.totalorder %s370, 3
      %s372 = scalar_select %p371, %s370, 3
      %s373 = smul.u32 4, %s21
      %p374 = scmp.lt.s32.totalorder %s20, 1
      %s375 = scalar_select %p374, %s20, 1
      %p376 = scmp.lt.s32.totalorder %s373, 3
      %s377 = scalar_select %p376, %s373, 3
      %s378 = smul.addr %s377, 2
      %s379 = smul.addr %s375, 8
      %s380 = sadd.s32 %s378, %s379
      %s381 = smul.addr %s380, 2
      %s382 = scalar_lea.vmem %s5, %s381
      %s383 = smul.u32 4, %s21
      %p386 = scmp.gt.s32.totalorder %s21, 0
      %v387 = vld [vmem:[%s352] sm:$0x3]
      %s388 = scalar_select %p386, 1, 0
      %v389 = vstv %s388
      %vm390 = vcmp.eq.s32.totalorder %v389, 1
      %v391 = vsel %vm390, 1, 0
      %v392 = vpack.c.b16 %v391, %v391
      %v393 = vunpack.c.l.b16 %v392
      %v394 = vunpack.c.h.b16 %v392
      %v395 = vunpack.c.l.b16 0
      %v396 = vunpack.c.h.b16 0
      %vm397 = vcmp.ne.s32.totalorder %v393, %v395
      %vm398 = vcmp.ne.s32.totalorder %v394, %v396
      %vm399 = vmpackc.low %vm398, %vm397
      %v400 = vsel %vm399, %v387, 0
      %p401 = scmp.lt.s32.totalorder %s21, 0
      %v402 = vld [vmem:[%s368] sm:$0x3]
      %s403 = scalar_select %p401, 1, 0
      %v404 = vstv %s403
      %vm405 = vcmp.eq.s32.totalorder %v404, 1
      %v406 = vsel %vm405, 1, 0
      %v407 = vpack.c.b16 %v406, %v406
      %v408 = vunpack.c.l.b16 %v407
      %v409 = vunpack.c.h.b16 %v407
      %v410 = vunpack.c.l.b16 0
      %v411 = vunpack.c.h.b16 0
      %vm412 = vcmp.ne.s32.totalorder %v408, %v410
      %vm413 = vcmp.ne.s32.totalorder %v409, %v411
      %vm414 = vmpackc.low %vm413, %vm412
      %v415 = vsel %vm414, %v402, 0
      %v416 = vld [vmem:[%s339] sm:$0x3]
      %v417 = vld [vmem:[%s339 + $0x2] sm:$0x3]
      %v418 = vld [vmem:[%s339 + $0x4] sm:$0x3]
      %v419 = vld [vmem:[%s339 + $0x6] sm:$0x3]
      %v420 = vld [vmem:[%s3] sm:$0xff]
      %v421 = vld [vmem:[%s3 + $0x8] sm:$0xff]
      %v422 = vld [vmem:[%s3 + $0x10] sm:$0xff]
      %v423 = vld [vmem:[%s3 + $0x18] sm:$0xff]
      %v424 = vld [vmem:[%s3 + $0x20] sm:$0xff]
      %v425 = vld [vmem:[%s3 + $0x28] sm:$0xff]
      %v426 = vld [vmem:[%s3 + $0x30] sm:$0xff]
      %v427 = vld [vmem:[%s3 + $0x38] sm:$0xff]
      %v428 = vld [vmem:[%s3 + $0x40] sm:$0xff]
      %v429 = vld [vmem:[%s3 + $0x48] sm:$0xff]
      %v430 = vld [vmem:[%s3 + $0x50] sm:$0xff]
      %v431 = vld [vmem:[%s3 + $0x58] sm:$0xff]
      %v432 = vld [vmem:[%s3 + $0x60] sm:$0xff]
      %v433 = vld [vmem:[%s3 + $0x68] sm:$0xff]
      %v434 = vld [vmem:[%s3 + $0x70] sm:$0xff]
      %v435 = vld [vmem:[%s3 + $0x78] sm:$0xff]
      %v436 = vld [vmem:[%s3 + $0x80] sm:$0xff]
      %v437 = vld [vmem:[%s3 + $0x88] sm:$0xff]
      %v438 = vld [vmem:[%s3 + $0x90] sm:$0xff]
      %v439 = vld [vmem:[%s3 + $0x98] sm:$0xff]
      %v440 = vld [vmem:[%s3 + $0xa0] sm:$0xff]
      %v441 = vld [vmem:[%s3 + $0xa8] sm:$0xff]
      %v442 = vld [vmem:[%s3 + $0xb0] sm:$0xff]
      %v443 = vld [vmem:[%s3 + $0xb8] sm:$0xff]
      %v444 = vld [vmem:[%s3 + $0xc0] sm:$0xff]
      %v445 = vld [vmem:[%s3 + $0xc8] sm:$0xff]
      %v446 = vld [vmem:[%s3 + $0xd0] sm:$0xff]
      %v447 = vld [vmem:[%s3 + $0xd8] sm:$0xff]
      %v448 = vld [vmem:[%s3 + $0xe0] sm:$0xff]
      %v449 = vld [vmem:[%s3 + $0xe8] sm:$0xff]
      %v450 = vld [vmem:[%s3 + $0xf0] sm:$0xff]
      %v451 = vld [vmem:[%s3 + $0xf8] sm:$0xff]
      %v452 = vld [vmem:[%s3 + $0x100] sm:$0xff]
      %v453 = vld [vmem:[%s3 + $0x108] sm:$0xff]
      %v454 = vld [vmem:[%s3 + $0x110] sm:$0xff]
      %v455 = vld [vmem:[%s3 + $0x118] sm:$0xff]
      %v456 = vld [vmem:[%s3 + $0x120] sm:$0xff]
      %v457 = vld [vmem:[%s3 + $0x128] sm:$0xff]
      %v458 = vld [vmem:[%s3 + $0x130] sm:$0xff]
      %v459 = vld [vmem:[%s3 + $0x138] sm:$0xff]
      %v460 = vld [vmem:[%s3 + $0x140] sm:$0xff]
      %v461 = vld [vmem:[%s3 + $0x148] sm:$0xff]
      %v462 = vld [vmem:[%s3 + $0x150] sm:$0xff]
      %v463 = vld [vmem:[%s3 + $0x158] sm:$0xff]
      %v464 = vld [vmem:[%s3 + $0x160] sm:$0xff]
      %v465 = vld [vmem:[%s3 + $0x168] sm:$0xff]
      %v466 = vld [vmem:[%s3 + $0x170] sm:$0xff]
      %v467 = vld [vmem:[%s3 + $0x178] sm:$0xff]
      %v468 = vld [vmem:[%s3 + $0x180] sm:$0xff]
      %v469 = vld [vmem:[%s3 + $0x188] sm:$0xff]
      %v470 = vld [vmem:[%s3 + $0x190] sm:$0xff]
      %v471 = vld [vmem:[%s3 + $0x198] sm:$0xff]
      %v472 = vld [vmem:[%s3 + $0x1a0] sm:$0xff]
      %v473 = vld [vmem:[%s3 + $0x1a8] sm:$0xff]
      %v474 = vld [vmem:[%s3 + $0x1b0] sm:$0xff]
      %v475 = vld [vmem:[%s3 + $0x1b8] sm:$0xff]
      %v476 = vld [vmem:[%s3 + $0x1c0] sm:$0xff]
      %v477 = vld [vmem:[%s3 + $0x1c8] sm:$0xff]
      %v478 = vld [vmem:[%s3 + $0x1d0] sm:$0xff]
      %v479 = vld [vmem:[%s3 + $0x1d8] sm:$0xff]
      %v480 = vld [vmem:[%s3 + $0x1e0] sm:$0xff]
      %v481 = vld [vmem:[%s3 + $0x1e8] sm:$0xff]
      %v482 = vld [vmem:[%s3 + $0x1f0] sm:$0xff]
      %v483 = vld [vmem:[%s3 + $0x1f8] sm:$0xff]
      %v484 = vld [vmem:[%s3 + $0x200] sm:$0xff]
      %v485 = vld [vmem:[%s3 + $0x208] sm:$0xff]
      %v486 = vld [vmem:[%s3 + $0x210] sm:$0xff]
      %v487 = vld [vmem:[%s3 + $0x218] sm:$0xff]
      %v488 = vld [vmem:[%s3 + $0x220] sm:$0xff]
      %v489 = vld [vmem:[%s3 + $0x228] sm:$0xff]
      %v490 = vld [vmem:[%s3 + $0x230] sm:$0xff]
      %v491 = vld [vmem:[%s3 + $0x238] sm:$0xff]
      %v492 = vld [vmem:[%s3 + $0x240] sm:$0xff]
      %v493 = vld [vmem:[%s3 + $0x248] sm:$0xff]
      %v494 = vld [vmem:[%s3 + $0x250] sm:$0xff]
      %v495 = vld [vmem:[%s3 + $0x258] sm:$0xff]
      %v496 = vld [vmem:[%s3 + $0x260] sm:$0xff]
      %v497 = vld [vmem:[%s3 + $0x268] sm:$0xff]
      %v498 = vld [vmem:[%s3 + $0x270] sm:$0xff]
      %v499 = vld [vmem:[%s3 + $0x278] sm:$0xff]
      %v500 = vld [vmem:[%s3 + $0x280] sm:$0xff]
      %v501 = vld [vmem:[%s3 + $0x288] sm:$0xff]
      %v502 = vld [vmem:[%s3 + $0x290] sm:$0xff]
      %v503 = vld [vmem:[%s3 + $0x298] sm:$0xff]
      %v504 = vld [vmem:[%s3 + $0x2a0] sm:$0xff]
      %v505 = vld [vmem:[%s3 + $0x2a8] sm:$0xff]
      %v506 = vld [vmem:[%s3 + $0x2b0] sm:$0xff]
      %v507 = vld [vmem:[%s3 + $0x2b8] sm:$0xff]
      %v508 = vld [vmem:[%s3 + $0x2c0] sm:$0xff]
      %v509 = vld [vmem:[%s3 + $0x2c8] sm:$0xff]
      %v510 = vld [vmem:[%s3 + $0x2d0] sm:$0xff]
      %v511 = vld [vmem:[%s3 + $0x2d8] sm:$0xff]
      %v512 = vld [vmem:[%s3 + $0x2e0] sm:$0xff]
      %v513 = vld [vmem:[%s3 + $0x2e8] sm:$0xff]
      %v514 = vld [vmem:[%s3 + $0x2f0] sm:$0xff]
      %v515 = vld [vmem:[%s3 + $0x2f8] sm:$0xff]
      %v516 = vld [vmem:[%s3 + $0x300] sm:$0xff]
      %v517 = vld [vmem:[%s3 + $0x308] sm:$0xff]
      %v518 = vld [vmem:[%s3 + $0x310] sm:$0xff]
      %v519 = vld [vmem:[%s3 + $0x318] sm:$0xff]
      %v520 = vld [vmem:[%s3 + $0x320] sm:$0xff]
      %v521 = vld [vmem:[%s3 + $0x328] sm:$0xff]
      %v522 = vld [vmem:[%s3 + $0x330] sm:$0xff]
      %v523 = vld [vmem:[%s3 + $0x338] sm:$0xff]
      %v524 = vld [vmem:[%s3 + $0x340] sm:$0xff]
      %v525 = vld [vmem:[%s3 + $0x348] sm:$0xff]
      %v526 = vld [vmem:[%s3 + $0x350] sm:$0xff]
      %v527 = vld [vmem:[%s3 + $0x358] sm:$0xff]
      %v528 = vld [vmem:[%s3 + $0x360] sm:$0xff]
      %v529 = vld [vmem:[%s3 + $0x368] sm:$0xff]
      %v530 = vld [vmem:[%s3 + $0x370] sm:$0xff]
      %v531 = vld [vmem:[%s3 + $0x378] sm:$0xff]
      %v532 = vld [vmem:[%s3 + $0x380] sm:$0xff]
      %v533 = vld [vmem:[%s3 + $0x388] sm:$0xff]
      %v534 = vld [vmem:[%s3 + $0x390] sm:$0xff]
      %v535 = vld [vmem:[%s3 + $0x398] sm:$0xff]
      %v536 = vld [vmem:[%s3 + $0x3a0] sm:$0xff]
      %v537 = vld [vmem:[%s3 + $0x3a8] sm:$0xff]
      %v538 = vld [vmem:[%s3 + $0x3b0] sm:$0xff]
      %v539 = vld [vmem:[%s3 + $0x3b8] sm:$0xff]
      %v540 = vld [vmem:[%s3 + $0x3c0] sm:$0xff]
      %v541 = vld [vmem:[%s3 + $0x3c8] sm:$0xff]
      %v542 = vld [vmem:[%s3 + $0x3d0] sm:$0xff]
      %v543 = vld [vmem:[%s3 + $0x3d8] sm:$0xff]
      %v544 = vld [vmem:[%s3 + $0x3e0] sm:$0xff]
      %v545 = vld [vmem:[%s3 + $0x3e8] sm:$0xff]
      %v546 = vld [vmem:[%s3 + $0x3f0] sm:$0xff]
      %v547 = vld [vmem:[%s3 + $0x3f8] sm:$0xff]
      %v548 = vld [vmem:[%s3 + $0x400] sm:$0xff]
      %v549 = vld [vmem:[%s3 + $0x408] sm:$0xff]
      %v550 = vld [vmem:[%s3 + $0x410] sm:$0xff]
      %v551 = vld [vmem:[%s3 + $0x418] sm:$0xff]
      %v552 = vld [vmem:[%s3 + $0x420] sm:$0xff]
      %v553 = vld [vmem:[%s3 + $0x428] sm:$0xff]
      %v554 = vld [vmem:[%s3 + $0x430] sm:$0xff]
      %v555 = vld [vmem:[%s3 + $0x438] sm:$0xff]
      %v556 = vld [vmem:[%s3 + $0x440] sm:$0xff]
      %v557 = vld [vmem:[%s3 + $0x448] sm:$0xff]
      %v558 = vld [vmem:[%s3 + $0x450] sm:$0xff]
      %v559 = vld [vmem:[%s3 + $0x458] sm:$0xff]
      %v560 = vld [vmem:[%s3 + $0x460] sm:$0xff]
      %v561 = vld [vmem:[%s3 + $0x468] sm:$0xff]
      %v562 = vld [vmem:[%s3 + $0x470] sm:$0xff]
      %v563 = vld [vmem:[%s3 + $0x478] sm:$0xff]
      %v564 = vld [vmem:[%s4] sm:$0x3]
      %566 = vst [vmem:[#allocation1] ss:$4 sm:$0xff] %v400
      %v567 = vld.sshfl [vmem:[#allocation1] sm:$0xff pattern:$0x73625140]
      %s569 = scalar_lea.vmem [#allocation1], 32
      %570 = vst [vmem:[%s569] ss:$4 sm:$0xff] %v416
      %v571 = vld.sshfl [vmem:[#allocation1 + $0x20] sm:$0xff pattern:$0x73625140]
      %573 = vst [vmem:[#allocation1] ss:$4 sm:$0xff] %v417
      %v574 = vld.sshfl [vmem:[#allocation1] sm:$0xff pattern:$0x73625140]
      %576 = vst [vmem:[%s569] ss:$4 sm:$0xff] %v418
      %v577 = vld.sshfl [vmem:[#allocation1 + $0x20] sm:$0xff pattern:$0x73625140]
      %579 = vst [vmem:[#allocation1] ss:$4 sm:$0xff] %v419
      %v580 = vld.sshfl [vmem:[#allocation1] sm:$0xff pattern:$0x73625140]
      %582 = vst [vmem:[%s569] ss:$4 sm:$0xff] %v415
      %v583 = vld.sshfl [vmem:[#allocation1 + $0x20] sm:$0xff pattern:$0x73625140]
      %v584 = vshrl.u32 %v567, 16
      %v586 = vrot.slane %v584, 7
      %v587 = vshll.u32 %v567, 16
      %v589 = vor.u32 %v586, %v587
      %v590 = vshrl.u32 %v571, 16
      %v592 = vrot.slane %v590, 7
      %v593 = vshll.u32 %v571, 16
      %v595 = vor.u32 %v592, %v593
      %v596 = vshrl.u32 %v574, 16
      %v598 = vrot.slane %v596, 7
      %v599 = vshll.u32 %v574, 16
      %v601 = vor.u32 %v598, %v599
      %v602 = vshrl.u32 %v577, 16
      %v604 = vrot.slane %v602, 7
      %v605 = vshll.u32 %v577, 16
      %v607 = vor.u32 %v604, %v605
      %v608 = vshrl.u32 %v580, 16
      %v610 = vrot.slane %v608, 7
      %v611 = vshll.u32 %v580, 16
      %v613 = vor.u32 %v610, %v611
      %v614 = vshrl.u32 %v583, 16
      %v616 = vrot.slane %v614, 7
      %v617 = vshll.u32 %v583, 16
      %v619 = vor.u32 %v616, %v617
      %vm626 = vcmask 1040384
      %vm627 = vsmask.f32 256
      %vm628 = vmand %vm626, %vm627
      %v629 = vsel %vm628, 0, %v589
      %v630 = vsel %vm628, 0, %v595
      %v631 = vsel %vm628, 0, %v601
      %v632 = vsel %vm628, 0, %v607
      %v633 = vsel %vm628, 0, %v613
      %v634 = vsel %vm628, 0, %v619
      %635 = vst [vmem:[#allocation1] ss:$4 sm:$0xff] %v400
      %v636 = vld.sshfl [vmem:[#allocation1] sm:$0xff pattern:$0x73625140]
      %s637 = scalar_lea.vmem [#allocation1], 32
      %638 = vst [vmem:[%s637] ss:$4 sm:$0xff] %v416
      %v639 = vld.sshfl [vmem:[#allocation1 + $0x20] sm:$0xff pattern:$0x73625140]
      %640 = vst [vmem:[#allocation1] ss:$4 sm:$0xff] %v417
      %v641 = vld.sshfl [vmem:[#allocation1] sm:$0xff pattern:$0x73625140]
      %642 = vst [vmem:[%s637] ss:$4 sm:$0xff] %v418
      %v643 = vld.sshfl [vmem:[#allocation1 + $0x20] sm:$0xff pattern:$0x73625140]
      %644 = vst [vmem:[#allocation1] ss:$4 sm:$0xff] %v419
      %v645 = vld.sshfl [vmem:[#allocation1] sm:$0xff pattern:$0x73625140]
      %646 = vst [vmem:[%s637] ss:$4 sm:$0xff] %v415
      %v647 = vld.sshfl [vmem:[#allocation1 + $0x20] sm:$0xff pattern:$0x73625140]
      %v648 = vshrl.u32 %v636, 16
      %v650 = vshll.u32 %v636, 16
      %v652 = vrot.slane %v650, 1
      %v653 = vor.u32 %v648, %v652
      %v654 = vshrl.u32 %v639, 16
      %v656 = vshll.u32 %v639, 16
      %v658 = vrot.slane %v656, 1
      %v659 = vor.u32 %v654, %v658
      %v660 = vshrl.u32 %v641, 16
      %v662 = vshll.u32 %v641, 16
      %v664 = vrot.slane %v662, 1
      %v665 = vor.u32 %v660, %v664
      %v666 = vshrl.u32 %v643, 16
      %v668 = vshll.u32 %v643, 16
      %v670 = vrot.slane %v668, 1
      %v671 = vor.u32 %v666, %v670
      %v672 = vshrl.u32 %v645, 16
      %v674 = vshll.u32 %v645, 16
      %v676 = vrot.slane %v674, 1
      %v677 = vor.u32 %v672, %v676
      %v678 = vshrl.u32 %v647, 16
      %v680 = vshll.u32 %v647, 16
      %v682 = vrot.slane %v680, 1
      %v683 = vor.u32 %v678, %v682
      %vm690 = vcmask 1041408
      %vm691 = vsmask.f32 1280
      %vm692 = vmand %vm690, %vm691
      %v693 = vsel %vm692, %v653, 0
      %v694 = vsel %vm692, %v659, 0
      %v695 = vsel %vm692, %v665, 0
      %v696 = vsel %vm692, %v671, 0
      %v697 = vsel %vm692, %v677, 0
      %v698 = vsel %vm692, %v683, 0
      %v707 = vrot.slane %v400, 6
      %v708 = vrot.slane %v693, 4
      %v709 = vrot.slane %v416, 6
      %v710 = vrot.slane %v694, 4
      %v711 = vrot.slane %v417, 6
      %v712 = vrot.slane %v695, 4
      %v713 = vrot.slane %v418, 6
      %v714 = vrot.slane %v696, 4
      %vm715 = vcmask 1041408
      %v718 = vsel %vm715, %v629, %v707
      %vm719 = vcmask 1043456
      %v721 = vsel %vm719, %v718, %v708
      %v724 = vsel %vm715, %v630, %v709
      %v726 = vsel %vm719, %v724, %v710
      %v729 = vsel %vm715, %v631, %v711
      %v731 = vsel %vm719, %v729, %v712
      %v734 = vsel %vm715, %v632, %v713
      %v736 = vsel %vm719, %v734, %v714
      %v739 = vrot.slane %v419, 6
      %v740 = vrot.slane %v697, 4
      %v743 = vsel %vm715, %v633, %v739
      %v745 = vsel %vm719, %v743, %v740
      %746 = vst [vmem:[#allocation1] ss:$4 sm:$0xff] %v726
      %s747 = scalar_lea.vmem [#allocation1], 1
      %748 = vst [vmem:[%s747] ss:$4 sm:$0xff] %v731
      %s749 = scalar_lea.vmem [#allocation1], 2
      %750 = vst [vmem:[%s749] ss:$4 sm:$0xff] %v736
      %s751 = scalar_lea.vmem [#allocation1], 3
      %752 = vst [vmem:[%s751] ss:$4 sm:$0xff] %v745
      %v753 = vld.sshfl [vmem:[#allocation1] sm:$0xff pattern:$0x73625140]
      %v754 = vld.sshfl [vmem:[#allocation1 + $0x8] sm:$0xff pattern:$0x73625140]
      %v755 = vld.sshfl [vmem:[#allocation1 + $0x10] sm:$0xff pattern:$0x73625140]
      %v807 = vunpack.c.l.b16 %v468
      %v808 = vunpack.c.h.b16 %v468
      %v809 = vunpack.c.l.b16 %v469
      %v810 = vunpack.c.h.b16 %v469
      %v811 = vunpack.c.l.b16 %v470
      %v812 = vunpack.c.h.b16 %v470
      %v813 = vunpack.c.l.b16 %v471
      %v814 = vunpack.c.h.b16 %v471
      %v815 = vunpack.c.l.b16 %v472
      %v816 = vunpack.c.h.b16 %v472
      %v817 = vunpack.c.l.b16 %v473
      %v818 = vunpack.c.h.b16 %v473
      %v819 = vunpack.c.l.b16 %v474
      %v820 = vunpack.c.h.b16 %v474
      %v821 = vunpack.c.l.b16 %v475
      %v822 = vunpack.c.h.b16 %v475
      %v823 = vunpack.c.l.b16 %v476
      %v824 = vunpack.c.h.b16 %v476
      %v825 = vunpack.c.l.b16 %v477
      %v826 = vunpack.c.h.b16 %v477
      %v827 = vunpack.c.l.b16 %v478
      %v828 = vunpack.c.h.b16 %v478
      %v829 = vunpack.c.l.b16 %v479
      %v830 = vunpack.c.h.b16 %v479
      %v831 = vunpack.c.l.b16 %v480
      %v832 = vunpack.c.h.b16 %v480
      %v833 = vunpack.c.l.b16 %v481
      %v834 = vunpack.c.h.b16 %v481
      %v835 = vunpack.c.l.b16 %v482
      %v836 = vunpack.c.h.b16 %v482
      %v837 = vunpack.c.l.b16 %v483
      %v838 = vunpack.c.h.b16 %v483
      %v839 = vunpack.c.l.b16 %v484
      %v840 = vunpack.c.h.b16 %v484
      %v841 = vunpack.c.l.b16 %v485
      %v842 = vunpack.c.h.b16 %v485
      %v843 = vunpack.c.l.b16 %v486
      %v844 = vunpack.c.h.b16 %v486
      %v845 = vunpack.c.l.b16 %v487
      %v846 = vunpack.c.h.b16 %v487
      %v847 = vunpack.c.l.b16 %v488
      %v848 = vunpack.c.h.b16 %v488
      %v849 = vunpack.c.l.b16 %v489
      %v850 = vunpack.c.h.b16 %v489
      %v851 = vunpack.c.l.b16 %v490
      %v852 = vunpack.c.h.b16 %v490
      %v853 = vunpack.c.l.b16 %v491
      %v854 = vunpack.c.h.b16 %v491
      %v855 = vunpack.c.l.b16 %v492
      %v856 = vunpack.c.h.b16 %v492
      %v857 = vunpack.c.l.b16 %v493
      %v858 = vunpack.c.h.b16 %v493
      %v859 = vunpack.c.l.b16 %v494
      %v860 = vunpack.c.h.b16 %v494
      %v861 = vunpack.c.l.b16 %v495
      %v862 = vunpack.c.h.b16 %v495
      %v863 = vunpack.c.l.b16 %v496
      %v864 = vunpack.c.h.b16 %v496
      %v865 = vunpack.c.l.b16 %v497
      %v866 = vunpack.c.h.b16 %v497
      %v867 = vunpack.c.l.b16 %v498
      %v868 = vunpack.c.h.b16 %v498
      %v869 = vunpack.c.l.b16 %v499
      %v870 = vunpack.c.h.b16 %v499
      %v871 = vunpack.c.l.b16 %v500
      %v872 = vunpack.c.h.b16 %v500
      %v873 = vunpack.c.l.b16 %v501
      %v874 = vunpack.c.h.b16 %v501
      %v875 = vunpack.c.l.b16 %v502
      %v876 = vunpack.c.h.b16 %v502
      %v877 = vunpack.c.l.b16 %v503
      %v878 = vunpack.c.h.b16 %v503
      %v879 = vunpack.c.l.b16 %v504
      %v880 = vunpack.c.h.b16 %v504
      %v881 = vunpack.c.l.b16 %v505
      %v882 = vunpack.c.h.b16 %v505
      %v883 = vunpack.c.l.b16 %v506
      %v884 = vunpack.c.h.b16 %v506
      %v885 = vunpack.c.l.b16 %v507
      %v886 = vunpack.c.h.b16 %v507
      %v887 = vunpack.c.l.b16 %v508
      %v888 = vunpack.c.h.b16 %v508
      %v889 = vunpack.c.l.b16 %v509
      %v890 = vunpack.c.h.b16 %v509
      %v891 = vunpack.c.l.b16 %v510
      %v892 = vunpack.c.h.b16 %v510
      %v893 = vunpack.c.l.b16 %v511
      %v894 = vunpack.c.h.b16 %v511
      %v895 = vunpack.c.l.b16 %v512
      %v896 = vunpack.c.h.b16 %v512
      %v897 = vunpack.c.l.b16 %v513
      %v898 = vunpack.c.h.b16 %v513
      %v899 = vunpack.c.l.b16 %v514
      %v900 = vunpack.c.h.b16 %v514
      %v901 = vunpack.c.l.b16 %v515
      %v902 = vunpack.c.h.b16 %v515
      %v903 = vpack.c.b16 %v809, %v807
      %v904 = vpack.c.b16 %v810, %v808
      %v905 = vpack.c.b16 %v813, %v811
      %v906 = vpack.c.b16 %v814, %v812
      %v907 = vpack.c.b16 %v817, %v815
      %v908 = vpack.c.b16 %v818, %v816
      %v909 = vpack.c.b16 %v821, %v819
      %v910 = vpack.c.b16 %v822, %v820
      %v911 = vpack.c.b16 %v825, %v823
      %v912 = vpack.c.b16 %v826, %v824
      %v913 = vpack.c.b16 %v829, %v827
      %v914 = vpack.c.b16 %v830, %v828
      %v915 = vpack.c.b16 %v833, %v831
      %v916 = vpack.c.b16 %v834, %v832
      %v917 = vpack.c.b16 %v837, %v835
      %v918 = vpack.c.b16 %v838, %v836
      %v919 = vpack.c.b16 %v841, %v839
      %v920 = vpack.c.b16 %v842, %v840
      %v921 = vpack.c.b16 %v845, %v843
      %v922 = vpack.c.b16 %v846, %v844
      %v923 = vpack.c.b16 %v849, %v847
      %v924 = vpack.c.b16 %v850, %v848
      %v925 = vpack.c.b16 %v853, %v851
      %v926 = vpack.c.b16 %v854, %v852
      %v927 = vpack.c.b16 %v857, %v855
      %v928 = vpack.c.b16 %v858, %v856
      %v929 = vpack.c.b16 %v861, %v859
      %v930 = vpack.c.b16 %v862, %v860
      %v931 = vpack.c.b16 %v865, %v863
      %v932 = vpack.c.b16 %v866, %v864
      %v933 = vpack.c.b16 %v869, %v867
      %v934 = vpack.c.b16 %v870, %v868
      %v935 = vpack.c.b16 %v873, %v871
      %v936 = vpack.c.b16 %v874, %v872
      %v937 = vpack.c.b16 %v877, %v875
      %v938 = vpack.c.b16 %v878, %v876
      %v939 = vpack.c.b16 %v881, %v879
      %v940 = vpack.c.b16 %v882, %v880
      %v941 = vpack.c.b16 %v885, %v883
      %v942 = vpack.c.b16 %v886, %v884
      %v943 = vpack.c.b16 %v889, %v887
      %v944 = vpack.c.b16 %v890, %v888
      %v945 = vpack.c.b16 %v893, %v891
      %v946 = vpack.c.b16 %v894, %v892
      %v947 = vpack.c.b16 %v897, %v895
      %v948 = vpack.c.b16 %v898, %v896
      %v949 = vpack.c.b16 %v901, %v899
      %v950 = vpack.c.b16 %v902, %v900
      %999 = vmatpush.bf16.msra.mxu0 %v917
      %1000 = vmatpush.bf16.msra.mxu0 %v915
      %1001 = vmatpush.bf16.msra.mxu0 %v913
      %1002 = vmatpush.bf16.msra.mxu0 %v911
      %1003 = vmatpush.bf16.msra.mxu0 %v909
      %1004 = vmatpush.bf16.msra.mxu0 %v907
      %1005 = vmatpush.bf16.msra.mxu0 %v905
      %1006 = vmatpush.bf16.msra.mxu0 %v903
      %1007 = vmatmul.bf16.gmra.mxu0 %v753
      %v1008 = vpop.f32.mrf.mxu0
      %v1009 = vadd.f32 0.0, %v1008
      %v1010 = vpop.f32.mrf.mxu0
      %v1011 = vadd.f32 0.0, %v1010
      %1012 = vdwg.mxu0
      %1013 = vmatpush.bf16.msra.mxu0 %v933
      %1014 = vmatpush.bf16.msra.mxu0 %v931
      %1015 = vmatpush.bf16.msra.mxu0 %v929
      %1016 = vmatpush.bf16.msra.mxu0 %v927
      %1017 = vmatpush.bf16.msra.mxu0 %v925
      %1018 = vmatpush.bf16.msra.mxu0 %v923
      %1019 = vmatpush.bf16.msra.mxu0 %v921
      %1020 = vmatpush.bf16.msra.mxu0 %v919
      %1021 = vmatmul.bf16.gmra.mxu0 %v754
      %v1022 = vpop.f32.mrf.mxu0
      %v1023 = vadd.f32 %v1009, %v1022
      %v1024 = vpop.f32.mrf.mxu0
      %v1025 = vadd.f32 %v1011, %v1024
      %1026 = vdwg.mxu0
      %1027 = vmatpush.bf16.msra.mxu0 %v949
      %1028 = vmatpush.bf16.msra.mxu0 %v947
      %1029 = vmatpush.bf16.msra.mxu0 %v945
      %1030 = vmatpush.bf16.msra.mxu0 %v943
      %1031 = vmatpush.bf16.msra.mxu0 %v941
      %1032 = vmatpush.bf16.msra.mxu0 %v939
      %1033 = vmatpush.bf16.msra.mxu0 %v937
      %1034 = vmatpush.bf16.msra.mxu0 %v935
      %1035 = vmatmul.bf16.gmra.mxu0 %v755
      %v1036 = vpop.f32.mrf.mxu0
      %v1037 = vadd.f32 %v1023, %v1036
      %v1038 = vpop.f32.mrf.mxu0
      %v1039 = vadd.f32 %v1025, %v1038
      %1040 = vdwg.mxu0
      %1041 = vmatpush.bf16.msra.mxu0 %v918
      %1042 = vmatpush.bf16.msra.mxu0 %v916
      %1043 = vmatpush.bf16.msra.mxu0 %v914
      %1044 = vmatpush.bf16.msra.mxu0 %v912
      %1045 = vmatpush.bf16.msra.mxu0 %v910
      %1046 = vmatpush.bf16.msra.mxu0 %v908
      %1047 = vmatpush.bf16.msra.mxu0 %v906
      %1048 = vmatpush.bf16.msra.mxu0 %v904
      %1049 = vmatmul.bf16.gmra.mxu0 %v753
      %v1050 = vpop.f32.mrf.mxu0
      %v1051 = vadd.f32 0.0, %v1050
      %v1052 = vpop.f32.mrf.mxu0
      %v1053 = vadd.f32 0.0, %v1052
      %1054 = vdwg.mxu0
      %1055 = vmatpush.bf16.msra.mxu0 %v934
      %1056 = vmatpush.bf16.msra.mxu0 %v932
      %1057 = vmatpush.bf16.msra.mxu0 %v930
      %1058 = vmatpush.bf16.msra.mxu0 %v928
      %1059 = vmatpush.bf16.msra.mxu0 %v926
      %1060 = vmatpush.bf16.msra.mxu0 %v924
      %1061 = vmatpush.bf16.msra.mxu0 %v922
      %1062 = vmatpush.bf16.msra.mxu0 %v920
      %1063 = vmatmul.bf16.gmra.mxu0 %v754
      %v1064 = vpop.f32.mrf.mxu0
      %v1065 = vadd.f32 %v1051, %v1064
      %v1066 = vpop.f32.mrf.mxu0
      %v1067 = vadd.f32 %v1053, %v1066
      %1068 = vdwg.mxu0
      %1069 = vmatpush.bf16.msra.mxu0 %v950
      %1070 = vmatpush.bf16.msra.mxu0 %v948
      %1071 = vmatpush.bf16.msra.mxu0 %v946
      %1072 = vmatpush.bf16.msra.mxu0 %v944
      %1073 = vmatpush.bf16.msra.mxu0 %v942
      %1074 = vmatpush.bf16.msra.mxu0 %v940
      %1075 = vmatpush.bf16.msra.mxu0 %v938
      %1076 = vmatpush.bf16.msra.mxu0 %v936
      %1077 = vmatmul.bf16.gmra.mxu0 %v755
      %v1078 = vpop.f32.mrf.mxu0
      %v1079 = vadd.f32 %v1065, %v1078
      %v1080 = vpop.f32.mrf.mxu0
      %v1081 = vadd.f32 %v1067, %v1080
      %1082 = vdwg.mxu0
      %1083 = vst [vmem:[#allocation1] ss:$4 sm:$0xff] %v721
      %s1084 = scalar_lea.vmem [#allocation1], 1
      %1085 = vst [vmem:[%s1084] ss:$4 sm:$0xff] %v726
      %s1086 = scalar_lea.vmem [#allocation1], 2
      %1087 = vst [vmem:[%s1086] ss:$4 sm:$0xff] %v731
      %s1088 = scalar_lea.vmem [#allocation1], 3
      %1089 = vst [vmem:[%s1088] ss:$4 sm:$0xff] %v736
      %v1090 = vld.sshfl [vmem:[#allocation1] sm:$0xff pattern:$0x73625140]
      %v1091 = vld.sshfl [vmem:[#allocation1 + $0x8] sm:$0xff pattern:$0x73625140]
      %v1092 = vld.sshfl [vmem:[#allocation1 + $0x10] sm:$0xff pattern:$0x73625140]
      %v1144 = vunpack.c.l.b16 %v420
      %v1145 = vunpack.c.h.b16 %v420
      %v1146 = vunpack.c.l.b16 %v421
      %v1147 = vunpack.c.h.b16 %v421
      %v1148 = vunpack.c.l.b16 %v422
      %v1149 = vunpack.c.h.b16 %v422
      %v1150 = vunpack.c.l.b16 %v423
      %v1151 = vunpack.c.h.b16 %v423
      %v1152 = vunpack.c.l.b16 %v424
      %v1153 = vunpack.c.h.b16 %v424
      %v1154 = vunpack.c.l.b16 %v425
      %v1155 = vunpack.c.h.b16 %v425
      %v1156 = vunpack.c.l.b16 %v426
      %v1157 = vunpack.c.h.b16 %v426
      %v1158 = vunpack.c.l.b16 %v427
      %v1159 = vunpack.c.h.b16 %v427
      %v1160 = vunpack.c.l.b16 %v428
      %v1161 = vunpack.c.h.b16 %v428
      %v1162 = vunpack.c.l.b16 %v429
      %v1163 = vunpack.c.h.b16 %v429
      %v1164 = vunpack.c.l.b16 %v430
      %v1165 = vunpack.c.h.b16 %v430
      %v1166 = vunpack.c.l.b16 %v431
      %v1167 = vunpack.c.h.b16 %v431
      %v1168 = vunpack.c.l.b16 %v432
      %v1169 = vunpack.c.h.b16 %v432
      %v1170 = vunpack.c.l.b16 %v433
      %v1171 = vunpack.c.h.b16 %v433
      %v1172 = vunpack.c.l.b16 %v434
      %v1173 = vunpack.c.h.b16 %v434
      %v1174 = vunpack.c.l.b16 %v435
      %v1175 = vunpack.c.h.b16 %v435
      %v1176 = vunpack.c.l.b16 %v436
      %v1177 = vunpack.c.h.b16 %v436
      %v1178 = vunpack.c.l.b16 %v437
      %v1179 = vunpack.c.h.b16 %v437
      %v1180 = vunpack.c.l.b16 %v438
      %v1181 = vunpack.c.h.b16 %v438
      %v1182 = vunpack.c.l.b16 %v439
      %v1183 = vunpack.c.h.b16 %v439
      %v1184 = vunpack.c.l.b16 %v440
      %v1185 = vunpack.c.h.b16 %v440
      %v1186 = vunpack.c.l.b16 %v441
      %v1187 = vunpack.c.h.b16 %v441
      %v1188 = vunpack.c.l.b16 %v442
      %v1189 = vunpack.c.h.b16 %v442
      %v1190 = vunpack.c.l.b16 %v443
      %v1191 = vunpack.c.h.b16 %v443
      %v1192 = vunpack.c.l.b16 %v444
      %v1193 = vunpack.c.h.b16 %v444
      %v1194 = vunpack.c.l.b16 %v445
      %v1195 = vunpack.c.h.b16 %v445
      %v1196 = vunpack.c.l.b16 %v446
      %v1197 = vunpack.c.h.b16 %v446
      %v1198 = vunpack.c.l.b16 %v447
      %v1199 = vunpack.c.h.b16 %v447
      %v1200 = vunpack.c.l.b16 %v448
      %v1201 = vunpack.c.h.b16 %v448
      %v1202 = vunpack.c.l.b16 %v449
      %v1203 = vunpack.c.h.b16 %v449
      %v1204 = vunpack.c.l.b16 %v450
      %v1205 = vunpack.c.h.b16 %v450
      %v1206 = vunpack.c.l.b16 %v451
      %v1207 = vunpack.c.h.b16 %v451
      %v1208 = vunpack.c.l.b16 %v452
      %v1209 = vunpack.c.h.b16 %v452
      %v1210 = vunpack.c.l.b16 %v453
      %v1211 = vunpack.c.h.b16 %v453
      %v1212 = vunpack.c.l.b16 %v454
      %v1213 = vunpack.c.h.b16 %v454
      %v1214 = vunpack.c.l.b16 %v455
      %v1215 = vunpack.c.h.b16 %v455
      %v1216 = vunpack.c.l.b16 %v456
      %v1217 = vunpack.c.h.b16 %v456
      %v1218 = vunpack.c.l.b16 %v457
      %v1219 = vunpack.c.h.b16 %v457
      %v1220 = vunpack.c.l.b16 %v458
      %v1221 = vunpack.c.h.b16 %v458
      %v1222 = vunpack.c.l.b16 %v459
      %v1223 = vunpack.c.h.b16 %v459
      %v1224 = vunpack.c.l.b16 %v460
      %v1225 = vunpack.c.h.b16 %v460
      %v1226 = vunpack.c.l.b16 %v461
      %v1227 = vunpack.c.h.b16 %v461
      %v1228 = vunpack.c.l.b16 %v462
      %v1229 = vunpack.c.h.b16 %v462
      %v1230 = vunpack.c.l.b16 %v463
      %v1231 = vunpack.c.h.b16 %v463
      %v1232 = vunpack.c.l.b16 %v464
      %v1233 = vunpack.c.h.b16 %v464
      %v1234 = vunpack.c.l.b16 %v465
      %v1235 = vunpack.c.h.b16 %v465
      %v1236 = vunpack.c.l.b16 %v466
      %v1237 = vunpack.c.h.b16 %v466
      %v1238 = vunpack.c.l.b16 %v467
      %v1239 = vunpack.c.h.b16 %v467
      %v1240 = vpack.c.b16 %v1146, %v1144
      %v1241 = vpack.c.b16 %v1147, %v1145
      %v1242 = vpack.c.b16 %v1150, %v1148
      %v1243 = vpack.c.b16 %v1151, %v1149
      %v1244 = vpack.c.b16 %v1154, %v1152
      %v1245 = vpack.c.b16 %v1155, %v1153
      %v1246 = vpack.c.b16 %v1158, %v1156
      %v1247 = vpack.c.b16 %v1159, %v1157
      %v1248 = vpack.c.b16 %v1162, %v1160
      %v1249 = vpack.c.b16 %v1163, %v1161
      %v1250 = vpack.c.b16 %v1166, %v1164
      %v1251 = vpack.c.b16 %v1167, %v1165
      %v1252 = vpack.c.b16 %v1170, %v1168
      %v1253 = vpack.c.b16 %v1171, %v1169
      %v1254 = vpack.c.b16 %v1174, %v1172
      %v1255 = vpack.c.b16 %v1175, %v1173
      %v1256 = vpack.c.b16 %v1178, %v1176
      %v1257 = vpack.c.b16 %v1179, %v1177
      %v1258 = vpack.c.b16 %v1182, %v1180
      %v1259 = vpack.c.b16 %v1183, %v1181
      %v1260 = vpack.c.b16 %v1186, %v1184
      %v1261 = vpack.c.b16 %v1187, %v1185
      %v1262 = vpack.c.b16 %v1190, %v1188
      %v1263 = vpack.c.b16 %v1191, %v1189
      %v1264 = vpack.c.b16 %v1194, %v1192
      %v1265 = vpack.c.b16 %v1195, %v1193
      %v1266 = vpack.c.b16 %v1198, %v1196
      %v1267 = vpack.c.b16 %v1199, %v1197
      %v1268 = vpack.c.b16 %v1202, %v1200
      %v1269 = vpack.c.b16 %v1203, %v1201
      %v1270 = vpack.c.b16 %v1206, %v1204
      %v1271 = vpack.c.b16 %v1207, %v1205
      %v1272 = vpack.c.b16 %v1210, %v1208
      %v1273 = vpack.c.b16 %v1211, %v1209
      %v1274 = vpack.c.b16 %v1214, %v1212
      %v1275 = vpack.c.b16 %v1215, %v1213
      %v1276 = vpack.c.b16 %v1218, %v1216
      %v1277 = vpack.c.b16 %v1219, %v1217
      %v1278 = vpack.c.b16 %v1222, %v1220
      %v1279 = vpack.c.b16 %v1223, %v1221
      %v1280 = vpack.c.b16 %v1226, %v1224
      %v1281 = vpack.c.b16 %v1227, %v1225
      %v1282 = vpack.c.b16 %v1230, %v1228
      %v1283 = vpack.c.b16 %v1231, %v1229
      %v1284 = vpack.c.b16 %v1234, %v1232
      %v1285 = vpack.c.b16 %v1235, %v1233
      %v1286 = vpack.c.b16 %v1238, %v1236
      %v1287 = vpack.c.b16 %v1239, %v1237
      %1336 = vmatpush.bf16.msra.mxu0 %v1254
      %1337 = vmatpush.bf16.msra.mxu0 %v1252
      %1338 = vmatpush.bf16.msra.mxu0 %v1250
      %1339 = vmatpush.bf16.msra.mxu0 %v1248
      %1340 = vmatpush.bf16.msra.mxu0 %v1246
      %1341 = vmatpush.bf16.msra.mxu0 %v1244
      %1342 = vmatpush.bf16.msra.mxu0 %v1242
      %1343 = vmatpush.bf16.msra.mxu0 %v1240
      %1344 = vmatmul.bf16.gmra.mxu0 %v1090
      %v1345 = vpop.f32.mrf.mxu0
      %v1346 = vadd.f32 %v1037, %v1345
      %v1347 = vpop.f32.mrf.mxu0
      %v1348 = vadd.f32 %v1039, %v1347
      %1349 = vdwg.mxu0
      %1350 = vmatpush.bf16.msra.mxu0 %v1270
      %1351 = vmatpush.bf16.msra.mxu0 %v1268
      %1352 = vmatpush.bf16.msra.mxu0 %v1266
      %1353 = vmatpush.bf16.msra.mxu0 %v1264
      %1354 = vmatpush.bf16.msra.mxu0 %v1262
      %1355 = vmatpush.bf16.msra.mxu0 %v1260
      %1356 = vmatpush.bf16.msra.mxu0 %v1258
      %1357 = vmatpush.bf16.msra.mxu0 %v1256
      %1358 = vmatmul.bf16.gmra.mxu0 %v1091
      %v1359 = vpop.f32.mrf.mxu0
      %v1360 = vadd.f32 %v1346, %v1359
      %v1361 = vpop.f32.mrf.mxu0
      %v1362 = vadd.f32 %v1348, %v1361
      %1363 = vdwg.mxu0
      %1364 = vmatpush.bf16.msra.mxu0 %v1286
      %1365 = vmatpush.bf16.msra.mxu0 %v1284
      %1366 = vmatpush.bf16.msra.mxu0 %v1282
      %1367 = vmatpush.bf16.msra.mxu0 %v1280
      %1368 = vmatpush.bf16.msra.mxu0 %v1278
      %1369 = vmatpush.bf16.msra.mxu0 %v1276
      %1370 = vmatpush.bf16.msra.mxu0 %v1274
      %1371 = vmatpush.bf16.msra.mxu0 %v1272
      %1372 = vmatmul.bf16.gmra.mxu0 %v1092
      %v1373 = vpop.f32.mrf.mxu0
      %v1374 = vadd.f32 %v1360, %v1373
      %v1375 = vpop.f32.mrf.mxu0
      %v1376 = vadd.f32 %v1362, %v1375
      %1377 = vdwg.mxu0
      %1378 = vmatpush.bf16.msra.mxu0 %v1255
      %1379 = vmatpush.bf16.msra.mxu0 %v1253
      %1380 = vmatpush.bf16.msra.mxu0 %v1251
      %1381 = vmatpush.bf16.msra.mxu0 %v1249
      %1382 = vmatpush.bf16.msra.mxu0 %v1247
      %1383 = vmatpush.bf16.msra.mxu0 %v1245
      %1384 = vmatpush.bf16.msra.mxu0 %v1243
      %1385 = vmatpush.bf16.msra.mxu0 %v1241
      %1386 = vmatmul.bf16.gmra.mxu0 %v1090
      %v1387 = vpop.f32.mrf.mxu0
      %v1388 = vadd.f32 %v1079, %v1387
      %v1389 = vpop.f32.mrf.mxu0
      %v1390 = vadd.f32 %v1081, %v1389
      %1391 = vdwg.mxu0
      %1392 = vmatpush.bf16.msra.mxu0 %v1271
      %1393 = vmatpush.bf16.msra.mxu0 %v1269
      %1394 = vmatpush.bf16.msra.mxu0 %v1267
      %1395 = vmatpush.bf16.msra.mxu0 %v1265
      %1396 = vmatpush.bf16.msra.mxu0 %v1263
      %1397 = vmatpush.bf16.msra.mxu0 %v1261
      %1398 = vmatpush.bf16.msra.mxu0 %v1259
      %1399 = vmatpush.bf16.msra.mxu0 %v1257
      %1400 = vmatmul.bf16.gmra.mxu0 %v1091
      %v1401 = vpop.f32.mrf.mxu0
      %v1402 = vadd.f32 %v1388, %v1401
      %v1403 = vpop.f32.mrf.mxu0
      %v1404 = vadd.f32 %v1390, %v1403
      %1405 = vdwg.mxu0
      %1406 = vmatpush.bf16.msra.mxu0 %v1287
      %1407 = vmatpush.bf16.msra.mxu0 %v1285
      %1408 = vmatpush.bf16.msra.mxu0 %v1283
      %1409 = vmatpush.bf16.msra.mxu0 %v1281
      %1410 = vmatpush.bf16.msra.mxu0 %v1279
      %1411 = vmatpush.bf16.msra.mxu0 %v1277
      %1412 = vmatpush.bf16.msra.mxu0 %v1275
      %1413 = vmatpush.bf16.msra.mxu0 %v1273
      %1414 = vmatmul.bf16.gmra.mxu0 %v1092
      %v1415 = vpop.f32.mrf.mxu0
      %v1416 = vadd.f32 %v1402, %v1415
      %v1417 = vpop.f32.mrf.mxu0
      %v1418 = vadd.f32 %v1404, %v1417
      %1419 = vdwg.mxu0
      %v1422 = vrot.slane %v415, 6
      %v1423 = vrot.slane %v698, 4
      %v1426 = vsel %vm715, %v634, %v1422
      %v1428 = vsel %vm719, %v1426, %v1423
      %1429 = vst [vmem:[#allocation1] ss:$4 sm:$0xff] %v731
      %s1430 = scalar_lea.vmem [#allocation1], 1
      %1431 = vst [vmem:[%s1430] ss:$4 sm:$0xff] %v736
      %s1432 = scalar_lea.vmem [#allocation1], 2
      %1433 = vst [vmem:[%s1432] ss:$4 sm:$0xff] %v745
      %s1434 = scalar_lea.vmem [#allocation1], 3
      %1435 = vst [vmem:[%s1434] ss:$4 sm:$0xff] %v1428
      %v1436 = vld.sshfl [vmem:[#allocation1] sm:$0xff pattern:$0x73625140]
      %v1437 = vld.sshfl [vmem:[#allocation1 + $0x8] sm:$0xff pattern:$0x73625140]
      %v1438 = vld.sshfl [vmem:[#allocation1 + $0x10] sm:$0xff pattern:$0x73625140]
      %v1490 = vunpack.c.l.b16 %v516
      %v1491 = vunpack.c.h.b16 %v516
      %v1492 = vunpack.c.l.b16 %v517
      %v1493 = vunpack.c.h.b16 %v517
      %v1494 = vunpack.c.l.b16 %v518
      %v1495 = vunpack.c.h.b16 %v518
      %v1496 = vunpack.c.l.b16 %v519
      %v1497 = vunpack.c.h.b16 %v519
      %v1498 = vunpack.c.l.b16 %v520
      %v1499 = vunpack.c.h.b16 %v520
      %v1500 = vunpack.c.l.b16 %v521
      %v1501 = vunpack.c.h.b16 %v521
      %v1502 = vunpack.c.l.b16 %v522
      %v1503 = vunpack.c.h.b16 %v522
      %v1504 = vunpack.c.l.b16 %v523
      %v1505 = vunpack.c.h.b16 %v523
      %v1506 = vunpack.c.l.b16 %v524
      %v1507 = vunpack.c.h.b16 %v524
      %v1508 = vunpack.c.l.b16 %v525
      %v1509 = vunpack.c.h.b16 %v525
      %v1510 = vunpack.c.l.b16 %v526
      %v1511 = vunpack.c.h.b16 %v526
      %v1512 = vunpack.c.l.b16 %v527
      %v1513 = vunpack.c.h.b16 %v527
      %v1514 = vunpack.c.l.b16 %v528
      %v1515 = vunpack.c.h.b16 %v528
      %v1516 = vunpack.c.l.b16 %v529
      %v1517 = vunpack.c.h.b16 %v529
      %v1518 = vunpack.c.l.b16 %v530
      %v1519 = vunpack.c.h.b16 %v530
      %v1520 = vunpack.c.l.b16 %v531
      %v1521 = vunpack.c.h.b16 %v531
      %v1522 = vunpack.c.l.b16 %v532
      %v1523 = vunpack.c.h.b16 %v532
      %v1524 = vunpack.c.l.b16 %v533
      %v1525 = vunpack.c.h.b16 %v533
      %v1526 = vunpack.c.l.b16 %v534
      %v1527 = vunpack.c.h.b16 %v534
      %v1528 = vunpack.c.l.b16 %v535
      %v1529 = vunpack.c.h.b16 %v535
      %v1530 = vunpack.c.l.b16 %v536
      %v1531 = vunpack.c.h.b16 %v536
      %v1532 = vunpack.c.l.b16 %v537
      %v1533 = vunpack.c.h.b16 %v537
      %v1534 = vunpack.c.l.b16 %v538
      %v1535 = vunpack.c.h.b16 %v538
      %v1536 = vunpack.c.l.b16 %v539
      %v1537 = vunpack.c.h.b16 %v539
      %v1538 = vunpack.c.l.b16 %v540
      %v1539 = vunpack.c.h.b16 %v540
      %v1540 = vunpack.c.l.b16 %v541
      %v1541 = vunpack.c.h.b16 %v541
      %v1542 = vunpack.c.l.b16 %v542
      %v1543 = vunpack.c.h.b16 %v542
      %v1544 = vunpack.c.l.b16 %v543
      %v1545 = vunpack.c.h.b16 %v543
      %v1546 = vunpack.c.l.b16 %v544
      %v1547 = vunpack.c.h.b16 %v544
      %v1548 = vunpack.c.l.b16 %v545
      %v1549 = vunpack.c.h.b16 %v545
      %v1550 = vunpack.c.l.b16 %v546
      %v1551 = vunpack.c.h.b16 %v546
      %v1552 = vunpack.c.l.b16 %v547
      %v1553 = vunpack.c.h.b16 %v547
      %v1554 = vunpack.c.l.b16 %v548
      %v1555 = vunpack.c.h.b16 %v548
      %v1556 = vunpack.c.l.b16 %v549
      %v1557 = vunpack.c.h.b16 %v549
      %v1558 = vunpack.c.l.b16 %v550
      %v1559 = vunpack.c.h.b16 %v550
      %v1560 = vunpack.c.l.b16 %v551
      %v1561 = vunpack.c.h.b16 %v551
      %v1562 = vunpack.c.l.b16 %v552
      %v1563 = vunpack.c.h.b16 %v552
      %v1564 = vunpack.c.l.b16 %v553
      %v1565 = vunpack.c.h.b16 %v553
      %v1566 = vunpack.c.l.b16 %v554
      %v1567 = vunpack.c.h.b16 %v554
      %v1568 = vunpack.c.l.b16 %v555
      %v1569 = vunpack.c.h.b16 %v555
      %v1570 = vunpack.c.l.b16 %v556
      %v1571 = vunpack.c.h.b16 %v556
      %v1572 = vunpack.c.l.b16 %v557
      %v1573 = vunpack.c.h.b16 %v557
      %v1574 = vunpack.c.l.b16 %v558
      %v1575 = vunpack.c.h.b16 %v558
      %v1576 = vunpack.c.l.b16 %v559
      %v1577 = vunpack.c.h.b16 %v559
      %v1578 = vunpack.c.l.b16 %v560
      %v1579 = vunpack.c.h.b16 %v560
      %v1580 = vunpack.c.l.b16 %v561
      %v1581 = vunpack.c.h.b16 %v561
      %v1582 = vunpack.c.l.b16 %v562
      %v1583 = vunpack.c.h.b16 %v562
      %v1584 = vunpack.c.l.b16 %v563
      %v1585 = vunpack.c.h.b16 %v563
      %v1586 = vpack.c.b16 %v1492, %v1490
      %v1587 = vpack.c.b16 %v1493, %v1491
      %v1588 = vpack.c.b16 %v1496, %v1494
      %v1589 = vpack.c.b16 %v1497, %v1495
      %v1590 = vpack.c.b16 %v1500, %v1498
      %v1591 = vpack.c.b16 %v1501, %v1499
      %v1592 = vpack.c.b16 %v1504, %v1502
      %v1593 = vpack.c.b16 %v1505, %v1503
      %v1594 = vpack.c.b16 %v1508, %v1506
      %v1595 = vpack.c.b16 %v1509, %v1507
      %v1596 = vpack.c.b16 %v1512, %v1510
      %v1597 = vpack.c.b16 %v1513, %v1511
      %v1598 = vpack.c.b16 %v1516, %v1514
      %v1599 = vpack.c.b16 %v1517, %v1515
      %v1600 = vpack.c.b16 %v1520, %v1518
      %v1601 = vpack.c.b16 %v1521, %v1519
      %v1602 = vpack.c.b16 %v1524, %v1522
      %v1603 = vpack.c.b16 %v1525, %v1523
      %v1604 = vpack.c.b16 %v1528, %v1526
      %v1605 = vpack.c.b16 %v1529, %v1527
      %v1606 = vpack.c.b16 %v1532, %v1530
      %v1607 = vpack.c.b16 %v1533, %v1531
      %v1608 = vpack.c.b16 %v1536, %v1534
      %v1609 = vpack.c.b16 %v1537, %v1535
      %v1610 = vpack.c.b16 %v1540, %v1538
      %v1611 = vpack.c.b16 %v1541, %v1539
      %v1612 = vpack.c.b16 %v1544, %v1542
      %v1613 = vpack.c.b16 %v1545, %v1543
      %v1614 = vpack.c.b16 %v1548, %v1546
      %v1615 = vpack.c.b16 %v1549, %v1547
      %v1616 = vpack.c.b16 %v1552, %v1550
      %v1617 = vpack.c.b16 %v1553, %v1551
      %v1618 = vpack.c.b16 %v1556, %v1554
      %v1619 = vpack.c.b16 %v1557, %v1555
      %v1620 = vpack.c.b16 %v1560, %v1558
      %v1621 = vpack.c.b16 %v1561, %v1559
      %v1622 = vpack.c.b16 %v1564, %v1562
      %v1623 = vpack.c.b16 %v1565, %v1563
      %v1624 = vpack.c.b16 %v1568, %v1566
      %v1625 = vpack.c.b16 %v1569, %v1567
      %v1626 = vpack.c.b16 %v1572, %v1570
      %v1627 = vpack.c.b16 %v1573, %v1571
      %v1628 = vpack.c.b16 %v1576, %v1574
      %v1629 = vpack.c.b16 %v1577, %v1575
      %v1630 = vpack.c.b16 %v1580, %v1578
      %v1631 = vpack.c.b16 %v1581, %v1579
      %v1632 = vpack.c.b16 %v1584, %v1582
      %v1633 = vpack.c.b16 %v1585, %v1583
      %1682 = vmatpush.bf16.msra.mxu0 %v1600
      %1683 = vmatpush.bf16.msra.mxu0 %v1598
      %1684 = vmatpush.bf16.msra.mxu0 %v1596
      %1685 = vmatpush.bf16.msra.mxu0 %v1594
      %1686 = vmatpush.bf16.msra.mxu0 %v1592
      %1687 = vmatpush.bf16.msra.mxu0 %v1590
      %1688 = vmatpush.bf16.msra.mxu0 %v1588
      %1689 = vmatpush.bf16.msra.mxu0 %v1586
      %1690 = vmatmul.bf16.gmra.mxu0 %v1436
      %v1691 = vpop.f32.mrf.mxu0
      %v1692 = vadd.f32 0.0, %v1691
      %v1693 = vpop.f32.mrf.mxu0
      %v1694 = vadd.f32 0.0, %v1693
      %1695 = vdwg.mxu0
      %1696 = vmatpush.bf16.msra.mxu0 %v1616
      %1697 = vmatpush.bf16.msra.mxu0 %v1614
      %1698 = vmatpush.bf16.msra.mxu0 %v1612
      %1699 = vmatpush.bf16.msra.mxu0 %v1610
      %1700 = vmatpush.bf16.msra.mxu0 %v1608
      %1701 = vmatpush.bf16.msra.mxu0 %v1606
      %1702 = vmatpush.bf16.msra.mxu0 %v1604
      %1703 = vmatpush.bf16.msra.mxu0 %v1602
      %1704 = vmatmul.bf16.gmra.mxu0 %v1437
      %v1705 = vpop.f32.mrf.mxu0
      %v1706 = vadd.f32 %v1692, %v1705
      %v1707 = vpop.f32.mrf.mxu0
      %v1708 = vadd.f32 %v1694, %v1707
      %1709 = vdwg.mxu0
      %1710 = vmatpush.bf16.msra.mxu0 %v1632
      %1711 = vmatpush.bf16.msra.mxu0 %v1630
      %1712 = vmatpush.bf16.msra.mxu0 %v1628
      %1713 = vmatpush.bf16.msra.mxu0 %v1626
      %1714 = vmatpush.bf16.msra.mxu0 %v1624
      %1715 = vmatpush.bf16.msra.mxu0 %v1622
      %1716 = vmatpush.bf16.msra.mxu0 %v1620
      %1717 = vmatpush.bf16.msra.mxu0 %v1618
      %1718 = vmatmul.bf16.gmra.mxu0 %v1438
      %v1719 = vpop.f32.mrf.mxu0
      %v1720 = vadd.f32 %v1706, %v1719
      %v1721 = vpop.f32.mrf.mxu0
      %v1722 = vadd.f32 %v1708, %v1721
      %1723 = vdwg.mxu0
      %1724 = vmatpush.bf16.msra.mxu0 %v1601
      %1725 = vmatpush.bf16.msra.mxu0 %v1599
      %1726 = vmatpush.bf16.msra.mxu0 %v1597
      %1727 = vmatpush.bf16.msra.mxu0 %v1595
      %1728 = vmatpush.bf16.msra.mxu0 %v1593
      %1729 = vmatpush.bf16.msra.mxu0 %v1591
      %1730 = vmatpush.bf16.msra.mxu0 %v1589
      %1731 = vmatpush.bf16.msra.mxu0 %v1587
      %1732 = vmatmul.bf16.gmra.mxu0 %v1436
      %v1733 = vpop.f32.mrf.mxu0
      %v1734 = vadd.f32 0.0, %v1733
      %v1735 = vpop.f32.mrf.mxu0
      %v1736 = vadd.f32 0.0, %v1735
      %1737 = vdwg.mxu0
      %1738 = vmatpush.bf16.msra.mxu0 %v1617
      %1739 = vmatpush.bf16.msra.mxu0 %v1615
      %1740 = vmatpush.bf16.msra.mxu0 %v1613
      %1741 = vmatpush.bf16.msra.mxu0 %v1611
      %1742 = vmatpush.bf16.msra.mxu0 %v1609
      %1743 = vmatpush.bf16.msra.mxu0 %v1607
      %1744 = vmatpush.bf16.msra.mxu0 %v1605
      %1745 = vmatpush.bf16.msra.mxu0 %v1603
      %1746 = vmatmul.bf16.gmra.mxu0 %v1437
      %v1747 = vpop.f32.mrf.mxu0
      %v1748 = vadd.f32 %v1734, %v1747
      %v1749 = vpop.f32.mrf.mxu0
      %v1750 = vadd.f32 %v1736, %v1749
      %1751 = vdwg.mxu0
      %1752 = vmatpush.bf16.msra.mxu0 %v1633
      %1753 = vmatpush.bf16.msra.mxu0 %v1631
      %1754 = vmatpush.bf16.msra.mxu0 %v1629
      %1755 = vmatpush.bf16.msra.mxu0 %v1627
      %1756 = vmatpush.bf16.msra.mxu0 %v1625
      %1757 = vmatpush.bf16.msra.mxu0 %v1623
      %1758 = vmatpush.bf16.msra.mxu0 %v1621
      %1759 = vmatpush.bf16.msra.mxu0 %v1619
      %1760 = vmatmul.bf16.gmra.mxu0 %v1438
      %v1761 = vpop.f32.mrf.mxu0
      %v1762 = vadd.f32 %v1748, %v1761
      %v1763 = vpop.f32.mrf.mxu0
      %v1764 = vadd.f32 %v1750, %v1763
      %1765 = vdwg.mxu0
      %v1766 = vadd.f32 %v1374, %v1720
      %v1767 = vadd.f32 %v1416, %v1762
      %v1768 = vadd.f32 %v1376, %v1722
      %v1769 = vadd.f32 %v1418, %v1764
      %v1771 = vperm.slane %v564, 0
      %v1772 = vperm.slane %v564, 1
      %v1775 = vadd.f32 %v1766, %v1771
      %v1776 = vadd.f32 %v1767, %v1772
      %v1777 = vadd.f32 %v1768, %v1771
      %v1778 = vadd.f32 %v1769, %v1772
      %v1779 = vmax.f32 %v1775, 0.0
      %v1780 = vmax.f32 %v1776, 0.0
      %v1781 = vmax.f32 %v1777, 0.0
      %v1782 = vmax.f32 %v1778, 0.0
      %v1787 = vrot.slane %v1780, 4
      %v1788 = vrot.slane %v1782, 4
      %v1789 = vsel %vm719, %v1779, %v1787
      %v1790 = vsel %vm719, %v1787, %v1779
      %v1791 = vrot.slane %v1790, 4
      %v1792 = vsel %vm719, %v1781, %v1788
      %v1793 = vsel %vm719, %v1788, %v1781
      %v1794 = vrot.slane %v1793, 4
      %1795 = vst [vmem:[#allocation1] ss:$2 sm:$0xff] %v1789
      %v1796 = vld.sshfl [vmem:[#allocation1] sm:$0xff pattern:$0x75316420]
      %v1797 = vld.sshfl [vmem:[#allocation1 + $0x8] sm:$0xff pattern:$0x75316420]
      %s1798 = scalar_lea.vmem [#allocation1], 16
      %1799 = vst [vmem:[%s1798] ss:$2 sm:$0xff] %v1791
      %v1800 = vld.sshfl [vmem:[#allocation1 + $0x10] sm:$0xff pattern:$0x75316420]
      %v1801 = vld.sshfl [vmem:[#allocation1 + $0x18] sm:$0xff pattern:$0x75316420]
      %s1802 = scalar_lea.vmem [#allocation1], 32
      %1803 = vst [vmem:[%s1802] ss:$2 sm:$0xff] %v1792
      %v1804 = vld.sshfl [vmem:[#allocation1 + $0x20] sm:$0xff pattern:$0x75316420]
      %v1805 = vld.sshfl [vmem:[#allocation1 + $0x28] sm:$0xff pattern:$0x75316420]
      %s1806 = scalar_lea.vmem [#allocation1], 48
      %1807 = vst [vmem:[%s1806] ss:$2 sm:$0xff] %v1794
      %v1808 = vld.sshfl [vmem:[#allocation1 + $0x30] sm:$0xff pattern:$0x75316420]
      %v1809 = vld.sshfl [vmem:[#allocation1 + $0x38] sm:$0xff pattern:$0x75316420]
      %v1818 = vpack.c.bf16 %v1797, %v1796
      %v1819 = vpack.c.bf16 %v1801, %v1800
      %v1820 = vpack.c.bf16 %v1805, %v1804
      %v1821 = vpack.c.bf16 %v1809, %v1808
      %v1826 = vrot.slane %v1818, 2
      %v1827 = vrot.slane %v1819, 2
      %v1828 = vrot.slane %v1820, 2
      %v1829 = vrot.slane %v1821, 2
      %v1832 = vsel %vm715, %v1818, %v1826
      %v1835 = vsel %vm715, %v1819, %v1827
      %v1838 = vsel %vm715, %v1820, %v1828
      %v1841 = vsel %vm715, %v1821, %v1829
      %1846 = vst [vmem:[%s382] sm:$0xf] %v1832
      %1847 = vst [vmem:[%s382 + $0x4] sm:$0xf] %v1835
      %1848 = vst [vmem:[%s382 + $0x8] sm:$0xf] %v1838
      %1849 = vst [vmem:[%s382 + $0xc] sm:$0xf] %v1841
      %s1850 = smul.u32 4, %s21
      %p1851 = scmp.lt.s32.totalorder %s20, 1
      %s1852 = scalar_select %p1851, %s20, 1
      %p1853 = scmp.lt.s32.totalorder %s1850, 3
      %s1854 = scalar_select %p1853, %s1850, 3
      %s1855 = smul.addr %s1854, 2
      %s1856 = smul.addr %s1852, 8
      %s1857 = sadd.s32 %s1855, %s1856
      %s1858 = smul.addr %s1857, 2
      %s1859 = scalar_lea.vmem %s5, %s1858
      // Predicated region
      $region41: #{feature_extractor.8} parent=39 // pred_check
        %p1860 = pneg %p190
      $region42: #{feature_extractor.8} parent=39 // pred_check_branch
        %1862 = sbr.rel (%p1860) target = $region44
      $region43: #{feature_extractor.8} parent=39 // pred_region
        %s1863 = smul.u32 4, %s21
      $region44: #{feature_extractor.8} parent=39 // pred_fallthru
        _
    $region40: #{feature_extractor.8} parent=5 // pred_fallthru
      _
    %p1864 = scmp.le.s32.totalorder 2, %s11
    // Predicated region
    $region45: #{feature_extractor.8} parent=5 // pred_check
      %p1865 = pneg %p1864
    $region46: #{feature_extractor.8} parent=5 // pred_check_branch
      %1867 = sbr.rel (%p1865) target = $region48
    $region47: #{feature_extractor.8} parent=5 // pred_region
      %s1868 = ssub.s32 %s11, 2
      // Predicated region
      $region49: #{feature_extractor.8} parent=47 // pred_check
        %p1869 = pneg %p196
      $region50: #{feature_extractor.8} parent=47 // pred_check_branch
        %1871 = sbr.rel (%p1869) target = $region52
      $region51: #{feature_extractor.8} parent=47 // pred_region
        %s1872 = smul.u32 4, %s23
        %p1873 = scmp.lt.s32.totalorder %s22, 1
        %s1874 = scalar_select %p1873, %s22, 1
        %p1875 = scmp.lt.s32.totalorder %s1872, 3
        %s1876 = scalar_select %p1875, %s1872, 3
        %s1877 = smul.addr %s1876, 2
        %s1878 = smul.addr %s1874, 8
        %s1879 = sadd.s32 %s1877, %s1878
        %s1880 = smul.addr %s1879, 2
        %s1881 = scalar_lea.vmem %s5, %s1880
      $region52: #{feature_extractor.8} parent=47 // pred_fallthru
        _
    $region48: #{feature_extractor.8} parent=5 // pred_fallthru
      _
  $region6: #{feature_extractor.8} parent=0 // loop_footer
    %s15 = sadd.s32 1, %s11
  $region7: #{feature_extractor.8} parent=0 // loop_footer_branch
    %10 = sbr.rel target = $region3
  $region8: #{feature_extractor.8} parent=0 // loop_exit
    _

// kernel: feature_extractor.7
$region0: #{feature_extractor.7}
  #allocation0 [shape = 'u32[]', space=smem, size = 0x4, offset = 0x4, fixed_abs, tag = 'smem constant byte address 0x4 - core index']
  #allocation1 [shape = 'u32[72,128]{1,0:T(1,128)}', space=vmem, size = 0x9000, scoped, tag = 'internal scratch']
  %s0 = inlined_call_operand.vmem [shape: bf16[2,12,8,64], index: 0, kind: input, shape index: {}]
  %s1 = inlined_call_operand.vmem [shape: bf16[3,192,128], index: 1, kind: input, shape index: {}]
  %s2 = inlined_call_operand.vmem [shape: f32[1,128], index: 2, kind: input, shape index: {}]
  %s3 = inlined_call_operand.vmem [shape: bf16[3,384,128], index: 3, kind: input, shape index: {}]
  %s4 = inlined_call_operand.vmem [shape: f32[1,128], index: 4, kind: input, shape index: {}]
  %s5 = inlined_call_operand.vmem [shape: bf16[2,4,4,128], index: 5, kind: output, shape index: {}]
  %s6 = sld [smem:[#allocation0]]
  $region53: #{feature_extractor.7} parent=0
    _
  %s8 = ssub.s32 1, %s6
  %s9 = scalar_select 0, %s8, %s6
  loop: start=0, step=1, limit=4
  $region2: #{feature_extractor.7} parent=0 // loop_pre_header
    _
  $region3: #{feature_extractor.7} parent=0 // loop_header
    %s11 = sphi 0, %s15
    %p12 = scmp.ge.s32.totalorder %s11, 4
    %s18 = sphi 0, %s30
    %s19 = sphi 0, %s26
    %s20 = sphi 0, %s18
    %s21 = sphi 0, %s19
    %s22 = sphi 0, %s20
    %s23 = sphi 0, %s21
    %s33 = sphi 0, %s35
    %s36 = sphi 0, %s33
    %s37 = sphi 0, %s36
    %s53 = sphi 0, %s37
    %s57 = sphi 0, %s57
    %s59 = sphi 0, %s57
    %s60 = sphi 0, %s59
    %s74 = sphi 0, %s60
    %s78 = sphi 0, %s78
    %s80 = sphi 0, %s78
    %s81 = sphi 0, %s80
    %s95 = sphi 0, %s81
    %s99 = sphi 0, %s99
    %s101 = sphi 0, %s99
    %s102 = sphi 0, %s101
    %s116 = sphi 0, %s102
    %s120 = sphi 0, %s120
    %s122 = sphi 0, %s120
    %s123 = sphi 0, %s122
    %s137 = sphi 0, %s123
    %s145 = sphi 0, %s147
    %s148 = sphi 0, %s145
    %s149 = sphi 0, %s148
    %s165 = sphi 0, %s149
  $region4: #{feature_extractor.7} parent=0 // loop_header_branch
    %14 = sbr.rel (%p12) target = $region8
  $region5: #{feature_extractor.7} parent=0 // loop_body
    %s16 = ssub.s32 %s11, 1
    %s17 = ssub.s32 %s11, 2
    %s24 = sadd.s32 1, %s19
    %p25 = scmp.ge.s32.totalorder %s24, 1
    %s26 = scalar_select %p25, 0, %s24
    %s27 = sadd.s32 1, %s18
    %s28 = scalar_select %p25, %s27, %s18
    %p29 = scmp.ge.s32.totalorder %s28, 2
    %s30 = scalar_select %p29, 0, %s28
    %s31 = ssub.s32 %s18, %s30
    %p32 = scmp.eq.s32.totalorder %s31, 0
    %s34 = sadd.s32 %s33, 1
    %s35 = scalar_select %p32, %s33, %s34
    %p38 = pneg %p32
    %p39 = scmp.eq.s32.totalorder %s11, 1
    %p40 = por %p38, %p39
    %p41 = scmp.ne.s32.totalorder %s33, %s36
    %p42 = scmp.eq.s32.totalorder %s11, 0
    %p43 = por %p41, %p42
    %p44 = scmp.ne.s32.totalorder %s33, %s36
    %p45 = scmp.eq.s32.totalorder %s16, 1
    %p46 = por %p44, %p45
    %p47 = scmp.ne.s32.totalorder %s36, %s37
    %p48 = scmp.eq.s32.totalorder %s16, 0
    %p49 = por %p47, %p48
    %p50 = scmp.ne.s32.totalorder %s36, %s37
    %p51 = scmp.eq.s32.totalorder %s17, 1
    %p52 = por %p50, %p51
    %p54 = scmp.ne.s32.totalorder %s37, %s53
    %p55 = scmp.eq.s32.totalorder %s17, 0
    %p56 = por %p54, %p55
    %s58 = sadd.s32 %s57, 1
    %p61 = scmp.eq.s32.totalorder %s11, 1
    %p62 = scmp.ne.s32.totalorder %s57, %s59
    %p63 = scmp.eq.s32.totalorder %s11, 0
    %p64 = por %p62, %p63
    %p65 = scmp.ne.s32.totalorder %s57, %s59
    %p66 = scmp.eq.s32.totalorder %s16, 1
    %p67 = por %p65, %p66
    %p68 = scmp.ne.s32.totalorder %s59, %s60
    %p69 = scmp.eq.s32.totalorder %s16, 0
    %p70 = por %p68, %p69
    %p71 = scmp.ne.s32.totalorder %s59, %s60
    %p72 = scmp.eq.s32.totalorder %s17, 1
    %p73 = por %p71, %p72
    %p75 = scmp.ne.s32.totalorder %s60, %s74
    %p76 = scmp.eq.s32.totalorder %s17, 0
    %p77 = por %p75, %p76
    %s79 = sadd.s32 %s78, 1
    %p82 = scmp.eq.s32.totalorder %s11, 1
    %p83 = scmp.ne.s32.totalorder %s78, %s80
    %p84 = scmp.eq.s32.totalorder %s11, 0
    %p85 = por %p83, %p84
    %p86 = scmp.ne.s32.totalorder %s78, %s80
    %p87 = scmp.eq.s32.totalorder %s16, 1
    %p88 = por %p86, %p87
    %p89 = scmp.ne.s32.totalorder %s80, %s81
    %p90 = scmp.eq.s32.totalorder %s16, 0
    %p91 = por %p89, %p90
    %p92 = scmp.ne.s32.totalorder %s80, %s81
    %p93 = scmp.eq.s32.totalorder %s17, 1
    %p94 = por %p92, %p93
    %p96 = scmp.ne.s32.totalorder %s81, %s95
    %p97 = scmp.eq.s32.totalorder %s17, 0
    %p98 = por %p96, %p97
    %s100 = sadd.s32 %s99, 1
    %p103 = scmp.eq.s32.totalorder %s11, 1
    %p104 = scmp.ne.s32.totalorder %s99, %s101
    %p105 = scmp.eq.s32.totalorder %s11, 0
    %p106 = por %p104, %p105
    %p107 = scmp.ne.s32.totalorder %s99, %s101
    %p108 = scmp.eq.s32.totalorder %s16, 1
    %p109 = por %p107, %p108
    %p110 = scmp.ne.s32.totalorder %s101, %s102
    %p111 = scmp.eq.s32.totalorder %s16, 0
    %p112 = por %p110, %p111
    %p113 = scmp.ne.s32.totalorder %s101, %s102
    %p114 = scmp.eq.s32.totalorder %s17, 1
    %p115 = por %p113, %p114
    %p117 = scmp.ne.s32.totalorder %s102, %s116
    %p118 = scmp.eq.s32.totalorder %s17, 0
    %p119 = por %p117, %p118
    %s121 = sadd.s32 %s120, 1
    %p124 = scmp.eq.s32.totalorder %s11, 1
    %p125 = scmp.ne.s32.totalorder %s120, %s122
    %p126 = scmp.eq.s32.totalorder %s11, 0
    %p127 = por %p125, %p126
    %p128 = scmp.ne.s32.totalorder %s120, %s122
    %p129 = scmp.eq.s32.totalorder %s16, 1
    %p130 = por %p128, %p129
    %p131 = scmp.ne.s32.totalorder %s122, %s123
    %p132 = scmp.eq.s32.totalorder %s16, 0
    %p133 = por %p131, %p132
    %p134 = scmp.ne.s32.totalorder %s122, %s123
    %p135 = scmp.eq.s32.totalorder %s17, 1
    %p136 = por %p134, %p135
    %p138 = scmp.ne.s32.totalorder %s123, %s137
    %p139 = scmp.eq.s32.totalorder %s17, 0
    %p140 = por %p138, %p139
    %s141 = ssub.s32 %s18, %s30
    %s142 = ssub.s32 %s19, %s26
    %s143 = sor.u32 %s141, %s142
    %p144 = scmp.eq.s32.totalorder %s143, 0
    %s146 = sadd.s32 %s145, 1
    %s147 = scalar_select %p144, %s145, %s146
    %p150 = pneg %p144
    %p151 = scmp.eq.s32.totalorder %s11, 1
    %p152 = por %p150, %p151
    %p153 = scmp.ne.s32.totalorder %s145, %s148
    %p154 = scmp.eq.s32.totalorder %s11, 0
    %p155 = por %p153, %p154
    %p156 = scmp.ne.s32.totalorder %s145, %s148
    %p157 = scmp.eq.s32.totalorder %s16, 1
    %p158 = por %p156, %p157
    %p159 = scmp.ne.s32.totalorder %s148, %s149
    %p160 = scmp.eq.s32.totalorder %s16, 0
    %p161 = por %p159, %p160
    %p162 = scmp.ne.s32.totalorder %s148, %s149
    %p163 = scmp.eq.s32.totalorder %s17, 1
    %p164 = por %p162, %p163
    %p166 = scmp.ne.s32.totalorder %s149, %s165
    %p167 = scmp.eq.s32.totalorder %s17, 0
    %p168 = por %p166, %p167
    %p169 = scmp.le.s32.totalorder 1, %s11
    %p170 = scmp.lt.s32.totalorder %s11, 3
    %p171 = pnand %p169, %p170
    %p172 = pneg %p171
    // Predicated region
    $region9: #{feature_extractor.7} parent=5 // pred_check
      _
    $region10: #{feature_extractor.7} parent=5 // pred_check_branch
      %174 = sbr.rel (%p171) target = $region12
    $region11: #{feature_extractor.7} parent=5 // pred_region
      %s175 = ssub.s32 %s11, 1
      // Predicated region
      $region13: #{feature_extractor.7} parent=11 // pred_check
        %p176 = pneg %p70
      $region14: #{feature_extractor.7} parent=11 // pred_check_branch
        %178 = sbr.rel (%p176) target = $region16
      $region15: #{feature_extractor.7} parent=11 // pred_region
        _
      $region16: #{feature_extractor.7} parent=11 // pred_fallthru
        _
      // Predicated region
      $region17: #{feature_extractor.7} parent=11 // pred_check
        %p179 = pneg %p91
      $region18: #{feature_extractor.7} parent=11 // pred_check_branch
        %181 = sbr.rel (%p179) target = $region20
      $region19: #{feature_extractor.7} parent=11 // pred_region
        _
      $region20: #{feature_extractor.7} parent=11 // pred_fallthru
        _
      // Predicated region
      $region21: #{feature_extractor.7} parent=11 // pred_check
        %p182 = pneg %p112
      $region22: #{feature_extractor.7} parent=11 // pred_check_branch
        %184 = sbr.rel (%p182) target = $region24
      $region23: #{feature_extractor.7} parent=11 // pred_region
        _
      $region24: #{feature_extractor.7} parent=11 // pred_fallthru
        _
      // Predicated region
      $region25: #{feature_extractor.7} parent=11 // pred_check
        %p185 = pneg %p133
      $region26: #{feature_extractor.7} parent=11 // pred_check_branch
        %187 = sbr.rel (%p185) target = $region28
      $region27: #{feature_extractor.7} parent=11 // pred_region
        _
      $region28: #{feature_extractor.7} parent=11 // pred_fallthru
        _
    $region12: #{feature_extractor.7} parent=5 // pred_fallthru
      _
    %p188 = scmp.lt.s32.totalorder %s11, 2
    // Predicated region
    $region29: #{feature_extractor.7} parent=5 // pred_check
      %p189 = pneg %p188
    $region30: #{feature_extractor.7} parent=5 // pred_check_branch
      %191 = sbr.rel (%p189) target = $region32
    $region31: #{feature_extractor.7} parent=5 // pred_region
      // Predicated region
      $region33: #{feature_extractor.7} parent=31 // pred_check
        %p192 = pneg %p43
      $region34: #{feature_extractor.7} parent=31 // pred_check_branch
        %194 = sbr.rel (%p192) target = $region36
      $region35: #{feature_extractor.7} parent=31 // pred_region
        %p195 = scmp.lt.s32.totalorder %s18, 1
        %s196 = scalar_select %p195, %s18, 1
        %s197 = smul.addr %s196, 12
        %s198 = smul.addr %s197, 4
        %s199 = scalar_lea.vmem %s0, %s198
      $region36: #{feature_extractor.7} parent=31 // pred_fallthru
        _
    $region32: #{feature_extractor.7} parent=5 // pred_fallthru
      _
    %p200 = scmp.le.s32.totalorder 1, %s11
    %p201 = scmp.lt.s32.totalorder %s11, 3
    %p202 = pnand %p200, %p201
    %p203 = pneg %p202
    // Predicated region
    $region37: #{feature_extractor.7} parent=5 // pred_check
      _
    $region38: #{feature_extractor.7} parent=5 // pred_check_branch
      %205 = sbr.rel (%p202) target = $region40
    $region39: #{feature_extractor.7} parent=5 // pred_region
      %s206 = ssub.s32 %s11, 1
      %p207 = scmp.lt.s32.totalorder %s20, 1
      %s208 = scalar_select %p207, %s20, 1
      %s209 = smul.addr %s208, 12
      %s210 = smul.addr %s209, 4
      %s211 = scalar_lea.vmem %s0, %s210
      %p212 = pneg %p49
      %p213 = pneg %p46
      %p214 = pneg %p70
      %p215 = pneg %p67
      %p216 = pneg %p91
      %p217 = pneg %p88
      %p218 = pneg %p112
      %p219 = pneg %p109
      %p220 = pneg %p133
      %p221 = pneg %p130
      %p222 = pneg %p161
      %p223 = pneg %p158
      %s224 = smul.u32 4, %s21
      %p225 = scmp.lt.s32.totalorder %s20, 1
      %s226 = scalar_select %p225, %s20, 1
      %p227 = scmp.lt.s32.totalorder %s224, 3
      %s228 = scalar_select %p227, %s224, 3
      %s229 = smul.addr %s226, 4
      %s230 = sadd.s32 %s228, %s229
      %s231 = smul.addr %s230, 2
      %s232 = scalar_lea.vmem %s5, %s231
      %p233 = scmp.lt.s32.totalorder %s20, 1
      %s234 = scalar_select %p233, %s20, 1
      %s235 = smul.addr %s234, 12
      %s236 = smul.addr %s235, 4
      %s237 = scalar_lea.vmem %s0, %s236
      %s238 = smul.u32 4, %s21
      %p239 = scmp.lt.s32.totalorder %s20, 1
      %s240 = scalar_select %p239, %s20, 1
      %p241 = scmp.lt.s32.totalorder %s238, 3
      %s242 = scalar_select %p241, %s238, 3
      %s243 = smul.addr %s240, 4
      %s244 = sadd.s32 %s242, %s243
      %s245 = smul.addr %s244, 2
      %s246 = scalar_lea.vmem %s5, %s245
      %s247 = smul.u32 4, %s21
      %s249 = smul.u32 %s21, 8
      %s250 = smul.addr %s249, 4
      %s251 = scalar_lea.vmem %s237, %s250
      %v252 = vld [vmem:[%s251] sm:$0xf]
      %v253 = vld [vmem:[%s251 + $0x4] sm:$0xf]
      %v254 = vld [vmem:[%s251 + $0x8] sm:$0xf]
      %v255 = vld [vmem:[%s251 + $0xc] sm:$0xf]
      %v256 = vld [vmem:[%s251 + $0x10] sm:$0xf]
      %v257 = vld [vmem:[%s251 + $0x14] sm:$0xf]
      %v258 = vld [vmem:[%s251 + $0x18] sm:$0xf]
      %v259 = vld [vmem:[%s251 + $0x1c] sm:$0xf]
      %v260 = vld [vmem:[%s251 + $0x20] sm:$0xf]
      %v261 = vld [vmem:[%s251 + $0x24] sm:$0xf]
      %v262 = vld [vmem:[%s251 + $0x28] sm:$0xf]
      %v263 = vld [vmem:[%s251 + $0x2c] sm:$0xf]
      %v264 = vld [vmem:[%s1] sm:$0xf]
      %v265 = vld [vmem:[%s1 + $0x4] sm:$0xf]
      %v266 = vld [vmem:[%s1 + $0x8] sm:$0xf]
      %v267 = vld [vmem:[%s1 + $0xc] sm:$0xf]
      %v268 = vld [vmem:[%s1 + $0x10] sm:$0xf]
      %v269 = vld [vmem:[%s1 + $0x14] sm:$0xf]
      %v270 = vld [vmem:[%s1 + $0x18] sm:$0xf]
      %v271 = vld [vmem:[%s1 + $0x1c] sm:$0xf]
      %v272 = vld [vmem:[%s1 + $0x20] sm:$0xf]
      %v273 = vld [vmem:[%s1 + $0x24] sm:$0xf]
      %v274 = vld [vmem:[%s1 + $0x28] sm:$0xf]
      %v275 = vld [vmem:[%s1 + $0x2c] sm:$0xf]
      %v276 = vld [vmem:[%s1 + $0x30] sm:$0xf]
      %v277 = vld [vmem:[%s1 + $0x34] sm:$0xf]
      %v278 = vld [vmem:[%s1 + $0x38] sm:$0xf]
      %v279 = vld [vmem:[%s1 + $0x3c] sm:$0xf]
      %v280 = vld [vmem:[%s1 + $0x40] sm:$0xf]
      %v281 = vld [vmem:[%s1 + $0x44] sm:$0xf]
      %v282 = vld [vmem:[%s1 + $0x48] sm:$0xf]
      %v283 = vld [vmem:[%s1 + $0x4c] sm:$0xf]
      %v284 = vld [vmem:[%s1 + $0x50] sm:$0xf]
      %v285 = vld [vmem:[%s1 + $0x54] sm:$0xf]
      %v286 = vld [vmem:[%s1 + $0x58] sm:$0xf]
      %v287 = vld [vmem:[%s1 + $0x5c] sm:$0xf]
      %v288 = vld [vmem:[%s1 + $0x60] sm:$0xf]
      %v289 = vld [vmem:[%s1 + $0x64] sm:$0xf]
      %v290 = vld [vmem:[%s1 + $0x68] sm:$0xf]
      %v291 = vld [vmem:[%s1 + $0x6c] sm:$0xf]
      %v292 = vld [vmem:[%s1 + $0x70] sm:$0xf]
      %v293 = vld [vmem:[%s1 + $0x74] sm:$0xf]
      %v294 = vld [vmem:[%s1 + $0x78] sm:$0xf]
      %v295 = vld [vmem:[%s1 + $0x7c] sm:$0xf]
      %v296 = vld [vmem:[%s1 + $0x80] sm:$0xf]
      %v297 = vld [vmem:[%s1 + $0x84] sm:$0xf]
      %v298 = vld [vmem:[%s1 + $0x88] sm:$0xf]
      %v299 = vld [vmem:[%s1 + $0x8c] sm:$0xf]
      %v300 = vld [vmem:[%s1 + $0x90] sm:$0xf]
      %v301 = vld [vmem:[%s1 + $0x94] sm:$0xf]
      %v302 = vld [vmem:[%s1 + $0x98] sm:$0xf]
      %v303 = vld [vmem:[%s1 + $0x9c] sm:$0xf]
      %v304 = vld [vmem:[%s1 + $0xa0] sm:$0xf]
      %v305 = vld [vmem:[%s1 + $0xa4] sm:$0xf]
      %v306 = vld [vmem:[%s1 + $0xa8] sm:$0xf]
      %v307 = vld [vmem:[%s1 + $0xac] sm:$0xf]
      %v308 = vld [vmem:[%s1 + $0xb0] sm:$0xf]
      %v309 = vld [vmem:[%s1 + $0xb4] sm:$0xf]
      %v310 = vld [vmem:[%s1 + $0xb8] sm:$0xf]
      %v311 = vld [vmem:[%s1 + $0xbc] sm:$0xf]
      %v312 = vld [vmem:[%s1 + $0xc0] sm:$0xf]
      %v313 = vld [vmem:[%s1 + $0xc4] sm:$0xf]
      %v314 = vld [vmem:[%s1 + $0xc8] sm:$0xf]
      %v315 = vld [vmem:[%s1 + $0xcc] sm:$0xf]
      %v316 = vld [vmem:[%s1 + $0xd0] sm:$0xf]
      %v317 = vld [vmem:[%s1 + $0xd4] sm:$0xf]
      %v318 = vld [vmem:[%s1 + $0xd8] sm:$0xf]
      %v319 = vld [vmem:[%s1 + $0xdc] sm:$0xf]
      %v320 = vld [vmem:[%s1 + $0xe0] sm:$0xf]
      %v321 = vld [vmem:[%s1 + $0xe4] sm:$0xf]
      %v322 = vld [vmem:[%s1 + $0xe8] sm:$0xf]
      %v323 = vld [vmem:[%s1 + $0xec] sm:$0xf]
      %v324 = vld [vmem:[%s1 + $0xf0] sm:$0xf]
      %v325 = vld [vmem:[%s1 + $0xf4] sm:$0xf]
      %v326 = vld [vmem:[%s1 + $0xf8] sm:$0xf]
      %v327 = vld [vmem:[%s1 + $0xfc] sm:$0xf]
      %v328 = vld [vmem:[%s1 + $0x100] sm:$0xf]
      %v329 = vld [vmem:[%s1 + $0x104] sm:$0xf]
      %v330 = vld [vmem:[%s1 + $0x108] sm:$0xf]
      %v331 = vld [vmem:[%s1 + $0x10c] sm:$0xf]
      %v332 = vld [vmem:[%s1 + $0x110] sm:$0xf]
      %v333 = vld [vmem:[%s1 + $0x114] sm:$0xf]
      %v334 = vld [vmem:[%s1 + $0x118] sm:$0xf]
      %v335 = vld [vmem:[%s1 + $0x11c] sm:$0xf]
      %v336 = vld [vmem:[%s2] sm:$0x1]
      %v349 = vunpack.c.l.b16 %v252
      %v350 = vunpack.c.l.b16 %v253
      %v351 = vunpack.c.l.b16 %v254
      %v352 = vunpack.c.l.b16 %v255
      %v353 = vunpack.c.l.b16 %v256
      %v354 = vunpack.c.l.b16 %v257
      %v355 = vunpack.c.l.b16 %v258
      %v356 = vunpack.c.l.b16 %v259
      %v357 = vunpack.c.l.b16 %v260
      %v358 = vunpack.c.l.b16 %v261
      %v359 = vunpack.c.l.b16 %v262
      %v360 = vunpack.c.l.b16 %v263
      %v361 = vpack.c.b16 %v349, %v349
      %v362 = vpack.c.b16 %v350, %v350
      %v363 = vpack.c.b16 %v351, %v351
      %v364 = vpack.c.b16 %v352, %v352
      %v365 = vpack.c.b16 %v353, %v353
      %v366 = vpack.c.b16 %v354, %v354
      %v367 = vpack.c.b16 %v355, %v355
      %v368 = vpack.c.b16 %v356, %v356
      %v369 = vpack.c.b16 %v357, %v357
      %v370 = vpack.c.b16 %v358, %v358
      %v371 = vpack.c.b16 %v359, %v359
      %v372 = vpack.c.b16 %v360, %v360
      %v374 = vshrl.u32 %v361, 16
      %v376 = vrot.slane %v374, 7
      %v377 = vshll.u32 %v361, 16
      %v379 = vor.u32 %v376, %v377
      %v381 = vshrl.u32 %v362, 16
      %v383 = vrot.slane %v381, 7
      %v384 = vshll.u32 %v362, 16
      %v386 = vor.u32 %v383, %v384
      %v388 = vshrl.u32 %v363, 16
      %v390 = vrot.slane %v388, 7
      %v391 = vshll.u32 %v363, 16
      %v393 = vor.u32 %v390, %v391
      %v395 = vshrl.u32 %v364, 16
      %v397 = vrot.slane %v395, 7
      %v398 = vshll.u32 %v364, 16
      %v400 = vor.u32 %v397, %v398
      %v402 = vshrl.u32 %v365, 16
      %v404 = vrot.slane %v402, 7
      %v405 = vshll.u32 %v365, 16
      %v407 = vor.u32 %v404, %v405
      %v409 = vshrl.u32 %v366, 16
      %v411 = vrot.slane %v409, 7
      %v412 = vshll.u32 %v366, 16
      %v414 = vor.u32 %v411, %v412
      %v416 = vshrl.u32 %v367, 16
      %v418 = vrot.slane %v416, 7
      %v419 = vshll.u32 %v367, 16
      %v421 = vor.u32 %v418, %v419
      %v423 = vshrl.u32 %v368, 16
      %v425 = vrot.slane %v423, 7
      %v426 = vshll.u32 %v368, 16
      %v428 = vor.u32 %v425, %v426
      %v430 = vshrl.u32 %v369, 16
      %v432 = vrot.slane %v430, 7
      %v433 = vshll.u32 %v369, 16
      %v435 = vor.u32 %v432, %v433
      %v437 = vshrl.u32 %v370, 16
      %v439 = vrot.slane %v437, 7
      %v440 = vshll.u32 %v370, 16
      %v442 = vor.u32 %v439, %v440
      %v444 = vshrl.u32 %v371, 16
      %v446 = vrot.slane %v444, 7
      %v447 = vshll.u32 %v371, 16
      %v449 = vor.u32 %v446, %v447
      %v451 = vshrl.u32 %v372, 16
      %v453 = vrot.slane %v451, 7
      %v454 = vshll.u32 %v372, 16
      %v456 = vor.u32 %v453, %v454
      %vm469 = vcmask 1040384
      %vm470 = vsmask.f32 256
      %vm471 = vmand %vm469, %vm470
      %v472 = vsel %vm471, 0, %v379
      %v473 = vsel %vm471, 0, %v386
      %v474 = vsel %vm471, 0, %v393
      %v475 = vsel %vm471, 0, %v400
      %v476 = vsel %vm471, 0, %v407
      %v477 = vsel %vm471, 0, %v414
      %v478 = vsel %vm471, 0, %v421
      %v479 = vsel %vm471, 0, %v428
      %v480 = vsel %vm471, 0, %v435
      %v481 = vsel %vm471, 0, %v442
      %v482 = vsel %vm471, 0, %v449
      %v483 = vsel %vm471, 0, %v456
      %v484 = vrot.slane %v377, 1
      %v485 = vor.u32 %v374, %v484
      %v486 = vrot.slane %v384, 1
      %v487 = vor.u32 %v381, %v486
      %v488 = vrot.slane %v391, 1
      %v489 = vor.u32 %v388, %v488
      %v490 = vrot.slane %v398, 1
      %v491 = vor.u32 %v395, %v490
      %v492 = vrot.slane %v405, 1
      %v493 = vor.u32 %v402, %v492
      %v494 = vrot.slane %v412, 1
      %v495 = vor.u32 %v409, %v494
      %v496 = vrot.slane %v419, 1
      %v497 = vor.u32 %v416, %v496
      %v498 = vrot.slane %v426, 1
      %v499 = vor.u32 %v423, %v498
      %v500 = vrot.slane %v433, 1
      %v501 = vor.u32 %v430, %v500
      %v502 = vrot.slane %v440, 1
      %v503 = vor.u32 %v437, %v502
      %v504 = vrot.slane %v447, 1
      %v505 = vor.u32 %v444, %v504
      %v506 = vrot.slane %v454, 1
      %v507 = vor.u32 %v451, %v506
      %vm520 = vcmask 1043456
      %vm521 = vsmask.f32 3328
      %vm522 = vmand %vm520, %vm521
      %v523 = vsel %vm522, %v485, 0
      %v524 = vsel %vm522, %v487, 0
      %v525 = vsel %vm522, %v489, 0
      %v526 = vsel %vm522, %v491, 0
      %v527 = vsel %vm522, %v493, 0
      %v528 = vsel %vm522, %v495, 0
      %v529 = vsel %vm522, %v497, 0
      %v530 = vsel %vm522, %v499, 0
      %v531 = vsel %vm522, %v501, 0
      %v532 = vsel %vm522, %v503, 0
      %v533 = vsel %vm522, %v505, 0
      %v534 = vsel %vm522, %v507, 0
      %535 = vrot.lane.b32.xlu0 %v361, 64
      %v536 = vpop.permute.xlu0 %535
      %537 = vrot.lane.b32.xlu0 %v362, 64
      %v538 = vpop.permute.xlu0 %537
      %539 = vrot.lane.b32.xlu0 %v363, 64
      %v540 = vpop.permute.xlu0 %539
      %541 = vrot.lane.b32.xlu0 %v364, 64
      %v542 = vpop.permute.xlu0 %541
      %543 = vrot.lane.b32.xlu0 %v365, 64
      %v544 = vpop.permute.xlu0 %543
      %545 = vrot.lane.b32.xlu0 %v366, 64
      %v546 = vpop.permute.xlu0 %545
      %547 = vrot.lane.b32.xlu0 %v367, 64
      %v548 = vpop.permute.xlu0 %547
      %549 = vrot.lane.b32.xlu0 %v368, 64
      %v550 = vpop.permute.xlu0 %549
      %551 = vrot.lane.b32.xlu0 %v369, 64
      %v552 = vpop.permute.xlu0 %551
      %553 = vrot.lane.b32.xlu0 %v370, 64
      %v554 = vpop.permute.xlu0 %553
      %555 = vrot.lane.b32.xlu0 %v371, 64
      %v556 = vpop.permute.xlu0 %555
      %557 = vrot.lane.b32.xlu0 %v372, 64
      %v558 = vpop.permute.xlu0 %557
      %vm559 = vcmask 523264
      %v562 = vsel %vm559, %v472, %v536
      %v565 = vsel %vm559, %v473, %v538
      %v568 = vsel %vm559, %v474, %v540
      %v571 = vsel %vm559, %v475, %v542
      %v574 = vsel %vm559, %v476, %v544
      %v577 = vsel %vm559, %v477, %v546
      %v580 = vsel %vm559, %v478, %v548
      %v583 = vsel %vm559, %v479, %v550
      %v586 = vsel %vm559, %v480, %v552
      %v589 = vsel %vm559, %v481, %v554
      %v592 = vsel %vm559, %v482, %v556
      %v595 = vsel %vm559, %v483, %v558
      %v616 = vunpack.c.l.b16 %v562
      %v617 = vunpack.c.l.b16 %v523
      %v618 = vunpack.c.l.b16 %v565
      %v619 = vunpack.c.l.b16 %v524
      %v620 = vunpack.c.l.b16 %v568
      %v621 = vunpack.c.l.b16 %v525
      %v622 = vunpack.c.l.b16 %v571
      %v623 = vunpack.c.l.b16 %v526
      %v624 = vunpack.c.l.b16 %v574
      %v625 = vunpack.c.l.b16 %v527
      %v626 = vunpack.c.l.b16 %v577
      %v627 = vunpack.c.l.b16 %v528
      %v628 = vunpack.c.l.b16 %v580
      %v629 = vunpack.c.l.b16 %v529
      %v630 = vunpack.c.l.b16 %v583
      %v631 = vunpack.c.l.b16 %v530
      %v632 = vunpack.c.l.b16 %v586
      %v633 = vunpack.c.l.b16 %v531
      %v634 = vunpack.c.l.b16 %v589
      %v635 = vunpack.c.l.b16 %v532
      %v638 = vunpack.c.l.b16 %v592
      %v639 = vunpack.c.l.b16 %v533
      %v640 = vpack.c.b16 %v620, %v618
      %v641 = vpack.c.b16 %v621, %v619
      %v642 = vpack.c.b16 %v624, %v622
      %v643 = vpack.c.b16 %v625, %v623
      %v644 = vpack.c.b16 %v628, %v626
      %v645 = vpack.c.b16 %v629, %v627
      %v646 = vpack.c.b16 %v632, %v630
      %v647 = vpack.c.b16 %v633, %v631
      %v648 = vpack.c.b16 %v638, %v634
      %v649 = vpack.c.b16 %v639, %v635
      %v679 = vunpack.c.l.b16 %v288
      %v680 = vunpack.c.l.b16 %v289
      %v681 = vunpack.c.l.b16 %v290
      %v682 = vunpack.c.l.b16 %v291
      %v683 = vunpack.c.l.b16 %v292
      %v684 = vunpack.c.l.b16 %v293
      %v685 = vunpack.c.l.b16 %v294
      %v686 = vunpack.c.l.b16 %v295
      %v687 = vunpack.c.l.b16 %v296
      %v688 = vunpack.c.l.b16 %v297
      %v689 = vunpack.c.l.b16 %v298
      %v690 = vunpack.c.l.b16 %v299
      %v691 = vunpack.c.l.b16 %v300
      %v692 = vunpack.c.l.b16 %v301
      %v693 = vunpack.c.l.b16 %v302
      %v694 = vunpack.c.l.b16 %v303
      %v695 = vunpack.c.l.b16 %v304
      %v696 = vunpack.c.l.b16 %v305
      %v697 = vunpack.c.l.b16 %v306
      %v698 = vunpack.c.l.b16 %v307
      %v699 = vunpack.c.l.b16 %v308
      %v700 = vunpack.c.l.b16 %v309
      %v701 = vunpack.c.l.b16 %v310
      %v702 = vunpack.c.l.b16 %v311
      %v703 = vpack.c.b16 %v680, %v679
      %v704 = vpack.c.b16 %v682, %v681
      %v705 = vpack.c.b16 %v684, %v683
      %v706 = vpack.c.b16 %v686, %v685
      %v707 = vpack.c.b16 %v688, %v687
      %v708 = vpack.c.b16 %v690, %v689
      %v709 = vpack.c.b16 %v692, %v691
      %v710 = vpack.c.b16 %v694, %v693
      %v711 = vpack.c.b16 %v696, %v695
      %v712 = vpack.c.b16 %v698, %v697
      %v713 = vpack.c.b16 %v700, %v699
      %v714 = vpack.c.b16 %v702, %v701
      %v728 = vsel %vm559, %v641, 0
      %v731 = vsel %vm559, %v643, 0
      %v734 = vsel %vm559, %v645, 0
      %v737 = vsel %vm559, %v647, 0
      %v740 = vsel %vm559, %v649, 0
      %742 = vmatpush.bf16.msra.mxu0 %v710
      %743 = vmatpush.bf16.msra.mxu0 %v709
      %744 = vmatpush.bf16.msra.mxu0 %v708
      %745 = vmatpush.bf16.msra.mxu0 %v707
      %746 = vmatpush.bf16.msra.mxu0 %v706
      %747 = vmatpush.bf16.msra.mxu0 %v705
      %748 = vmatpush.bf16.msra.mxu0 %v704
      %749 = vmatpush.bf16.msra.mxu0 %v703
      %750 = vmatmul.bf16.gmra.mxu0 %v640
      %v751 = vpop.f32.mrf.mxu0
      %v752 = vadd.f32 0.0, %v751
      %v753 = vpop.f32.mrf.mxu0
      %v754 = vadd.f32 0.0, %v753
      %755 = vmatmul.bf16.gmra.mxu0 %v642
      %v756 = vpop.f32.mrf.mxu0
      %v757 = vadd.f32 0.0, %v756
      %v758 = vpop.f32.mrf.mxu0
      %v759 = vadd.f32 0.0, %v758
      %760 = vmatmul.bf16.gmra.mxu0 %v644
      %v761 = vpop.f32.mrf.mxu0
      %v762 = vadd.f32 0.0, %v761
      %v763 = vpop.f32.mrf.mxu0
      %v764 = vadd.f32 0.0, %v763
      %765 = vmatmul.bf16.gmra.mxu0 %v646
      %v766 = vpop.f32.mrf.mxu0
      %v767 = vadd.f32 0.0, %v766
      %v768 = vpop.f32.mrf.mxu0
      %v769 = vadd.f32 0.0, %v768
      %770 = vmatmul.bf16.gmra.mxu0 %v648
      %v771 = vpop.f32.mrf.mxu0
      %v772 = vadd.f32 0.0, %v771
      %v773 = vpop.f32.mrf.mxu0
      %v774 = vadd.f32 0.0, %v773
      %775 = vdwg.mxu0
      %776 = vmatpush.bf16.msra.mxu0 0
      %777 = vmatpush.bf16.msra.mxu0 0
      %778 = vmatpush.bf16.msra.mxu0 0
      %779 = vmatpush.bf16.msra.mxu0 0
      %780 = vmatpush.bf16.msra.mxu0 %v714
      %781 = vmatpush.bf16.msra.mxu0 %v713
      %782 = vmatpush.bf16.msra.mxu0 %v712
      %783 = vmatpush.bf16.msra.mxu0 %v711
      %784 = vmatmul.bf16.gmra.mxu0 %v728
      %v785 = vpop.f32.mrf.mxu0
      %v786 = vadd.f32 %v752, %v785
      %v787 = vpop.f32.mrf.mxu0
      %v788 = vadd.f32 %v754, %v787
      %789 = vmatmul.bf16.gmra.mxu0 %v731
      %v790 = vpop.f32.mrf.mxu0
      %v791 = vadd.f32 %v757, %v790
      %v792 = vpop.f32.mrf.mxu0
      %v793 = vadd.f32 %v759, %v792
      %794 = vmatmul.bf16.gmra.mxu0 %v734
      %v795 = vpop.f32.mrf.mxu0
      %v796 = vadd.f32 %v762, %v795
      %v797 = vpop.f32.mrf.mxu0
      %v798 = vadd.f32 %v764, %v797
      %799 = vmatmul.bf16.gmra.mxu0 %v737
      %v800 = vpop.f32.mrf.mxu0
      %v801 = vadd.f32 %v767, %v800
      %v802 = vpop.f32.mrf.mxu0
      %v803 = vadd.f32 %v769, %v802
      %804 = vmatmul.bf16.gmra.mxu0 %v740
      %v805 = vpop.f32.mrf.mxu0
      %v806 = vadd.f32 %v772, %v805
      %v807 = vpop.f32.mrf.mxu0
      %v808 = vadd.f32 %v774, %v807
      %809 = vdwg.mxu0
      %v810 = vpack.c.b16 %v618, %v616
      %v811 = vpack.c.b16 %v619, %v617
      %v812 = vpack.c.b16 %v622, %v620
      %v813 = vpack.c.b16 %v623, %v621
      %v814 = vpack.c.b16 %v626, %v624
      %v815 = vpack.c.b16 %v627, %v625
      %v816 = vpack.c.b16 %v630, %v628
      %v817 = vpack.c.b16 %v631, %v629
      %v818 = vpack.c.b16 %v634, %v632
      %v819 = vpack.c.b16 %v635, %v633
      %v849 = vunpack.c.l.b16 %v264
      %v850 = vunpack.c.l.b16 %v265
      %v851 = vunpack.c.l.b16 %v266
      %v852 = vunpack.c.l.b16 %v267
      %v853 = vunpack.c.l.b16 %v268
      %v854 = vunpack.c.l.b16 %v269
      %v855 = vunpack.c.l.b16 %v270
      %v856 = vunpack.c.l.b16 %v271
      %v857 = vunpack.c.l.b16 %v272
      %v858 = vunpack.c.l.b16 %v273
      %v859 = vunpack.c.l.b16 %v274
      %v860 = vunpack.c.l.b16 %v275
      %v861 = vunpack.c.l.b16 %v276
      %v862 = vunpack.c.l.b16 %v277
      %v863 = vunpack.c.l.b16 %v278
      %v864 = vunpack.c.l.b16 %v279
      %v865 = vunpack.c.l.b16 %v280
      %v866 = vunpack.c.l.b16 %v281
      %v867 = vunpack.c.l.b16 %v282
      %v868 = vunpack.c.l.b16 %v283
      %v869 = vunpack.c.l.b16 %v284
      %v870 = vunpack.c.l.b16 %v285
      %v871 = vunpack.c.l.b16 %v286
      %v872 = vunpack.c.l.b16 %v287
      %v873 = vpack.c.b16 %v850, %v849
      %v874 = vpack.c.b16 %v852, %v851
      %v875 = vpack.c.b16 %v854, %v853
      %v876 = vpack.c.b16 %v856, %v855
      %v877 = vpack.c.b16 %v858, %v857
      %v878 = vpack.c.b16 %v860, %v859
      %v879 = vpack.c.b16 %v862, %v861
      %v880 = vpack.c.b16 %v864, %v863
      %v881 = vpack.c.b16 %v866, %v865
      %v882 = vpack.c.b16 %v868, %v867
      %v883 = vpack.c.b16 %v870, %v869
      %v884 = vpack.c.b16 %v872, %v871
      %v898 = vsel %vm559, %v811, 0
      %v901 = vsel %vm559, %v813, 0
      %v904 = vsel %vm559, %v815, 0
      %v907 = vsel %vm559, %v817, 0
      %v910 = vsel %vm559, %v819, 0
      %912 = vmatpush.bf16.msra.mxu0 %v880
      %913 = vmatpush.bf16.msra.mxu0 %v879
      %914 = vmatpush.bf16.msra.mxu0 %v878
      %915 = vmatpush.bf16.msra.mxu0 %v877
      %916 = vmatpush.bf16.msra.mxu0 %v876
      %917 = vmatpush.bf16.msra.mxu0 %v875
      %918 = vmatpush.bf16.msra.mxu0 %v874
      %919 = vmatpush.bf16.msra.mxu0 %v873
      %920 = vmatmul.bf16.gmra.mxu0 %v810
      %v921 = vpop.f32.mrf.mxu0
      %v922 = vadd.f32 %v786, %v921
      %v923 = vpop.f32.mrf.mxu0
      %v924 = vadd.f32 %v788, %v923
      %925 = vmatmul.bf16.gmra.mxu0 %v812
      %v926 = vpop.f32.mrf.mxu0
      %v927 = vadd.f32 %v791, %v926
      %v928 = vpop.f32.mrf.mxu0
      %v929 = vadd.f32 %v793, %v928
      %930 = vmatmul.bf16.gmra.mxu0 %v814
      %v931 = vpop.f32.mrf.mxu0
      %v932 = vadd.f32 %v796, %v931
      %v933 = vpop.f32.mrf.mxu0
      %v934 = vadd.f32 %v798, %v933
      %935 = vmatmul.bf16.gmra.mxu0 %v816
      %v936 = vpop.f32.mrf.mxu0
      %v937 = vadd.f32 %v801, %v936
      %v938 = vpop.f32.mrf.mxu0
      %v939 = vadd.f32 %v803, %v938
      %940 = vmatmul.bf16.gmra.mxu0 %v818
      %v941 = vpop.f32.mrf.mxu0
      %v942 = vadd.f32 %v806, %v941
      %v943 = vpop.f32.mrf.mxu0
      %v944 = vadd.f32 %v808, %v943
      %945 = vdwg.mxu0
      %946 = vmatpush.bf16.msra.mxu0 0
      %947 = vmatpush.bf16.msra.mxu0 0
      %948 = vmatpush.bf16.msra.mxu0 0
      %949 = vmatpush.bf16.msra.mxu0 0
      %950 = vmatpush.bf16.msra.mxu0 %v884
      %951 = vmatpush.bf16.msra.mxu0 %v883
      %952 = vmatpush.bf16.msra.mxu0 %v882
      %953 = vmatpush.bf16.msra.mxu0 %v881
      %954 = vmatmul.bf16.gmra.mxu0 %v898
      %v955 = vpop.f32.mrf.mxu0
      %v956 = vadd.f32 %v922, %v955
      %v957 = vpop.f32.mrf.mxu0
      %v958 = vadd.f32 %v924, %v957
      %959 = vmatmul.bf16.gmra.mxu0 %v901
      %v960 = vpop.f32.mrf.mxu0
      %v961 = vadd.f32 %v927, %v960
      %v962 = vpop.f32.mrf.mxu0
      %v963 = vadd.f32 %v929, %v962
      %964 = vmatmul.bf16.gmra.mxu0 %v904
      %v965 = vpop.f32.mrf.mxu0
      %v966 = vadd.f32 %v932, %v965
      %v967 = vpop.f32.mrf.mxu0
      %v968 = vadd.f32 %v934, %v967
      %969 = vmatmul.bf16.gmra.mxu0 %v907
      %v970 = vpop.f32.mrf.mxu0
      %v971 = vadd.f32 %v937, %v970
      %v972 = vpop.f32.mrf.mxu0
      %v973 = vadd.f32 %v939, %v972
      %974 = vmatmul.bf16.gmra.mxu0 %v910
      %v975 = vpop.f32.mrf.mxu0
      %v976 = vadd.f32 %v942, %v975
      %v977 = vpop.f32.mrf.mxu0
      %v978 = vadd.f32 %v944, %v977
      %979 = vdwg.mxu0
      %v982 = vunpack.c.l.b16 %v595
      %v983 = vunpack.c.l.b16 %v534
      %v984 = vpack.c.b16 %v982, %v638
      %v985 = vpack.c.b16 %v983, %v639
      %v1011 = vunpack.c.l.b16 %v312
      %v1012 = vunpack.c.l.b16 %v313
      %v1013 = vunpack.c.l.b16 %v314
      %v1014 = vunpack.c.l.b16 %v315
      %v1015 = vunpack.c.l.b16 %v316
      %v1016 = vunpack.c.l.b16 %v317
      %v1017 = vunpack.c.l.b16 %v318
      %v1018 = vunpack.c.l.b16 %v319
      %v1019 = vunpack.c.l.b16 %v320
      %v1020 = vunpack.c.l.b16 %v321
      %v1021 = vunpack.c.l.b16 %v322
      %v1022 = vunpack.c.l.b16 %v323
      %v1023 = vunpack.c.l.b16 %v324
      %v1024 = vunpack.c.l.b16 %v325
      %v1025 = vunpack.c.l.b16 %v326
      %v1026 = vunpack.c.l.b16 %v327
      %v1027 = vunpack.c.l.b16 %v328
      %v1028 = vunpack.c.l.b16 %v329
      %v1029 = vunpack.c.l.b16 %v330
      %v1030 = vunpack.c.l.b16 %v331
      %v1031 = vunpack.c.l.b16 %v332
      %v1032 = vunpack.c.l.b16 %v333
      %v1033 = vunpack.c.l.b16 %v334
      %v1034 = vunpack.c.l.b16 %v335
      %v1035 = vpack.c.b16 %v1012, %v1011
      %v1036 = vpack.c.b16 %v1014, %v1013
      %v1037 = vpack.c.b16 %v1016, %v1015
      %v1038 = vpack.c.b16 %v1018, %v1017
      %v1039 = vpack.c.b16 %v1020, %v1019
      %v1040 = vpack.c.b16 %v1022, %v1021
      %v1041 = vpack.c.b16 %v1024, %v1023
      %v1042 = vpack.c.b16 %v1026, %v1025
      %v1043 = vpack.c.b16 %v1028, %v1027
      %v1044 = vpack.c.b16 %v1030, %v1029
      %v1045 = vpack.c.b16 %v1032, %v1031
      %v1046 = vpack.c.b16 %v1034, %v1033
      %v1060 = vsel %vm559, %v985, 0
      %1062 = vmatpush.bf16.msra.mxu0 %v1042
      %1063 = vmatpush.bf16.msra.mxu0 %v1041
      %1064 = vmatpush.bf16.msra.mxu0 %v1040
      %1065 = vmatpush.bf16.msra.mxu0 %v1039
      %1066 = vmatpush.bf16.msra.mxu0 %v1038
      %1067 = vmatpush.bf16.msra.mxu0 %v1037
      %1068 = vmatpush.bf16.msra.mxu0 %v1036
      %1069 = vmatpush.bf16.msra.mxu0 %v1035
      %1070 = vmatmul.bf16.gmra.mxu0 %v812
      %v1071 = vpop.f32.mrf.mxu0
      %v1072 = vadd.f32 0.0, %v1071
      %v1073 = vpop.f32.mrf.mxu0
      %v1074 = vadd.f32 0.0, %v1073
      %1075 = vmatmul.bf16.gmra.mxu0 %v814
      %v1076 = vpop.f32.mrf.mxu0
      %v1077 = vadd.f32 0.0, %v1076
      %v1078 = vpop.f32.mrf.mxu0
      %v1079 = vadd.f32 0.0, %v1078
      %1080 = vmatmul.bf16.gmra.mxu0 %v816
      %v1081 = vpop.f32.mrf.mxu0
      %v1082 = vadd.f32 0.0, %v1081
      %v1083 = vpop.f32.mrf.mxu0
      %v1084 = vadd.f32 0.0, %v1083
      %1085 = vmatmul.bf16.gmra.mxu0 %v818
      %v1086 = vpop.f32.mrf.mxu0
      %v1087 = vadd.f32 0.0, %v1086
      %v1088 = vpop.f32.mrf.mxu0
      %v1089 = vadd.f32 0.0, %v1088
      %1090 = vmatmul.bf16.gmra.mxu0 %v984
      %v1091 = vpop.f32.mrf.mxu0
      %v1092 = vadd.f32 0.0, %v1091
      %v1093 = vpop.f32.mrf.mxu0
      %v1094 = vadd.f32 0.0, %v1093
      %1095 = vdwg.mxu0
      %1096 = vmatpush.bf16.msra.mxu0 0
      %1097 = vmatpush.bf16.msra.mxu0 0
      %1098 = vmatpush.bf16.msra.mxu0 0
      %1099 = vmatpush.bf16.msra.mxu0 0
      %1100 = vmatpush.bf16.msra.mxu0 %v1046
      %1101 = vmatpush.bf16.msra.mxu0 %v1045
      %1102 = vmatpush.bf16.msra.mxu0 %v1044
      %1103 = vmatpush.bf16.msra.mxu0 %v1043
      %1104 = vmatmul.bf16.gmra.mxu0 %v901
      %v1105 = vpop.f32.mrf.mxu0
      %v1106 = vadd.f32 %v1072, %v1105
      %v1107 = vpop.f32.mrf.mxu0
      %v1108 = vadd.f32 %v1074, %v1107
      %1109 = vmatmul.bf16.gmra.mxu0 %v904
      %v1110 = vpop.f32.mrf.mxu0
      %v1111 = vadd.f32 %v1077, %v1110
      %v1112 = vpop.f32.mrf.mxu0
      %v1113 = vadd.f32 %v1079, %v1112
      %1114 = vmatmul.bf16.gmra.mxu0 %v907
      %v1115 = vpop.f32.mrf.mxu0
      %v1116 = vadd.f32 %v1082, %v1115
      %v1117 = vpop.f32.mrf.mxu0
      %v1118 = vadd.f32 %v1084, %v1117
      %1119 = vmatmul.bf16.gmra.mxu0 %v910
      %v1120 = vpop.f32.mrf.mxu0
      %v1121 = vadd.f32 %v1087, %v1120
      %v1122 = vpop.f32.mrf.mxu0
      %v1123 = vadd.f32 %v1089, %v1122
      %1124 = vmatmul.bf16.gmra.mxu0 %v1060
      %v1125 = vpop.f32.mrf.mxu0
      %v1126 = vadd.f32 %v1092, %v1125
      %v1127 = vpop.f32.mrf.mxu0
      %v1128 = vadd.f32 %v1094, %v1127
      %1129 = vdwg.mxu0
      %v1130 = vadd.f32 %v956, %v1106
      %v1131 = vadd.f32 %v958, %v1108
      %v1132 = vadd.f32 %v961, %v1111
      %v1133 = vadd.f32 %v963, %v1113
      %v1134 = vadd.f32 %v966, %v1116
      %v1135 = vadd.f32 %v968, %v1118
      %v1136 = vadd.f32 %v971, %v1121
      %v1137 = vadd.f32 %v973, %v1123
      %v1138 = vadd.f32 %v976, %v1126
      %v1139 = vadd.f32 %v978, %v1128
      %v1141 = vperm.slane %v336, 0
      %v1143 = vadd.f32 %v1130, %v1141
      %v1144 = vadd.f32 %v1131, %v1141
      %v1145 = vadd.f32 %v1132, %v1141
      %v1146 = vadd.f32 %v1133, %v1141
      %v1147 = vadd.f32 %v1134, %v1141
      %v1148 = vadd.f32 %v1135, %v1141
      %v1149 = vadd.f32 %v1136, %v1141
      %v1150 = vadd.f32 %v1137, %v1141
      %v1151 = vadd.f32 %v1138, %v1141
      %v1152 = vadd.f32 %v1139, %v1141
      %v1153 = vmax.f32 %v1143, 0.0
      %v1154 = vmax.f32 %v1144, 0.0
      %v1155 = vmax.f32 %v1145, 0.0
      %v1156 = vmax.f32 %v1146, 0.0
      %v1157 = vmax.f32 %v1147, 0.0
      %v1158 = vmax.f32 %v1148, 0.0
      %v1159 = vmax.f32 %v1149, 0.0
      %v1160 = vmax.f32 %v1150, 0.0
      %v1161 = vmax.f32 %v1151, 0.0
      %v1162 = vmax.f32 %v1152, 0.0
      %s1163 = ssub.s32 %s249, 1
      %v1164 = vstv %s1163
      %v1165 = vadd.s32 %v1164, 1
      %v1166 = vadd.s32 %v1164, 2
      %v1167 = vadd.s32 %v1164, 3
      %v1168 = vadd.s32 %v1164, 4
      %v1169 = vadd.s32 %v1164, 5
      %v1170 = vadd.s32 %v1164, 6
      %v1171 = vadd.s32 %v1164, 7
      %v1172 = vadd.s32 %v1164, 8
      %v1173 = vadd.s32 %v1164, 9
      %vm1174 = vcmp.ge.s32.totalorder %v1164, 0
      %vm1175 = vcmp.ge.s32.totalorder %v1165, 0
      %vm1176 = vcmp.ge.s32.totalorder %v1166, 0
      %vm1177 = vcmp.ge.s32.totalorder %v1167, 0
      %vm1178 = vcmp.ge.s32.totalorder %v1168, 0
      %vm1179 = vcmp.ge.s32.totalorder %v1169, 0
      %vm1180 = vcmp.ge.s32.totalorder %v1170, 0
      %vm1181 = vcmp.ge.s32.totalorder %v1171, 0
      %vm1182 = vcmp.ge.s32.totalorder %v1172, 0
      %vm1183 = vcmp.ge.s32.totalorder %v1173, 0
      %vm1184 = vcmp.lt.s32.totalorder %v1164, 8
      %vm1185 = vcmp.lt.s32.totalorder %v1165, 8
      %vm1186 = vcmp.lt.s32.totalorder %v1166, 8
      %vm1187 = vcmp.lt.s32.totalorder %v1167, 8
      %vm1188 = vcmp.lt.s32.totalorder %v1168, 8
      %vm1189 = vcmp.lt.s32.totalorder %v1169, 8
      %vm1190 = vcmp.lt.s32.totalorder %v1170, 8
      %vm1191 = vcmp.lt.s32.totalorder %v1171, 8
      %vm1192 = vcmp.lt.s32.totalorder %v1172, 8
      %vm1193 = vcmp.lt.s32.totalorder %v1173, 8
      %vm1194 = vmand %vm1174, %vm1184
      %vm1195 = vmand %vm1175, %vm1185
      %vm1196 = vmand %vm1176, %vm1186
      %vm1197 = vmand %vm1177, %vm1187
      %vm1198 = vmand %vm1178, %vm1188
      %vm1199 = vmand %vm1179, %vm1189
      %vm1200 = vmand %vm1180, %vm1190
      %vm1201 = vmand %vm1181, %vm1191
      %vm1202 = vmand %vm1182, %vm1192
      %vm1203 = vmand %vm1183, %vm1193
      %v1204 = vsel %vm1194, 1, 0
      %v1205 = vsel %vm1195, 1, 0
      %v1206 = vsel %vm1196, 1, 0
      %v1207 = vsel %vm1197, 1, 0
      %v1208 = vsel %vm1198, 1, 0
      %v1209 = vsel %vm1199, 1, 0
      %v1210 = vsel %vm1200, 1, 0
      %v1211 = vsel %vm1201, 1, 0
      %v1212 = vsel %vm1202, 1, 0
      %v1213 = vsel %vm1203, 1, 0
      %vm1214 = vcmp.eq.s32.totalorder %v1204, 1
      %vm1215 = vcmp.eq.s32.totalorder %v1205, 1
      %vm1216 = vcmp.eq.s32.totalorder %v1206, 1
      %vm1217 = vcmp.eq.s32.totalorder %v1207, 1
      %vm1218 = vcmp.eq.s32.totalorder %v1208, 1
      %vm1219 = vcmp.eq.s32.totalorder %v1209, 1
      %vm1220 = vcmp.eq.s32.totalorder %v1210, 1
      %vm1221 = vcmp.eq.s32.totalorder %v1211, 1
      %vm1222 = vcmp.eq.s32.totalorder %v1212, 1
      %vm1223 = vcmp.eq.s32.totalorder %v1213, 1
      %v1224 = vsel %vm1214, %v1153, 0.0
      %v1225 = vsel %vm1215, %v1154, 0.0
      %v1226 = vsel %vm1216, %v1155, 0.0
      %v1227 = vsel %vm1217, %v1156, 0.0
      %v1228 = vsel %vm1218, %v1157, 0.0
      %v1229 = vsel %vm1219, %v1158, 0.0
      %v1230 = vsel %vm1220, %v1159, 0.0
      %v1231 = vsel %vm1221, %v1160, 0.0
      %v1232 = vsel %vm1222, %v1161, 0.0
      %v1233 = vsel %vm1223, %v1162, 0.0
      %v1234 = vpack.c.bf16 %v1224, %v1224
      %v1235 = vpack.c.bf16 %v1225, %v1225
      %v1236 = vpack.c.bf16 %v1226, %v1226
      %v1237 = vpack.c.bf16 %v1227, %v1227
      %v1238 = vpack.c.bf16 %v1228, %v1228
      %v1239 = vpack.c.bf16 %v1229, %v1229
      %v1240 = vpack.c.bf16 %v1230, %v1230
      %v1241 = vpack.c.bf16 %v1231, %v1231
      %v1242 = vpack.c.bf16 %v1232, %v1232
      %v1243 = vpack.c.bf16 %v1233, %v1233
      %v1244 = vld [vmem:[%s3] sm:$0xf]
      %v1245 = vld [vmem:[%s3 + $0x4] sm:$0xf]
      %v1246 = vld [vmem:[%s3 + $0x8] sm:$0xf]
      %v1247 = vld [vmem:[%s3 + $0xc] sm:$0xf]
      %v1248 = vld [vmem:[%s3 + $0x10] sm:$0xf]
      %v1249 = vld [vmem:[%s3 + $0x14] sm:$0xf]
      %v1250 = vld [vmem:[%s3 + $0x18] sm:$0xf]
      %v1251 = vld [vmem:[%s3 + $0x1c] sm:$0xf]
      %v1252 = vld [vmem:[%s3 + $0x20] sm:$0xf]
      %v1253 = vld [vmem:[%s3 + $0x24] sm:$0xf]
      %v1254 = vld [vmem:[%s3 + $0x28] sm:$0xf]
      %v1255 = vld [vmem:[%s3 + $0x2c] sm:$0xf]
      %v1256 = vld [vmem:[%s3 + $0x30] sm:$0xf]
      %v1257 = vld [vmem:[%s3 + $0x34] sm:$0xf]
      %v1258 = vld [vmem:[%s3 + $0x38] sm:$0xf]
      %v1259 = vld [vmem:[%s3 + $0x3c] sm:$0xf]
      %v1260 = vld [vmem:[%s3 + $0x40] sm:$0xf]
      %v1261 = vld [vmem:[%s3 + $0x44] sm:$0xf]
      %v1262 = vld [vmem:[%s3 + $0x48] sm:$0xf]
      %v1263 = vld [vmem:[%s3 + $0x4c] sm:$0xf]
      %v1264 = vld [vmem:[%s3 + $0x50] sm:$0xf]
      %v1265 = vld [vmem:[%s3 + $0x54] sm:$0xf]
      %v1266 = vld [vmem:[%s3 + $0x58] sm:$0xf]
      %v1267 = vld [vmem:[%s3 + $0x5c] sm:$0xf]
      %v1268 = vld [vmem:[%s3 + $0x60] sm:$0xf]
      %v1269 = vld [vmem:[%s3 + $0x64] sm:$0xf]
      %v1270 = vld [vmem:[%s3 + $0x68] sm:$0xf]
      %v1271 = vld [vmem:[%s3 + $0x6c] sm:$0xf]
      %v1272 = vld [vmem:[%s3 + $0x70] sm:$0xf]
      %v1273 = vld [vmem:[%s3 + $0x74] sm:$0xf]
      %v1274 = vld [vmem:[%s3 + $0x78] sm:$0xf]
      %v1275 = vld [vmem:[%s3 + $0x7c] sm:$0xf]
      %v1276 = vld [vmem:[%s3 + $0x80] sm:$0xf]
      %v1277 = vld [vmem:[%s3 + $0x84] sm:$0xf]
      %v1278 = vld [vmem:[%s3 + $0x88] sm:$0xf]
      %v1279 = vld [vmem:[%s3 + $0x8c] sm:$0xf]
      %v1280 = vld [vmem:[%s3 + $0x90] sm:$0xf]
      %v1281 = vld [vmem:[%s3 + $0x94] sm:$0xf]
      %v1282 = vld [vmem:[%s3 + $0x98] sm:$0xf]
      %v1283 = vld [vmem:[%s3 + $0x9c] sm:$0xf]
      %v1284 = vld [vmem:[%s3 + $0xa0] sm:$0xf]
      %v1285 = vld [vmem:[%s3 + $0xa4] sm:$0xf]
      %v1286 = vld [vmem:[%s3 + $0xa8] sm:$0xf]
      %v1287 = vld [vmem:[%s3 + $0xac] sm:$0xf]
      %v1288 = vld [vmem:[%s3 + $0xb0] sm:$0xf]
      %v1289 = vld [vmem:[%s3 + $0xb4] sm:$0xf]
      %v1290 = vld [vmem:[%s3 + $0xb8] sm:$0xf]
      %v1291 = vld [vmem:[%s3 + $0xbc] sm:$0xf]
      %v1292 = vld [vmem:[%s3 + $0xc0] sm:$0xf]
      %v1293 = vld [vmem:[%s3 + $0xc4] sm:$0xf]
      %v1294 = vld [vmem:[%s3 + $0xc8] sm:$0xf]
      %v1295 = vld [vmem:[%s3 + $0xcc] sm:$0xf]
      %v1296 = vld [vmem:[%s3 + $0xd0] sm:$0xf]
      %v1297 = vld [vmem:[%s3 + $0xd4] sm:$0xf]
      %v1298 = vld [vmem:[%s3 + $0xd8] sm:$0xf]
      %v1299 = vld [vmem:[%s3 + $0xdc] sm:$0xf]
      %v1300 = vld [vmem:[%s3 + $0xe0] sm:$0xf]
      %v1301 = vld [vmem:[%s3 + $0xe4] sm:$0xf]
      %v1302 = vld [vmem:[%s3 + $0xe8] sm:$0xf]
      %v1303 = vld [vmem:[%s3 + $0xec] sm:$0xf]
      %v1304 = vld [vmem:[%s3 + $0xf0] sm:$0xf]
      %v1305 = vld [vmem:[%s3 + $0xf4] sm:$0xf]
      %v1306 = vld [vmem:[%s3 + $0xf8] sm:$0xf]
      %v1307 = vld [vmem:[%s3 + $0xfc] sm:$0xf]
      %v1308 = vld [vmem:[%s3 + $0x100] sm:$0xf]
      %v1309 = vld [vmem:[%s3 + $0x104] sm:$0xf]
      %v1310 = vld [vmem:[%s3 + $0x108] sm:$0xf]
      %v1311 = vld [vmem:[%s3 + $0x10c] sm:$0xf]
      %v1312 = vld [vmem:[%s3 + $0x110] sm:$0xf]
      %v1313 = vld [vmem:[%s3 + $0x114] sm:$0xf]
      %v1314 = vld [vmem:[%s3 + $0x118] sm:$0xf]
      %v1315 = vld [vmem:[%s3 + $0x11c] sm:$0xf]
      %v1316 = vld [vmem:[%s3 + $0x120] sm:$0xf]
      %v1317 = vld [vmem:[%s3 + $0x124] sm:$0xf]
      %v1318 = vld [vmem:[%s3 + $0x128] sm:$0xf]
      %v1319 = vld [vmem:[%s3 + $0x12c] sm:$0xf]
      %v1320 = vld [vmem:[%s3 + $0x130] sm:$0xf]
      %v1321 = vld [vmem:[%s3 + $0x134] sm:$0xf]
      %v1322 = vld [vmem:[%s3 + $0x138] sm:$0xf]
      %v1323 = vld [vmem:[%s3 + $0x13c] sm:$0xf]
      %v1324 = vld [vmem:[%s3 + $0x140] sm:$0xf]
      %v1325 = vld [vmem:[%s3 + $0x144] sm:$0xf]
      %v1326 = vld [vmem:[%s3 + $0x148] sm:$0xf]
      %v1327 = vld [vmem:[%s3 + $0x14c] sm:$0xf]
      %v1328 = vld [vmem:[%s3 + $0x150] sm:$0xf]
      %v1329 = vld [vmem:[%s3 + $0x154] sm:$0xf]
      %v1330 = vld [vmem:[%s3 + $0x158] sm:$0xf]
      %v1331 = vld [vmem:[%s3 + $0x15c] sm:$0xf]
      %v1332 = vld [vmem:[%s3 + $0x160] sm:$0xf]
      %v1333 = vld [vmem:[%s3 + $0x164] sm:$0xf]
      %v1334 = vld [vmem:[%s3 + $0x168] sm:$0xf]
      %v1335 = vld [vmem:[%s3 + $0x16c] sm:$0xf]
      %v1336 = vld [vmem:[%s3 + $0x170] sm:$0xf]
      %v1337 = vld [vmem:[%s3 + $0x174] sm:$0xf]
      %v1338 = vld [vmem:[%s3 + $0x178] sm:$0xf]
      %v1339 = vld [vmem:[%s3 + $0x17c] sm:$0xf]
      %v1340 = vld [vmem:[%s3 + $0x180] sm:$0xf]
      %v1341 = vld [vmem:[%s3 + $0x184] sm:$0xf]
      %v1342 = vld [vmem:[%s3 + $0x188] sm:$0xf]
      %v1343 = vld [vmem:[%s3 + $0x18c] sm:$0xf]
      %v1344 = vld [vmem:[%s3 + $0x190] sm:$0xf]
      %v1345 = vld [vmem:[%s3 + $0x194] sm:$0xf]
      %v1346 = vld [vmem:[%s3 + $0x198] sm:$0xf]
      %v1347 = vld [vmem:[%s3 + $0x19c] sm:$0xf]
      %v1348 = vld [vmem:[%s3 + $0x1a0] sm:$0xf]
      %v1349 = vld [vmem:[%s3 + $0x1a4] sm:$0xf]
      %v1350 = vld [vmem:[%s3 + $0x1a8] sm:$0xf]
      %v1351 = vld [vmem:[%s3 + $0x1ac] sm:$0xf]
      %v1352 = vld [vmem:[%s3 + $0x1b0] sm:$0xf]
      %v1353 = vld [vmem:[%s3 + $0x1b4] sm:$0xf]
      %v1354 = vld [vmem:[%s3 + $0x1b8] sm:$0xf]
      %v1355 = vld [vmem:[%s3 + $0x1bc] sm:$0xf]
      %v1356 = vld [vmem:[%s3 + $0x1c0] sm:$0xf]
      %v1357 = vld [vmem:[%s3 + $0x1c4] sm:$0xf]
      %v1358 = vld [vmem:[%s3 + $0x1c8] sm:$0xf]
      %v1359 = vld [vmem:[%s3 + $0x1cc] sm:$0xf]
      %v1360 = vld [vmem:[%s3 + $0x1d0] sm:$0xf]
      %v1361 = vld [vmem:[%s3 + $0x1d4] sm:$0xf]
      %v1362 = vld [vmem:[%s3 + $0x1d8] sm:$0xf]
      %v1363 = vld [vmem:[%s3 + $0x1dc] sm:$0xf]
      %v1364 = vld [vmem:[%s3 + $0x1e0] sm:$0xf]
      %v1365 = vld [vmem:[%s3 + $0x1e4] sm:$0xf]
      %v1366 = vld [vmem:[%s3 + $0x1e8] sm:$0xf]
      %v1367 = vld [vmem:[%s3 + $0x1ec] sm:$0xf]
      %v1368 = vld [vmem:[%s3 + $0x1f0] sm:$0xf]
      %v1369 = vld [vmem:[%s3 + $0x1f4] sm:$0xf]
      %v1370 = vld [vmem:[%s3 + $0x1f8] sm:$0xf]
      %v1371 = vld [vmem:[%s3 + $0x1fc] sm:$0xf]
      %v1372 = vld [vmem:[%s3 + $0x200] sm:$0xf]
      %v1373 = vld [vmem:[%s3 + $0x204] sm:$0xf]
      %v1374 = vld [vmem:[%s3 + $0x208] sm:$0xf]
      %v1375 = vld [vmem:[%s3 + $0x20c] sm:$0xf]
      %v1376 = vld [vmem:[%s3 + $0x210] sm:$0xf]
      %v1377 = vld [vmem:[%s3 + $0x214] sm:$0xf]
      %v1378 = vld [vmem:[%s3 + $0x218] sm:$0xf]
      %v1379 = vld [vmem:[%s3 + $0x21c] sm:$0xf]
      %v1380 = vld [vmem:[%s3 + $0x220] sm:$0xf]
      %v1381 = vld [vmem:[%s3 + $0x224] sm:$0xf]
      %v1382 = vld [vmem:[%s3 + $0x228] sm:$0xf]
      %v1383 = vld [vmem:[%s3 + $0x22c] sm:$0xf]
      %v1384 = vld [vmem:[%s3 + $0x230] sm:$0xf]
      %v1385 = vld [vmem:[%s3 + $0x234] sm:$0xf]
      %v1386 = vld [vmem:[%s3 + $0x238] sm:$0xf]
      %v1387 = vld [vmem:[%s3 + $0x23c] sm:$0xf]
      %v1388 = vld [vmem:[%s4] sm:$0x1]
      %v1399 = vunpack.c.l.b16 %v1234
      %v1400 = vunpack.c.l.b16 %v1235
      %v1401 = vunpack.c.l.b16 %v1236
      %v1402 = vunpack.c.l.b16 %v1237
      %v1403 = vunpack.c.l.b16 %v1238
      %v1404 = vunpack.c.l.b16 %v1239
      %v1405 = vunpack.c.l.b16 %v1240
      %v1406 = vunpack.c.l.b16 %v1241
      %v1407 = vunpack.c.l.b16 %v1242
      %v1408 = vunpack.c.l.b16 %v1243
      %v1409 = vpack.c.b16 %v1399, %v1399
      %v1410 = vpack.c.b16 %v1400, %v1400
      %v1411 = vpack.c.b16 %v1401, %v1401
      %v1412 = vpack.c.b16 %v1402, %v1402
      %v1413 = vpack.c.b16 %v1403, %v1403
      %v1414 = vpack.c.b16 %v1404, %v1404
      %v1415 = vpack.c.b16 %v1405, %v1405
      %v1416 = vpack.c.b16 %v1406, %v1406
      %v1417 = vpack.c.b16 %v1407, %v1407
      %v1418 = vpack.c.b16 %v1408, %v1408
      %v1420 = vshrl.u32 %v1409, 16
      %v1422 = vrot.slane %v1420, 7
      %v1423 = vshll.u32 %v1409, 16
      %v1425 = vor.u32 %v1422, %v1423
      %v1427 = vshrl.u32 %v1410, 16
      %v1429 = vrot.slane %v1427, 7
      %v1430 = vshll.u32 %v1410, 16
      %v1432 = vor.u32 %v1429, %v1430
      %v1434 = vshrl.u32 %v1411, 16
      %v1436 = vrot.slane %v1434, 7
      %v1437 = vshll.u32 %v1411, 16
      %v1439 = vor.u32 %v1436, %v1437
      %v1441 = vshrl.u32 %v1412, 16
      %v1443 = vrot.slane %v1441, 7
      %v1444 = vshll.u32 %v1412, 16
      %v1446 = vor.u32 %v1443, %v1444
      %v1448 = vshrl.u32 %v1413, 16
      %v1450 = vrot.slane %v1448, 7
      %v1451 = vshll.u32 %v1413, 16
      %v1453 = vor.u32 %v1450, %v1451
      %v1455 = vshrl.u32 %v1414, 16
      %v1457 = vrot.slane %v1455, 7
      %v1458 = vshll.u32 %v1414, 16
      %v1460 = vor.u32 %v1457, %v1458
      %v1462 = vshrl.u32 %v1415, 16
      %v1464 = vrot.slane %v1462, 7
      %v1465 = vshll.u32 %v1415, 16
      %v1467 = vor.u32 %v1464, %v1465
      %v1469 = vshrl.u32 %v1416, 16
      %v1471 = vrot.slane %v1469, 7
      %v1472 = vshll.u32 %v1416, 16
      %v1474 = vor.u32 %v1471, %v1472
      %v1476 = vshrl.u32 %v1417, 16
      %v1478 = vrot.slane %v1476, 7
      %v1479 = vshll.u32 %v1417, 16
      %v1481 = vor.u32 %v1478, %v1479
      %v1483 = vshrl.u32 %v1418, 16
      %v1485 = vrot.slane %v1483, 7
      %v1486 = vshll.u32 %v1418, 16
      %v1488 = vor.u32 %v1485, %v1486
      %v1499 = vsel %vm471, 0, %v1425
      %v1500 = vsel %vm471, 0, %v1432
      %v1501 = vsel %vm471, 0, %v1439
      %v1502 = vsel %vm471, 0, %v1446
      %v1503 = vsel %vm471, 0, %v1453
      %v1504 = vsel %vm471, 0, %v1460
      %v1505 = vsel %vm471, 0, %v1467
      %v1506 = vsel %vm471, 0, %v1474
      %v1507 = vsel %vm471, 0, %v1481
      %v1508 = vsel %vm471, 0, %v1488
      %v1509 = vrot.slane %v1423, 1
      %v1510 = vor.u32 %v1420, %v1509
      %v1511 = vrot.slane %v1430, 1
      %v1512 = vor.u32 %v1427, %v1511
      %v1513 = vrot.slane %v1437, 1
      %v1514 = vor.u32 %v1434, %v1513
      %v1515 = vrot.slane %v1444, 1
      %v1516 = vor.u32 %v1441, %v1515
      %v1517 = vrot.slane %v1451, 1
      %v1518 = vor.u32 %v1448, %v1517
      %v1519 = vrot.slane %v1458, 1
      %v1520 = vor.u32 %v1455, %v1519
      %v1521 = vrot.slane %v1465, 1
      %v1522 = vor.u32 %v1462, %v1521
      %v1523 = vrot.slane %v1472, 1
      %v1524 = vor.u32 %v1469, %v1523
      %v1525 = vrot.slane %v1479, 1
      %v1526 = vor.u32 %v1476, %v1525
      %v1527 = vrot.slane %v1486, 1
      %v1528 = vor.u32 %v1483, %v1527
      %v1539 = vsel %vm522, %v1510, 0
      %v1540 = vsel %vm522, %v1512, 0
      %v1541 = vsel %vm522, %v1514, 0
      %v1542 = vsel %vm522, %v1516, 0
      %v1543 = vsel %vm522, %v1518, 0
      %v1544 = vsel %vm522, %v1520, 0
      %v1545 = vsel %vm522, %v1522, 0
      %v1546 = vsel %vm522, %v1524, 0
      %v1547 = vsel %vm522, %v1526, 0
      %v1548 = vsel %vm522, %v1528, 0
      %v1565 = vunpack.c.l.b16 %v1499
      %v1566 = vunpack.c.l.b16 %v1539
      %v1567 = vunpack.c.l.b16 %v1500
      %v1568 = vunpack.c.l.b16 %v1540
      %v1569 = vunpack.c.l.b16 %v1501
      %v1570 = vunpack.c.l.b16 %v1541
      %v1571 = vunpack.c.l.b16 %v1502
      %v1572 = vunpack.c.l.b16 %v1542
      %v1573 = vunpack.c.l.b16 %v1503
      %v1574 = vunpack.c.l.b16 %v1543
      %v1575 = vunpack.c.l.b16 %v1504
      %v1576 = vunpack.c.l.b16 %v1544
      %v1577 = vunpack.c.l.b16 %v1505
      %v1578 = vunpack.c.l.b16 %v1545
      %v1579 = vunpack.c.l.b16 %v1506
      %v1580 = vunpack.c.l.b16 %v1546
      %v1583 = vunpack.c.l.b16 %v1507
      %v1584 = vunpack.c.l.b16 %v1547
      %v1585 = vpack.c.b16 %v1569, %v1567
      %v1586 = vpack.c.b16 %v1401, %v1400
      %v1587 = vpack.c.b16 %v1570, %v1568
      %v1588 = vpack.c.b16 %v1573, %v1571
      %v1589 = vpack.c.b16 %v1403, %v1402
      %v1590 = vpack.c.b16 %v1574, %v1572
      %v1591 = vpack.c.b16 %v1577, %v1575
      %v1592 = vpack.c.b16 %v1405, %v1404
      %v1593 = vpack.c.b16 %v1578, %v1576
      %v1594 = vpack.c.b16 %v1583, %v1579
      %v1595 = vpack.c.b16 %v1407, %v1406
      %v1596 = vpack.c.b16 %v1584, %v1580
      %v1657 = vunpack.c.l.b16 %v1292
      %v1658 = vunpack.c.l.b16 %v1293
      %v1659 = vunpack.c.l.b16 %v1294
      %v1660 = vunpack.c.l.b16 %v1295
      %v1661 = vunpack.c.l.b16 %v1296
      %v1662 = vunpack.c.l.b16 %v1297
      %v1663 = vunpack.c.l.b16 %v1298
      %v1664 = vunpack.c.l.b16 %v1299
      %v1665 = vunpack.c.l.b16 %v1300
      %v1666 = vunpack.c.l.b16 %v1301
      %v1667 = vunpack.c.l.b16 %v1302
      %v1668 = vunpack.c.l.b16 %v1303
      %v1669 = vunpack.c.l.b16 %v1304
      %v1670 = vunpack.c.l.b16 %v1305
      %v1671 = vunpack.c.l.b16 %v1306
      %v1672 = vunpack.c.l.b16 %v1307
      %v1673 = vunpack.c.l.b16 %v1308
      %v1674 = vunpack.c.l.b16 %v1309
      %v1675 = vunpack.c.l.b16 %v1310
      %v1676 = vunpack.c.l.b16 %v1311
      %v1677 = vunpack.c.l.b16 %v1312
      %v1678 = vunpack.c.l.b16 %v1313
      %v1679 = vunpack.c.l.b16 %v1314
      %v1680 = vunpack.c.l.b16 %v1315
      %v1681 = vunpack.c.l.b16 %v1316
      %v1682 = vunpack.c.l.b16 %v1317
      %v1683 = vunpack.c.l.b16 %v1318
      %v1684 = vunpack.c.l.b16 %v1319
      %v1685 = vunpack.c.l.b16 %v1320
      %v1686 = vunpack.c.l.b16 %v1321
      %v1687 = vunpack.c.l.b16 %v1322
      %v1688 = vunpack.c.l.b16 %v1323
      %v1689 = vunpack.c.l.b16 %v1324
      %v1690 = vunpack.c.l.b16 %v1325
      %v1691 = vunpack.c.l.b16 %v1326
      %v1692 = vunpack.c.l.b16 %v1327
      %v1693 = vunpack.c.l.b16 %v1328
      %v1694 = vunpack.c.l.b16 %v1329
      %v1695 = vunpack.c.l.b16 %v1330
      %v1696 = vunpack.c.l.b16 %v1331
      %v1697 = vunpack.c.l.b16 %v1332
      %v1698 = vunpack.c.l.b16 %v1333
      %v1699 = vunpack.c.l.b16 %v1334
      %v1700 = vunpack.c.l.b16 %v1335
      %v1701 = vunpack.c.l.b16 %v1336
      %v1702 = vunpack.c.l.b16 %v1337
      %v1703 = vunpack.c.l.b16 %v1338
      %v1704 = vunpack.c.l.b16 %v1339
      %v1705 = vpack.c.b16 %v1658, %v1657
      %v1706 = vpack.c.b16 %v1660, %v1659
      %v1707 = vpack.c.b16 %v1662, %v1661
      %v1708 = vpack.c.b16 %v1664, %v1663
      %v1709 = vpack.c.b16 %v1666, %v1665
      %v1710 = vpack.c.b16 %v1668, %v1667
      %v1711 = vpack.c.b16 %v1670, %v1669
      %v1712 = vpack.c.b16 %v1672, %v1671
      %v1713 = vpack.c.b16 %v1674, %v1673
      %v1714 = vpack.c.b16 %v1676, %v1675
      %v1715 = vpack.c.b16 %v1678, %v1677
      %v1716 = vpack.c.b16 %v1680, %v1679
      %v1717 = vpack.c.b16 %v1682, %v1681
      %v1718 = vpack.c.b16 %v1684, %v1683
      %v1719 = vpack.c.b16 %v1686, %v1685
      %v1720 = vpack.c.b16 %v1688, %v1687
      %v1721 = vpack.c.b16 %v1690, %v1689
      %v1722 = vpack.c.b16 %v1692, %v1691
      %v1723 = vpack.c.b16 %v1694, %v1693
      %v1724 = vpack.c.b16 %v1696, %v1695
      %v1725 = vpack.c.b16 %v1698, %v1697
      %v1726 = vpack.c.b16 %v1700, %v1699
      %v1727 = vpack.c.b16 %v1702, %v1701
      %v1728 = vpack.c.b16 %v1704, %v1703
      %1753 = vmatpush.bf16.msra.mxu0 %v1712
      %1754 = vmatpush.bf16.msra.mxu0 %v1711
      %1755 = vmatpush.bf16.msra.mxu0 %v1710
      %1756 = vmatpush.bf16.msra.mxu0 %v1709
      %1757 = vmatpush.bf16.msra.mxu0 %v1708
      %1758 = vmatpush.bf16.msra.mxu0 %v1707
      %1759 = vmatpush.bf16.msra.mxu0 %v1706
      %1760 = vmatpush.bf16.msra.mxu0 %v1705
      %1761 = vmatmul.bf16.gmra.mxu0 %v1585
      %v1762 = vpop.f32.mrf.mxu0
      %v1763 = vadd.f32 0.0, %v1762
      %v1764 = vpop.f32.mrf.mxu0
      %v1765 = vadd.f32 0.0, %v1764
      %1766 = vmatmul.bf16.gmra.mxu0 %v1588
      %v1767 = vpop.f32.mrf.mxu0
      %v1768 = vadd.f32 0.0, %v1767
      %v1769 = vpop.f32.mrf.mxu0
      %v1770 = vadd.f32 0.0, %v1769
      %1771 = vmatmul.bf16.gmra.mxu0 %v1591
      %v1772 = vpop.f32.mrf.mxu0
      %v1773 = vadd.f32 0.0, %v1772
      %v1774 = vpop.f32.mrf.mxu0
      %v1775 = vadd.f32 0.0, %v1774
      %1776 = vmatmul.bf16.gmra.mxu0 %v1594
      %v1777 = vpop.f32.mrf.mxu0
      %v1778 = vadd.f32 0.0, %v1777
      %v1779 = vpop.f32.mrf.mxu0
      %v1780 = vadd.f32 0.0, %v1779
      %1781 = vdwg.mxu0
      %1782 = vmatpush.bf16.msra.mxu0 %v1720
      %1783 = vmatpush.bf16.msra.mxu0 %v1719
      %1784 = vmatpush.bf16.msra.mxu0 %v1718
      %1785 = vmatpush.bf16.msra.mxu0 %v1717
      %1786 = vmatpush.bf16.msra.mxu0 %v1716
      %1787 = vmatpush.bf16.msra.mxu0 %v1715
      %1788 = vmatpush.bf16.msra.mxu0 %v1714
      %1789 = vmatpush.bf16.msra.mxu0 %v1713
      %1790 = vmatmul.bf16.gmra.mxu0 %v1586
      %v1791 = vpop.f32.mrf.mxu0
      %v1792 = vadd.f32 %v1763, %v1791
      %v1793 = vpop.f32.mrf.mxu0
      %v1794 = vadd.f32 %v1765, %v1793
      %1795 = vmatmul.bf16.gmra.mxu0 %v1589
      %v1796 = vpop.f32.mrf.mxu0
      %v1797 = vadd.f32 %v1768, %v1796
      %v1798 = vpop.f32.mrf.mxu0
      %v1799 = vadd.f32 %v1770, %v1798
      %1800 = vmatmul.bf16.gmra.mxu0 %v1592
      %v1801 = vpop.f32.mrf.mxu0
      %v1802 = vadd.f32 %v1773, %v1801
      %v1803 = vpop.f32.mrf.mxu0
      %v1804 = vadd.f32 %v1775, %v1803
      %1805 = vmatmul.bf16.gmra.mxu0 %v1595
      %v1806 = vpop.f32.mrf.mxu0
      %v1807 = vadd.f32 %v1778, %v1806
      %v1808 = vpop.f32.mrf.mxu0
      %v1809 = vadd.f32 %v1780, %v1808
      %1810 = vdwg.mxu0
      %1811 = vmatpush.bf16.msra.mxu0 %v1728
      %1812 = vmatpush.bf16.msra.mxu0 %v1727
      %1813 = vmatpush.bf16.msra.mxu0 %v1726
      %1814 = vmatpush.bf16.msra.mxu0 %v1725
      %1815 = vmatpush.bf16.msra.mxu0 %v1724
      %1816 = vmatpush.bf16.msra.mxu0 %v1723
      %1817 = vmatpush.bf16.msra.mxu0 %v1722
      %1818 = vmatpush.bf16.msra.mxu0 %v1721
      %1819 = vmatmul.bf16.gmra.mxu0 %v1587
      %v1820 = vpop.f32.mrf.mxu0
      %v1821 = vadd.f32 %v1792, %v1820
      %v1822 = vpop.f32.mrf.mxu0
      %v1823 = vadd.f32 %v1794, %v1822
      %1824 = vmatmul.bf16.gmra.mxu0 %v1590
      %v1825 = vpop.f32.mrf.mxu0
      %v1826 = vadd.f32 %v1797, %v1825
      %v1827 = vpop.f32.mrf.mxu0
      %v1828 = vadd.f32 %v1799, %v1827
      %1829 = vmatmul.bf16.gmra.mxu0 %v1593
      %v1830 = vpop.f32.mrf.mxu0
      %v1831 = vadd.f32 %v1802, %v1830
      %v1832 = vpop.f32.mrf.mxu0
      %v1833 = vadd.f32 %v1804, %v1832
      %1834 = vmatmul.bf16.gmra.mxu0 %v1596
      %v1835 = vpop.f32.mrf.mxu0
      %v1836 = vadd.f32 %v1807, %v1835
      %v1837 = vpop.f32.mrf.mxu0
      %v1838 = vadd.f32 %v1809, %v1837
      %1839 = vdwg.mxu0
      %v1840 = vpack.c.b16 %v1567, %v1565
      %v1841 = vpack.c.b16 %v1400, %v1399
      %v1842 = vpack.c.b16 %v1568, %v1566
      %v1843 = vpack.c.b16 %v1571, %v1569
      %v1844 = vpack.c.b16 %v1402, %v1401
      %v1845 = vpack.c.b16 %v1572, %v1570
      %v1846 = vpack.c.b16 %v1575, %v1573
      %v1847 = vpack.c.b16 %v1404, %v1403
      %v1848 = vpack.c.b16 %v1576, %v1574
      %v1849 = vpack.c.b16 %v1579, %v1577
      %v1850 = vpack.c.b16 %v1406, %v1405
      %v1851 = vpack.c.b16 %v1580, %v1578
      %v1912 = vunpack.c.l.b16 %v1244
      %v1913 = vunpack.c.l.b16 %v1245
      %v1914 = vunpack.c.l.b16 %v1246
      %v1915 = vunpack.c.l.b16 %v1247
      %v1916 = vunpack.c.l.b16 %v1248
      %v1917 = vunpack.c.l.b16 %v1249
      %v1918 = vunpack.c.l.b16 %v1250
      %v1919 = vunpack.c.l.b16 %v1251
      %v1920 = vunpack.c.l.b16 %v1252
      %v1921 = vunpack.c.l.b16 %v1253
      %v1922 = vunpack.c.l.b16 %v1254
      %v1923 = vunpack.c.l.b16 %v1255
      %v1924 = vunpack.c.l.b16 %v1256
      %v1925 = vunpack.c.l.b16 %v1257
      %v1926 = vunpack.c.l.b16 %v1258
      %v1927 = vunpack.c.l.b16 %v1259
      %v1928 = vunpack.c.l.b16 %v1260
      %v1929 = vunpack.c.l.b16 %v1261
      %v1930 = vunpack.c.l.b16 %v1262
      %v1931 = vunpack.c.l.b16 %v1263
      %v1932 = vunpack.c.l.b16 %v1264
      %v1933 = vunpack.c.l.b16 %v1265
      %v1934 = vunpack.c.l.b16 %v1266
      %v1935 = vunpack.c.l.b16 %v1267
      %v1936 = vunpack.c.l.b16 %v1268
      %v1937 = vunpack.c.l.b16 %v1269
      %v1938 = vunpack.c.l.b16 %v1270
      %v1939 = vunpack.c.l.b16 %v1271
      %v1940 = vunpack.c.l.b16 %v1272
      %v1941 = vunpack.c.l.b16 %v1273
      %v1942 = vunpack.c.l.b16 %v1274
      %v1943 = vunpack.c.l.b16 %v1275
      %v1944 = vunpack.c.l.b16 %v1276
      %v1945 = vunpack.c.l.b16 %v1277
      %v1946 = vunpack.c.l.b16 %v1278
      %v1947 = vunpack.c.l.b16 %v1279
      %v1948 = vunpack.c.l.b16 %v1280
      %v1949 = vunpack.c.l.b16 %v1281
      %v1950 = vunpack.c.l.b16 %v1282
      %v1951 = vunpack.c.l.b16 %v1283
      %v1952 = vunpack.c.l.b16 %v1284
      %v1953 = vunpack.c.l.b16 %v1285
      %v1954 = vunpack.c.l.b16 %v1286
      %v1955 = vunpack.c.l.b16 %v1287
      %v1956 = vunpack.c.l.b16 %v1288
      %v1957 = vunpack.c.l.b16 %v1289
      %v1958 = vunpack.c.l.b16 %v1290
      %v1959 = vunpack.c.l.b16 %v1291
      %v1960 = vpack.c.b16 %v1913, %v1912
      %v1961 = vpack.c.b16 %v1915, %v1914
      %v1962 = vpack.c.b16 %v1917, %v1916
      %v1963 = vpack.c.b16 %v1919, %v1918
      %v1964 = vpack.c.b16 %v1921, %v1920
      %v1965 = vpack.c.b16 %v1923, %v1922
      %v1966 = vpack.c.b16 %v1925, %v1924
      %v1967 = vpack.c.b16 %v1927, %v1926
      %v1968 = vpack.c.b16 %v1929, %v1928
      %v1969 = vpack.c.b16 %v1931, %v1930
      %v1970 = vpack.c.b16 %v1933, %v1932
      %v1971 = vpack.c.b16 %v1935, %v1934
      %v1972 = vpack.c.b16 %v1937, %v1936
      %v1973 = vpack.c.b16 %v1939, %v1938
      %v1974 = vpack.c.b16 %v1941, %v1940
      %v1975 = vpack.c.b16 %v1943, %v1942
      %v1976 = vpack.c.b16 %v1945, %v1944
      %v1977 = vpack.c.b16 %v1947, %v1946
      %v1978 = vpack.c.b16 %v1949, %v1948
      %v1979 = vpack.c.b16 %v1951, %v1950
      %v1980 = vpack.c.b16 %v1953, %v1952
      %v1981 = vpack.c.b16 %v1955, %v1954
      %v1982 = vpack.c.b16 %v1957, %v1956
      %v1983 = vpack.c.b16 %v1959, %v1958
      %2008 = vmatpush.bf16.msra.mxu0 %v1967
      %2009 = vmatpush.bf16.msra.mxu0 %v1966
      %2010 = vmatpush.bf16.msra.mxu0 %v1965
      %2011 = vmatpush.bf16.msra.mxu0 %v1964
      %2012 = vmatpush.bf16.msra.mxu0 %v1963
      %2013 = vmatpush.bf16.msra.mxu0 %v1962
      %2014 = vmatpush.bf16.msra.mxu0 %v1961
      %2015 = vmatpush.bf16.msra.mxu0 %v1960
      %2016 = vmatmul.bf16.gmra.mxu0 %v1840
      %v2017 = vpop.f32.mrf.mxu0
      %v2018 = vadd.f32 %v1821, %v2017
      %v2019 = vpop.f32.mrf.mxu0
      %v2020 = vadd.f32 %v1823, %v2019
      %2021 = vmatmul.bf16.gmra.mxu0 %v1843
      %v2022 = vpop.f32.mrf.mxu0
      %v2023 = vadd.f32 %v1826, %v2022
      %v2024 = vpop.f32.mrf.mxu0
      %v2025 = vadd.f32 %v1828, %v2024
      %2026 = vmatmul.bf16.gmra.mxu0 %v1846
      %v2027 = vpop.f32.mrf.mxu0
      %v2028 = vadd.f32 %v1831, %v2027
      %v2029 = vpop.f32.mrf.mxu0
      %v2030 = vadd.f32 %v1833, %v2029
      %2031 = vmatmul.bf16.gmra.mxu0 %v1849
      %v2032 = vpop.f32.mrf.mxu0
      %v2033 = vadd.f32 %v1836, %v2032
      %v2034 = vpop.f32.mrf.mxu0
      %v2035 = vadd.f32 %v1838, %v2034
      %2036 = vdwg.mxu0
      %2037 = vmatpush.bf16.msra.mxu0 %v1975
      %2038 = vmatpush.bf16.msra.mxu0 %v1974
      %2039 = vmatpush.bf16.msra.mxu0 %v1973
      %2040 = vmatpush.bf16.msra.mxu0 %v1972
      %2041 = vmatpush.bf16.msra.mxu0 %v1971
      %2042 = vmatpush.bf16.msra.mxu0 %v1970
      %2043 = vmatpush.bf16.msra.mxu0 %v1969
      %2044 = vmatpush.bf16.msra.mxu0 %v1968
      %2045 = vmatmul.bf16.gmra.mxu0 %v1841
      %v2046 = vpop.f32.mrf.mxu0
      %v2047 = vadd.f32 %v2018, %v2046
      %v2048 = vpop.f32.mrf.mxu0
      %v2049 = vadd.f32 %v2020, %v2048
      %2050 = vmatmul.bf16.gmra.mxu0 %v1844
      %v2051 = vpop.f32.mrf.mxu0
      %v2052 = vadd.f32 %v2023, %v2051
      %v2053 = vpop.f32.mrf.mxu0
      %v2054 = vadd.f32 %v2025, %v2053
      %2055 = vmatmul.bf16.gmra.mxu0 %v1847
      %v2056 = vpop.f32.mrf.mxu0
      %v2057 = vadd.f32 %v2028, %v2056
      %v2058 = vpop.f32.mrf.mxu0
      %v2059 = vadd.f32 %v2030, %v2058
      %2060 = vmatmul.bf16.gmra.mxu0 %v1850
      %v2061 = vpop.f32.mrf.mxu0
      %v2062 = vadd.f32 %v2033, %v2061
      %v2063 = vpop.f32.mrf.mxu0
      %v2064 = vadd.f32 %v2035, %v2063
      %2065 = vdwg.mxu0
      %2066 = vmatpush.bf16.msra.mxu0 %v1983
      %2067 = vmatpush.bf16.msra.mxu0 %v1982
      %2068 = vmatpush.bf16.msra.mxu0 %v1981
      %2069 = vmatpush.bf16.msra.mxu0 %v1980
      %2070 = vmatpush.bf16.msra.mxu0 %v1979
      %2071 = vmatpush.bf16.msra.mxu0 %v1978
      %2072 = vmatpush.bf16.msra.mxu0 %v1977
      %2073 = vmatpush.bf16.msra.mxu0 %v1976
      %2074 = vmatmul.bf16.gmra.mxu0 %v1842
      %v2075 = vpop.f32.mrf.mxu0
      %v2076 = vadd.f32 %v2047, %v2075
      %v2077 = vpop.f32.mrf.mxu0
      %v2078 = vadd.f32 %v2049, %v2077
      %2079 = vmatmul.bf16.gmra.mxu0 %v1845
      %v2080 = vpop.f32.mrf.mxu0
      %v2081 = vadd.f32 %v2052, %v2080
      %v2082 = vpop.f32.mrf.mxu0
      %v2083 = vadd.f32 %v2054, %v2082
      %2084 = vmatmul.bf16.gmra.mxu0 %v1848
      %v2085 = vpop.f32.mrf.mxu0
      %v2086 = vadd.f32 %v2057, %v2085
      %v2087 = vpop.f32.mrf.mxu0
      %v2088 = vadd.f32 %v2059, %v2087
      %2089 = vmatmul.bf16.gmra.mxu0 %v1851
      %v2090 = vpop.f32.mrf.mxu0
      %v2091 = vadd.f32 %v2062, %v2090
      %v2092 = vpop.f32.mrf.mxu0
      %v2093 = vadd.f32 %v2064, %v2092
      %2094 = vdwg.mxu0
      %v2097 = vunpack.c.l.b16 %v1508
      %v2098 = vunpack.c.l.b16 %v1548
      %v2099 = vpack.c.b16 %v2097, %v1583
      %v2100 = vpack.c.b16 %v1408, %v1407
      %v2101 = vpack.c.b16 %v2098, %v1584
      %v2153 = vunpack.c.l.b16 %v1340
      %v2154 = vunpack.c.l.b16 %v1341
      %v2155 = vunpack.c.l.b16 %v1342
      %v2156 = vunpack.c.l.b16 %v1343
      %v2157 = vunpack.c.l.b16 %v1344
      %v2158 = vunpack.c.l.b16 %v1345
      %v2159 = vunpack.c.l.b16 %v1346
      %v2160 = vunpack.c.l.b16 %v1347
      %v2161 = vunpack.c.l.b16 %v1348
      %v2162 = vunpack.c.l.b16 %v1349
      %v2163 = vunpack.c.l.b16 %v1350
      %v2164 = vunpack.c.l.b16 %v1351
      %v2165 = vunpack.c.l.b16 %v1352
      %v2166 = vunpack.c.l.b16 %v1353
      %v2167 = vunpack.c.l.b16 %v1354
      %v2168 = vunpack.c.l.b16 %v1355
      %v2169 = vunpack.c.l.b16 %v1356
      %v2170 = vunpack.c.l.b16 %v1357
      %v2171 = vunpack.c.l.b16 %v1358
      %v2172 = vunpack.c.l.b16 %v1359
      %v2173 = vunpack.c.l.b16 %v1360
      %v2174 = vunpack.c.l.b16 %v1361
      %v2175 = vunpack.c.l.b16 %v1362
      %v2176 = vunpack.c.l.b16 %v1363
      %v2177 = vunpack.c.l.b16 %v1364
      %v2178 = vunpack.c.l.b16 %v1365
      %v2179 = vunpack.c.l.b16 %v1366
      %v2180 = vunpack.c.l.b16 %v1367
      %v2181 = vunpack.c.l.b16 %v1368
      %v2182 = vunpack.c.l.b16 %v1369
      %v2183 = vunpack.c.l.b16 %v1370
      %v2184 = vunpack.c.l.b16 %v1371
      %v2185 = vunpack.c.l.b16 %v1372
      %v2186 = vunpack.c.l.b16 %v1373
      %v2187 = vunpack.c.l.b16 %v1374
      %v2188 = vunpack.c.l.b16 %v1375
      %v2189 = vunpack.c.l.b16 %v1376
      %v2190 = vunpack.c.l.b16 %v1377
      %v2191 = vunpack.c.l.b16 %v1378
      %v2192 = vunpack.c.l.b16 %v1379
      %v2193 = vunpack.c.l.b16 %v1380
      %v2194 = vunpack.c.l.b16 %v1381
      %v2195 = vunpack.c.l.b16 %v1382
      %v2196 = vunpack.c.l.b16 %v1383
      %v2197 = vunpack.c.l.b16 %v1384
      %v2198 = vunpack.c.l.b16 %v1385
      %v2199 = vunpack.c.l.b16 %v1386
      %v2200 = vunpack.c.l.b16 %v1387
      %v2201 = vpack.c.b16 %v2154, %v2153
      %v2202 = vpack.c.b16 %v2156, %v2155
      %v2203 = vpack.c.b16 %v2158, %v2157
      %v2204 = vpack.c.b16 %v2160, %v2159
      %v2205 = vpack.c.b16 %v2162, %v2161
      %v2206 = vpack.c.b16 %v2164, %v2163
      %v2207 = vpack.c.b16 %v2166, %v2165
      %v2208 = vpack.c.b16 %v2168, %v2167
      %v2209 = vpack.c.b16 %v2170, %v2169
      %v2210 = vpack.c.b16 %v2172, %v2171
      %v2211 = vpack.c.b16 %v2174, %v2173
      %v2212 = vpack.c.b16 %v2176, %v2175
      %v2213 = vpack.c.b16 %v2178, %v2177
      %v2214 = vpack.c.b16 %v2180, %v2179
      %v2215 = vpack.c.b16 %v2182, %v2181
      %v2216 = vpack.c.b16 %v2184, %v2183
      %v2217 = vpack.c.b16 %v2186, %v2185
      %v2218 = vpack.c.b16 %v2188, %v2187
      %v2219 = vpack.c.b16 %v2190, %v2189
      %v2220 = vpack.c.b16 %v2192, %v2191
      %v2221 = vpack.c.b16 %v2194, %v2193
      %v2222 = vpack.c.b16 %v2196, %v2195
      %v2223 = vpack.c.b16 %v2198, %v2197
      %v2224 = vpack.c.b16 %v2200, %v2199
      %2249 = vmatpush.bf16.msra.mxu0 %v2208
      %2250 = vmatpush.bf16.msra.mxu0 %v2207
      %2251 = vmatpush.bf16.msra.mxu0 %v2206
      %2252 = vmatpush.bf16.msra.mxu0 %v2205
      %2253 = vmatpush.bf16.msra.mxu0 %v2204
      %2254 = vmatpush.bf16.msra.mxu0 %v2203
      %2255 = vmatpush.bf16.msra.mxu0 %v2202
      %2256 = vmatpush.bf16.msra.mxu0 %v2201
      %2257 = vmatmul.bf16.gmra.mxu0 %v1843
      %v2258 = vpop.f32.mrf.mxu0
      %v2259 = vadd.f32 0.0, %v2258
      %v2260 = vpop.f32.mrf.mxu0
      %v2261 = vadd.f32 0.0, %v2260
      %2262 = vmatmul.bf16.gmra.mxu0 %v1846
      %v2263 = vpop.f32.mrf.mxu0
      %v2264 = vadd.f32 0.0, %v2263
      %v2265 = vpop.f32.mrf.mxu0
      %v2266 = vadd.f32 0.0, %v2265
      %2267 = vmatmul.bf16.gmra.mxu0 %v1849
      %v2268 = vpop.f32.mrf.mxu0
      %v2269 = vadd.f32 0.0, %v2268
      %v2270 = vpop.f32.mrf.mxu0
      %v2271 = vadd.f32 0.0, %v2270
      %2272 = vmatmul.bf16.gmra.mxu0 %v2099
      %v2273 = vpop.f32.mrf.mxu0
      %v2274 = vadd.f32 0.0, %v2273
      %v2275 = vpop.f32.mrf.mxu0
      %v2276 = vadd.f32 0.0, %v2275
      %2277 = vdwg.mxu0
      %2278 = vmatpush.bf16.msra.mxu0 %v2216
      %2279 = vmatpush.bf16.msra.mxu0 %v2215
      %2280 = vmatpush.bf16.msra.mxu0 %v2214
      %2281 = vmatpush.bf16.msra.mxu0 %v2213
      %2282 = vmatpush.bf16.msra.mxu0 %v2212
      %2283 = vmatpush.bf16.msra.mxu0 %v2211
      %2284 = vmatpush.bf16.msra.mxu0 %v2210
      %2285 = vmatpush.bf16.msra.mxu0 %v2209
      %2286 = vmatmul.bf16.gmra.mxu0 %v1844
      %v2287 = vpop.f32.mrf.mxu0
      %v2288 = vadd.f32 %v2259, %v2287
      %v2289 = vpop.f32.mrf.mxu0
      %v2290 = vadd.f32 %v2261, %v2289
      %2291 = vmatmul.bf16.gmra.mxu0 %v1847
      %v2292 = vpop.f32.mrf.mxu0
      %v2293 = vadd.f32 %v2264, %v2292
      %v2294 = vpop.f32.mrf.mxu0
      %v2295 = vadd.f32 %v2266, %v2294
      %2296 = vmatmul.bf16.gmra.mxu0 %v1850
      %v2297 = vpop.f32.mrf.mxu0
      %v2298 = vadd.f32 %v2269, %v2297
      %v2299 = vpop.f32.mrf.mxu0
      %v2300 = vadd.f32 %v2271, %v2299
      %2301 = vmatmul.bf16.gmra.mxu0 %v2100
      %v2302 = vpop.f32.mrf.mxu0
      %v2303 = vadd.f32 %v2274, %v2302
      %v2304 = vpop.f32.mrf.mxu0
      %v2305 = vadd.f32 %v2276, %v2304
      %2306 = vdwg.mxu0
      %2307 = vmatpush.bf16.msra.mxu0 %v2224
      %2308 = vmatpush.bf16.msra.mxu0 %v2223
      %2309 = vmatpush.bf16.msra.mxu0 %v2222
      %2310 = vmatpush.bf16.msra.mxu0 %v2221
      %2311 = vmatpush.bf16.msra.mxu0 %v2220
      %2312 = vmatpush.bf16.msra.mxu0 %v2219
      %2313 = vmatpush.bf16.msra.mxu0 %v2218
      %2314 = vmatpush.bf16.msra.mxu0 %v2217
      %2315 = vmatmul.bf16.gmra.mxu0 %v1845
      %v2316 = vpop.f32.mrf.mxu0
      %v2317 = vadd.f32 %v2288, %v2316
      %v2318 = vpop.f32.mrf.mxu0
      %v2319 = vadd.f32 %v2290, %v2318
      %2320 = vmatmul.bf16.gmra.mxu0 %v1848
      %v2321 = vpop.f32.mrf.mxu0
      %v2322 = vadd.f32 %v2293, %v2321
      %v2323 = vpop.f32.mrf.mxu0
      %v2324 = vadd.f32 %v2295, %v2323
      %2325 = vmatmul.bf16.gmra.mxu0 %v1851
      %v2326 = vpop.f32.mrf.mxu0
      %v2327 = vadd.f32 %v2298, %v2326
      %v2328 = vpop.f32.mrf.mxu0
      %v2329 = vadd.f32 %v2300, %v2328
      %2330 = vmatmul.bf16.gmra.mxu0 %v2101
      %v2331 = vpop.f32.mrf.mxu0
      %v2332 = vadd.f32 %v2303, %v2331
      %v2333 = vpop.f32.mrf.mxu0
      %v2334 = vadd.f32 %v2305, %v2333
      %2335 = vdwg.mxu0
      %v2336 = vadd.f32 %v2076, %v2317
      %v2337 = vadd.f32 %v2078, %v2319
      %v2338 = vadd.f32 %v2081, %v2322
      %v2339 = vadd.f32 %v2083, %v2324
      %v2340 = vadd.f32 %v2086, %v2327
      %v2341 = vadd.f32 %v2088, %v2329
      %v2342 = vadd.f32 %v2091, %v2332
      %v2343 = vadd.f32 %v2093, %v2334
      %v2345 = vperm.slane %v1388, 0
      %v2347 = vadd.f32 %v2336, %v2345
      %v2348 = vadd.f32 %v2337, %v2345
      %v2349 = vadd.f32 %v2338, %v2345
      %v2350 = vadd.f32 %v2339, %v2345
      %v2351 = vadd.f32 %v2340, %v2345
      %v2352 = vadd.f32 %v2341, %v2345
      %v2353 = vadd.f32 %v2342, %v2345
      %v2354 = vadd.f32 %v2343, %v2345
      %v2355 = vmax.f32 %v2347, 0.0
      %v2356 = vmax.f32 %v2348, 0.0
      %v2357 = vmax.f32 %v2349, 0.0
      %v2358 = vmax.f32 %v2350, 0.0
      %v2359 = vmax.f32 %v2351, 0.0
      %v2360 = vmax.f32 %v2352, 0.0
      %v2361 = vmax.f32 %v2353, 0.0
      %v2362 = vmax.f32 %v2354, 0.0
      %v2363 = vmax.f32 %v2355, %v2356
      %v2364 = vmax.f32 %v2357, %v2358
      %v2365 = vmax.f32 %v2359, %v2360
      %v2366 = vmax.f32 %v2361, %v2362
      %v2371 = vrot.slane %v2363, 2
      %v2372 = vrot.slane %v2363, 4
      %v2373 = vrot.slane %v2363, 6
      %v2374 = vrot.slane %v2364, 2
      %v2375 = vrot.slane %v2364, 4
      %v2376 = vrot.slane %v2364, 6
      %v2377 = vrot.slane %v2365, 2
      %v2378 = vrot.slane %v2365, 4
      %v2379 = vrot.slane %v2365, 6
      %v2380 = vrot.slane %v2366, 2
      %v2381 = vrot.slane %v2366, 4
      %v2382 = vrot.slane %v2366, 6
      %vm2395 = vcmask 1041408
      %v2396 = vsel %vm2395, %v2363, -inf
      %v2397 = vrot.slane %v2396, 4
      %v2398 = vmax.f32 %v2396, %v2397
      %v2399 = vrot.slane %v2398, 2
      %v2400 = vmax.f32 %v2398, %v2399
      %v2401 = vrot.slane %v2400, 1
      %v2402 = vmax.f32 %v2400, %v2401
      %v2403 = vsel %vm2395, %v2371, -inf
      %v2404 = vrot.slane %v2403, 4
      %v2405 = vmax.f32 %v2403, %v2404
      %v2406 = vrot.slane %v2405, 2
      %v2407 = vmax.f32 %v2405, %v2406
      %v2408 = vrot.slane %v2407, 1
      %v2409 = vmax.f32 %v2407, %v2408
      %v2410 = vsel %vm2395, %v2372, -inf
      %v2411 = vrot.slane %v2410, 4
      %v2412 = vmax.f32 %v2410, %v2411
      %v2413 = vrot.slane %v2412, 2
      %v2414 = vmax.f32 %v2412, %v2413
      %v2415 = vrot.slane %v2414, 1
      %v2416 = vmax.f32 %v2414, %v2415
      %v2417 = vsel %vm2395, %v2373, -inf
      %v2418 = vrot.slane %v2417, 4
      %v2419 = vmax.f32 %v2417, %v2418
      %v2420 = vrot.slane %v2419, 2
      %v2421 = vmax.f32 %v2419, %v2420
      %v2422 = vrot.slane %v2421, 1
      %v2423 = vmax.f32 %v2421, %v2422
      %v2424 = vsel %vm2395, %v2364, -inf
      %v2425 = vrot.slane %v2424, 4
      %v2426 = vmax.f32 %v2424, %v2425
      %v2427 = vrot.slane %v2426, 2
      %v2428 = vmax.f32 %v2426, %v2427
      %v2429 = vrot.slane %v2428, 1
      %v2430 = vmax.f32 %v2428, %v2429
      %v2431 = vsel %vm2395, %v2374, -inf
      %v2432 = vrot.slane %v2431, 4
      %v2433 = vmax.f32 %v2431, %v2432
      %v2434 = vrot.slane %v2433, 2
      %v2435 = vmax.f32 %v2433, %v2434
      %v2436 = vrot.slane %v2435, 1
      %v2437 = vmax.f32 %v2435, %v2436
      %v2438 = vsel %vm2395, %v2375, -inf
      %v2439 = vrot.slane %v2438, 4
      %v2440 = vmax.f32 %v2438, %v2439
      %v2441 = vrot.slane %v2440, 2
      %v2442 = vmax.f32 %v2440, %v2441
      %v2443 = vrot.slane %v2442, 1
      %v2444 = vmax.f32 %v2442, %v2443
      %v2445 = vsel %vm2395, %v2376, -inf
      %v2446 = vrot.slane %v2445, 4
      %v2447 = vmax.f32 %v2445, %v2446
      %v2448 = vrot.slane %v2447, 2
      %v2449 = vmax.f32 %v2447, %v2448
      %v2450 = vrot.slane %v2449, 1
      %v2451 = vmax.f32 %v2449, %v2450
      %v2452 = vsel %vm2395, %v2365, -inf
      %v2453 = vrot.slane %v2452, 4
      %v2454 = vmax.f32 %v2452, %v2453
      %v2455 = vrot.slane %v2454, 2
      %v2456 = vmax.f32 %v2454, %v2455
      %v2457 = vrot.slane %v2456, 1
      %v2458 = vmax.f32 %v2456, %v2457
      %v2459 = vsel %vm2395, %v2377, -inf
      %v2460 = vrot.slane %v2459, 4
      %v2461 = vmax.f32 %v2459, %v2460
      %v2462 = vrot.slane %v2461, 2
      %v2463 = vmax.f32 %v2461, %v2462
      %v2464 = vrot.slane %v2463, 1
      %v2465 = vmax.f32 %v2463, %v2464
      %v2466 = vsel %vm2395, %v2378, -inf
      %v2467 = vrot.slane %v2466, 4
      %v2468 = vmax.f32 %v2466, %v2467
      %v2469 = vrot.slane %v2468, 2
      %v2470 = vmax.f32 %v2468, %v2469
      %v2471 = vrot.slane %v2470, 1
      %v2472 = vmax.f32 %v2470, %v2471
      %v2473 = vsel %vm2395, %v2379, -inf
      %v2474 = vrot.slane %v2473, 4
      %v2475 = vmax.f32 %v2473, %v2474
      %v2476 = vrot.slane %v2475, 2
      %v2477 = vmax.f32 %v2475, %v2476
      %v2478 = vrot.slane %v2477, 1
      %v2479 = vmax.f32 %v2477, %v2478
      %v2480 = vsel %vm2395, %v2366, -inf
      %v2481 = vrot.slane %v2480, 4
      %v2482 = vmax.f32 %v2480, %v2481
      %v2483 = vrot.slane %v2482, 2
      %v2484 = vmax.f32 %v2482, %v2483
      %v2485 = vrot.slane %v2484, 1
      %v2486 = vmax.f32 %v2484, %v2485
      %v2487 = vsel %vm2395, %v2380, -inf
      %v2488 = vrot.slane %v2487, 4
      %v2489 = vmax.f32 %v2487, %v2488
      %v2490 = vrot.slane %v2489, 2
      %v2491 = vmax.f32 %v2489, %v2490
      %v2492 = vrot.slane %v2491, 1
      %v2493 = vmax.f32 %v2491, %v2492
      %v2494 = vsel %vm2395, %v2381, -inf
      %v2495 = vrot.slane %v2494, 4
      %v2496 = vmax.f32 %v2494, %v2495
      %v2497 = vrot.slane %v2496, 2
      %v2498 = vmax.f32 %v2496, %v2497
      %v2499 = vrot.slane %v2498, 1
      %v2500 = vmax.f32 %v2498, %v2499
      %v2501 = vsel %vm2395, %v2382, -inf
      %v2502 = vrot.slane %v2501, 4
      %v2503 = vmax.f32 %v2501, %v2502
      %v2504 = vrot.slane %v2503, 2
      %v2505 = vmax.f32 %v2503, %v2504
      %v2506 = vrot.slane %v2505, 1
      %v2507 = vmax.f32 %v2505, %v2506
      %v2508 = vpack.c.bf16 %v2402, %v2402
      %v2509 = vpack.c.bf16 %v2409, %v2409
      %v2510 = vpack.c.bf16 %v2416, %v2416
      %v2511 = vpack.c.bf16 %v2423, %v2423
      %v2512 = vpack.c.bf16 %v2430, %v2430
      %v2513 = vpack.c.bf16 %v2437, %v2437
      %v2514 = vpack.c.bf16 %v2444, %v2444
      %v2515 = vpack.c.bf16 %v2451, %v2451
      %v2516 = vpack.c.bf16 %v2458, %v2458
      %v2517 = vpack.c.bf16 %v2465, %v2465
      %v2518 = vpack.c.bf16 %v2472, %v2472
      %v2519 = vpack.c.bf16 %v2479, %v2479
      %v2520 = vpack.c.bf16 %v2486, %v2486
      %v2521 = vpack.c.bf16 %v2493, %v2493
      %v2522 = vpack.c.bf16 %v2500, %v2500
      %v2523 = vpack.c.bf16 %v2507, %v2507
      %v2540 = vrot.slane %v2508, 2
      %v2541 = vrot.slane %v2509, 2
      %v2542 = vrot.slane %v2510, 2
      %v2543 = vrot.slane %v2511, 2
      %v2544 = vrot.slane %v2512, 2
      %v2545 = vrot.slane %v2513, 2
      %v2546 = vrot.slane %v2514, 2
      %v2547 = vrot.slane %v2515, 2
      %v2548 = vrot.slane %v2516, 2
      %v2549 = vrot.slane %v2517, 2
      %v2550 = vrot.slane %v2518, 2
      %v2551 = vrot.slane %v2519, 2
      %v2552 = vrot.slane %v2520, 2
      %v2553 = vrot.slane %v2521, 2
      %v2554 = vrot.slane %v2522, 2
      %v2555 = vrot.slane %v2523, 2
      %v2558 = vsel %vm2395, %v2508, %v2540
      %v2561 = vsel %vm2395, %v2509, %v2541
      %v2564 = vsel %vm2395, %v2510, %v2542
      %v2567 = vsel %vm2395, %v2511, %v2543
      %v2570 = vsel %vm2395, %v2512, %v2544
      %v2573 = vsel %vm2395, %v2513, %v2545
      %v2576 = vsel %vm2395, %v2514, %v2546
      %v2579 = vsel %vm2395, %v2515, %v2547
      %v2582 = vsel %vm2395, %v2516, %v2548
      %v2585 = vsel %vm2395, %v2517, %v2549
      %v2588 = vsel %vm2395, %v2518, %v2550
      %v2591 = vsel %vm2395, %v2519, %v2551
      %v2594 = vsel %vm2395, %v2520, %v2552
      %v2597 = vsel %vm2395, %v2521, %v2553
      %v2600 = vsel %vm2395, %v2522, %v2554
      %v2603 = vsel %vm2395, %v2523, %v2555
      %2604 = vst [vmem:[#allocation1] ss:$2 sm:$0xff] %v2558
      %v2605 = vld.sshfl [vmem:[#allocation1] sm:$0xff pattern:$0x75643120]
      %s2607 = scalar_lea.vmem [#allocation1], 16
      %2608 = vst [vmem:[%s2607] ss:$2 sm:$0xff] %v2561
      %v2609 = vld.sshfl [vmem:[#allocation1 + $0x10] sm:$0xff pattern:$0x75643120]
      %s2611 = scalar_lea.vmem [#allocation1], 32
      %2612 = vst [vmem:[%s2611] ss:$2 sm:$0xff] %v2564
      %v2613 = vld.sshfl [vmem:[#allocation1 + $0x20] sm:$0xff pattern:$0x75643120]
      %s2615 = scalar_lea.vmem [#allocation1], 48
      %2616 = vst [vmem:[%s2615] ss:$2 sm:$0xff] %v2567
      %v2617 = vld.sshfl [vmem:[#allocation1 + $0x30] sm:$0xff pattern:$0x75643120]
      %2619 = vst [vmem:[#allocation1] ss:$2 sm:$0xff] %v2570
      %v2620 = vld.sshfl [vmem:[#allocation1] sm:$0xff pattern:$0x75643120]
      %2622 = vst [vmem:[%s2607] ss:$2 sm:$0xff] %v2573
      %v2623 = vld.sshfl [vmem:[#allocation1 + $0x10] sm:$0xff pattern:$0x75643120]
      %2625 = vst [vmem:[%s2611] ss:$2 sm:$0xff] %v2576
      %v2626 = vld.sshfl [vmem:[#allocation1 + $0x20] sm:$0xff pattern:$0x75643120]
      %2628 = vst [vmem:[%s2615] ss:$2 sm:$0xff] %v2579
      %v2629 = vld.sshfl [vmem:[#allocation1 + $0x30] sm:$0xff pattern:$0x75643120]
      %2631 = vst [vmem:[#allocation1] ss:$2 sm:$0xff] %v2582
      %v2632 = vld.sshfl [vmem:[#allocation1] sm:$0xff pattern:$0x75643120]
      %2634 = vst [vmem:[%s2607] ss:$2 sm:$0xff] %v2585
      %v2635 = vld.sshfl [vmem:[#allocation1 + $0x10] sm:$0xff pattern:$0x75643120]
      %2637 = vst [vmem:[%s2611] ss:$2 sm:$0xff] %v2588
      %v2638 = vld.sshfl [vmem:[#allocation1 + $0x20] sm:$0xff pattern:$0x75643120]
      %2640 = vst [vmem:[%s2615] ss:$2 sm:$0xff] %v2591
      %v2641 = vld.sshfl [vmem:[#allocation1 + $0x30] sm:$0xff pattern:$0x75643120]
      %2643 = vst [vmem:[#allocation1] ss:$2 sm:$0xff] %v2594
      %v2644 = vld.sshfl [vmem:[#allocation1] sm:$0xff pattern:$0x75643120]
      %2646 = vst [vmem:[%s2607] ss:$2 sm:$0xff] %v2597
      %v2647 = vld.sshfl [vmem:[#allocation1 + $0x10] sm:$0xff pattern:$0x75643120]
      %2649 = vst [vmem:[%s2611] ss:$2 sm:$0xff] %v2600
      %v2650 = vld.sshfl [vmem:[#allocation1 + $0x20] sm:$0xff pattern:$0x75643120]
      %2652 = vst [vmem:[%s2615] ss:$2 sm:$0xff] %v2603
      %v2653 = vld.sshfl [vmem:[#allocation1 + $0x30] sm:$0xff pattern:$0x75643120]
      %v2655 = vunpack.c.l.b16 %v2605
      %v2656 = vunpack.c.l.b16 %v2609
      %v2657 = vunpack.c.l.b16 %v2613
      %v2658 = vunpack.c.l.b16 %v2617
      %v2659 = vunpack.c.l.b16 %v2620
      %v2660 = vunpack.c.l.b16 %v2623
      %v2661 = vunpack.c.l.b16 %v2626
      %v2662 = vunpack.c.l.b16 %v2629
      %v2663 = vunpack.c.l.b16 %v2632
      %v2664 = vunpack.c.l.b16 %v2635
      %v2665 = vunpack.c.l.b16 %v2638
      %v2666 = vunpack.c.l.b16 %v2641
      %v2667 = vunpack.c.l.b16 %v2644
      %v2668 = vunpack.c.l.b16 %v2647
      %v2669 = vunpack.c.l.b16 %v2650
      %v2670 = vunpack.c.l.b16 %v2653
      %v2671 = vrot.slane %v2656, 7
      %vm2672 = vcmask 1041409
      %v2673 = vsel %vm2672, %v2671, %v2655
      %v2674 = vrot.slane %v2657, 6
      %vm2675 = vcmask 1042434
      %v2676 = vsel %vm2675, %v2674, %v2673
      %v2677 = vrot.slane %v2658, 5
      %vm2678 = vcmask 1043459
      %v2679 = vsel %vm2678, %v2677, %v2676
      %v2680 = vrot.slane %v2660, 7
      %v2681 = vsel %vm2672, %v2680, %v2659
      %v2682 = vrot.slane %v2661, 6
      %v2683 = vsel %vm2675, %v2682, %v2681
      %v2684 = vrot.slane %v2662, 5
      %v2685 = vsel %vm2678, %v2684, %v2683
      %v2686 = vrot.slane %v2664, 7
      %v2687 = vsel %vm2672, %v2686, %v2663
      %v2688 = vrot.slane %v2665, 6
      %v2689 = vsel %vm2675, %v2688, %v2687
      %v2690 = vrot.slane %v2666, 5
      %v2691 = vsel %vm2678, %v2690, %v2689
      %v2692 = vrot.slane %v2668, 7
      %v2693 = vsel %vm2672, %v2692, %v2667
      %v2694 = vrot.slane %v2669, 6
      %v2695 = vsel %vm2675, %v2694, %v2693
      %v2696 = vrot.slane %v2670, 5
      %v2697 = vsel %vm2678, %v2696, %v2695
      %v2698 = vpack.c.b16 %v2679, %v2679
      %v2699 = vpack.c.b16 %v2685, %v2685
      %v2700 = vpack.c.b16 %v2691, %v2691
      %v2701 = vpack.c.b16 %v2697, %v2697
      %v2702 = vrot.slane %v2698, 2
      %v2703 = vrot.slane %v2699, 2
      %v2704 = vrot.slane %v2700, 2
      %v2705 = vrot.slane %v2701, 2
      %v2708 = vsel %vm2395, %v2698, %v2702
      %v2711 = vsel %vm2395, %v2699, %v2703
      %v2714 = vsel %vm2395, %v2700, %v2704
      %v2717 = vsel %vm2395, %v2701, %v2705
      %2722 = vst [vmem:[%s246] sm:$0x3] %v2708
      %2723 = vst [vmem:[%s246 + $0x2] sm:$0x3] %v2711
      %2724 = vst [vmem:[%s246 + $0x4] sm:$0x3] %v2714
      %2725 = vst [vmem:[%s246 + $0x6] sm:$0x3] %v2717
      %s2726 = smul.u32 4, %s21
      %p2727 = scmp.lt.s32.totalorder %s20, 1
      %s2728 = scalar_select %p2727, %s20, 1
      %p2729 = scmp.lt.s32.totalorder %s2726, 3
      %s2730 = scalar_select %p2729, %s2726, 3
      %s2731 = smul.addr %s2728, 4
      %s2732 = sadd.s32 %s2730, %s2731
      %s2733 = smul.addr %s2732, 2
      %s2734 = scalar_lea.vmem %s5, %s2733
      // Predicated region
      $region41: #{feature_extractor.7} parent=39 // pred_check
        %p2735 = pneg %p158
      $region42: #{feature_extractor.7} parent=39 // pred_check_branch
        %2737 = sbr.rel (%p2735) target = $region44
      $region43: #{feature_extractor.7} parent=39 // pred_region
        %s2738 = smul.u32 4, %s21
      $region44: #{feature_extractor.7} parent=39 // pred_fallthru
        _
    $region40: #{feature_extractor.7} parent=5 // pred_fallthru
      _
    %p2739 = scmp.le.s32.totalorder 2, %s11
    // Predicated region
    $region45: #{feature_extractor.7} parent=5 // pred_check
      %p2740 = pneg %p2739
    $region46: #{feature_extractor.7} parent=5 // pred_check_branch
      %2742 = sbr.rel (%p2740) target = $region48
    $region47: #{feature_extractor.7} parent=5 // pred_region
      %s2743 = ssub.s32 %s11, 2
      // Predicated region
      $region49: #{feature_extractor.7} parent=47 // pred_check
        %p2744 = pneg %p164
      $region50: #{feature_extractor.7} parent=47 // pred_check_branch
        %2746 = sbr.rel (%p2744) target = $region52
      $region51: #{feature_extractor.7} parent=47 // pred_region
        %s2747 = smul.u32 4, %s23
        %p2748 = scmp.lt.s32.totalorder %s22, 1
        %s2749 = scalar_select %p2748, %s22, 1
        %p2750 = scmp.lt.s32.totalorder %s2747, 3
        %s2751 = scalar_select %p2750, %s2747, 3
        %s2752 = smul.addr %s2749, 4
        %s2753 = sadd.s32 %s2751, %s2752
        %s2754 = smul.addr %s2753, 2
        %s2755 = scalar_lea.vmem %s5, %s2754
      $region52: #{feature_extractor.7} parent=47 // pred_fallthru
        _
    $region48: #{feature_extractor.7} parent=5 // pred_fallthru
      _
  $region6: #{feature_extractor.7} parent=0 // loop_footer
    %s15 = sadd.s32 1, %s11
  $region7: #{feature_extractor.7} parent=0 // loop_footer_branch
    %10 = sbr.rel target = $region3
  $region8: #{feature_extractor.7} parent=0 // loop_exit
    _

// kernel: feature_extractor.6
$region0: #{feature_extractor.6}
  #allocation0 [shape = 'u32[]', space=smem, size = 0x4, offset = 0x4, fixed_abs, tag = 'smem constant byte address 0x4 - core index']
  #allocation1 [shape = 'u32[72,128]{1,0:T(1,128)}', space=vmem, size = 0x9000, scoped, tag = 'internal scratch']
  %s0 = inlined_call_operand.vmem [shape: bf16[2,20,16,3], index: 0, kind: input, shape index: {}]
  %s1 = inlined_call_operand.vmem [shape: bf16[3,9,64], index: 1, kind: input, shape index: {}]
  %s2 = inlined_call_operand.hbm [shape: f32[1,64], index: 2, kind: input, shape index: {}]
  %s3 = inlined_call_operand.vmem [shape: bf16[3,192,64], index: 3, kind: input, shape index: {}]
  %s4 = inlined_call_operand.hbm [shape: f32[1,64], index: 4, kind: input, shape index: {}]
  %s5 = inlined_call_operand.vmem [shape: bf16[2,8,8,64], index: 5, kind: output, shape index: {}]
  %s6 = sld [smem:[#allocation0]]
  $region61: #{feature_extractor.6} parent=0
    _
  %s8 = ssub.s32 1, %s6
  %s9 = scalar_select 0, %s8, %s6
  $region1: #{feature_extractor.6} parent=0
    #allocation2 [shape = 'u8[512]{0}', space=vmem, size = 0x400, scoped, tag = 'input window, operand 2, single buffered']
    #allocation3 [shape = 's32[2]{0}', space=sflag, size = 0x8, scoped, tag = 'scoped memory for feature_extractor.6']
    #allocation4 [shape = 'u8[512]{0}', space=vmem, size = 0x400, scoped, tag = 'input window, operand 4, single buffered']
    #allocation5 [shape = 's32[1]{0}', space=sflag, size = 0x4, scoped, tag = 'scoped memory for feature_extractor.6']
    %10 = vsyncpa [#allocation3], 0
    %11 = vsyncpa [#allocation5], 0
    loop: start=0, step=1, limit=4
    $region2: #{feature_extractor.6} parent=1 // loop_pre_header
      _
    $region3: #{feature_extractor.6} parent=1 // loop_header
      %s13 = sphi 0, %s17
      %p14 = scmp.ge.s32.totalorder %s13, 4
      %s20 = sphi 0, %s32
      %s21 = sphi 0, %s28
      %s22 = sphi 0, %s20
      %s23 = sphi 0, %s21
      %s24 = sphi 0, %s22
      %s25 = sphi 0, %s23
      %s35 = sphi 0, %s37
      %s38 = sphi 0, %s35
      %s39 = sphi 0, %s38
      %s55 = sphi 0, %s39
      %s59 = sphi 0, %s59
      %s61 = sphi 0, %s59
      %s62 = sphi 0, %s61
      %s76 = sphi 0, %s62
      %s80 = sphi 0, %s80
      %s82 = sphi 0, %s80
      %s83 = sphi 0, %s82
      %s97 = sphi 0, %s83
      %s101 = sphi 0, %s101
      %s103 = sphi 0, %s101
      %s104 = sphi 0, %s103
      %s118 = sphi 0, %s104
      %s122 = sphi 0, %s122
      %s124 = sphi 0, %s122
      %s125 = sphi 0, %s124
      %s139 = sphi 0, %s125
      %s147 = sphi 0, %s149
      %s150 = sphi 0, %s147
      %s151 = sphi 0, %s150
      %s167 = sphi 0, %s151
    $region4: #{feature_extractor.6} parent=1 // loop_header_branch
      %16 = sbr.rel (%p14) target = $region8
    $region5: #{feature_extractor.6} parent=1 // loop_body
      %s18 = ssub.s32 %s13, 1
      %s19 = ssub.s32 %s13, 2
      %s26 = sadd.s32 1, %s21
      %p27 = scmp.ge.s32.totalorder %s26, 1
      %s28 = scalar_select %p27, 0, %s26
      %s29 = sadd.s32 1, %s20
      %s30 = scalar_select %p27, %s29, %s20
      %p31 = scmp.ge.s32.totalorder %s30, 2
      %s32 = scalar_select %p31, 0, %s30
      %s33 = ssub.s32 %s20, %s32
      %p34 = scmp.eq.s32.totalorder %s33, 0
      %s36 = sadd.s32 %s35, 1
      %s37 = scalar_select %p34, %s35, %s36
      %p40 = pneg %p34
      %p41 = scmp.eq.s32.totalorder %s13, 1
      %p42 = por %p40, %p41
      %p43 = scmp.ne.s32.totalorder %s35, %s38
      %p44 = scmp.eq.s32.totalorder %s13, 0
      %p45 = por %p43, %p44
      %p46 = scmp.ne.s32.totalorder %s35, %s38
      %p47 = scmp.eq.s32.totalorder %s18, 1
      %p48 = por %p46, %p47
      %p49 = scmp.ne.s32.totalorder %s38, %s39
      %p50 = scmp.eq.s32.totalorder %s18, 0
      %p51 = por %p49, %p50
      %p52 = scmp.ne.s32.totalorder %s38, %s39
      %p53 = scmp.eq.s32.totalorder %s19, 1
      %p54 = por %p52, %p53
      %p56 = scmp.ne.s32.totalorder %s39, %s55
      %p57 = scmp.eq.s32.totalorder %s19, 0
      %p58 = por %p56, %p57
      %s60 = sadd.s32 %s59, 1
      %p63 = scmp.eq.s32.totalorder %s13, 1
      %p64 = scmp.ne.s32.totalorder %s59, %s61
      %p65 = scmp.eq.s32.totalorder %s13, 0
      %p66 = por %p64, %p65
      %p67 = scmp.ne.s32.totalorder %s59, %s61
      %p68 = scmp.eq.s32.totalorder %s18, 1
      %p69 = por %p67, %p68
      %p70 = scmp.ne.s32.totalorder %s61, %s62
      %p71 = scmp.eq.s32.totalorder %s18, 0
      %p72 = por %p70, %p71
      %p73 = scmp.ne.s32.totalorder %s61, %s62
      %p74 = scmp.eq.s32.totalorder %s19, 1
      %p75 = por %p73, %p74
      %p77 = scmp.ne.s32.totalorder %s62, %s76
      %p78 = scmp.eq.s32.totalorder %s19, 0
      %p79 = por %p77, %p78
      %s81 = sadd.s32 %s80, 1
      %p84 = scmp.eq.s32.totalorder %s13, 1
      %p85 = scmp.ne.s32.totalorder %s80, %s82
      %p86 = scmp.eq.s32.totalorder %s13, 0
      %p87 = por %p85, %p86
      %p88 = scmp.ne.s32.totalorder %s80, %s82
      %p89 = scmp.eq.s32.totalorder %s18, 1
      %p90 = por %p88, %p89
      %p91 = scmp.ne.s32.totalorder %s82, %s83
      %p92 = scmp.eq.s32.totalorder %s18, 0
      %p93 = por %p91, %p92
      %p94 = scmp.ne.s32.totalorder %s82, %s83
      %p95 = scmp.eq.s32.totalorder %s19, 1
      %p96 = por %p94, %p95
      %p98 = scmp.ne.s32.totalorder %s83, %s97
      %p99 = scmp.eq.s32.totalorder %s19, 0
      %p100 = por %p98, %p99
      %s102 = sadd.s32 %s101, 1
      %p105 = scmp.eq.s32.totalorder %s13, 1
      %p106 = scmp.ne.s32.totalorder %s101, %s103
      %p107 = scmp.eq.s32.totalorder %s13, 0
      %p108 = por %p106, %p107
      %p109 = scmp.ne.s32.totalorder %s101, %s103
      %p110 = scmp.eq.s32.totalorder %s18, 1
      %p111 = por %p109, %p110
      %p112 = scmp.ne.s32.totalorder %s103, %s104
      %p113 = scmp.eq.s32.totalorder %s18, 0
      %p114 = por %p112, %p113
      %p115 = scmp.ne.s32.totalorder %s103, %s104
      %p116 = scmp.eq.s32.totalorder %s19, 1
      %p117 = por %p115, %p116
      %p119 = scmp.ne.s32.totalorder %s104, %s118
      %p120 = scmp.eq.s32.totalorder %s19, 0
      %p121 = por %p119, %p120
      %s123 = sadd.s32 %s122, 1
      %p126 = scmp.eq.s32.totalorder %s13, 1
      %p127 = scmp.ne.s32.totalorder %s122, %s124
      %p128 = scmp.eq.s32.totalorder %s13, 0
      %p129 = por %p127, %p128
      %p130 = scmp.ne.s32.totalorder %s122, %s124
      %p131 = scmp.eq.s32.totalorder %s18, 1
      %p132 = por %p130, %p131
      %p133 = scmp.ne.s32.totalorder %s124, %s125
      %p134 = scmp.eq.s32.totalorder %s18, 0
      %p135 = por %p133, %p134
      %p136 = scmp.ne.s32.totalorder %s124, %s125
      %p137 = scmp.eq.s32.totalorder %s19, 1
      %p138 = por %p136, %p137
      %p140 = scmp.ne.s32.totalorder %s125, %s139
      %p141 = scmp.eq.s32.totalorder %s19, 0
      %p142 = por %p140, %p141
      %s143 = ssub.s32 %s20, %s32
      %s144 = ssub.s32 %s21, %s28
      %s145 = sor.u32 %s143, %s144
      %p146 = scmp.eq.s32.totalorder %s145, 0
      %s148 = sadd.s32 %s147, 1
      %s149 = scalar_select %p146, %s147, %s148
      %p152 = pneg %p146
      %p153 = scmp.eq.s32.totalorder %s13, 1
      %p154 = por %p152, %p153
      %p155 = scmp.ne.s32.totalorder %s147, %s150
      %p156 = scmp.eq.s32.totalorder %s13, 0
      %p157 = por %p155, %p156
      %p158 = scmp.ne.s32.totalorder %s147, %s150
      %p159 = scmp.eq.s32.totalorder %s18, 1
      %p160 = por %p158, %p159
      %p161 = scmp.ne.s32.totalorder %s150, %s151
      %p162 = scmp.eq.s32.totalorder %s18, 0
      %p163 = por %p161, %p162
      %p164 = scmp.ne.s32.totalorder %s150, %s151
      %p165 = scmp.eq.s32.totalorder %s19, 1
      %p166 = por %p164, %p165
      %p168 = scmp.ne.s32.totalorder %s151, %s167
      %p169 = scmp.eq.s32.totalorder %s19, 0
      %p170 = por %p168, %p169
      %p171 = scmp.le.s32.totalorder 1, %s13
      %p172 = scmp.lt.s32.totalorder %s13, 3
      %p173 = pnand %p171, %p172
      %p174 = pneg %p173
      // Predicated region
      $region9: #{feature_extractor.6} parent=5 // pred_check
        _
      $region10: #{feature_extractor.6} parent=5 // pred_check_branch
        %176 = sbr.rel (%p173) target = $region12
      $region11: #{feature_extractor.6} parent=5 // pred_region
        %s177 = ssub.s32 %s13, 1
        // Predicated region
        $region13: #{feature_extractor.6} parent=11 // pred_check
          %p178 = pneg %p72
        $region14: #{feature_extractor.6} parent=11 // pred_check_branch
          %180 = sbr.rel (%p178) target = $region16
        $region15: #{feature_extractor.6} parent=11 // pred_region
          _
        $region16: #{feature_extractor.6} parent=11 // pred_fallthru
          _
        // Predicated region
        $region17: #{feature_extractor.6} parent=11 // pred_check
          %p181 = pneg %p93
        $region18: #{feature_extractor.6} parent=11 // pred_check_branch
          %183 = sbr.rel (%p181) target = $region20
        $region19: #{feature_extractor.6} parent=11 // pred_region
          %185 = vsyncadd [#allocation3], 0
          %s187 = sshll.u32 %s2, 4
          %s188 = int_to_ptr.hbm [resolvable:$true] %s187
          %s189 = sshll.u32 [#allocation2], 4
          %s190 = int_to_ptr.vmem [resolvable:$true] %s189
          %192 = dma.hbm_to_vmem [thread:$0]  %s188, 16, %s190, [#allocation3]
        $region20: #{feature_extractor.6} parent=11 // pred_fallthru
          _
        // Predicated region
        $region21: #{feature_extractor.6} parent=11 // pred_check
          %p193 = pneg %p114
        $region22: #{feature_extractor.6} parent=11 // pred_check_branch
          %195 = sbr.rel (%p193) target = $region24
        $region23: #{feature_extractor.6} parent=11 // pred_region
          _
        $region24: #{feature_extractor.6} parent=11 // pred_fallthru
          _
        // Predicated region
        $region25: #{feature_extractor.6} parent=11 // pred_check
          %p196 = pneg %p135
        $region26: #{feature_extractor.6} parent=11 // pred_check_branch
          %198 = sbr.rel (%p196) target = $region28
        $region27: #{feature_extractor.6} parent=11 // pred_region
          %200 = vsyncadd [#allocation5], 0
          %s202 = sshll.u32 %s4, 4
          %s203 = int_to_ptr.hbm [resolvable:$true] %s202
          %s204 = sshll.u32 [#allocation4], 4
          %s205 = int_to_ptr.vmem [resolvable:$true] %s204
          %207 = dma.hbm_to_vmem [thread:$0]  %s203, 16, %s205, [#allocation5]
        $region28: #{feature_extractor.6} parent=11 // pred_fallthru
          _
      $region12: #{feature_extractor.6} parent=5 // pred_fallthru
        _
      %p208 = scmp.lt.s32.totalorder %s13, 2
      // Predicated region
      $region29: #{feature_extractor.6} parent=5 // pred_check
        %p209 = pneg %p208
      $region30: #{feature_extractor.6} parent=5 // pred_check_branch
        %211 = sbr.rel (%p209) target = $region32
      $region31: #{feature_extractor.6} parent=5 // pred_region
        // Predicated region
        $region33: #{feature_extractor.6} parent=31 // pred_check
          %p212 = pneg %p45
        $region34: #{feature_extractor.6} parent=31 // pred_check_branch
          %214 = sbr.rel (%p212) target = $region36
        $region35: #{feature_extractor.6} parent=31 // pred_region
          %p215 = scmp.lt.s32.totalorder %s20, 1
          %s216 = scalar_select %p215, %s20, 1
          %s217 = smul.addr %s216, 40
          %s218 = smul.addr %s217, 4
          %s219 = scalar_lea.vmem %s0, %s218
        $region36: #{feature_extractor.6} parent=31 // pred_fallthru
          _
      $region32: #{feature_extractor.6} parent=5 // pred_fallthru
        _
      %p220 = scmp.le.s32.totalorder 1, %s13
      %p221 = scmp.lt.s32.totalorder %s13, 3
      %p222 = pnand %p220, %p221
      %p223 = pneg %p222
      // Predicated region
      $region37: #{feature_extractor.6} parent=5 // pred_check
        _
      $region38: #{feature_extractor.6} parent=5 // pred_check_branch
        %225 = sbr.rel (%p222) target = $region40
      $region39: #{feature_extractor.6} parent=5 // pred_region
        %s226 = ssub.s32 %s13, 1
        // Predicated region
        $region41: #{feature_extractor.6} parent=39 // pred_check
          %p227 = pneg %p93
        $region42: #{feature_extractor.6} parent=39 // pred_check_branch
          %229 = sbr.rel (%p227) target = $region44
        $region43: #{feature_extractor.6} parent=39 // pred_region
          %231 = dma.done [#allocation3], 16
        $region44: #{feature_extractor.6} parent=39 // pred_fallthru
          _
        // Predicated region
        $region45: #{feature_extractor.6} parent=39 // pred_check
          %p232 = pneg %p135
        $region46: #{feature_extractor.6} parent=39 // pred_check_branch
          %234 = sbr.rel (%p232) target = $region48
        $region47: #{feature_extractor.6} parent=39 // pred_region
          %236 = dma.done [#allocation5], 16
        $region48: #{feature_extractor.6} parent=39 // pred_fallthru
          _
        %p237 = scmp.lt.s32.totalorder %s22, 1
        %s238 = scalar_select %p237, %s22, 1
        %s239 = smul.addr %s238, 40
        %s240 = smul.addr %s239, 4
        %s241 = scalar_lea.vmem %s0, %s240
        %p242 = pneg %p51
        %p243 = pneg %p48
        %p244 = pneg %p72
        %p245 = pneg %p69
        %p246 = pneg %p93
        %p247 = pneg %p90
        %p248 = pneg %p114
        %p249 = pneg %p111
        %p250 = pneg %p135
        %p251 = pneg %p132
        %p252 = pneg %p163
        %p253 = pneg %p160
        %s254 = smul.u32 8, %s23
        %p255 = scmp.lt.s32.totalorder %s22, 1
        %s256 = scalar_select %p255, %s22, 1
        %p257 = scmp.lt.s32.totalorder %s254, 7
        %s258 = scalar_select %p257, %s254, 7
        %s259 = smul.addr %s256, 8
        %s260 = sadd.s32 %s258, %s259
        %s261 = smul.addr %s260, 4
        %s262 = scalar_lea.vmem %s5, %s261
        %p263 = scmp.lt.s32.totalorder %s22, 1
        %s264 = scalar_select %p263, %s22, 1
        %s265 = smul.addr %s264, 40
        %s266 = smul.addr %s265, 4
        %s267 = scalar_lea.vmem %s0, %s266
        %s268 = smul.u32 8, %s23
        %p269 = scmp.lt.s32.totalorder %s22, 1
        %s270 = scalar_select %p269, %s22, 1
        %p271 = scmp.lt.s32.totalorder %s268, 7
        %s272 = scalar_select %p271, %s268, 7
        %s273 = smul.addr %s270, 8
        %s274 = sadd.s32 %s272, %s273
        %s275 = smul.addr %s274, 4
        %s276 = scalar_lea.vmem %s5, %s275
        %s277 = smul.u32 8, %s23
        %s279 = smul.u32 %s23, 16
        %s280 = smul.u32 %s279, 2
        %s281 = smul.addr %s280, 4
        %s282 = scalar_lea.vmem %s267, %s281
        %v283 = vld [vmem:[%s282] sm:$0xf]
        %v284 = vld [vmem:[%s282 + $0x4] sm:$0xf]
        %v285 = vld [vmem:[%s282 + $0x8] sm:$0xf]
        %v286 = vld [vmem:[%s282 + $0xc] sm:$0xf]
        %v287 = vld [vmem:[%s282 + $0x10] sm:$0xf]
        %v288 = vld [vmem:[%s282 + $0x14] sm:$0xf]
        %v289 = vld [vmem:[%s282 + $0x18] sm:$0xf]
        %v290 = vld [vmem:[%s282 + $0x1c] sm:$0xf]
        %v291 = vld [vmem:[%s282 + $0x20] sm:$0xf]
        %v292 = vld [vmem:[%s282 + $0x24] sm:$0xf]
        %v293 = vld [vmem:[%s282 + $0x28] sm:$0xf]
        %v294 = vld [vmem:[%s282 + $0x2c] sm:$0xf]
        %v295 = vld [vmem:[%s282 + $0x30] sm:$0xf]
        %v296 = vld [vmem:[%s282 + $0x34] sm:$0xf]
        %v297 = vld [vmem:[%s282 + $0x38] sm:$0xf]
        %v298 = vld [vmem:[%s282 + $0x3c] sm:$0xf]
        %v299 = vld [vmem:[%s282 + $0x40] sm:$0xf]
        %v300 = vld [vmem:[%s282 + $0x44] sm:$0xf]
        %v301 = vld [vmem:[%s282 + $0x48] sm:$0xf]
        %v302 = vld [vmem:[%s282 + $0x4c] sm:$0xf]
        %v303 = vld [vmem:[%s282 + $0x50] sm:$0xf]
        %v304 = vld [vmem:[%s282 + $0x54] sm:$0xf]
        %v305 = vld [vmem:[%s282 + $0x58] sm:$0xf]
        %v306 = vld [vmem:[%s282 + $0x5c] sm:$0xf]
        %v307 = vld [vmem:[%s282 + $0x60] sm:$0xf]
        %v308 = vld [vmem:[%s282 + $0x64] sm:$0xf]
        %v309 = vld [vmem:[%s282 + $0x68] sm:$0xf]
        %v310 = vld [vmem:[%s282 + $0x6c] sm:$0xf]
        %v311 = vld [vmem:[%s282 + $0x70] sm:$0xf]
        %v312 = vld [vmem:[%s282 + $0x74] sm:$0xf]
        %v313 = vld [vmem:[%s282 + $0x78] sm:$0xf]
        %v314 = vld [vmem:[%s282 + $0x7c] sm:$0xf]
        %v315 = vld [vmem:[%s282 + $0x80] sm:$0xf]
        %v316 = vld [vmem:[%s282 + $0x84] sm:$0xf]
        %v317 = vld [vmem:[%s282 + $0x88] sm:$0xf]
        %v318 = vld [vmem:[%s282 + $0x8c] sm:$0xf]
        %v319 = vld [vmem:[%s282 + $0x90] sm:$0xf]
        %v320 = vld [vmem:[%s282 + $0x94] sm:$0xf]
        %v321 = vld [vmem:[%s282 + $0x98] sm:$0xf]
        %v322 = vld [vmem:[%s282 + $0x9c] sm:$0xf]
        %v323 = vld [vmem:[%s1] sm:$0xf]
        %v324 = vld [vmem:[%s1 + $0x4] sm:$0x1]
        %v325 = vld [vmem:[%s1 + $0x8] sm:$0xf]
        %v326 = vld [vmem:[%s1 + $0xc] sm:$0x1]
        %v327 = vld [vmem:[%s1 + $0x10] sm:$0xf]
        %v328 = vld [vmem:[%s1 + $0x14] sm:$0x1]
        %v329 = vld [vmem:[#allocation2] sm:$0x1]
        %v370 = vunpack.c.l.b16 %v283
        %v371 = vunpack.c.l.b16 %v284
        %v372 = vunpack.c.l.b16 %v285
        %v373 = vunpack.c.l.b16 %v286
        %v374 = vunpack.c.l.b16 %v287
        %v375 = vunpack.c.l.b16 %v288
        %v376 = vunpack.c.l.b16 %v289
        %v377 = vunpack.c.l.b16 %v290
        %v378 = vunpack.c.l.b16 %v291
        %v379 = vunpack.c.l.b16 %v292
        %v380 = vunpack.c.l.b16 %v293
        %v381 = vunpack.c.l.b16 %v294
        %v382 = vunpack.c.l.b16 %v295
        %v383 = vunpack.c.l.b16 %v296
        %v384 = vunpack.c.l.b16 %v297
        %v385 = vunpack.c.l.b16 %v298
        %v386 = vunpack.c.l.b16 %v299
        %v387 = vunpack.c.l.b16 %v300
        %v388 = vunpack.c.l.b16 %v301
        %v389 = vunpack.c.l.b16 %v302
        %v390 = vunpack.c.l.b16 %v303
        %v391 = vunpack.c.l.b16 %v304
        %v392 = vunpack.c.l.b16 %v305
        %v393 = vunpack.c.l.b16 %v306
        %v394 = vunpack.c.l.b16 %v307
        %v395 = vunpack.c.l.b16 %v308
        %v396 = vunpack.c.l.b16 %v309
        %v397 = vunpack.c.l.b16 %v310
        %v398 = vunpack.c.l.b16 %v311
        %v399 = vunpack.c.l.b16 %v312
        %v400 = vunpack.c.l.b16 %v313
        %v401 = vunpack.c.l.b16 %v314
        %v402 = vunpack.c.l.b16 %v315
        %v403 = vunpack.c.l.b16 %v316
        %v404 = vunpack.c.l.b16 %v317
        %v405 = vunpack.c.l.b16 %v318
        %v406 = vunpack.c.l.b16 %v319
        %v407 = vunpack.c.l.b16 %v320
        %v408 = vunpack.c.l.b16 %v321
        %v409 = vunpack.c.l.b16 %v322
        %v410 = vpack.c.b16 %v371, %v370
        %v411 = vpack.c.b16 %v373, %v372
        %v412 = vpack.c.b16 %v375, %v374
        %v413 = vpack.c.b16 %v377, %v376
        %v414 = vpack.c.b16 %v379, %v378
        %v415 = vpack.c.b16 %v381, %v380
        %v416 = vpack.c.b16 %v383, %v382
        %v417 = vpack.c.b16 %v385, %v384
        %v418 = vpack.c.b16 %v387, %v386
        %v419 = vpack.c.b16 %v389, %v388
        %v420 = vpack.c.b16 %v391, %v390
        %v421 = vpack.c.b16 %v393, %v392
        %v422 = vpack.c.b16 %v395, %v394
        %v423 = vpack.c.b16 %v397, %v396
        %v424 = vpack.c.b16 %v399, %v398
        %v425 = vpack.c.b16 %v401, %v400
        %v426 = vpack.c.b16 %v403, %v402
        %v427 = vpack.c.b16 %v405, %v404
        %v428 = vpack.c.b16 %v407, %v406
        %v429 = vpack.c.b16 %v409, %v408
        %v431 = vshrl.u32 %v410, 16
        %v433 = vrot.slane %v431, 7
        %v434 = vshll.u32 %v410, 16
        %v436 = vor.u32 %v433, %v434
        %v438 = vshrl.u32 %v411, 16
        %v440 = vrot.slane %v438, 7
        %v441 = vshll.u32 %v411, 16
        %v443 = vor.u32 %v440, %v441
        %v445 = vshrl.u32 %v412, 16
        %v447 = vrot.slane %v445, 7
        %v448 = vshll.u32 %v412, 16
        %v450 = vor.u32 %v447, %v448
        %v452 = vshrl.u32 %v413, 16
        %v454 = vrot.slane %v452, 7
        %v455 = vshll.u32 %v413, 16
        %v457 = vor.u32 %v454, %v455
        %v459 = vshrl.u32 %v414, 16
        %v461 = vrot.slane %v459, 7
        %v462 = vshll.u32 %v414, 16
        %v464 = vor.u32 %v461, %v462
        %v466 = vshrl.u32 %v415, 16
        %v468 = vrot.slane %v466, 7
        %v469 = vshll.u32 %v415, 16
        %v471 = vor.u32 %v468, %v469
        %v473 = vshrl.u32 %v416, 16
        %v475 = vrot.slane %v473, 7
        %v476 = vshll.u32 %v416, 16
        %v478 = vor.u32 %v475, %v476
        %v480 = vshrl.u32 %v417, 16
        %v482 = vrot.slane %v480, 7
        %v483 = vshll.u32 %v417, 16
        %v485 = vor.u32 %v482, %v483
        %v487 = vshrl.u32 %v418, 16
        %v489 = vrot.slane %v487, 7
        %v490 = vshll.u32 %v418, 16
        %v492 = vor.u32 %v489, %v490
        %v494 = vshrl.u32 %v419, 16
        %v496 = vrot.slane %v494, 7
        %v497 = vshll.u32 %v419, 16
        %v499 = vor.u32 %v496, %v497
        %v501 = vshrl.u32 %v420, 16
        %v503 = vrot.slane %v501, 7
        %v504 = vshll.u32 %v420, 16
        %v506 = vor.u32 %v503, %v504
        %v508 = vshrl.u32 %v421, 16
        %v510 = vrot.slane %v508, 7
        %v511 = vshll.u32 %v421, 16
        %v513 = vor.u32 %v510, %v511
        %v515 = vshrl.u32 %v422, 16
        %v517 = vrot.slane %v515, 7
        %v518 = vshll.u32 %v422, 16
        %v520 = vor.u32 %v517, %v518
        %v522 = vshrl.u32 %v423, 16
        %v524 = vrot.slane %v522, 7
        %v525 = vshll.u32 %v423, 16
        %v527 = vor.u32 %v524, %v525
        %v529 = vshrl.u32 %v424, 16
        %v531 = vrot.slane %v529, 7
        %v532 = vshll.u32 %v424, 16
        %v534 = vor.u32 %v531, %v532
        %v536 = vshrl.u32 %v425, 16
        %v538 = vrot.slane %v536, 7
        %v539 = vshll.u32 %v425, 16
        %v541 = vor.u32 %v538, %v539
        %v543 = vshrl.u32 %v426, 16
        %v545 = vrot.slane %v543, 7
        %v546 = vshll.u32 %v426, 16
        %v548 = vor.u32 %v545, %v546
        %v550 = vshrl.u32 %v427, 16
        %v552 = vrot.slane %v550, 7
        %v553 = vshll.u32 %v427, 16
        %v555 = vor.u32 %v552, %v553
        %v557 = vshrl.u32 %v428, 16
        %v559 = vrot.slane %v557, 7
        %v560 = vshll.u32 %v428, 16
        %v562 = vor.u32 %v559, %v560
        %v564 = vshrl.u32 %v429, 16
        %v566 = vrot.slane %v564, 7
        %v567 = vshll.u32 %v429, 16
        %v569 = vor.u32 %v566, %v567
        %vm590 = vcmask 1040384
        %vm591 = vsmask.f32 256
        %vm592 = vmand %vm590, %vm591
        %v593 = vsel %vm592, 0, %v436
        %v594 = vsel %vm592, 0, %v443
        %v595 = vsel %vm592, 0, %v450
        %v596 = vsel %vm592, 0, %v457
        %v597 = vsel %vm592, 0, %v464
        %v598 = vsel %vm592, 0, %v471
        %v599 = vsel %vm592, 0, %v478
        %v600 = vsel %vm592, 0, %v485
        %v601 = vsel %vm592, 0, %v492
        %v602 = vsel %vm592, 0, %v499
        %v603 = vsel %vm592, 0, %v506
        %v604 = vsel %vm592, 0, %v513
        %v605 = vsel %vm592, 0, %v520
        %v606 = vsel %vm592, 0, %v527
        %v607 = vsel %vm592, 0, %v534
        %v608 = vsel %vm592, 0, %v541
        %v609 = vsel %vm592, 0, %v548
        %v610 = vsel %vm592, 0, %v555
        %v611 = vsel %vm592, 0, %v562
        %v612 = vsel %vm592, 0, %v569
        %v613 = vrot.slane %v434, 1
        %v614 = vor.u32 %v431, %v613
        %v615 = vrot.slane %v441, 1
        %v616 = vor.u32 %v438, %v615
        %v617 = vrot.slane %v448, 1
        %v618 = vor.u32 %v445, %v617
        %v619 = vrot.slane %v455, 1
        %v620 = vor.u32 %v452, %v619
        %v621 = vrot.slane %v462, 1
        %v622 = vor.u32 %v459, %v621
        %v623 = vrot.slane %v469, 1
        %v624 = vor.u32 %v466, %v623
        %v625 = vrot.slane %v476, 1
        %v626 = vor.u32 %v473, %v625
        %v627 = vrot.slane %v483, 1
        %v628 = vor.u32 %v480, %v627
        %v629 = vrot.slane %v490, 1
        %v630 = vor.u32 %v487, %v629
        %v631 = vrot.slane %v497, 1
        %v632 = vor.u32 %v494, %v631
        %v633 = vrot.slane %v504, 1
        %v634 = vor.u32 %v501, %v633
        %v635 = vrot.slane %v511, 1
        %v636 = vor.u32 %v508, %v635
        %v637 = vrot.slane %v518, 1
        %v638 = vor.u32 %v515, %v637
        %v639 = vrot.slane %v525, 1
        %v640 = vor.u32 %v522, %v639
        %v641 = vrot.slane %v532, 1
        %v642 = vor.u32 %v529, %v641
        %v643 = vrot.slane %v539, 1
        %v644 = vor.u32 %v536, %v643
        %v645 = vrot.slane %v546, 1
        %v646 = vor.u32 %v543, %v645
        %v647 = vrot.slane %v553, 1
        %v648 = vor.u32 %v550, %v647
        %v649 = vrot.slane %v560, 1
        %v650 = vor.u32 %v557, %v649
        %v651 = vrot.slane %v567, 1
        %v652 = vor.u32 %v564, %v651
        %vm673 = vcmask 1047552
        %vm674 = vsmask.f32 7424
        %vm675 = vmand %vm673, %vm674
        %v676 = vsel %vm675, %v614, 0
        %v677 = vsel %vm675, %v616, 0
        %v678 = vsel %vm675, %v618, 0
        %v679 = vsel %vm675, %v620, 0
        %v680 = vsel %vm675, %v622, 0
        %v681 = vsel %vm675, %v624, 0
        %v682 = vsel %vm675, %v626, 0
        %v683 = vsel %vm675, %v628, 0
        %v684 = vsel %vm675, %v630, 0
        %v685 = vsel %vm675, %v632, 0
        %v686 = vsel %vm675, %v634, 0
        %v687 = vsel %vm675, %v636, 0
        %v688 = vsel %vm675, %v638, 0
        %v689 = vsel %vm675, %v640, 0
        %v690 = vsel %vm675, %v642, 0
        %v691 = vsel %vm675, %v644, 0
        %v692 = vsel %vm675, %v646, 0
        %v693 = vsel %vm675, %v648, 0
        %v694 = vsel %vm675, %v650, 0
        %v695 = vsel %vm675, %v652, 0
        %696 = vrot.lane.b32.xlu0 %v410, 3
        %v697 = vpop.permute.xlu0 %696
        %698 = vrot.lane.b32.xlu0 %v411, 3
        %v699 = vpop.permute.xlu0 %698
        %700 = vrot.lane.b32.xlu0 %v412, 3
        %v701 = vpop.permute.xlu0 %700
        %702 = vrot.lane.b32.xlu0 %v413, 3
        %v703 = vpop.permute.xlu0 %702
        %704 = vrot.lane.b32.xlu0 %v414, 3
        %v705 = vpop.permute.xlu0 %704
        %706 = vrot.lane.b32.xlu0 %v415, 3
        %v707 = vpop.permute.xlu0 %706
        %708 = vrot.lane.b32.xlu0 %v416, 3
        %v709 = vpop.permute.xlu0 %708
        %710 = vrot.lane.b32.xlu0 %v417, 3
        %v711 = vpop.permute.xlu0 %710
        %712 = vrot.lane.b32.xlu0 %v418, 3
        %v713 = vpop.permute.xlu0 %712
        %714 = vrot.lane.b32.xlu0 %v419, 3
        %v715 = vpop.permute.xlu0 %714
        %716 = vrot.lane.b32.xlu0 %v420, 3
        %v717 = vpop.permute.xlu0 %716
        %718 = vrot.lane.b32.xlu0 %v421, 3
        %v719 = vpop.permute.xlu0 %718
        %720 = vrot.lane.b32.xlu0 %v422, 3
        %v721 = vpop.permute.xlu0 %720
        %722 = vrot.lane.b32.xlu0 %v423, 3
        %v723 = vpop.permute.xlu0 %722
        %724 = vrot.lane.b32.xlu0 %v424, 3
        %v725 = vpop.permute.xlu0 %724
        %726 = vrot.lane.b32.xlu0 %v425, 3
        %v727 = vpop.permute.xlu0 %726
        %728 = vrot.lane.b32.xlu0 %v426, 3
        %v729 = vpop.permute.xlu0 %728
        %730 = vrot.lane.b32.xlu0 %v427, 3
        %v731 = vpop.permute.xlu0 %730
        %732 = vrot.lane.b32.xlu0 %v428, 3
        %v733 = vpop.permute.xlu0 %732
        %734 = vrot.lane.b32.xlu0 %v429, 3
        %v735 = vpop.permute.xlu0 %734
        %756 = vrot.lane.b32.xlu0 %v676, 6
        %v757 = vpop.permute.xlu0 %756
        %758 = vrot.lane.b32.xlu0 %v677, 6
        %v759 = vpop.permute.xlu0 %758
        %760 = vrot.lane.b32.xlu0 %v678, 6
        %v761 = vpop.permute.xlu0 %760
        %762 = vrot.lane.b32.xlu0 %v679, 6
        %v763 = vpop.permute.xlu0 %762
        %764 = vrot.lane.b32.xlu0 %v680, 6
        %v765 = vpop.permute.xlu0 %764
        %766 = vrot.lane.b32.xlu0 %v681, 6
        %v767 = vpop.permute.xlu0 %766
        %768 = vrot.lane.b32.xlu0 %v682, 6
        %v769 = vpop.permute.xlu0 %768
        %770 = vrot.lane.b32.xlu0 %v683, 6
        %v771 = vpop.permute.xlu0 %770
        %772 = vrot.lane.b32.xlu0 %v684, 6
        %v773 = vpop.permute.xlu0 %772
        %774 = vrot.lane.b32.xlu0 %v685, 6
        %v775 = vpop.permute.xlu0 %774
        %776 = vrot.lane.b32.xlu0 %v686, 6
        %v777 = vpop.permute.xlu0 %776
        %778 = vrot.lane.b32.xlu0 %v687, 6
        %v779 = vpop.permute.xlu0 %778
        %780 = vrot.lane.b32.xlu0 %v688, 6
        %v781 = vpop.permute.xlu0 %780
        %782 = vrot.lane.b32.xlu0 %v689, 6
        %v783 = vpop.permute.xlu0 %782
        %784 = vrot.lane.b32.xlu0 %v690, 6
        %v785 = vpop.permute.xlu0 %784
        %786 = vrot.lane.b32.xlu0 %v691, 6
        %v787 = vpop.permute.xlu0 %786
        %788 = vrot.lane.b32.xlu0 %v692, 6
        %v789 = vpop.permute.xlu0 %788
        %790 = vrot.lane.b32.xlu0 %v693, 6
        %v791 = vpop.permute.xlu0 %790
        %792 = vrot.lane.b32.xlu0 %v694, 6
        %v793 = vpop.permute.xlu0 %792
        %794 = vrot.lane.b32.xlu0 %v695, 6
        %v795 = vpop.permute.xlu0 %794
        %vm796 = vcmask 23552
        %v799 = vsel %vm796, %v593, %v697
        %v802 = vsel %vm796, %v594, %v699
        %v805 = vsel %vm796, %v595, %v701
        %v808 = vsel %vm796, %v596, %v703
        %v811 = vsel %vm796, %v597, %v705
        %v814 = vsel %vm796, %v598, %v707
        %v817 = vsel %vm796, %v599, %v709
        %v820 = vsel %vm796, %v600, %v711
        %v823 = vsel %vm796, %v601, %v713
        %v826 = vsel %vm796, %v602, %v715
        %v829 = vsel %vm796, %v603, %v717
        %v832 = vsel %vm796, %v604, %v719
        %v835 = vsel %vm796, %v605, %v721
        %v838 = vsel %vm796, %v606, %v723
        %v841 = vsel %vm796, %v607, %v725
        %v844 = vsel %vm796, %v608, %v727
        %v847 = vsel %vm796, %v609, %v729
        %v850 = vsel %vm796, %v610, %v731
        %v853 = vsel %vm796, %v611, %v733
        %v856 = vsel %vm796, %v612, %v735
        %vm857 = vcmask 48128
        %v859 = vsel %vm857, %v799, %v757
        %v861 = vsel %vm857, %v802, %v759
        %v863 = vsel %vm857, %v805, %v761
        %v865 = vsel %vm857, %v808, %v763
        %v867 = vsel %vm857, %v811, %v765
        %v869 = vsel %vm857, %v814, %v767
        %v871 = vsel %vm857, %v817, %v769
        %v873 = vsel %vm857, %v820, %v771
        %v875 = vsel %vm857, %v823, %v773
        %v877 = vsel %vm857, %v826, %v775
        %v879 = vsel %vm857, %v829, %v777
        %v881 = vsel %vm857, %v832, %v779
        %v883 = vsel %vm857, %v835, %v781
        %v885 = vsel %vm857, %v838, %v783
        %v887 = vsel %vm857, %v841, %v785
        %v889 = vsel %vm857, %v844, %v787
        %v891 = vsel %vm857, %v847, %v789
        %v893 = vsel %vm857, %v850, %v791
        %v895 = vsel %vm857, %v853, %v793
        %v897 = vsel %vm857, %v856, %v795
        %916 = vrot.lane.b32.xlu0 %v861, 9
        %v917 = vpop.permute.xlu0 %916
        %918 = vrot.lane.b32.xlu0 %v863, 9
        %v919 = vpop.permute.xlu0 %918
        %920 = vrot.lane.b32.xlu0 %v865, 9
        %v921 = vpop.permute.xlu0 %920
        %922 = vrot.lane.b32.xlu0 %v867, 9
        %v923 = vpop.permute.xlu0 %922
        %924 = vrot.lane.b32.xlu0 %v869, 9
        %v925 = vpop.permute.xlu0 %924
        %926 = vrot.lane.b32.xlu0 %v871, 9
        %v927 = vpop.permute.xlu0 %926
        %928 = vrot.lane.b32.xlu0 %v873, 9
        %v929 = vpop.permute.xlu0 %928
        %930 = vrot.lane.b32.xlu0 %v875, 9
        %v931 = vpop.permute.xlu0 %930
        %932 = vrot.lane.b32.xlu0 %v877, 9
        %v933 = vpop.permute.xlu0 %932
        %934 = vrot.lane.b32.xlu0 %v879, 9
        %v935 = vpop.permute.xlu0 %934
        %936 = vrot.lane.b32.xlu0 %v881, 9
        %v937 = vpop.permute.xlu0 %936
        %938 = vrot.lane.b32.xlu0 %v883, 9
        %v939 = vpop.permute.xlu0 %938
        %940 = vrot.lane.b32.xlu0 %v885, 9
        %v941 = vpop.permute.xlu0 %940
        %942 = vrot.lane.b32.xlu0 %v887, 9
        %v943 = vpop.permute.xlu0 %942
        %944 = vrot.lane.b32.xlu0 %v889, 9
        %v945 = vpop.permute.xlu0 %944
        %946 = vrot.lane.b32.xlu0 %v891, 9
        %v947 = vpop.permute.xlu0 %946
        %948 = vrot.lane.b32.xlu0 %v893, 9
        %v949 = vpop.permute.xlu0 %948
        %950 = vrot.lane.b32.xlu0 %v895, 9
        %v951 = vpop.permute.xlu0 %950
        %953 = vrot.lane.b32.xlu0 %v863, 18
        %v954 = vpop.permute.xlu0 %953
        %955 = vrot.lane.b32.xlu0 %v865, 18
        %v956 = vpop.permute.xlu0 %955
        %957 = vrot.lane.b32.xlu0 %v867, 18
        %v958 = vpop.permute.xlu0 %957
        %959 = vrot.lane.b32.xlu0 %v869, 18
        %v960 = vpop.permute.xlu0 %959
        %961 = vrot.lane.b32.xlu0 %v871, 18
        %v962 = vpop.permute.xlu0 %961
        %963 = vrot.lane.b32.xlu0 %v873, 18
        %v964 = vpop.permute.xlu0 %963
        %965 = vrot.lane.b32.xlu0 %v875, 18
        %v966 = vpop.permute.xlu0 %965
        %967 = vrot.lane.b32.xlu0 %v877, 18
        %v968 = vpop.permute.xlu0 %967
        %969 = vrot.lane.b32.xlu0 %v879, 18
        %v970 = vpop.permute.xlu0 %969
        %971 = vrot.lane.b32.xlu0 %v881, 18
        %v972 = vpop.permute.xlu0 %971
        %973 = vrot.lane.b32.xlu0 %v883, 18
        %v974 = vpop.permute.xlu0 %973
        %975 = vrot.lane.b32.xlu0 %v885, 18
        %v976 = vpop.permute.xlu0 %975
        %977 = vrot.lane.b32.xlu0 %v887, 18
        %v978 = vpop.permute.xlu0 %977
        %979 = vrot.lane.b32.xlu0 %v889, 18
        %v980 = vpop.permute.xlu0 %979
        %981 = vrot.lane.b32.xlu0 %v891, 18
        %v982 = vpop.permute.xlu0 %981
        %983 = vrot.lane.b32.xlu0 %v893, 18
        %v984 = vpop.permute.xlu0 %983
        %985 = vrot.lane.b32.xlu0 %v895, 18
        %v986 = vpop.permute.xlu0 %985
        %987 = vrot.lane.b32.xlu0 %v897, 18
        %v988 = vpop.permute.xlu0 %987
        %vm989 = vcmask 72704
        %v991 = vsel %vm989, %v859, %v917
        %v993 = vsel %vm989, %v861, %v919
        %v995 = vsel %vm989, %v863, %v921
        %v997 = vsel %vm989, %v865, %v923
        %v999 = vsel %vm989, %v867, %v925
        %v1001 = vsel %vm989, %v869, %v927
        %v1003 = vsel %vm989, %v871, %v929
        %v1005 = vsel %vm989, %v873, %v931
        %v1007 = vsel %vm989, %v875, %v933
        %v1009 = vsel %vm989, %v877, %v935
        %v1011 = vsel %vm989, %v879, %v937
        %v1013 = vsel %vm989, %v881, %v939
        %v1015 = vsel %vm989, %v883, %v941
        %v1017 = vsel %vm989, %v885, %v943
        %v1019 = vsel %vm989, %v887, %v945
        %v1021 = vsel %vm989, %v889, %v947
        %v1023 = vsel %vm989, %v891, %v949
        %v1025 = vsel %vm989, %v893, %v951
        %vm1026 = vcmask 146432
        %v1028 = vsel %vm1026, %v991, %v954
        %v1030 = vsel %vm1026, %v993, %v956
        %v1032 = vsel %vm1026, %v995, %v958
        %v1034 = vsel %vm1026, %v997, %v960
        %v1036 = vsel %vm1026, %v999, %v962
        %v1038 = vsel %vm1026, %v1001, %v964
        %v1040 = vsel %vm1026, %v1003, %v966
        %v1042 = vsel %vm1026, %v1005, %v968
        %v1044 = vsel %vm1026, %v1007, %v970
        %v1046 = vsel %vm1026, %v1009, %v972
        %v1048 = vsel %vm1026, %v1011, %v974
        %v1050 = vsel %vm1026, %v1013, %v976
        %v1052 = vsel %vm1026, %v1015, %v978
        %v1054 = vsel %vm1026, %v1017, %v980
        %v1056 = vsel %vm1026, %v1019, %v982
        %v1058 = vsel %vm1026, %v1021, %v984
        %v1060 = vsel %vm1026, %v1023, %v986
        %v1062 = vsel %vm1026, %v1025, %v988
        %v1069 = vrot.slane %v323, 3
        %v1070 = vrot.slane %v324, 3
        %v1071 = vrot.slane %v325, 3
        %v1072 = vrot.slane %v326, 3
        %v1073 = vrot.slane %v327, 3
        %v1074 = vrot.slane %v328, 3
        %vm1075 = vcmask 1040384
        %v1078 = vsel %vm1075, %v323, %v1069
        %vm1080 = vcmask 1041409
        %v1081 = vsel %vm1080, %v323, %v1069
        %v1083 = vrot.slane %v1081, 1
        %vm1084 = vcmask 1042434
        %v1085 = vsel %vm1084, %v323, %v1069
        %v1087 = vrot.slane %v1085, 2
        %vm1088 = vcmask 1043459
        %v1089 = vsel %vm1088, %v323, %v1069
        %v1091 = vrot.slane %v1089, 3
        %v1094 = vsel %vm1075, %v324, %v1070
        %v1098 = vsel %vm1075, %v325, %v1071
        %v1100 = vsel %vm1080, %v325, %v1071
        %v1102 = vrot.slane %v1100, 1
        %v1103 = vsel %vm1084, %v325, %v1071
        %v1105 = vrot.slane %v1103, 2
        %v1106 = vsel %vm1088, %v325, %v1071
        %v1108 = vrot.slane %v1106, 3
        %v1111 = vsel %vm1075, %v326, %v1072
        %v1115 = vsel %vm1075, %v327, %v1073
        %v1117 = vsel %vm1080, %v327, %v1073
        %v1119 = vrot.slane %v1117, 1
        %v1120 = vsel %vm1084, %v327, %v1073
        %v1122 = vrot.slane %v1120, 2
        %v1123 = vsel %vm1088, %v327, %v1073
        %v1125 = vrot.slane %v1123, 3
        %v1128 = vsel %vm1075, %v328, %v1074
        %v1130 = vunpack.i.l.s16 %v1078
        %v1131 = vunpack.i.h.s16 %v1078
        %v1132 = vunpack.i.l.s16 %v1083
        %v1133 = vunpack.i.h.s16 %v1083
        %v1134 = vunpack.i.l.s16 %v1087
        %v1135 = vunpack.i.h.s16 %v1087
        %v1136 = vunpack.i.l.s16 %v1091
        %v1137 = vunpack.i.h.s16 %v1091
        %v1138 = vunpack.i.l.s16 %v1094
        %v1139 = vunpack.i.l.s16 %v1098
        %v1140 = vunpack.i.h.s16 %v1098
        %v1141 = vunpack.i.l.s16 %v1102
        %v1142 = vunpack.i.h.s16 %v1102
        %v1143 = vunpack.i.l.s16 %v1105
        %v1144 = vunpack.i.h.s16 %v1105
        %v1145 = vunpack.i.l.s16 %v1108
        %v1146 = vunpack.i.h.s16 %v1108
        %v1147 = vunpack.i.l.s16 %v1111
        %v1148 = vunpack.i.l.s16 %v1115
        %v1149 = vunpack.i.h.s16 %v1115
        %v1150 = vunpack.i.l.s16 %v1119
        %v1151 = vunpack.i.h.s16 %v1119
        %v1152 = vunpack.i.l.s16 %v1122
        %v1153 = vunpack.i.h.s16 %v1122
        %v1154 = vunpack.i.l.s16 %v1125
        %v1155 = vunpack.i.h.s16 %v1125
        %v1156 = vunpack.i.l.s16 %v1128
        %v1158 = vperm.slane %v329, 0
        %v1160 = vpack.i.b16 %v1131, %v1130
        %v1161 = vpack.i.b16 %v1133, %v1132
        %v1162 = vpack.i.b16 %v1135, %v1134
        %v1163 = vpack.i.b16 %v1137, %v1136
        %v1164 = vpack.i.b16 %v1139, %v1138
        %v1165 = vpack.i.b16 %v1141, %v1140
        %v1166 = vpack.i.b16 %v1143, %v1142
        %v1167 = vpack.i.b16 %v1145, %v1144
        %v1168 = vpack.i.b16 %v1147, %v1146
        %v1169 = vpack.i.b16 %v1149, %v1148
        %v1170 = vpack.i.b16 %v1151, %v1150
        %v1171 = vpack.i.b16 %v1153, %v1152
        %v1172 = vpack.i.b16 %v1155, %v1154
        %1175 = vst [vmem:[#allocation1] ss:$9 sm:$0xff] %v1160
        %s1177 = scalar_lea.vmem [#allocation1], 1
        %1178 = vst [vmem:[%s1177] ss:$9 sm:$0xff] %v1161
        %s1180 = scalar_lea.vmem [#allocation1], 2
        %1181 = vst [vmem:[%s1180] ss:$9 sm:$0xff] %v1162
        %s1183 = scalar_lea.vmem [#allocation1], 3
        %1184 = vst [vmem:[%s1183] ss:$9 sm:$0xff] %v1163
        %s1186 = scalar_lea.vmem [#allocation1], 4
        %1187 = vst [vmem:[%s1186] ss:$9 sm:$0xff] %v1164
        %s1189 = scalar_lea.vmem [#allocation1], 5
        %1190 = vst [vmem:[%s1189] ss:$9 sm:$0xff] %v1165
        %s1192 = scalar_lea.vmem [#allocation1], 6
        %1193 = vst [vmem:[%s1192] ss:$9 sm:$0xff] %v1166
        %s1195 = scalar_lea.vmem [#allocation1], 7
        %1196 = vst [vmem:[%s1195] ss:$9 sm:$0xff] %v1167
        %v1197 = vld [vmem:[#allocation1] sm:$0xff]
        %1199 = vst [vmem:[#allocation1] ss:$9 sm:$0xff] %v1168
        %1201 = vst [vmem:[%s1177] ss:$9 sm:$0xff] %v1169
        %1203 = vst [vmem:[%s1180] ss:$9 sm:$0xff] %v1170
        %1205 = vst [vmem:[%s1183] ss:$9 sm:$0xff] %v1171
        %1207 = vst [vmem:[%s1186] ss:$9 sm:$0xff] %v1172
        %1209 = vst [vmem:[%s1189] ss:$9 sm:$0xff] %v1156
        %v1210 = vld [vmem:[#allocation1] sm:$0xff]
        %vm1212 = vcmask 220160
        %v1213 = vsel %vm1212, %v1028, 0
        %v1215 = vsel %vm1212, %v1030, 0
        %v1217 = vsel %vm1212, %v1032, 0
        %v1219 = vsel %vm1212, %v1034, 0
        %v1221 = vsel %vm1212, %v1036, 0
        %v1223 = vsel %vm1212, %v1038, 0
        %v1225 = vsel %vm1212, %v1040, 0
        %v1227 = vsel %vm1212, %v1042, 0
        %v1229 = vsel %vm1212, %v1044, 0
        %v1231 = vsel %vm1212, %v1046, 0
        %v1233 = vsel %vm1212, %v1048, 0
        %v1235 = vsel %vm1212, %v1050, 0
        %v1237 = vsel %vm1212, %v1052, 0
        %v1239 = vsel %vm1212, %v1054, 0
        %v1241 = vsel %vm1212, %v1056, 0
        %v1243 = vsel %vm1212, %v1058, 0
        %v1245 = vsel %vm1212, %v1060, 0
        %v1247 = vsel %vm1212, %v1062, 0
        %vm1249 = vcmask 1044480
        %vm1250 = vcmask 1045504
        %v1251 = vsel %vm1249, 4294967295, 65535
        %v1252 = vsel %vm1250, %v1251, 0
        %v1253 = vand.u32 %v1210, %v1252
        %1255 = vmatpush.bf16.msra.mxu0 0
        %1256 = vmatpush.bf16.msra.mxu0 0
        %1257 = vmatpush.bf16.msra.mxu0 0
        %1258 = vmatpush.bf16.msra.mxu0 0
        %1259 = vmatpush.bf16.msra.mxu0 0
        %1260 = vmatpush.bf16.msra.mxu0 0
        %1261 = vmatpush.bf16.msra.mxu0 %v1253
        %1262 = vmatpush.bf16.msra.mxu0 %v1197
        %1263 = vmatmul.bf16.gmra.mxu0 %v1213
        %v1264 = vpop.f32.mrf.mxu0
        %v1265 = vadd.f32 %v1158, %v1264
        %v1266 = vpop.f32.mrf.mxu0
        %v1267 = vadd.f32 %v1158, %v1266
        %1268 = vmatmul.bf16.gmra.mxu0 %v1215
        %v1269 = vpop.f32.mrf.mxu0
        %v1270 = vadd.f32 %v1158, %v1269
        %v1271 = vpop.f32.mrf.mxu0
        %v1272 = vadd.f32 %v1158, %v1271
        %1273 = vmatmul.bf16.gmra.mxu0 %v1217
        %v1274 = vpop.f32.mrf.mxu0
        %v1275 = vadd.f32 %v1158, %v1274
        %v1276 = vpop.f32.mrf.mxu0
        %v1277 = vadd.f32 %v1158, %v1276
        %1278 = vmatmul.bf16.gmra.mxu0 %v1219
        %v1279 = vpop.f32.mrf.mxu0
        %v1280 = vadd.f32 %v1158, %v1279
        %v1281 = vpop.f32.mrf.mxu0
        %v1282 = vadd.f32 %v1158, %v1281
        %1283 = vmatmul.bf16.gmra.mxu0 %v1221
        %v1284 = vpop.f32.mrf.mxu0
        %v1285 = vadd.f32 %v1158, %v1284
        %v1286 = vpop.f32.mrf.mxu0
        %v1287 = vadd.f32 %v1158, %v1286
        %1288 = vmatmul.bf16.gmra.mxu0 %v1223
        %v1289 = vpop.f32.mrf.mxu0
        %v1290 = vadd.f32 %v1158, %v1289
        %v1291 = vpop.f32.mrf.mxu0
        %v1292 = vadd.f32 %v1158, %v1291
        %1293 = vmatmul.bf16.gmra.mxu0 %v1225
        %v1294 = vpop.f32.mrf.mxu0
        %v1295 = vadd.f32 %v1158, %v1294
        %v1296 = vpop.f32.mrf.mxu0
        %v1297 = vadd.f32 %v1158, %v1296
        %1298 = vmatmul.bf16.gmra.mxu0 %v1227
        %v1299 = vpop.f32.mrf.mxu0
        %v1300 = vadd.f32 %v1158, %v1299
        %v1301 = vpop.f32.mrf.mxu0
        %v1302 = vadd.f32 %v1158, %v1301
        %1303 = vmatmul.bf16.gmra.mxu0 %v1229
        %v1304 = vpop.f32.mrf.mxu0
        %v1305 = vadd.f32 %v1158, %v1304
        %v1306 = vpop.f32.mrf.mxu0
        %v1307 = vadd.f32 %v1158, %v1306
        %1308 = vmatmul.bf16.gmra.mxu0 %v1231
        %v1309 = vpop.f32.mrf.mxu0
        %v1310 = vadd.f32 %v1158, %v1309
        %v1311 = vpop.f32.mrf.mxu0
        %v1312 = vadd.f32 %v1158, %v1311
        %1313 = vmatmul.bf16.gmra.mxu0 %v1233
        %v1314 = vpop.f32.mrf.mxu0
        %v1315 = vadd.f32 %v1158, %v1314
        %v1316 = vpop.f32.mrf.mxu0
        %v1317 = vadd.f32 %v1158, %v1316
        %1318 = vmatmul.bf16.gmra.mxu0 %v1235
        %v1319 = vpop.f32.mrf.mxu0
        %v1320 = vadd.f32 %v1158, %v1319
        %v1321 = vpop.f32.mrf.mxu0
        %v1322 = vadd.f32 %v1158, %v1321
        %1323 = vmatmul.bf16.gmra.mxu0 %v1237
        %v1324 = vpop.f32.mrf.mxu0
        %v1325 = vadd.f32 %v1158, %v1324
        %v1326 = vpop.f32.mrf.mxu0
        %v1327 = vadd.f32 %v1158, %v1326
        %1328 = vmatmul.bf16.gmra.mxu0 %v1239
        %v1329 = vpop.f32.mrf.mxu0
        %v1330 = vadd.f32 %v1158, %v1329
        %v1331 = vpop.f32.mrf.mxu0
        %v1332 = vadd.f32 %v1158, %v1331
        %1333 = vmatmul.bf16.gmra.mxu0 %v1241
        %v1334 = vpop.f32.mrf.mxu0
        %v1335 = vadd.f32 %v1158, %v1334
        %v1336 = vpop.f32.mrf.mxu0
        %v1337 = vadd.f32 %v1158, %v1336
        %1338 = vmatmul.bf16.gmra.mxu0 %v1243
        %v1339 = vpop.f32.mrf.mxu0
        %v1340 = vadd.f32 %v1158, %v1339
        %v1341 = vpop.f32.mrf.mxu0
        %v1342 = vadd.f32 %v1158, %v1341
        %1343 = vmatmul.bf16.gmra.mxu0 %v1245
        %v1344 = vpop.f32.mrf.mxu0
        %v1345 = vadd.f32 %v1158, %v1344
        %v1346 = vpop.f32.mrf.mxu0
        %v1347 = vadd.f32 %v1158, %v1346
        %1348 = vmatmul.bf16.gmra.mxu0 %v1247
        %v1349 = vpop.f32.mrf.mxu0
        %v1350 = vadd.f32 %v1158, %v1349
        %v1351 = vpop.f32.mrf.mxu0
        %v1352 = vadd.f32 %v1158, %v1351
        %1353 = vdwg.mxu0
        %v1354 = vmax.f32 %v1265, 0.0
        %v1355 = vmax.f32 %v1267, 0.0
        %v1356 = vmax.f32 %v1270, 0.0
        %v1357 = vmax.f32 %v1272, 0.0
        %v1358 = vmax.f32 %v1275, 0.0
        %v1359 = vmax.f32 %v1277, 0.0
        %v1360 = vmax.f32 %v1280, 0.0
        %v1361 = vmax.f32 %v1282, 0.0
        %v1362 = vmax.f32 %v1285, 0.0
        %v1363 = vmax.f32 %v1287, 0.0
        %v1364 = vmax.f32 %v1290, 0.0
        %v1365 = vmax.f32 %v1292, 0.0
        %v1366 = vmax.f32 %v1295, 0.0
        %v1367 = vmax.f32 %v1297, 0.0
        %v1368 = vmax.f32 %v1300, 0.0
        %v1369 = vmax.f32 %v1302, 0.0
        %v1370 = vmax.f32 %v1305, 0.0
        %v1371 = vmax.f32 %v1307, 0.0
        %v1372 = vmax.f32 %v1310, 0.0
        %v1373 = vmax.f32 %v1312, 0.0
        %v1374 = vmax.f32 %v1315, 0.0
        %v1375 = vmax.f32 %v1317, 0.0
        %v1376 = vmax.f32 %v1320, 0.0
        %v1377 = vmax.f32 %v1322, 0.0
        %v1378 = vmax.f32 %v1325, 0.0
        %v1379 = vmax.f32 %v1327, 0.0
        %v1380 = vmax.f32 %v1330, 0.0
        %v1381 = vmax.f32 %v1332, 0.0
        %v1382 = vmax.f32 %v1335, 0.0
        %v1383 = vmax.f32 %v1337, 0.0
        %v1384 = vmax.f32 %v1340, 0.0
        %v1385 = vmax.f32 %v1342, 0.0
        %v1386 = vmax.f32 %v1345, 0.0
        %v1387 = vmax.f32 %v1347, 0.0
        %v1388 = vmax.f32 %v1350, 0.0
        %v1389 = vmax.f32 %v1352, 0.0
        %s1390 = ssub.s32 %s279, 1
        %v1391 = vstv %s1390
        %v1392 = vadd.s32 %v1391, 1
        %v1393 = vadd.s32 %v1391, 2
        %v1394 = vadd.s32 %v1391, 3
        %v1395 = vadd.s32 %v1391, 4
        %v1396 = vadd.s32 %v1391, 5
        %v1397 = vadd.s32 %v1391, 6
        %v1398 = vadd.s32 %v1391, 7
        %v1399 = vadd.s32 %v1391, 8
        %v1400 = vadd.s32 %v1391, 9
        %v1401 = vadd.s32 %v1391, 10
        %v1402 = vadd.s32 %v1391, 11
        %v1403 = vadd.s32 %v1391, 12
        %v1404 = vadd.s32 %v1391, 13
        %v1405 = vadd.s32 %v1391, 14
        %v1406 = vadd.s32 %v1391, 15
        %v1407 = vadd.s32 %v1391, 16
        %v1408 = vadd.s32 %v1391, 17
        %vm1409 = vcmp.ge.s32.totalorder %v1391, 0
        %vm1410 = vcmp.ge.s32.totalorder %v1392, 0
        %vm1411 = vcmp.ge.s32.totalorder %v1393, 0
        %vm1412 = vcmp.ge.s32.totalorder %v1394, 0
        %vm1413 = vcmp.ge.s32.totalorder %v1395, 0
        %vm1414 = vcmp.ge.s32.totalorder %v1396, 0
        %vm1415 = vcmp.ge.s32.totalorder %v1397, 0
        %vm1416 = vcmp.ge.s32.totalorder %v1398, 0
        %vm1417 = vcmp.ge.s32.totalorder %v1399, 0
        %vm1418 = vcmp.ge.s32.totalorder %v1400, 0
        %vm1419 = vcmp.ge.s32.totalorder %v1401, 0
        %vm1420 = vcmp.ge.s32.totalorder %v1402, 0
        %vm1421 = vcmp.ge.s32.totalorder %v1403, 0
        %vm1422 = vcmp.ge.s32.totalorder %v1404, 0
        %vm1423 = vcmp.ge.s32.totalorder %v1405, 0
        %vm1424 = vcmp.ge.s32.totalorder %v1406, 0
        %vm1425 = vcmp.ge.s32.totalorder %v1407, 0
        %vm1426 = vcmp.ge.s32.totalorder %v1408, 0
        %vm1427 = vcmp.lt.s32.totalorder %v1391, 16
        %vm1428 = vcmp.lt.s32.totalorder %v1392, 16
        %vm1429 = vcmp.lt.s32.totalorder %v1393, 16
        %vm1430 = vcmp.lt.s32.totalorder %v1394, 16
        %vm1431 = vcmp.lt.s32.totalorder %v1395, 16
        %vm1432 = vcmp.lt.s32.totalorder %v1396, 16
        %vm1433 = vcmp.lt.s32.totalorder %v1397, 16
        %vm1434 = vcmp.lt.s32.totalorder %v1398, 16
        %vm1435 = vcmp.lt.s32.totalorder %v1399, 16
        %vm1436 = vcmp.lt.s32.totalorder %v1400, 16
        %vm1437 = vcmp.lt.s32.totalorder %v1401, 16
        %vm1438 = vcmp.lt.s32.totalorder %v1402, 16
        %vm1439 = vcmp.lt.s32.totalorder %v1403, 16
        %vm1440 = vcmp.lt.s32.totalorder %v1404, 16
        %vm1441 = vcmp.lt.s32.totalorder %v1405, 16
        %vm1442 = vcmp.lt.s32.totalorder %v1406, 16
        %vm1443 = vcmp.lt.s32.totalorder %v1407, 16
        %vm1444 = vcmp.lt.s32.totalorder %v1408, 16
        %vm1445 = vmand %vm1409, %vm1427
        %vm1446 = vmand %vm1410, %vm1428
        %vm1447 = vmand %vm1411, %vm1429
        %vm1448 = vmand %vm1412, %vm1430
        %vm1449 = vmand %vm1413, %vm1431
        %vm1450 = vmand %vm1414, %vm1432
        %vm1451 = vmand %vm1415, %vm1433
        %vm1452 = vmand %vm1416, %vm1434
        %vm1453 = vmand %vm1417, %vm1435
        %vm1454 = vmand %vm1418, %vm1436
        %vm1455 = vmand %vm1419, %vm1437
        %vm1456 = vmand %vm1420, %vm1438
        %vm1457 = vmand %vm1421, %vm1439
        %vm1458 = vmand %vm1422, %vm1440
        %vm1459 = vmand %vm1423, %vm1441
        %vm1460 = vmand %vm1424, %vm1442
        %vm1461 = vmand %vm1425, %vm1443
        %vm1462 = vmand %vm1426, %vm1444
        %v1463 = vsel %vm1445, 1, 0
        %v1464 = vsel %vm1446, 1, 0
        %v1465 = vsel %vm1447, 1, 0
        %v1466 = vsel %vm1448, 1, 0
        %v1467 = vsel %vm1449, 1, 0
        %v1468 = vsel %vm1450, 1, 0
        %v1469 = vsel %vm1451, 1, 0
        %v1470 = vsel %vm1452, 1, 0
        %v1471 = vsel %vm1453, 1, 0
        %v1472 = vsel %vm1454, 1, 0
        %v1473 = vsel %vm1455, 1, 0
        %v1474 = vsel %vm1456, 1, 0
        %v1475 = vsel %vm1457, 1, 0
        %v1476 = vsel %vm1458, 1, 0
        %v1477 = vsel %vm1459, 1, 0
        %v1478 = vsel %vm1460, 1, 0
        %v1479 = vsel %vm1461, 1, 0
        %v1480 = vsel %vm1462, 1, 0
        %vm1481 = vcmp.eq.s32.totalorder %v1463, 1
        %vm1482 = vcmp.eq.s32.totalorder %v1464, 1
        %vm1483 = vcmp.eq.s32.totalorder %v1465, 1
        %vm1484 = vcmp.eq.s32.totalorder %v1466, 1
        %vm1485 = vcmp.eq.s32.totalorder %v1467, 1
        %vm1486 = vcmp.eq.s32.totalorder %v1468, 1
        %vm1487 = vcmp.eq.s32.totalorder %v1469, 1
        %vm1488 = vcmp.eq.s32.totalorder %v1470, 1
        %vm1489 = vcmp.eq.s32.totalorder %v1471, 1
        %vm1490 = vcmp.eq.s32.totalorder %v1472, 1
        %vm1491 = vcmp.eq.s32.totalorder %v1473, 1
        %vm1492 = vcmp.eq.s32.totalorder %v1474, 1
        %vm1493 = vcmp.eq.s32.totalorder %v1475, 1
        %vm1494 = vcmp.eq.s32.totalorder %v1476, 1
        %vm1495 = vcmp.eq.s32.totalorder %v1477, 1
        %vm1496 = vcmp.eq.s32.totalorder %v1478, 1
        %vm1497 = vcmp.eq.s32.totalorder %v1479, 1
        %vm1498 = vcmp.eq.s32.totalorder %v1480, 1
        %v1499 = vsel %vm1481, %v1354, 0.0
        %v1500 = vsel %vm1481, %v1355, 0.0
        %v1501 = vsel %vm1482, %v1356, 0.0
        %v1502 = vsel %vm1482, %v1357, 0.0
        %v1503 = vsel %vm1483, %v1358, 0.0
        %v1504 = vsel %vm1483, %v1359, 0.0
        %v1505 = vsel %vm1484, %v1360, 0.0
        %v1506 = vsel %vm1484, %v1361, 0.0
        %v1507 = vsel %vm1485, %v1362, 0.0
        %v1508 = vsel %vm1485, %v1363, 0.0
        %v1509 = vsel %vm1486, %v1364, 0.0
        %v1510 = vsel %vm1486, %v1365, 0.0
        %v1511 = vsel %vm1487, %v1366, 0.0
        %v1512 = vsel %vm1487, %v1367, 0.0
        %v1513 = vsel %vm1488, %v1368, 0.0
        %v1514 = vsel %vm1488, %v1369, 0.0
        %v1515 = vsel %vm1489, %v1370, 0.0
        %v1516 = vsel %vm1489, %v1371, 0.0
        %v1517 = vsel %vm1490, %v1372, 0.0
        %v1518 = vsel %vm1490, %v1373, 0.0
        %v1519 = vsel %vm1491, %v1374, 0.0
        %v1520 = vsel %vm1491, %v1375, 0.0
        %v1521 = vsel %vm1492, %v1376, 0.0
        %v1522 = vsel %vm1492, %v1377, 0.0
        %v1523 = vsel %vm1493, %v1378, 0.0
        %v1524 = vsel %vm1493, %v1379, 0.0
        %v1525 = vsel %vm1494, %v1380, 0.0
        %v1526 = vsel %vm1494, %v1381, 0.0
        %v1527 = vsel %vm1495, %v1382, 0.0
        %v1528 = vsel %vm1495, %v1383, 0.0
        %v1529 = vsel %vm1496, %v1384, 0.0
        %v1530 = vsel %vm1496, %v1385, 0.0
        %v1531 = vsel %vm1497, %v1386, 0.0
        %v1532 = vsel %vm1497, %v1387, 0.0
        %v1533 = vsel %vm1498, %v1388, 0.0
        %v1534 = vsel %vm1498, %v1389, 0.0
        %v1535 = vpack.c.bf16 %v1499, %v1499
        %v1536 = vpack.c.bf16 %v1500, %v1500
        %v1537 = vpack.c.bf16 %v1501, %v1501
        %v1538 = vpack.c.bf16 %v1502, %v1502
        %v1539 = vpack.c.bf16 %v1503, %v1503
        %v1540 = vpack.c.bf16 %v1504, %v1504
        %v1541 = vpack.c.bf16 %v1505, %v1505
        %v1542 = vpack.c.bf16 %v1506, %v1506
        %v1543 = vpack.c.bf16 %v1507, %v1507
        %v1544 = vpack.c.bf16 %v1508, %v1508
        %v1545 = vpack.c.bf16 %v1509, %v1509
        %v1546 = vpack.c.bf16 %v1510, %v1510
        %v1547 = vpack.c.bf16 %v1511, %v1511
        %v1548 = vpack.c.bf16 %v1512, %v1512
        %v1549 = vpack.c.bf16 %v1513, %v1513
        %v1550 = vpack.c.bf16 %v1514, %v1514
        %v1551 = vpack.c.bf16 %v1515, %v1515
        %v1552 = vpack.c.bf16 %v1516, %v1516
        %v1553 = vpack.c.bf16 %v1517, %v1517
        %v1554 = vpack.c.bf16 %v1518, %v1518
        %v1555 = vpack.c.bf16 %v1519, %v1519
        %v1556 = vpack.c.bf16 %v1520, %v1520
        %v1557 = vpack.c.bf16 %v1521, %v1521
        %v1558 = vpack.c.bf16 %v1522, %v1522
        %v1559 = vpack.c.bf16 %v1523, %v1523
        %v1560 = vpack.c.bf16 %v1524, %v1524
        %v1561 = vpack.c.bf16 %v1525, %v1525
        %v1562 = vpack.c.bf16 %v1526, %v1526
        %v1563 = vpack.c.bf16 %v1527, %v1527
        %v1564 = vpack.c.bf16 %v1528, %v1528
        %v1565 = vpack.c.bf16 %v1529, %v1529
        %v1566 = vpack.c.bf16 %v1530, %v1530
        %v1567 = vpack.c.bf16 %v1531, %v1531
        %v1568 = vpack.c.bf16 %v1532, %v1532
        %v1569 = vpack.c.bf16 %v1533, %v1533
        %v1570 = vpack.c.bf16 %v1534, %v1534
        %v1571 = vld [vmem:[%s3] sm:$0xf]
        %v1572 = vld [vmem:[%s3 + $0x4] sm:$0xf]
        %v1573 = vld [vmem:[%s3 + $0x8] sm:$0xf]
        %v1574 = vld [vmem:[%s3 + $0xc] sm:$0xf]
        %v1575 = vld [vmem:[%s3 + $0x10] sm:$0xf]
        %v1576 = vld [vmem:[%s3 + $0x14] sm:$0xf]
        %v1577 = vld [vmem:[%s3 + $0x18] sm:$0xf]
        %v1578 = vld [vmem:[%s3 + $0x1c] sm:$0xf]
        %v1579 = vld [vmem:[%s3 + $0x20] sm:$0xf]
        %v1580 = vld [vmem:[%s3 + $0x24] sm:$0xf]
        %v1581 = vld [vmem:[%s3 + $0x28] sm:$0xf]
        %v1582 = vld [vmem:[%s3 + $0x2c] sm:$0xf]
        %v1583 = vld [vmem:[%s3 + $0x30] sm:$0xf]
        %v1584 = vld [vmem:[%s3 + $0x34] sm:$0xf]
        %v1585 = vld [vmem:[%s3 + $0x38] sm:$0xf]
        %v1586 = vld [vmem:[%s3 + $0x3c] sm:$0xf]
        %v1587 = vld [vmem:[%s3 + $0x40] sm:$0xf]
        %v1588 = vld [vmem:[%s3 + $0x44] sm:$0xf]
        %v1589 = vld [vmem:[%s3 + $0x48] sm:$0xf]
        %v1590 = vld [vmem:[%s3 + $0x4c] sm:$0xf]
        %v1591 = vld [vmem:[%s3 + $0x50] sm:$0xf]
        %v1592 = vld [vmem:[%s3 + $0x54] sm:$0xf]
        %v1593 = vld [vmem:[%s3 + $0x58] sm:$0xf]
        %v1594 = vld [vmem:[%s3 + $0x5c] sm:$0xf]
        %v1595 = vld [vmem:[%s3 + $0x60] sm:$0xf]
        %v1596 = vld [vmem:[%s3 + $0x64] sm:$0xf]
        %v1597 = vld [vmem:[%s3 + $0x68] sm:$0xf]
        %v1598 = vld [vmem:[%s3 + $0x6c] sm:$0xf]
        %v1599 = vld [vmem:[%s3 + $0x70] sm:$0xf]
        %v1600 = vld [vmem:[%s3 + $0x74] sm:$0xf]
        %v1601 = vld [vmem:[%s3 + $0x78] sm:$0xf]
        %v1602 = vld [vmem:[%s3 + $0x7c] sm:$0xf]
        %v1603 = vld [vmem:[%s3 + $0x80] sm:$0xf]
        %v1604 = vld [vmem:[%s3 + $0x84] sm:$0xf]
        %v1605 = vld [vmem:[%s3 + $0x88] sm:$0xf]
        %v1606 = vld [vmem:[%s3 + $0x8c] sm:$0xf]
        %v1607 = vld [vmem:[%s3 + $0x90] sm:$0xf]
        %v1608 = vld [vmem:[%s3 + $0x94] sm:$0xf]
        %v1609 = vld [vmem:[%s3 + $0x98] sm:$0xf]
        %v1610 = vld [vmem:[%s3 + $0x9c] sm:$0xf]
        %v1611 = vld [vmem:[%s3 + $0xa0] sm:$0xf]
        %v1612 = vld [vmem:[%s3 + $0xa4] sm:$0xf]
        %v1613 = vld [vmem:[%s3 + $0xa8] sm:$0xf]
        %v1614 = vld [vmem:[%s3 + $0xac] sm:$0xf]
        %v1615 = vld [vmem:[%s3 + $0xb0] sm:$0xf]
        %v1616 = vld [vmem:[%s3 + $0xb4] sm:$0xf]
        %v1617 = vld [vmem:[%s3 + $0xb8] sm:$0xf]
        %v1618 = vld [vmem:[%s3 + $0xbc] sm:$0xf]
        %v1619 = vld [vmem:[%s3 + $0xc0] sm:$0xf]
        %v1620 = vld [vmem:[%s3 + $0xc4] sm:$0xf]
        %v1621 = vld [vmem:[%s3 + $0xc8] sm:$0xf]
        %v1622 = vld [vmem:[%s3 + $0xcc] sm:$0xf]
        %v1623 = vld [vmem:[%s3 + $0xd0] sm:$0xf]
        %v1624 = vld [vmem:[%s3 + $0xd4] sm:$0xf]
        %v1625 = vld [vmem:[%s3 + $0xd8] sm:$0xf]
        %v1626 = vld [vmem:[%s3 + $0xdc] sm:$0xf]
        %v1627 = vld [vmem:[%s3 + $0xe0] sm:$0xf]
        %v1628 = vld [vmem:[%s3 + $0xe4] sm:$0xf]
        %v1629 = vld [vmem:[%s3 + $0xe8] sm:$0xf]
        %v1630 = vld [vmem:[%s3 + $0xec] sm:$0xf]
        %v1631 = vld [vmem:[%s3 + $0xf0] sm:$0xf]
        %v1632 = vld [vmem:[%s3 + $0xf4] sm:$0xf]
        %v1633 = vld [vmem:[%s3 + $0xf8] sm:$0xf]
        %v1634 = vld [vmem:[%s3 + $0xfc] sm:$0xf]
        %v1635 = vld [vmem:[%s3 + $0x100] sm:$0xf]
        %v1636 = vld [vmem:[%s3 + $0x104] sm:$0xf]
        %v1637 = vld [vmem:[%s3 + $0x108] sm:$0xf]
        %v1638 = vld [vmem:[%s3 + $0x10c] sm:$0xf]
        %v1639 = vld [vmem:[%s3 + $0x110] sm:$0xf]
        %v1640 = vld [vmem:[%s3 + $0x114] sm:$0xf]
        %v1641 = vld [vmem:[%s3 + $0x118] sm:$0xf]
        %v1642 = vld [vmem:[%s3 + $0x11c] sm:$0xf]
        %v1643 = vld [vmem:[#allocation4] sm:$0x1]
        %v1680 = vunpack.c.l.b16 %v1535
        %v1681 = vunpack.c.l.b16 %v1536
        %v1682 = vunpack.c.l.b16 %v1537
        %v1683 = vunpack.c.l.b16 %v1538
        %v1684 = vunpack.c.l.b16 %v1539
        %v1685 = vunpack.c.l.b16 %v1540
        %v1686 = vunpack.c.l.b16 %v1541
        %v1687 = vunpack.c.l.b16 %v1542
        %v1688 = vunpack.c.l.b16 %v1543
        %v1689 = vunpack.c.l.b16 %v1544
        %v1690 = vunpack.c.l.b16 %v1545
        %v1691 = vunpack.c.l.b16 %v1546
        %v1692 = vunpack.c.l.b16 %v1547
        %v1693 = vunpack.c.l.b16 %v1548
        %v1694 = vunpack.c.l.b16 %v1549
        %v1695 = vunpack.c.l.b16 %v1550
        %v1696 = vunpack.c.l.b16 %v1551
        %v1697 = vunpack.c.l.b16 %v1552
        %v1698 = vunpack.c.l.b16 %v1553
        %v1699 = vunpack.c.l.b16 %v1554
        %v1700 = vunpack.c.l.b16 %v1555
        %v1701 = vunpack.c.l.b16 %v1556
        %v1702 = vunpack.c.l.b16 %v1557
        %v1703 = vunpack.c.l.b16 %v1558
        %v1704 = vunpack.c.l.b16 %v1559
        %v1705 = vunpack.c.l.b16 %v1560
        %v1706 = vunpack.c.l.b16 %v1561
        %v1707 = vunpack.c.l.b16 %v1562
        %v1708 = vunpack.c.l.b16 %v1563
        %v1709 = vunpack.c.l.b16 %v1564
        %v1710 = vunpack.c.l.b16 %v1565
        %v1711 = vunpack.c.l.b16 %v1566
        %v1712 = vunpack.c.l.b16 %v1567
        %v1713 = vunpack.c.l.b16 %v1568
        %v1714 = vunpack.c.l.b16 %v1569
        %v1715 = vunpack.c.l.b16 %v1570
        %v1716 = vpack.c.b16 %v1681, %v1680
        %v1717 = vpack.c.b16 %v1683, %v1682
        %v1718 = vpack.c.b16 %v1685, %v1684
        %v1719 = vpack.c.b16 %v1687, %v1686
        %v1720 = vpack.c.b16 %v1689, %v1688
        %v1721 = vpack.c.b16 %v1691, %v1690
        %v1722 = vpack.c.b16 %v1693, %v1692
        %v1723 = vpack.c.b16 %v1695, %v1694
        %v1724 = vpack.c.b16 %v1697, %v1696
        %v1725 = vpack.c.b16 %v1699, %v1698
        %v1726 = vpack.c.b16 %v1701, %v1700
        %v1727 = vpack.c.b16 %v1703, %v1702
        %v1728 = vpack.c.b16 %v1705, %v1704
        %v1729 = vpack.c.b16 %v1707, %v1706
        %v1730 = vpack.c.b16 %v1709, %v1708
        %v1731 = vpack.c.b16 %v1711, %v1710
        %v1732 = vpack.c.b16 %v1713, %v1712
        %v1733 = vpack.c.b16 %v1715, %v1714
        %v1735 = vshrl.u32 %v1716, 16
        %v1737 = vrot.slane %v1735, 7
        %v1738 = vshll.u32 %v1716, 16
        %v1740 = vor.u32 %v1737, %v1738
        %v1742 = vshrl.u32 %v1717, 16
        %v1744 = vrot.slane %v1742, 7
        %v1745 = vshll.u32 %v1717, 16
        %v1747 = vor.u32 %v1744, %v1745
        %v1749 = vshrl.u32 %v1718, 16
        %v1751 = vrot.slane %v1749, 7
        %v1752 = vshll.u32 %v1718, 16
        %v1754 = vor.u32 %v1751, %v1752
        %v1756 = vshrl.u32 %v1719, 16
        %v1758 = vrot.slane %v1756, 7
        %v1759 = vshll.u32 %v1719, 16
        %v1761 = vor.u32 %v1758, %v1759
        %v1763 = vshrl.u32 %v1720, 16
        %v1765 = vrot.slane %v1763, 7
        %v1766 = vshll.u32 %v1720, 16
        %v1768 = vor.u32 %v1765, %v1766
        %v1770 = vshrl.u32 %v1721, 16
        %v1772 = vrot.slane %v1770, 7
        %v1773 = vshll.u32 %v1721, 16
        %v1775 = vor.u32 %v1772, %v1773
        %v1777 = vshrl.u32 %v1722, 16
        %v1779 = vrot.slane %v1777, 7
        %v1780 = vshll.u32 %v1722, 16
        %v1782 = vor.u32 %v1779, %v1780
        %v1784 = vshrl.u32 %v1723, 16
        %v1786 = vrot.slane %v1784, 7
        %v1787 = vshll.u32 %v1723, 16
        %v1789 = vor.u32 %v1786, %v1787
        %v1791 = vshrl.u32 %v1724, 16
        %v1793 = vrot.slane %v1791, 7
        %v1794 = vshll.u32 %v1724, 16
        %v1796 = vor.u32 %v1793, %v1794
        %v1798 = vshrl.u32 %v1725, 16
        %v1800 = vrot.slane %v1798, 7
        %v1801 = vshll.u32 %v1725, 16
        %v1803 = vor.u32 %v1800, %v1801
        %v1805 = vshrl.u32 %v1726, 16
        %v1807 = vrot.slane %v1805, 7
        %v1808 = vshll.u32 %v1726, 16
        %v1810 = vor.u32 %v1807, %v1808
        %v1812 = vshrl.u32 %v1727, 16
        %v1814 = vrot.slane %v1812, 7
        %v1815 = vshll.u32 %v1727, 16
        %v1817 = vor.u32 %v1814, %v1815
        %v1819 = vshrl.u32 %v1728, 16
        %v1821 = vrot.slane %v1819, 7
        %v1822 = vshll.u32 %v1728, 16
        %v1824 = vor.u32 %v1821, %v1822
        %v1826 = vshrl.u32 %v1729, 16
        %v1828 = vrot.slane %v1826, 7
        %v1829 = vshll.u32 %v1729, 16
        %v1831 = vor.u32 %v1828, %v1829
        %v1833 = vshrl.u32 %v1730, 16
        %v1835 = vrot.slane %v1833, 7
        %v1836 = vshll.u32 %v1730, 16
        %v1838 = vor.u32 %v1835, %v1836
        %v1840 = vshrl.u32 %v1731, 16
        %v1842 = vrot.slane %v1840, 7
        %v1843 = vshll.u32 %v1731, 16
        %v1845 = vor.u32 %v1842, %v1843
        %v1847 = vshrl.u32 %v1732, 16
        %v1849 = vrot.slane %v1847, 7
        %v1850 = vshll.u32 %v1732, 16
        %v1852 = vor.u32 %v1849, %v1850
        %v1854 = vshrl.u32 %v1733, 16
        %v1856 = vrot.slane %v1854, 7
        %v1857 = vshll.u32 %v1733, 16
        %v1859 = vor.u32 %v1856, %v1857
        %v1878 = vsel %vm592, 0, %v1740
        %v1879 = vsel %vm592, 0, %v1747
        %v1880 = vsel %vm592, 0, %v1754
        %v1881 = vsel %vm592, 0, %v1761
        %v1882 = vsel %vm592, 0, %v1768
        %v1883 = vsel %vm592, 0, %v1775
        %v1884 = vsel %vm592, 0, %v1782
        %v1885 = vsel %vm592, 0, %v1789
        %v1886 = vsel %vm592, 0, %v1796
        %v1887 = vsel %vm592, 0, %v1803
        %v1888 = vsel %vm592, 0, %v1810
        %v1889 = vsel %vm592, 0, %v1817
        %v1890 = vsel %vm592, 0, %v1824
        %v1891 = vsel %vm592, 0, %v1831
        %v1892 = vsel %vm592, 0, %v1838
        %v1893 = vsel %vm592, 0, %v1845
        %v1894 = vsel %vm592, 0, %v1852
        %v1895 = vsel %vm592, 0, %v1859
        %v1896 = vrot.slane %v1738, 1
        %v1897 = vor.u32 %v1735, %v1896
        %v1898 = vrot.slane %v1745, 1
        %v1899 = vor.u32 %v1742, %v1898
        %v1900 = vrot.slane %v1752, 1
        %v1901 = vor.u32 %v1749, %v1900
        %v1902 = vrot.slane %v1759, 1
        %v1903 = vor.u32 %v1756, %v1902
        %v1904 = vrot.slane %v1766, 1
        %v1905 = vor.u32 %v1763, %v1904
        %v1906 = vrot.slane %v1773, 1
        %v1907 = vor.u32 %v1770, %v1906
        %v1908 = vrot.slane %v1780, 1
        %v1909 = vor.u32 %v1777, %v1908
        %v1910 = vrot.slane %v1787, 1
        %v1911 = vor.u32 %v1784, %v1910
        %v1912 = vrot.slane %v1794, 1
        %v1913 = vor.u32 %v1791, %v1912
        %v1914 = vrot.slane %v1801, 1
        %v1915 = vor.u32 %v1798, %v1914
        %v1916 = vrot.slane %v1808, 1
        %v1917 = vor.u32 %v1805, %v1916
        %v1918 = vrot.slane %v1815, 1
        %v1919 = vor.u32 %v1812, %v1918
        %v1920 = vrot.slane %v1822, 1
        %v1921 = vor.u32 %v1819, %v1920
        %v1922 = vrot.slane %v1829, 1
        %v1923 = vor.u32 %v1826, %v1922
        %v1924 = vrot.slane %v1836, 1
        %v1925 = vor.u32 %v1833, %v1924
        %v1926 = vrot.slane %v1843, 1
        %v1927 = vor.u32 %v1840, %v1926
        %v1928 = vrot.slane %v1850, 1
        %v1929 = vor.u32 %v1847, %v1928
        %v1930 = vrot.slane %v1857, 1
        %v1931 = vor.u32 %v1854, %v1930
        %v1950 = vsel %vm675, %v1897, 0
        %v1951 = vsel %vm675, %v1899, 0
        %v1952 = vsel %vm675, %v1901, 0
        %v1953 = vsel %vm675, %v1903, 0
        %v1954 = vsel %vm675, %v1905, 0
        %v1955 = vsel %vm675, %v1907, 0
        %v1956 = vsel %vm675, %v1909, 0
        %v1957 = vsel %vm675, %v1911, 0
        %v1958 = vsel %vm675, %v1913, 0
        %v1959 = vsel %vm675, %v1915, 0
        %v1960 = vsel %vm675, %v1917, 0
        %v1961 = vsel %vm675, %v1919, 0
        %v1962 = vsel %vm675, %v1921, 0
        %v1963 = vsel %vm675, %v1923, 0
        %v1964 = vsel %vm675, %v1925, 0
        %v1965 = vsel %vm675, %v1927, 0
        %v1966 = vsel %vm675, %v1929, 0
        %v1967 = vsel %vm675, %v1931, 0
        %1968 = vrot.lane.b32.xlu0 %v1716, 64
        %v1969 = vpop.permute.xlu0 %1968
        %1970 = vrot.lane.b32.xlu0 %v1717, 64
        %v1971 = vpop.permute.xlu0 %1970
        %1972 = vrot.lane.b32.xlu0 %v1718, 64
        %v1973 = vpop.permute.xlu0 %1972
        %1974 = vrot.lane.b32.xlu0 %v1719, 64
        %v1975 = vpop.permute.xlu0 %1974
        %1976 = vrot.lane.b32.xlu0 %v1720, 64
        %v1977 = vpop.permute.xlu0 %1976
        %1978 = vrot.lane.b32.xlu0 %v1721, 64
        %v1979 = vpop.permute.xlu0 %1978
        %1980 = vrot.lane.b32.xlu0 %v1722, 64
        %v1981 = vpop.permute.xlu0 %1980
        %1982 = vrot.lane.b32.xlu0 %v1723, 64
        %v1983 = vpop.permute.xlu0 %1982
        %1984 = vrot.lane.b32.xlu0 %v1724, 64
        %v1985 = vpop.permute.xlu0 %1984
        %1986 = vrot.lane.b32.xlu0 %v1725, 64
        %v1987 = vpop.permute.xlu0 %1986
        %1988 = vrot.lane.b32.xlu0 %v1726, 64
        %v1989 = vpop.permute.xlu0 %1988
        %1990 = vrot.lane.b32.xlu0 %v1727, 64
        %v1991 = vpop.permute.xlu0 %1990
        %1992 = vrot.lane.b32.xlu0 %v1728, 64
        %v1993 = vpop.permute.xlu0 %1992
        %1994 = vrot.lane.b32.xlu0 %v1729, 64
        %v1995 = vpop.permute.xlu0 %1994
        %1996 = vrot.lane.b32.xlu0 %v1730, 64
        %v1997 = vpop.permute.xlu0 %1996
        %1998 = vrot.lane.b32.xlu0 %v1731, 64
        %v1999 = vpop.permute.xlu0 %1998
        %2000 = vrot.lane.b32.xlu0 %v1732, 64
        %v2001 = vpop.permute.xlu0 %2000
        %2002 = vrot.lane.b32.xlu0 %v1733, 64
        %v2003 = vpop.permute.xlu0 %2002
        %vm2004 = vcmask 523264
        %v2007 = vsel %vm2004, %v1878, %v1969
        %v2011 = vsel %vm2004, %v1879, %v1971
        %v2015 = vsel %vm2004, %v1880, %v1973
        %v2019 = vsel %vm2004, %v1881, %v1975
        %v2023 = vsel %vm2004, %v1882, %v1977
        %v2027 = vsel %vm2004, %v1883, %v1979
        %v2031 = vsel %vm2004, %v1884, %v1981
        %v2035 = vsel %vm2004, %v1885, %v1983
        %v2039 = vsel %vm2004, %v1886, %v1985
        %v2043 = vsel %vm2004, %v1887, %v1987
        %v2047 = vsel %vm2004, %v1888, %v1989
        %v2051 = vsel %vm2004, %v1889, %v1991
        %v2055 = vsel %vm2004, %v1890, %v1993
        %v2059 = vsel %vm2004, %v1891, %v1995
        %v2063 = vsel %vm2004, %v1892, %v1997
        %v2067 = vsel %vm2004, %v1893, %v1999
        %v2071 = vsel %vm2004, %v1894, %v2001
        %v2075 = vsel %vm2004, %v1895, %v2003
        %v2101 = vunpack.c.l.b16 %v1595
        %v2102 = vunpack.c.l.b16 %v1596
        %v2103 = vunpack.c.l.b16 %v1597
        %v2104 = vunpack.c.l.b16 %v1598
        %v2105 = vunpack.c.l.b16 %v1599
        %v2106 = vunpack.c.l.b16 %v1600
        %v2107 = vunpack.c.l.b16 %v1601
        %v2108 = vunpack.c.l.b16 %v1602
        %v2109 = vunpack.c.l.b16 %v1603
        %v2110 = vunpack.c.l.b16 %v1604
        %v2111 = vunpack.c.l.b16 %v1605
        %v2112 = vunpack.c.l.b16 %v1606
        %v2113 = vunpack.c.l.b16 %v1607
        %v2114 = vunpack.c.l.b16 %v1608
        %v2115 = vunpack.c.l.b16 %v1609
        %v2116 = vunpack.c.l.b16 %v1610
        %v2117 = vunpack.c.l.b16 %v1611
        %v2118 = vunpack.c.l.b16 %v1612
        %v2119 = vunpack.c.l.b16 %v1613
        %v2120 = vunpack.c.l.b16 %v1614
        %v2121 = vunpack.c.l.b16 %v1615
        %v2122 = vunpack.c.l.b16 %v1616
        %v2123 = vunpack.c.l.b16 %v1617
        %v2124 = vunpack.c.l.b16 %v1618
        %v2125 = vpack.c.b16 %v2102, %v2101
        %v2126 = vpack.c.b16 %v2104, %v2103
        %v2127 = vpack.c.b16 %v2106, %v2105
        %v2128 = vpack.c.b16 %v2108, %v2107
        %v2129 = vpack.c.b16 %v2110, %v2109
        %v2130 = vpack.c.b16 %v2112, %v2111
        %v2131 = vpack.c.b16 %v2114, %v2113
        %v2132 = vpack.c.b16 %v2116, %v2115
        %v2133 = vpack.c.b16 %v2118, %v2117
        %v2134 = vpack.c.b16 %v2120, %v2119
        %v2135 = vpack.c.b16 %v2122, %v2121
        %v2136 = vpack.c.b16 %v2124, %v2123
        %v2150 = vsel %vm2004, %v1951, 0
        %v2153 = vsel %vm2004, %v1952, 0
        %v2156 = vsel %vm2004, %v1953, 0
        %v2159 = vsel %vm2004, %v1954, 0
        %v2162 = vsel %vm2004, %v1955, 0
        %v2165 = vsel %vm2004, %v1956, 0
        %v2168 = vsel %vm2004, %v1957, 0
        %v2171 = vsel %vm2004, %v1958, 0
        %v2174 = vsel %vm2004, %v1959, 0
        %v2177 = vsel %vm2004, %v1960, 0
        %v2180 = vsel %vm2004, %v1961, 0
        %v2183 = vsel %vm2004, %v1962, 0
        %v2186 = vsel %vm2004, %v1963, 0
        %v2189 = vsel %vm2004, %v1964, 0
        %v2192 = vsel %vm2004, %v1965, 0
        %v2195 = vsel %vm2004, %v1966, 0
        %2197 = vmatpush.bf16.msra.mxu0 %v2132
        %2198 = vmatpush.bf16.msra.mxu0 %v2131
        %2199 = vmatpush.bf16.msra.mxu0 %v2130
        %2200 = vmatpush.bf16.msra.mxu0 %v2129
        %2201 = vmatpush.bf16.msra.mxu0 %v2128
        %2202 = vmatpush.bf16.msra.mxu0 %v2127
        %2203 = vmatpush.bf16.msra.mxu0 %v2126
        %2204 = vmatpush.bf16.msra.mxu0 %v2125
        %2205 = vmatmul.bf16.gmra.mxu0 %v2011
        %v2206 = vpop.f32.mrf.mxu0
        %v2207 = vadd.f32 0.0, %v2206
        %v2208 = vpop.f32.mrf.mxu0
        %v2209 = vadd.f32 0.0, %v2208
        %2210 = vmatmul.bf16.gmra.mxu0 %v2015
        %v2211 = vpop.f32.mrf.mxu0
        %v2212 = vadd.f32 0.0, %v2211
        %v2213 = vpop.f32.mrf.mxu0
        %v2214 = vadd.f32 0.0, %v2213
        %2215 = vmatmul.bf16.gmra.mxu0 %v2019
        %v2216 = vpop.f32.mrf.mxu0
        %v2217 = vadd.f32 0.0, %v2216
        %v2218 = vpop.f32.mrf.mxu0
        %v2219 = vadd.f32 0.0, %v2218
        %2220 = vmatmul.bf16.gmra.mxu0 %v2023
        %v2221 = vpop.f32.mrf.mxu0
        %v2222 = vadd.f32 0.0, %v2221
        %v2223 = vpop.f32.mrf.mxu0
        %v2224 = vadd.f32 0.0, %v2223
        %2225 = vmatmul.bf16.gmra.mxu0 %v2027
        %v2226 = vpop.f32.mrf.mxu0
        %v2227 = vadd.f32 0.0, %v2226
        %v2228 = vpop.f32.mrf.mxu0
        %v2229 = vadd.f32 0.0, %v2228
        %2230 = vmatmul.bf16.gmra.mxu0 %v2031
        %v2231 = vpop.f32.mrf.mxu0
        %v2232 = vadd.f32 0.0, %v2231
        %v2233 = vpop.f32.mrf.mxu0
        %v2234 = vadd.f32 0.0, %v2233
        %2235 = vmatmul.bf16.gmra.mxu0 %v2035
        %v2236 = vpop.f32.mrf.mxu0
        %v2237 = vadd.f32 0.0, %v2236
        %v2238 = vpop.f32.mrf.mxu0
        %v2239 = vadd.f32 0.0, %v2238
        %2240 = vmatmul.bf16.gmra.mxu0 %v2039
        %v2241 = vpop.f32.mrf.mxu0
        %v2242 = vadd.f32 0.0, %v2241
        %v2243 = vpop.f32.mrf.mxu0
        %v2244 = vadd.f32 0.0, %v2243
        %2245 = vmatmul.bf16.gmra.mxu0 %v2043
        %v2246 = vpop.f32.mrf.mxu0
        %v2247 = vadd.f32 0.0, %v2246
        %v2248 = vpop.f32.mrf.mxu0
        %v2249 = vadd.f32 0.0, %v2248
        %2250 = vmatmul.bf16.gmra.mxu0 %v2047
        %v2251 = vpop.f32.mrf.mxu0
        %v2252 = vadd.f32 0.0, %v2251
        %v2253 = vpop.f32.mrf.mxu0
        %v2254 = vadd.f32 0.0, %v2253
        %2255 = vmatmul.bf16.gmra.mxu0 %v2051
        %v2256 = vpop.f32.mrf.mxu0
        %v2257 = vadd.f32 0.0, %v2256
        %v2258 = vpop.f32.mrf.mxu0
        %v2259 = vadd.f32 0.0, %v2258
        %2260 = vmatmul.bf16.gmra.mxu0 %v2055
        %v2261 = vpop.f32.mrf.mxu0
        %v2262 = vadd.f32 0.0, %v2261
        %v2263 = vpop.f32.mrf.mxu0
        %v2264 = vadd.f32 0.0, %v2263
        %2265 = vmatmul.bf16.gmra.mxu0 %v2059
        %v2266 = vpop.f32.mrf.mxu0
        %v2267 = vadd.f32 0.0, %v2266
        %v2268 = vpop.f32.mrf.mxu0
        %v2269 = vadd.f32 0.0, %v2268
        %2270 = vmatmul.bf16.gmra.mxu0 %v2063
        %v2271 = vpop.f32.mrf.mxu0
        %v2272 = vadd.f32 0.0, %v2271
        %v2273 = vpop.f32.mrf.mxu0
        %v2274 = vadd.f32 0.0, %v2273
        %2275 = vmatmul.bf16.gmra.mxu0 %v2067
        %v2276 = vpop.f32.mrf.mxu0
        %v2277 = vadd.f32 0.0, %v2276
        %v2278 = vpop.f32.mrf.mxu0
        %v2279 = vadd.f32 0.0, %v2278
        %2280 = vmatmul.bf16.gmra.mxu0 %v2071
        %v2281 = vpop.f32.mrf.mxu0
        %v2282 = vadd.f32 0.0, %v2281
        %v2283 = vpop.f32.mrf.mxu0
        %v2284 = vadd.f32 0.0, %v2283
        %2285 = vdwg.mxu0
        %2286 = vmatpush.bf16.msra.mxu0 0
        %2287 = vmatpush.bf16.msra.mxu0 0
        %2288 = vmatpush.bf16.msra.mxu0 0
        %2289 = vmatpush.bf16.msra.mxu0 0
        %2290 = vmatpush.bf16.msra.mxu0 %v2136
        %2291 = vmatpush.bf16.msra.mxu0 %v2135
        %2292 = vmatpush.bf16.msra.mxu0 %v2134
        %2293 = vmatpush.bf16.msra.mxu0 %v2133
        %2294 = vmatmul.bf16.gmra.mxu0 %v2150
        %v2295 = vpop.f32.mrf.mxu0
        %v2296 = vadd.f32 %v2207, %v2295
        %v2297 = vpop.f32.mrf.mxu0
        %v2298 = vadd.f32 %v2209, %v2297
        %2299 = vmatmul.bf16.gmra.mxu0 %v2153
        %v2300 = vpop.f32.mrf.mxu0
        %v2301 = vadd.f32 %v2212, %v2300
        %v2302 = vpop.f32.mrf.mxu0
        %v2303 = vadd.f32 %v2214, %v2302
        %2304 = vmatmul.bf16.gmra.mxu0 %v2156
        %v2305 = vpop.f32.mrf.mxu0
        %v2306 = vadd.f32 %v2217, %v2305
        %v2307 = vpop.f32.mrf.mxu0
        %v2308 = vadd.f32 %v2219, %v2307
        %2309 = vmatmul.bf16.gmra.mxu0 %v2159
        %v2310 = vpop.f32.mrf.mxu0
        %v2311 = vadd.f32 %v2222, %v2310
        %v2312 = vpop.f32.mrf.mxu0
        %v2313 = vadd.f32 %v2224, %v2312
        %2314 = vmatmul.bf16.gmra.mxu0 %v2162
        %v2315 = vpop.f32.mrf.mxu0
        %v2316 = vadd.f32 %v2227, %v2315
        %v2317 = vpop.f32.mrf.mxu0
        %v2318 = vadd.f32 %v2229, %v2317
        %2319 = vmatmul.bf16.gmra.mxu0 %v2165
        %v2320 = vpop.f32.mrf.mxu0
        %v2321 = vadd.f32 %v2232, %v2320
        %v2322 = vpop.f32.mrf.mxu0
        %v2323 = vadd.f32 %v2234, %v2322
        %2324 = vmatmul.bf16.gmra.mxu0 %v2168
        %v2325 = vpop.f32.mrf.mxu0
        %v2326 = vadd.f32 %v2237, %v2325
        %v2327 = vpop.f32.mrf.mxu0
        %v2328 = vadd.f32 %v2239, %v2327
        %2329 = vmatmul.bf16.gmra.mxu0 %v2171
        %v2330 = vpop.f32.mrf.mxu0
        %v2331 = vadd.f32 %v2242, %v2330
        %v2332 = vpop.f32.mrf.mxu0
        %v2333 = vadd.f32 %v2244, %v2332
        %2334 = vmatmul.bf16.gmra.mxu0 %v2174
        %v2335 = vpop.f32.mrf.mxu0
        %v2336 = vadd.f32 %v2247, %v2335
        %v2337 = vpop.f32.mrf.mxu0
        %v2338 = vadd.f32 %v2249, %v2337
        %2339 = vmatmul.bf16.gmra.mxu0 %v2177
        %v2340 = vpop.f32.mrf.mxu0
        %v2341 = vadd.f32 %v2252, %v2340
        %v2342 = vpop.f32.mrf.mxu0
        %v2343 = vadd.f32 %v2254, %v2342
        %2344 = vmatmul.bf16.gmra.mxu0 %v2180
        %v2345 = vpop.f32.mrf.mxu0
        %v2346 = vadd.f32 %v2257, %v2345
        %v2347 = vpop.f32.mrf.mxu0
        %v2348 = vadd.f32 %v2259, %v2347
        %2349 = vmatmul.bf16.gmra.mxu0 %v2183
        %v2350 = vpop.f32.mrf.mxu0
        %v2351 = vadd.f32 %v2262, %v2350
        %v2352 = vpop.f32.mrf.mxu0
        %v2353 = vadd.f32 %v2264, %v2352
        %2354 = vmatmul.bf16.gmra.mxu0 %v2186
        %v2355 = vpop.f32.mrf.mxu0
        %v2356 = vadd.f32 %v2267, %v2355
        %v2357 = vpop.f32.mrf.mxu0
        %v2358 = vadd.f32 %v2269, %v2357
        %2359 = vmatmul.bf16.gmra.mxu0 %v2189
        %v2360 = vpop.f32.mrf.mxu0
        %v2361 = vadd.f32 %v2272, %v2360
        %v2362 = vpop.f32.mrf.mxu0
        %v2363 = vadd.f32 %v2274, %v2362
        %2364 = vmatmul.bf16.gmra.mxu0 %v2192
        %v2365 = vpop.f32.mrf.mxu0
        %v2366 = vadd.f32 %v2277, %v2365
        %v2367 = vpop.f32.mrf.mxu0
        %v2368 = vadd.f32 %v2279, %v2367
        %2369 = vmatmul.bf16.gmra.mxu0 %v2195
        %v2370 = vpop.f32.mrf.mxu0
        %v2371 = vadd.f32 %v2282, %v2370
        %v2372 = vpop.f32.mrf.mxu0
        %v2373 = vadd.f32 %v2284, %v2372
        %2374 = vdwg.mxu0
        %v2399 = vunpack.c.l.b16 %v1571
        %v2400 = vunpack.c.l.b16 %v1572
        %v2401 = vunpack.c.l.b16 %v1573
        %v2402 = vunpack.c.l.b16 %v1574
        %v2403 = vunpack.c.l.b16 %v1575
        %v2404 = vunpack.c.l.b16 %v1576
        %v2405 = vunpack.c.l.b16 %v1577
        %v2406 = vunpack.c.l.b16 %v1578
        %v2407 = vunpack.c.l.b16 %v1579
        %v2408 = vunpack.c.l.b16 %v1580
        %v2409 = vunpack.c.l.b16 %v1581
        %v2410 = vunpack.c.l.b16 %v1582
        %v2411 = vunpack.c.l.b16 %v1583
        %v2412 = vunpack.c.l.b16 %v1584
        %v2413 = vunpack.c.l.b16 %v1585
        %v2414 = vunpack.c.l.b16 %v1586
        %v2415 = vunpack.c.l.b16 %v1587
        %v2416 = vunpack.c.l.b16 %v1588
        %v2417 = vunpack.c.l.b16 %v1589
        %v2418 = vunpack.c.l.b16 %v1590
        %v2419 = vunpack.c.l.b16 %v1591
        %v2420 = vunpack.c.l.b16 %v1592
        %v2421 = vunpack.c.l.b16 %v1593
        %v2422 = vunpack.c.l.b16 %v1594
        %v2423 = vpack.c.b16 %v2400, %v2399
        %v2424 = vpack.c.b16 %v2402, %v2401
        %v2425 = vpack.c.b16 %v2404, %v2403
        %v2426 = vpack.c.b16 %v2406, %v2405
        %v2427 = vpack.c.b16 %v2408, %v2407
        %v2428 = vpack.c.b16 %v2410, %v2409
        %v2429 = vpack.c.b16 %v2412, %v2411
        %v2430 = vpack.c.b16 %v2414, %v2413
        %v2431 = vpack.c.b16 %v2416, %v2415
        %v2432 = vpack.c.b16 %v2418, %v2417
        %v2433 = vpack.c.b16 %v2420, %v2419
        %v2434 = vpack.c.b16 %v2422, %v2421
        %v2448 = vsel %vm2004, %v1950, 0
        %2450 = vmatpush.bf16.msra.mxu0 %v2430
        %2451 = vmatpush.bf16.msra.mxu0 %v2429
        %2452 = vmatpush.bf16.msra.mxu0 %v2428
        %2453 = vmatpush.bf16.msra.mxu0 %v2427
        %2454 = vmatpush.bf16.msra.mxu0 %v2426
        %2455 = vmatpush.bf16.msra.mxu0 %v2425
        %2456 = vmatpush.bf16.msra.mxu0 %v2424
        %2457 = vmatpush.bf16.msra.mxu0 %v2423
        %2458 = vmatmul.bf16.gmra.mxu0 %v2007
        %v2459 = vpop.f32.mrf.mxu0
        %v2460 = vadd.f32 %v2296, %v2459
        %v2461 = vpop.f32.mrf.mxu0
        %v2462 = vadd.f32 %v2298, %v2461
        %2463 = vmatmul.bf16.gmra.mxu0 %v2011
        %v2464 = vpop.f32.mrf.mxu0
        %v2465 = vadd.f32 %v2301, %v2464
        %v2466 = vpop.f32.mrf.mxu0
        %v2467 = vadd.f32 %v2303, %v2466
        %2468 = vmatmul.bf16.gmra.mxu0 %v2015
        %v2469 = vpop.f32.mrf.mxu0
        %v2470 = vadd.f32 %v2306, %v2469
        %v2471 = vpop.f32.mrf.mxu0
        %v2472 = vadd.f32 %v2308, %v2471
        %2473 = vmatmul.bf16.gmra.mxu0 %v2019
        %v2474 = vpop.f32.mrf.mxu0
        %v2475 = vadd.f32 %v2311, %v2474
        %v2476 = vpop.f32.mrf.mxu0
        %v2477 = vadd.f32 %v2313, %v2476
        %2478 = vmatmul.bf16.gmra.mxu0 %v2023
        %v2479 = vpop.f32.mrf.mxu0
        %v2480 = vadd.f32 %v2316, %v2479
        %v2481 = vpop.f32.mrf.mxu0
        %v2482 = vadd.f32 %v2318, %v2481
        %2483 = vmatmul.bf16.gmra.mxu0 %v2027
        %v2484 = vpop.f32.mrf.mxu0
        %v2485 = vadd.f32 %v2321, %v2484
        %v2486 = vpop.f32.mrf.mxu0
        %v2487 = vadd.f32 %v2323, %v2486
        %2488 = vmatmul.bf16.gmra.mxu0 %v2031
        %v2489 = vpop.f32.mrf.mxu0
        %v2490 = vadd.f32 %v2326, %v2489
        %v2491 = vpop.f32.mrf.mxu0
        %v2492 = vadd.f32 %v2328, %v2491
        %2493 = vmatmul.bf16.gmra.mxu0 %v2035
        %v2494 = vpop.f32.mrf.mxu0
        %v2495 = vadd.f32 %v2331, %v2494
        %v2496 = vpop.f32.mrf.mxu0
        %v2497 = vadd.f32 %v2333, %v2496
        %2498 = vmatmul.bf16.gmra.mxu0 %v2039
        %v2499 = vpop.f32.mrf.mxu0
        %v2500 = vadd.f32 %v2336, %v2499
        %v2501 = vpop.f32.mrf.mxu0
        %v2502 = vadd.f32 %v2338, %v2501
        %2503 = vmatmul.bf16.gmra.mxu0 %v2043
        %v2504 = vpop.f32.mrf.mxu0
        %v2505 = vadd.f32 %v2341, %v2504
        %v2506 = vpop.f32.mrf.mxu0
        %v2507 = vadd.f32 %v2343, %v2506
        %2508 = vmatmul.bf16.gmra.mxu0 %v2047
        %v2509 = vpop.f32.mrf.mxu0
        %v2510 = vadd.f32 %v2346, %v2509
        %v2511 = vpop.f32.mrf.mxu0
        %v2512 = vadd.f32 %v2348, %v2511
        %2513 = vmatmul.bf16.gmra.mxu0 %v2051
        %v2514 = vpop.f32.mrf.mxu0
        %v2515 = vadd.f32 %v2351, %v2514
        %v2516 = vpop.f32.mrf.mxu0
        %v2517 = vadd.f32 %v2353, %v2516
        %2518 = vmatmul.bf16.gmra.mxu0 %v2055
        %v2519 = vpop.f32.mrf.mxu0
        %v2520 = vadd.f32 %v2356, %v2519
        %v2521 = vpop.f32.mrf.mxu0
        %v2522 = vadd.f32 %v2358, %v2521
        %2523 = vmatmul.bf16.gmra.mxu0 %v2059
        %v2524 = vpop.f32.mrf.mxu0
        %v2525 = vadd.f32 %v2361, %v2524
        %v2526 = vpop.f32.mrf.mxu0
        %v2527 = vadd.f32 %v2363, %v2526
        %2528 = vmatmul.bf16.gmra.mxu0 %v2063
        %v2529 = vpop.f32.mrf.mxu0
        %v2530 = vadd.f32 %v2366, %v2529
        %v2531 = vpop.f32.mrf.mxu0
        %v2532 = vadd.f32 %v2368, %v2531
        %2533 = vmatmul.bf16.gmra.mxu0 %v2067
        %v2534 = vpop.f32.mrf.mxu0
        %v2535 = vadd.f32 %v2371, %v2534
        %v2536 = vpop.f32.mrf.mxu0
        %v2537 = vadd.f32 %v2373, %v2536
        %2538 = vdwg.mxu0
        %2539 = vmatpush.bf16.msra.mxu0 0
        %2540 = vmatpush.bf16.msra.mxu0 0
        %2541 = vmatpush.bf16.msra.mxu0 0
        %2542 = vmatpush.bf16.msra.mxu0 0
        %2543 = vmatpush.bf16.msra.mxu0 %v2434
        %2544 = vmatpush.bf16.msra.mxu0 %v2433
        %2545 = vmatpush.bf16.msra.mxu0 %v2432
        %2546 = vmatpush.bf16.msra.mxu0 %v2431
        %2547 = vmatmul.bf16.gmra.mxu0 %v2448
        %v2548 = vpop.f32.mrf.mxu0
        %v2549 = vadd.f32 %v2460, %v2548
        %v2550 = vpop.f32.mrf.mxu0
        %v2551 = vadd.f32 %v2462, %v2550
        %2552 = vmatmul.bf16.gmra.mxu0 %v2150
        %v2553 = vpop.f32.mrf.mxu0
        %v2554 = vadd.f32 %v2465, %v2553
        %v2555 = vpop.f32.mrf.mxu0
        %v2556 = vadd.f32 %v2467, %v2555
        %2557 = vmatmul.bf16.gmra.mxu0 %v2153
        %v2558 = vpop.f32.mrf.mxu0
        %v2559 = vadd.f32 %v2470, %v2558
        %v2560 = vpop.f32.mrf.mxu0
        %v2561 = vadd.f32 %v2472, %v2560
        %2562 = vmatmul.bf16.gmra.mxu0 %v2156
        %v2563 = vpop.f32.mrf.mxu0
        %v2564 = vadd.f32 %v2475, %v2563
        %v2565 = vpop.f32.mrf.mxu0
        %v2566 = vadd.f32 %v2477, %v2565
        %2567 = vmatmul.bf16.gmra.mxu0 %v2159
        %v2568 = vpop.f32.mrf.mxu0
        %v2569 = vadd.f32 %v2480, %v2568
        %v2570 = vpop.f32.mrf.mxu0
        %v2571 = vadd.f32 %v2482, %v2570
        %2572 = vmatmul.bf16.gmra.mxu0 %v2162
        %v2573 = vpop.f32.mrf.mxu0
        %v2574 = vadd.f32 %v2485, %v2573
        %v2575 = vpop.f32.mrf.mxu0
        %v2576 = vadd.f32 %v2487, %v2575
        %2577 = vmatmul.bf16.gmra.mxu0 %v2165
        %v2578 = vpop.f32.mrf.mxu0
        %v2579 = vadd.f32 %v2490, %v2578
        %v2580 = vpop.f32.mrf.mxu0
        %v2581 = vadd.f32 %v2492, %v2580
        %2582 = vmatmul.bf16.gmra.mxu0 %v2168
        %v2583 = vpop.f32.mrf.mxu0
        %v2584 = vadd.f32 %v2495, %v2583
        %v2585 = vpop.f32.mrf.mxu0
        %v2586 = vadd.f32 %v2497, %v2585
        %2587 = vmatmul.bf16.gmra.mxu0 %v2171
        %v2588 = vpop.f32.mrf.mxu0
        %v2589 = vadd.f32 %v2500, %v2588
        %v2590 = vpop.f32.mrf.mxu0
        %v2591 = vadd.f32 %v2502, %v2590
        %2592 = vmatmul.bf16.gmra.mxu0 %v2174
        %v2593 = vpop.f32.mrf.mxu0
        %v2594 = vadd.f32 %v2505, %v2593
        %v2595 = vpop.f32.mrf.mxu0
        %v2596 = vadd.f32 %v2507, %v2595
        %2597 = vmatmul.bf16.gmra.mxu0 %v2177
        %v2598 = vpop.f32.mrf.mxu0
        %v2599 = vadd.f32 %v2510, %v2598
        %v2600 = vpop.f32.mrf.mxu0
        %v2601 = vadd.f32 %v2512, %v2600
        %2602 = vmatmul.bf16.gmra.mxu0 %v2180
        %v2603 = vpop.f32.mrf.mxu0
        %v2604 = vadd.f32 %v2515, %v2603
        %v2605 = vpop.f32.mrf.mxu0
        %v2606 = vadd.f32 %v2517, %v2605
        %2607 = vmatmul.bf16.gmra.mxu0 %v2183
        %v2608 = vpop.f32.mrf.mxu0
        %v2609 = vadd.f32 %v2520, %v2608
        %v2610 = vpop.f32.mrf.mxu0
        %v2611 = vadd.f32 %v2522, %v2610
        %2612 = vmatmul.bf16.gmra.mxu0 %v2186
        %v2613 = vpop.f32.mrf.mxu0
        %v2614 = vadd.f32 %v2525, %v2613
        %v2615 = vpop.f32.mrf.mxu0
        %v2616 = vadd.f32 %v2527, %v2615
        %2617 = vmatmul.bf16.gmra.mxu0 %v2189
        %v2618 = vpop.f32.mrf.mxu0
        %v2619 = vadd.f32 %v2530, %v2618
        %v2620 = vpop.f32.mrf.mxu0
        %v2621 = vadd.f32 %v2532, %v2620
        %2622 = vmatmul.bf16.gmra.mxu0 %v2192
        %v2623 = vpop.f32.mrf.mxu0
        %v2624 = vadd.f32 %v2535, %v2623
        %v2625 = vpop.f32.mrf.mxu0
        %v2626 = vadd.f32 %v2537, %v2625
        %2627 = vdwg.mxu0
        %v2652 = vunpack.c.l.b16 %v1619
        %v2653 = vunpack.c.l.b16 %v1620
        %v2654 = vunpack.c.l.b16 %v1621
        %v2655 = vunpack.c.l.b16 %v1622
        %v2656 = vunpack.c.l.b16 %v1623
        %v2657 = vunpack.c.l.b16 %v1624
        %v2658 = vunpack.c.l.b16 %v1625
        %v2659 = vunpack.c.l.b16 %v1626
        %v2660 = vunpack.c.l.b16 %v1627
        %v2661 = vunpack.c.l.b16 %v1628
        %v2662 = vunpack.c.l.b16 %v1629
        %v2663 = vunpack.c.l.b16 %v1630
        %v2664 = vunpack.c.l.b16 %v1631
        %v2665 = vunpack.c.l.b16 %v1632
        %v2666 = vunpack.c.l.b16 %v1633
        %v2667 = vunpack.c.l.b16 %v1634
        %v2668 = vunpack.c.l.b16 %v1635
        %v2669 = vunpack.c.l.b16 %v1636
        %v2670 = vunpack.c.l.b16 %v1637
        %v2671 = vunpack.c.l.b16 %v1638
        %v2672 = vunpack.c.l.b16 %v1639
        %v2673 = vunpack.c.l.b16 %v1640
        %v2674 = vunpack.c.l.b16 %v1641
        %v2675 = vunpack.c.l.b16 %v1642
        %v2676 = vpack.c.b16 %v2653, %v2652
        %v2677 = vpack.c.b16 %v2655, %v2654
        %v2678 = vpack.c.b16 %v2657, %v2656
        %v2679 = vpack.c.b16 %v2659, %v2658
        %v2680 = vpack.c.b16 %v2661, %v2660
        %v2681 = vpack.c.b16 %v2663, %v2662
        %v2682 = vpack.c.b16 %v2665, %v2664
        %v2683 = vpack.c.b16 %v2667, %v2666
        %v2684 = vpack.c.b16 %v2669, %v2668
        %v2685 = vpack.c.b16 %v2671, %v2670
        %v2686 = vpack.c.b16 %v2673, %v2672
        %v2687 = vpack.c.b16 %v2675, %v2674
        %v2701 = vsel %vm2004, %v1967, 0
        %2703 = vmatpush.bf16.msra.mxu0 %v2683
        %2704 = vmatpush.bf16.msra.mxu0 %v2682
        %2705 = vmatpush.bf16.msra.mxu0 %v2681
        %2706 = vmatpush.bf16.msra.mxu0 %v2680
        %2707 = vmatpush.bf16.msra.mxu0 %v2679
        %2708 = vmatpush.bf16.msra.mxu0 %v2678
        %2709 = vmatpush.bf16.msra.mxu0 %v2677
        %2710 = vmatpush.bf16.msra.mxu0 %v2676
        %2711 = vmatmul.bf16.gmra.mxu0 %v2015
        %v2712 = vpop.f32.mrf.mxu0
        %v2713 = vadd.f32 0.0, %v2712
        %v2714 = vpop.f32.mrf.mxu0
        %v2715 = vadd.f32 0.0, %v2714
        %2716 = vmatmul.bf16.gmra.mxu0 %v2019
        %v2717 = vpop.f32.mrf.mxu0
        %v2718 = vadd.f32 0.0, %v2717
        %v2719 = vpop.f32.mrf.mxu0
        %v2720 = vadd.f32 0.0, %v2719
        %2721 = vmatmul.bf16.gmra.mxu0 %v2023
        %v2722 = vpop.f32.mrf.mxu0
        %v2723 = vadd.f32 0.0, %v2722
        %v2724 = vpop.f32.mrf.mxu0
        %v2725 = vadd.f32 0.0, %v2724
        %2726 = vmatmul.bf16.gmra.mxu0 %v2027
        %v2727 = vpop.f32.mrf.mxu0
        %v2728 = vadd.f32 0.0, %v2727
        %v2729 = vpop.f32.mrf.mxu0
        %v2730 = vadd.f32 0.0, %v2729
        %2731 = vmatmul.bf16.gmra.mxu0 %v2031
        %v2732 = vpop.f32.mrf.mxu0
        %v2733 = vadd.f32 0.0, %v2732
        %v2734 = vpop.f32.mrf.mxu0
        %v2735 = vadd.f32 0.0, %v2734
        %2736 = vmatmul.bf16.gmra.mxu0 %v2035
        %v2737 = vpop.f32.mrf.mxu0
        %v2738 = vadd.f32 0.0, %v2737
        %v2739 = vpop.f32.mrf.mxu0
        %v2740 = vadd.f32 0.0, %v2739
        %2741 = vmatmul.bf16.gmra.mxu0 %v2039
        %v2742 = vpop.f32.mrf.mxu0
        %v2743 = vadd.f32 0.0, %v2742
        %v2744 = vpop.f32.mrf.mxu0
        %v2745 = vadd.f32 0.0, %v2744
        %2746 = vmatmul.bf16.gmra.mxu0 %v2043
        %v2747 = vpop.f32.mrf.mxu0
        %v2748 = vadd.f32 0.0, %v2747
        %v2749 = vpop.f32.mrf.mxu0
        %v2750 = vadd.f32 0.0, %v2749
        %2751 = vmatmul.bf16.gmra.mxu0 %v2047
        %v2752 = vpop.f32.mrf.mxu0
        %v2753 = vadd.f32 0.0, %v2752
        %v2754 = vpop.f32.mrf.mxu0
        %v2755 = vadd.f32 0.0, %v2754
        %2756 = vmatmul.bf16.gmra.mxu0 %v2051
        %v2757 = vpop.f32.mrf.mxu0
        %v2758 = vadd.f32 0.0, %v2757
        %v2759 = vpop.f32.mrf.mxu0
        %v2760 = vadd.f32 0.0, %v2759
        %2761 = vmatmul.bf16.gmra.mxu0 %v2055
        %v2762 = vpop.f32.mrf.mxu0
        %v2763 = vadd.f32 0.0, %v2762
        %v2764 = vpop.f32.mrf.mxu0
        %v2765 = vadd.f32 0.0, %v2764
        %2766 = vmatmul.bf16.gmra.mxu0 %v2059
        %v2767 = vpop.f32.mrf.mxu0
        %v2768 = vadd.f32 0.0, %v2767
        %v2769 = vpop.f32.mrf.mxu0
        %v2770 = vadd.f32 0.0, %v2769
        %2771 = vmatmul.bf16.gmra.mxu0 %v2063
        %v2772 = vpop.f32.mrf.mxu0
        %v2773 = vadd.f32 0.0, %v2772
        %v2774 = vpop.f32.mrf.mxu0
        %v2775 = vadd.f32 0.0, %v2774
        %2776 = vmatmul.bf16.gmra.mxu0 %v2067
        %v2777 = vpop.f32.mrf.mxu0
        %v2778 = vadd.f32 0.0, %v2777
        %v2779 = vpop.f32.mrf.mxu0
        %v2780 = vadd.f32 0.0, %v2779
        %2781 = vmatmul.bf16.gmra.mxu0 %v2071
        %v2782 = vpop.f32.mrf.mxu0
        %v2783 = vadd.f32 0.0, %v2782
        %v2784 = vpop.f32.mrf.mxu0
        %v2785 = vadd.f32 0.0, %v2784
        %2786 = vmatmul.bf16.gmra.mxu0 %v2075
        %v2787 = vpop.f32.mrf.mxu0
        %v2788 = vadd.f32 0.0, %v2787
        %v2789 = vpop.f32.mrf.mxu0
        %v2790 = vadd.f32 0.0, %v2789
        %2791 = vdwg.mxu0
        %2792 = vmatpush.bf16.msra.mxu0 0
        %2793 = vmatpush.bf16.msra.mxu0 0
        %2794 = vmatpush.bf16.msra.mxu0 0
        %2795 = vmatpush.bf16.msra.mxu0 0
        %2796 = vmatpush.bf16.msra.mxu0 %v2687
        %2797 = vmatpush.bf16.msra.mxu0 %v2686
        %2798 = vmatpush.bf16.msra.mxu0 %v2685
        %2799 = vmatpush.bf16.msra.mxu0 %v2684
        %2800 = vmatmul.bf16.gmra.mxu0 %v2153
        %v2801 = vpop.f32.mrf.mxu0
        %v2802 = vadd.f32 %v2713, %v2801
        %v2803 = vpop.f32.mrf.mxu0
        %v2804 = vadd.f32 %v2715, %v2803
        %2805 = vmatmul.bf16.gmra.mxu0 %v2156
        %v2806 = vpop.f32.mrf.mxu0
        %v2807 = vadd.f32 %v2718, %v2806
        %v2808 = vpop.f32.mrf.mxu0
        %v2809 = vadd.f32 %v2720, %v2808
        %2810 = vmatmul.bf16.gmra.mxu0 %v2159
        %v2811 = vpop.f32.mrf.mxu0
        %v2812 = vadd.f32 %v2723, %v2811
        %v2813 = vpop.f32.mrf.mxu0
        %v2814 = vadd.f32 %v2725, %v2813
        %2815 = vmatmul.bf16.gmra.mxu0 %v2162
        %v2816 = vpop.f32.mrf.mxu0
        %v2817 = vadd.f32 %v2728, %v2816
        %v2818 = vpop.f32.mrf.mxu0
        %v2819 = vadd.f32 %v2730, %v2818
        %2820 = vmatmul.bf16.gmra.mxu0 %v2165
        %v2821 = vpop.f32.mrf.mxu0
        %v2822 = vadd.f32 %v2733, %v2821
        %v2823 = vpop.f32.mrf.mxu0
        %v2824 = vadd.f32 %v2735, %v2823
        %2825 = vmatmul.bf16.gmra.mxu0 %v2168
        %v2826 = vpop.f32.mrf.mxu0
        %v2827 = vadd.f32 %v2738, %v2826
        %v2828 = vpop.f32.mrf.mxu0
        %v2829 = vadd.f32 %v2740, %v2828
        %2830 = vmatmul.bf16.gmra.mxu0 %v2171
        %v2831 = vpop.f32.mrf.mxu0
        %v2832 = vadd.f32 %v2743, %v2831
        %v2833 = vpop.f32.mrf.mxu0
        %v2834 = vadd.f32 %v2745, %v2833
        %2835 = vmatmul.bf16.gmra.mxu0 %v2174
        %v2836 = vpop.f32.mrf.mxu0
        %v2837 = vadd.f32 %v2748, %v2836
        %v2838 = vpop.f32.mrf.mxu0
        %v2839 = vadd.f32 %v2750, %v2838
        %2840 = vmatmul.bf16.gmra.mxu0 %v2177
        %v2841 = vpop.f32.mrf.mxu0
        %v2842 = vadd.f32 %v2753, %v2841
        %v2843 = vpop.f32.mrf.mxu0
        %v2844 = vadd.f32 %v2755, %v2843
        %2845 = vmatmul.bf16.gmra.mxu0 %v2180
        %v2846 = vpop.f32.mrf.mxu0
        %v2847 = vadd.f32 %v2758, %v2846
        %v2848 = vpop.f32.mrf.mxu0
        %v2849 = vadd.f32 %v2760, %v2848
        %2850 = vmatmul.bf16.gmra.mxu0 %v2183
        %v2851 = vpop.f32.mrf.mxu0
        %v2852 = vadd.f32 %v2763, %v2851
        %v2853 = vpop.f32.mrf.mxu0
        %v2854 = vadd.f32 %v2765, %v2853
        %2855 = vmatmul.bf16.gmra.mxu0 %v2186
        %v2856 = vpop.f32.mrf.mxu0
        %v2857 = vadd.f32 %v2768, %v2856
        %v2858 = vpop.f32.mrf.mxu0
        %v2859 = vadd.f32 %v2770, %v2858
        %2860 = vmatmul.bf16.gmra.mxu0 %v2189
        %v2861 = vpop.f32.mrf.mxu0
        %v2862 = vadd.f32 %v2773, %v2861
        %v2863 = vpop.f32.mrf.mxu0
        %v2864 = vadd.f32 %v2775, %v2863
        %2865 = vmatmul.bf16.gmra.mxu0 %v2192
        %v2866 = vpop.f32.mrf.mxu0
        %v2867 = vadd.f32 %v2778, %v2866
        %v2868 = vpop.f32.mrf.mxu0
        %v2869 = vadd.f32 %v2780, %v2868
        %2870 = vmatmul.bf16.gmra.mxu0 %v2195
        %v2871 = vpop.f32.mrf.mxu0
        %v2872 = vadd.f32 %v2783, %v2871
        %v2873 = vpop.f32.mrf.mxu0
        %v2874 = vadd.f32 %v2785, %v2873
        %2875 = vmatmul.bf16.gmra.mxu0 %v2701
        %v2876 = vpop.f32.mrf.mxu0
        %v2877 = vadd.f32 %v2788, %v2876
        %v2878 = vpop.f32.mrf.mxu0
        %v2879 = vadd.f32 %v2790, %v2878
        %2880 = vdwg.mxu0
        %v2881 = vadd.f32 %v2549, %v2802
        %v2882 = vadd.f32 %v2551, %v2804
        %v2883 = vadd.f32 %v2554, %v2807
        %v2884 = vadd.f32 %v2556, %v2809
        %v2885 = vadd.f32 %v2559, %v2812
        %v2886 = vadd.f32 %v2561, %v2814
        %v2887 = vadd.f32 %v2564, %v2817
        %v2888 = vadd.f32 %v2566, %v2819
        %v2889 = vadd.f32 %v2569, %v2822
        %v2890 = vadd.f32 %v2571, %v2824
        %v2891 = vadd.f32 %v2574, %v2827
        %v2892 = vadd.f32 %v2576, %v2829
        %v2893 = vadd.f32 %v2579, %v2832
        %v2894 = vadd.f32 %v2581, %v2834
        %v2895 = vadd.f32 %v2584, %v2837
        %v2896 = vadd.f32 %v2586, %v2839
        %v2897 = vadd.f32 %v2589, %v2842
        %v2898 = vadd.f32 %v2591, %v2844
        %v2899 = vadd.f32 %v2594, %v2847
        %v2900 = vadd.f32 %v2596, %v2849
        %v2901 = vadd.f32 %v2599, %v2852
        %v2902 = vadd.f32 %v2601, %v2854
        %v2903 = vadd.f32 %v2604, %v2857
        %v2904 = vadd.f32 %v2606, %v2859
        %v2905 = vadd.f32 %v2609, %v2862
        %v2906 = vadd.f32 %v2611, %v2864
        %v2907 = vadd.f32 %v2614, %v2867
        %v2908 = vadd.f32 %v2616, %v2869
        %v2909 = vadd.f32 %v2619, %v2872
        %v2910 = vadd.f32 %v2621, %v2874
        %v2911 = vadd.f32 %v2624, %v2877
        %v2912 = vadd.f32 %v2626, %v2879
        %v2914 = vperm.slane %v1643, 0
        %v2916 = vadd.f32 %v2881, %v2914
        %v2917 = vadd.f32 %v2882, %v2914
        %v2918 = vadd.f32 %v2883, %v2914
        %v2919 = vadd.f32 %v2884, %v2914
        %v2920 = vadd.f32 %v2885, %v2914
        %v2921 = vadd.f32 %v2886, %v2914
        %v2922 = vadd.f32 %v2887, %v2914
        %v2923 = vadd.f32 %v2888, %v2914
        %v2924 = vadd.f32 %v2889, %v2914
        %v2925 = vadd.f32 %v2890, %v2914
        %v2926 = vadd.f32 %v2891, %v2914
        %v2927 = vadd.f32 %v2892, %v2914
        %v2928 = vadd.f32 %v2893, %v2914
        %v2929 = vadd.f32 %v2894, %v2914
        %v2930 = vadd.f32 %v2895, %v2914
        %v2931 = vadd.f32 %v2896, %v2914
        %v2932 = vadd.f32 %v2897, %v2914
        %v2933 = vadd.f32 %v2898, %v2914
        %v2934 = vadd.f32 %v2899, %v2914
        %v2935 = vadd.f32 %v2900, %v2914
        %v2936 = vadd.f32 %v2901, %v2914
        %v2937 = vadd.f32 %v2902, %v2914
        %v2938 = vadd.f32 %v2903, %v2914
        %v2939 = vadd.f32 %v2904, %v2914
        %v2940 = vadd.f32 %v2905, %v2914
        %v2941 = vadd.f32 %v2906, %v2914
        %v2942 = vadd.f32 %v2907, %v2914
        %v2943 = vadd.f32 %v2908, %v2914
        %v2944 = vadd.f32 %v2909, %v2914
        %v2945 = vadd.f32 %v2910, %v2914
        %v2946 = vadd.f32 %v2911, %v2914
        %v2947 = vadd.f32 %v2912, %v2914
        %v2948 = vmax.f32 %v2916, 0.0
        %v2949 = vmax.f32 %v2917, 0.0
        %v2950 = vmax.f32 %v2918, 0.0
        %v2951 = vmax.f32 %v2919, 0.0
        %v2952 = vmax.f32 %v2920, 0.0
        %v2953 = vmax.f32 %v2921, 0.0
        %v2954 = vmax.f32 %v2922, 0.0
        %v2955 = vmax.f32 %v2923, 0.0
        %v2956 = vmax.f32 %v2924, 0.0
        %v2957 = vmax.f32 %v2925, 0.0
        %v2958 = vmax.f32 %v2926, 0.0
        %v2959 = vmax.f32 %v2927, 0.0
        %v2960 = vmax.f32 %v2928, 0.0
        %v2961 = vmax.f32 %v2929, 0.0
        %v2962 = vmax.f32 %v2930, 0.0
        %v2963 = vmax.f32 %v2931, 0.0
        %v2964 = vmax.f32 %v2932, 0.0
        %v2965 = vmax.f32 %v2933, 0.0
        %v2966 = vmax.f32 %v2934, 0.0
        %v2967 = vmax.f32 %v2935, 0.0
        %v2968 = vmax.f32 %v2936, 0.0
        %v2969 = vmax.f32 %v2937, 0.0
        %v2970 = vmax.f32 %v2938, 0.0
        %v2971 = vmax.f32 %v2939, 0.0
        %v2972 = vmax.f32 %v2940, 0.0
        %v2973 = vmax.f32 %v2941, 0.0
        %v2974 = vmax.f32 %v2942, 0.0
        %v2975 = vmax.f32 %v2943, 0.0
        %v2976 = vmax.f32 %v2944, 0.0
        %v2977 = vmax.f32 %v2945, 0.0
        %v2978 = vmax.f32 %v2946, 0.0
        %v2979 = vmax.f32 %v2947, 0.0
        %v2980 = vsel %vm2004, %v2948, -inf
        %v2981 = vsel %vm2004, %v2950, -inf
        %v2982 = vmax.f32 %v2980, %v2981
        %v2983 = vsel %vm2004, %v2949, -inf
        %v2984 = vsel %vm2004, %v2951, -inf
        %v2985 = vmax.f32 %v2983, %v2984
        %v2986 = vsel %vm2004, %v2952, -inf
        %v2987 = vsel %vm2004, %v2954, -inf
        %v2988 = vmax.f32 %v2986, %v2987
        %v2989 = vsel %vm2004, %v2953, -inf
        %v2990 = vsel %vm2004, %v2955, -inf
        %v2991 = vmax.f32 %v2989, %v2990
        %v2992 = vsel %vm2004, %v2956, -inf
        %v2993 = vsel %vm2004, %v2958, -inf
        %v2994 = vmax.f32 %v2992, %v2993
        %v2995 = vsel %vm2004, %v2957, -inf
        %v2996 = vsel %vm2004, %v2959, -inf
        %v2997 = vmax.f32 %v2995, %v2996
        %v2998 = vsel %vm2004, %v2960, -inf
        %v2999 = vsel %vm2004, %v2962, -inf
        %v3000 = vmax.f32 %v2998, %v2999
        %v3001 = vsel %vm2004, %v2961, -inf
        %v3002 = vsel %vm2004, %v2963, -inf
        %v3003 = vmax.f32 %v3001, %v3002
        %v3004 = vsel %vm2004, %v2964, -inf
        %v3005 = vsel %vm2004, %v2966, -inf
        %v3006 = vmax.f32 %v3004, %v3005
        %v3007 = vsel %vm2004, %v2965, -inf
        %v3008 = vsel %vm2004, %v2967, -inf
        %v3009 = vmax.f32 %v3007, %v3008
        %v3010 = vsel %vm2004, %v2968, -inf
        %v3011 = vsel %vm2004, %v2970, -inf
        %v3012 = vmax.f32 %v3010, %v3011
        %v3013 = vsel %vm2004, %v2969, -inf
        %v3014 = vsel %vm2004, %v2971, -inf
        %v3015 = vmax.f32 %v3013, %v3014
        %v3016 = vsel %vm2004, %v2972, -inf
        %v3017 = vsel %vm2004, %v2974, -inf
        %v3018 = vmax.f32 %v3016, %v3017
        %v3019 = vsel %vm2004, %v2973, -inf
        %v3020 = vsel %vm2004, %v2975, -inf
        %v3021 = vmax.f32 %v3019, %v3020
        %v3022 = vsel %vm2004, %v2976, -inf
        %v3023 = vsel %vm2004, %v2978, -inf
        %v3024 = vmax.f32 %v3022, %v3023
        %v3025 = vsel %vm2004, %v2977, -inf
        %v3026 = vsel %vm2004, %v2979, -inf
        %v3027 = vmax.f32 %v3025, %v3026
        %v3044 = vrot.slane %v2982, 2
        %v3045 = vrot.slane %v2982, 4
        %v3046 = vrot.slane %v2982, 6
        %v3047 = vrot.slane %v2985, 2
        %v3048 = vrot.slane %v2985, 4
        %v3049 = vrot.slane %v2985, 6
        %v3050 = vrot.slane %v2988, 2
        %v3051 = vrot.slane %v2988, 4
        %v3052 = vrot.slane %v2988, 6
        %v3053 = vrot.slane %v2991, 2
        %v3054 = vrot.slane %v2991, 4
        %v3055 = vrot.slane %v2991, 6
        %v3056 = vrot.slane %v2994, 2
        %v3057 = vrot.slane %v2994, 4
        %v3058 = vrot.slane %v2994, 6
        %v3059 = vrot.slane %v2997, 2
        %v3060 = vrot.slane %v2997, 4
        %v3061 = vrot.slane %v2997, 6
        %v3062 = vrot.slane %v3000, 2
        %v3063 = vrot.slane %v3000, 4
        %v3064 = vrot.slane %v3000, 6
        %v3065 = vrot.slane %v3003, 2
        %v3066 = vrot.slane %v3003, 4
        %v3067 = vrot.slane %v3003, 6
        %v3068 = vrot.slane %v3006, 2
        %v3069 = vrot.slane %v3006, 4
        %v3070 = vrot.slane %v3006, 6
        %v3071 = vrot.slane %v3009, 2
        %v3072 = vrot.slane %v3009, 4
        %v3073 = vrot.slane %v3009, 6
        %v3074 = vrot.slane %v3012, 2
        %v3075 = vrot.slane %v3012, 4
        %v3076 = vrot.slane %v3012, 6
        %v3077 = vrot.slane %v3015, 2
        %v3078 = vrot.slane %v3015, 4
        %v3079 = vrot.slane %v3015, 6
        %v3080 = vrot.slane %v3018, 2
        %v3081 = vrot.slane %v3018, 4
        %v3082 = vrot.slane %v3018, 6
        %v3083 = vrot.slane %v3021, 2
        %v3084 = vrot.slane %v3021, 4
        %v3085 = vrot.slane %v3021, 6
        %v3086 = vrot.slane %v3024, 2
        %v3087 = vrot.slane %v3024, 4
        %v3088 = vrot.slane %v3024, 6
        %v3089 = vrot.slane %v3027, 2
        %v3090 = vrot.slane %v3027, 4
        %v3091 = vrot.slane %v3027, 6
        %vm3140 = vcmask 517120
        %v3141 = vsel %vm3140, %v2982, -inf
        %v3142 = vrot.slane %v3141, 4
        %v3143 = vmax.f32 %v3141, %v3142
        %v3144 = vrot.slane %v3143, 2
        %v3145 = vmax.f32 %v3143, %v3144
        %v3146 = vrot.slane %v3145, 1
        %v3147 = vmax.f32 %v3145, %v3146
        %v3148 = vsel %vm3140, %v3044, -inf
        %v3149 = vrot.slane %v3148, 4
        %v3150 = vmax.f32 %v3148, %v3149
        %v3151 = vrot.slane %v3150, 2
        %v3152 = vmax.f32 %v3150, %v3151
        %v3153 = vrot.slane %v3152, 1
        %v3154 = vmax.f32 %v3152, %v3153
        %v3155 = vsel %vm3140, %v3045, -inf
        %v3156 = vrot.slane %v3155, 4
        %v3157 = vmax.f32 %v3155, %v3156
        %v3158 = vrot.slane %v3157, 2
        %v3159 = vmax.f32 %v3157, %v3158
        %v3160 = vrot.slane %v3159, 1
        %v3161 = vmax.f32 %v3159, %v3160
        %v3162 = vsel %vm3140, %v3046, -inf
        %v3163 = vrot.slane %v3162, 4
        %v3164 = vmax.f32 %v3162, %v3163
        %v3165 = vrot.slane %v3164, 2
        %v3166 = vmax.f32 %v3164, %v3165
        %v3167 = vrot.slane %v3166, 1
        %v3168 = vmax.f32 %v3166, %v3167
        %v3169 = vsel %vm3140, %v2985, -inf
        %v3170 = vrot.slane %v3169, 4
        %v3171 = vmax.f32 %v3169, %v3170
        %v3172 = vrot.slane %v3171, 2
        %v3173 = vmax.f32 %v3171, %v3172
        %v3174 = vrot.slane %v3173, 1
        %v3175 = vmax.f32 %v3173, %v3174
        %v3176 = vsel %vm3140, %v3047, -inf
        %v3177 = vrot.slane %v3176, 4
        %v3178 = vmax.f32 %v3176, %v3177
        %v3179 = vrot.slane %v3178, 2
        %v3180 = vmax.f32 %v3178, %v3179
        %v3181 = vrot.slane %v3180, 1
        %v3182 = vmax.f32 %v3180, %v3181
        %v3183 = vsel %vm3140, %v3048, -inf
        %v3184 = vrot.slane %v3183, 4
        %v3185 = vmax.f32 %v3183, %v3184
        %v3186 = vrot.slane %v3185, 2
        %v3187 = vmax.f32 %v3185, %v3186
        %v3188 = vrot.slane %v3187, 1
        %v3189 = vmax.f32 %v3187, %v3188
        %v3190 = vsel %vm3140, %v3049, -inf
        %v3191 = vrot.slane %v3190, 4
        %v3192 = vmax.f32 %v3190, %v3191
        %v3193 = vrot.slane %v3192, 2
        %v3194 = vmax.f32 %v3192, %v3193
        %v3195 = vrot.slane %v3194, 1
        %v3196 = vmax.f32 %v3194, %v3195
        %v3197 = vsel %vm3140, %v2988, -inf
        %v3198 = vrot.slane %v3197, 4
        %v3199 = vmax.f32 %v3197, %v3198
        %v3200 = vrot.slane %v3199, 2
        %v3201 = vmax.f32 %v3199, %v3200
        %v3202 = vrot.slane %v3201, 1
        %v3203 = vmax.f32 %v3201, %v3202
        %v3204 = vsel %vm3140, %v3050, -inf
        %v3205 = vrot.slane %v3204, 4
        %v3206 = vmax.f32 %v3204, %v3205
        %v3207 = vrot.slane %v3206, 2
        %v3208 = vmax.f32 %v3206, %v3207
        %v3209 = vrot.slane %v3208, 1
        %v3210 = vmax.f32 %v3208, %v3209
        %v3211 = vsel %vm3140, %v3051, -inf
        %v3212 = vrot.slane %v3211, 4
        %v3213 = vmax.f32 %v3211, %v3212
        %v3214 = vrot.slane %v3213, 2
        %v3215 = vmax.f32 %v3213, %v3214
        %v3216 = vrot.slane %v3215, 1
        %v3217 = vmax.f32 %v3215, %v3216
        %v3218 = vsel %vm3140, %v3052, -inf
        %v3219 = vrot.slane %v3218, 4
        %v3220 = vmax.f32 %v3218, %v3219
        %v3221 = vrot.slane %v3220, 2
        %v3222 = vmax.f32 %v3220, %v3221
        %v3223 = vrot.slane %v3222, 1
        %v3224 = vmax.f32 %v3222, %v3223
        %v3225 = vsel %vm3140, %v2991, -inf
        %v3226 = vrot.slane %v3225, 4
        %v3227 = vmax.f32 %v3225, %v3226
        %v3228 = vrot.slane %v3227, 2
        %v3229 = vmax.f32 %v3227, %v3228
        %v3230 = vrot.slane %v3229, 1
        %v3231 = vmax.f32 %v3229, %v3230
        %v3232 = vsel %vm3140, %v3053, -inf
        %v3233 = vrot.slane %v3232, 4
        %v3234 = vmax.f32 %v3232, %v3233
        %v3235 = vrot.slane %v3234, 2
        %v3236 = vmax.f32 %v3234, %v3235
        %v3237 = vrot.slane %v3236, 1
        %v3238 = vmax.f32 %v3236, %v3237
        %v3239 = vsel %vm3140, %v3054, -inf
        %v3240 = vrot.slane %v3239, 4
        %v3241 = vmax.f32 %v3239, %v3240
        %v3242 = vrot.slane %v3241, 2
        %v3243 = vmax.f32 %v3241, %v3242
        %v3244 = vrot.slane %v3243, 1
        %v3245 = vmax.f32 %v3243, %v3244
        %v3246 = vsel %vm3140, %v3055, -inf
        %v3247 = vrot.slane %v3246, 4
        %v3248 = vmax.f32 %v3246, %v3247
        %v3249 = vrot.slane %v3248, 2
        %v3250 = vmax.f32 %v3248, %v3249
        %v3251 = vrot.slane %v3250, 1
        %v3252 = vmax.f32 %v3250, %v3251
        %v3253 = vsel %vm3140, %v2994, -inf
        %v3254 = vrot.slane %v3253, 4
        %v3255 = vmax.f32 %v3253, %v3254
        %v3256 = vrot.slane %v3255, 2
        %v3257 = vmax.f32 %v3255, %v3256
        %v3258 = vrot.slane %v3257, 1
        %v3259 = vmax.f32 %v3257, %v3258
        %v3260 = vsel %vm3140, %v3056, -inf
        %v3261 = vrot.slane %v3260, 4
        %v3262 = vmax.f32 %v3260, %v3261
        %v3263 = vrot.slane %v3262, 2
        %v3264 = vmax.f32 %v3262, %v3263
        %v3265 = vrot.slane %v3264, 1
        %v3266 = vmax.f32 %v3264, %v3265
        %v3267 = vsel %vm3140, %v3057, -inf
        %v3268 = vrot.slane %v3267, 4
        %v3269 = vmax.f32 %v3267, %v3268
        %v3270 = vrot.slane %v3269, 2
        %v3271 = vmax.f32 %v3269, %v3270
        %v3272 = vrot.slane %v3271, 1
        %v3273 = vmax.f32 %v3271, %v3272
        %v3274 = vsel %vm3140, %v3058, -inf
        %v3275 = vrot.slane %v3274, 4
        %v3276 = vmax.f32 %v3274, %v3275
        %v3277 = vrot.slane %v3276, 2
        %v3278 = vmax.f32 %v3276, %v3277
        %v3279 = vrot.slane %v3278, 1
        %v3280 = vmax.f32 %v3278, %v3279
        %v3281 = vsel %vm3140, %v2997, -inf
        %v3282 = vrot.slane %v3281, 4
        %v3283 = vmax.f32 %v3281, %v3282
        %v3284 = vrot.slane %v3283, 2
        %v3285 = vmax.f32 %v3283, %v3284
        %v3286 = vrot.slane %v3285, 1
        %v3287 = vmax.f32 %v3285, %v3286
        %v3288 = vsel %vm3140, %v3059, -inf
        %v3289 = vrot.slane %v3288, 4
        %v3290 = vmax.f32 %v3288, %v3289
        %v3291 = vrot.slane %v3290, 2
        %v3292 = vmax.f32 %v3290, %v3291
        %v3293 = vrot.slane %v3292, 1
        %v3294 = vmax.f32 %v3292, %v3293
        %v3295 = vsel %vm3140, %v3060, -inf
        %v3296 = vrot.slane %v3295, 4
        %v3297 = vmax.f32 %v3295, %v3296
        %v3298 = vrot.slane %v3297, 2
        %v3299 = vmax.f32 %v3297, %v3298
        %v3300 = vrot.slane %v3299, 1
        %v3301 = vmax.f32 %v3299, %v3300
        %v3302 = vsel %vm3140, %v3061, -inf
        %v3303 = vrot.slane %v3302, 4
        %v3304 = vmax.f32 %v3302, %v3303
        %v3305 = vrot.slane %v3304, 2
        %v3306 = vmax.f32 %v3304, %v3305
        %v3307 = vrot.slane %v3306, 1
        %v3308 = vmax.f32 %v3306, %v3307
        %v3309 = vsel %vm3140, %v3000, -inf
        %v3310 = vrot.slane %v3309, 4
        %v3311 = vmax.f32 %v3309, %v3310
        %v3312 = vrot.slane %v3311, 2
        %v3313 = vmax.f32 %v3311, %v3312
        %v3314 = vrot.slane %v3313, 1
        %v3315 = vmax.f32 %v3313, %v3314
        %v3316 = vsel %vm3140, %v3062, -inf
        %v3317 = vrot.slane %v3316, 4
        %v3318 = vmax.f32 %v3316, %v3317
        %v3319 = vrot.slane %v3318, 2
        %v3320 = vmax.f32 %v3318, %v3319
        %v3321 = vrot.slane %v3320, 1
        %v3322 = vmax.f32 %v3320, %v3321
        %v3323 = vsel %vm3140, %v3063, -inf
        %v3324 = vrot.slane %v3323, 4
        %v3325 = vmax.f32 %v3323, %v3324
        %v3326 = vrot.slane %v3325, 2
        %v3327 = vmax.f32 %v3325, %v3326
        %v3328 = vrot.slane %v3327, 1
        %v3329 = vmax.f32 %v3327, %v3328
        %v3330 = vsel %vm3140, %v3064, -inf
        %v3331 = vrot.slane %v3330, 4
        %v3332 = vmax.f32 %v3330, %v3331
        %v3333 = vrot.slane %v3332, 2
        %v3334 = vmax.f32 %v3332, %v3333
        %v3335 = vrot.slane %v3334, 1
        %v3336 = vmax.f32 %v3334, %v3335
        %v3337 = vsel %vm3140, %v3003, -inf
        %v3338 = vrot.slane %v3337, 4
        %v3339 = vmax.f32 %v3337, %v3338
        %v3340 = vrot.slane %v3339, 2
        %v3341 = vmax.f32 %v3339, %v3340
        %v3342 = vrot.slane %v3341, 1
        %v3343 = vmax.f32 %v3341, %v3342
        %v3344 = vsel %vm3140, %v3065, -inf
        %v3345 = vrot.slane %v3344, 4
        %v3346 = vmax.f32 %v3344, %v3345
        %v3347 = vrot.slane %v3346, 2
        %v3348 = vmax.f32 %v3346, %v3347
        %v3349 = vrot.slane %v3348, 1
        %v3350 = vmax.f32 %v3348, %v3349
        %v3351 = vsel %vm3140, %v3066, -inf
        %v3352 = vrot.slane %v3351, 4
        %v3353 = vmax.f32 %v3351, %v3352
        %v3354 = vrot.slane %v3353, 2
        %v3355 = vmax.f32 %v3353, %v3354
        %v3356 = vrot.slane %v3355, 1
        %v3357 = vmax.f32 %v3355, %v3356
        %v3358 = vsel %vm3140, %v3067, -inf
        %v3359 = vrot.slane %v3358, 4
        %v3360 = vmax.f32 %v3358, %v3359
        %v3361 = vrot.slane %v3360, 2
        %v3362 = vmax.f32 %v3360, %v3361
        %v3363 = vrot.slane %v3362, 1
        %v3364 = vmax.f32 %v3362, %v3363
        %v3365 = vsel %vm3140, %v3006, -inf
        %v3366 = vrot.slane %v3365, 4
        %v3367 = vmax.f32 %v3365, %v3366
        %v3368 = vrot.slane %v3367, 2
        %v3369 = vmax.f32 %v3367, %v3368
        %v3370 = vrot.slane %v3369, 1
        %v3371 = vmax.f32 %v3369, %v3370
        %v3372 = vsel %vm3140, %v3068, -inf
        %v3373 = vrot.slane %v3372, 4
        %v3374 = vmax.f32 %v3372, %v3373
        %v3375 = vrot.slane %v3374, 2
        %v3376 = vmax.f32 %v3374, %v3375
        %v3377 = vrot.slane %v3376, 1
        %v3378 = vmax.f32 %v3376, %v3377
        %v3379 = vsel %vm3140, %v3069, -inf
        %v3380 = vrot.slane %v3379, 4
        %v3381 = vmax.f32 %v3379, %v3380
        %v3382 = vrot.slane %v3381, 2
        %v3383 = vmax.f32 %v3381, %v3382
        %v3384 = vrot.slane %v3383, 1
        %v3385 = vmax.f32 %v3383, %v3384
        %v3386 = vsel %vm3140, %v3070, -inf
        %v3387 = vrot.slane %v3386, 4
        %v3388 = vmax.f32 %v3386, %v3387
        %v3389 = vrot.slane %v3388, 2
        %v3390 = vmax.f32 %v3388, %v3389
        %v3391 = vrot.slane %v3390, 1
        %v3392 = vmax.f32 %v3390, %v3391
        %v3393 = vsel %vm3140, %v3009, -inf
        %v3394 = vrot.slane %v3393, 4
        %v3395 = vmax.f32 %v3393, %v3394
        %v3396 = vrot.slane %v3395, 2
        %v3397 = vmax.f32 %v3395, %v3396
        %v3398 = vrot.slane %v3397, 1
        %v3399 = vmax.f32 %v3397, %v3398
        %v3400 = vsel %vm3140, %v3071, -inf
        %v3401 = vrot.slane %v3400, 4
        %v3402 = vmax.f32 %v3400, %v3401
        %v3403 = vrot.slane %v3402, 2
        %v3404 = vmax.f32 %v3402, %v3403
        %v3405 = vrot.slane %v3404, 1
        %v3406 = vmax.f32 %v3404, %v3405
        %v3407 = vsel %vm3140, %v3072, -inf
        %v3408 = vrot.slane %v3407, 4
        %v3409 = vmax.f32 %v3407, %v3408
        %v3410 = vrot.slane %v3409, 2
        %v3411 = vmax.f32 %v3409, %v3410
        %v3412 = vrot.slane %v3411, 1
        %v3413 = vmax.f32 %v3411, %v3412
        %v3414 = vsel %vm3140, %v3073, -inf
        %v3415 = vrot.slane %v3414, 4
        %v3416 = vmax.f32 %v3414, %v3415
        %v3417 = vrot.slane %v3416, 2
        %v3418 = vmax.f32 %v3416, %v3417
        %v3419 = vrot.slane %v3418, 1
        %v3420 = vmax.f32 %v3418, %v3419
        %v3421 = vsel %vm3140, %v3012, -inf
        %v3422 = vrot.slane %v3421, 4
        %v3423 = vmax.f32 %v3421, %v3422
        %v3424 = vrot.slane %v3423, 2
        %v3425 = vmax.f32 %v3423, %v3424
        %v3426 = vrot.slane %v3425, 1
        %v3427 = vmax.f32 %v3425, %v3426
        %v3428 = vsel %vm3140, %v3074, -inf
        %v3429 = vrot.slane %v3428, 4
        %v3430 = vmax.f32 %v3428, %v3429
        %v3431 = vrot.slane %v3430, 2
        %v3432 = vmax.f32 %v3430, %v3431
        %v3433 = vrot.slane %v3432, 1
        %v3434 = vmax.f32 %v3432, %v3433
        %v3435 = vsel %vm3140, %v3075, -inf
        %v3436 = vrot.slane %v3435, 4
        %v3437 = vmax.f32 %v3435, %v3436
        %v3438 = vrot.slane %v3437, 2
        %v3439 = vmax.f32 %v3437, %v3438
        %v3440 = vrot.slane %v3439, 1
        %v3441 = vmax.f32 %v3439, %v3440
        %v3442 = vsel %vm3140, %v3076, -inf
        %v3443 = vrot.slane %v3442, 4
        %v3444 = vmax.f32 %v3442, %v3443
        %v3445 = vrot.slane %v3444, 2
        %v3446 = vmax.f32 %v3444, %v3445
        %v3447 = vrot.slane %v3446, 1
        %v3448 = vmax.f32 %v3446, %v3447
        %v3449 = vsel %vm3140, %v3015, -inf
        %v3450 = vrot.slane %v3449, 4
        %v3451 = vmax.f32 %v3449, %v3450
        %v3452 = vrot.slane %v3451, 2
        %v3453 = vmax.f32 %v3451, %v3452
        %v3454 = vrot.slane %v3453, 1
        %v3455 = vmax.f32 %v3453, %v3454
        %v3456 = vsel %vm3140, %v3077, -inf
        %v3457 = vrot.slane %v3456, 4
        %v3458 = vmax.f32 %v3456, %v3457
        %v3459 = vrot.slane %v3458, 2
        %v3460 = vmax.f32 %v3458, %v3459
        %v3461 = vrot.slane %v3460, 1
        %v3462 = vmax.f32 %v3460, %v3461
        %v3463 = vsel %vm3140, %v3078, -inf
        %v3464 = vrot.slane %v3463, 4
        %v3465 = vmax.f32 %v3463, %v3464
        %v3466 = vrot.slane %v3465, 2
        %v3467 = vmax.f32 %v3465, %v3466
        %v3468 = vrot.slane %v3467, 1
        %v3469 = vmax.f32 %v3467, %v3468
        %v3470 = vsel %vm3140, %v3079, -inf
        %v3471 = vrot.slane %v3470, 4
        %v3472 = vmax.f32 %v3470, %v3471
        %v3473 = vrot.slane %v3472, 2
        %v3474 = vmax.f32 %v3472, %v3473
        %v3475 = vrot.slane %v3474, 1
        %v3476 = vmax.f32 %v3474, %v3475
        %v3477 = vsel %vm3140, %v3018, -inf
        %v3478 = vrot.slane %v3477, 4
        %v3479 = vmax.f32 %v3477, %v3478
        %v3480 = vrot.slane %v3479, 2
        %v3481 = vmax.f32 %v3479, %v3480
        %v3482 = vrot.slane %v3481, 1
        %v3483 = vmax.f32 %v3481, %v3482
        %v3484 = vsel %vm3140, %v3080, -inf
        %v3485 = vrot.slane %v3484, 4
        %v3486 = vmax.f32 %v3484, %v3485
        %v3487 = vrot.slane %v3486, 2
        %v3488 = vmax.f32 %v3486, %v3487
        %v3489 = vrot.slane %v3488, 1
        %v3490 = vmax.f32 %v3488, %v3489
        %v3491 = vsel %vm3140, %v3081, -inf
        %v3492 = vrot.slane %v3491, 4
        %v3493 = vmax.f32 %v3491, %v3492
        %v3494 = vrot.slane %v3493, 2
        %v3495 = vmax.f32 %v3493, %v3494
        %v3496 = vrot.slane %v3495, 1
        %v3497 = vmax.f32 %v3495, %v3496
        %v3498 = vsel %vm3140, %v3082, -inf
        %v3499 = vrot.slane %v3498, 4
        %v3500 = vmax.f32 %v3498, %v3499
        %v3501 = vrot.slane %v3500, 2
        %v3502 = vmax.f32 %v3500, %v3501
        %v3503 = vrot.slane %v3502, 1
        %v3504 = vmax.f32 %v3502, %v3503
        %v3505 = vsel %vm3140, %v3021, -inf
        %v3506 = vrot.slane %v3505, 4
        %v3507 = vmax.f32 %v3505, %v3506
        %v3508 = vrot.slane %v3507, 2
        %v3509 = vmax.f32 %v3507, %v3508
        %v3510 = vrot.slane %v3509, 1
        %v3511 = vmax.f32 %v3509, %v3510
        %v3512 = vsel %vm3140, %v3083, -inf
        %v3513 = vrot.slane %v3512, 4
        %v3514 = vmax.f32 %v3512, %v3513
        %v3515 = vrot.slane %v3514, 2
        %v3516 = vmax.f32 %v3514, %v3515
        %v3517 = vrot.slane %v3516, 1
        %v3518 = vmax.f32 %v3516, %v3517
        %v3519 = vsel %vm3140, %v3084, -inf
        %v3520 = vrot.slane %v3519, 4
        %v3521 = vmax.f32 %v3519, %v3520
        %v3522 = vrot.slane %v3521, 2
        %v3523 = vmax.f32 %v3521, %v3522
        %v3524 = vrot.slane %v3523, 1
        %v3525 = vmax.f32 %v3523, %v3524
        %v3526 = vsel %vm3140, %v3085, -inf
        %v3527 = vrot.slane %v3526, 4
        %v3528 = vmax.f32 %v3526, %v3527
        %v3529 = vrot.slane %v3528, 2
        %v3530 = vmax.f32 %v3528, %v3529
        %v3531 = vrot.slane %v3530, 1
        %v3532 = vmax.f32 %v3530, %v3531
        %v3533 = vsel %vm3140, %v3024, -inf
        %v3534 = vrot.slane %v3533, 4
        %v3535 = vmax.f32 %v3533, %v3534
        %v3536 = vrot.slane %v3535, 2
        %v3537 = vmax.f32 %v3535, %v3536
        %v3538 = vrot.slane %v3537, 1
        %v3539 = vmax.f32 %v3537, %v3538
        %v3540 = vsel %vm3140, %v3086, -inf
        %v3541 = vrot.slane %v3540, 4
        %v3542 = vmax.f32 %v3540, %v3541
        %v3543 = vrot.slane %v3542, 2
        %v3544 = vmax.f32 %v3542, %v3543
        %v3545 = vrot.slane %v3544, 1
        %v3546 = vmax.f32 %v3544, %v3545
        %v3547 = vsel %vm3140, %v3087, -inf
        %v3548 = vrot.slane %v3547, 4
        %v3549 = vmax.f32 %v3547, %v3548
        %v3550 = vrot.slane %v3549, 2
        %v3551 = vmax.f32 %v3549, %v3550
        %v3552 = vrot.slane %v3551, 1
        %v3553 = vmax.f32 %v3551, %v3552
        %v3554 = vsel %vm3140, %v3088, -inf
        %v3555 = vrot.slane %v3554, 4
        %v3556 = vmax.f32 %v3554, %v3555
        %v3557 = vrot.slane %v3556, 2
        %v3558 = vmax.f32 %v3556, %v3557
        %v3559 = vrot.slane %v3558, 1
        %v3560 = vmax.f32 %v3558, %v3559
        %v3561 = vsel %vm3140, %v3027, -inf
        %v3562 = vrot.slane %v3561, 4
        %v3563 = vmax.f32 %v3561, %v3562
        %v3564 = vrot.slane %v3563, 2
        %v3565 = vmax.f32 %v3563, %v3564
        %v3566 = vrot.slane %v3565, 1
        %v3567 = vmax.f32 %v3565, %v3566
        %v3568 = vsel %vm3140, %v3089, -inf
        %v3569 = vrot.slane %v3568, 4
        %v3570 = vmax.f32 %v3568, %v3569
        %v3571 = vrot.slane %v3570, 2
        %v3572 = vmax.f32 %v3570, %v3571
        %v3573 = vrot.slane %v3572, 1
        %v3574 = vmax.f32 %v3572, %v3573
        %v3575 = vsel %vm3140, %v3090, -inf
        %v3576 = vrot.slane %v3575, 4
        %v3577 = vmax.f32 %v3575, %v3576
        %v3578 = vrot.slane %v3577, 2
        %v3579 = vmax.f32 %v3577, %v3578
        %v3580 = vrot.slane %v3579, 1
        %v3581 = vmax.f32 %v3579, %v3580
        %v3582 = vsel %vm3140, %v3091, -inf
        %v3583 = vrot.slane %v3582, 4
        %v3584 = vmax.f32 %v3582, %v3583
        %v3585 = vrot.slane %v3584, 2
        %v3586 = vmax.f32 %v3584, %v3585
        %v3587 = vrot.slane %v3586, 1
        %v3588 = vmax.f32 %v3586, %v3587
        %v3589 = vpack.c.bf16 %v3147, %v3147
        %v3590 = vpack.c.bf16 %v3154, %v3154
        %v3591 = vpack.c.bf16 %v3161, %v3161
        %v3592 = vpack.c.bf16 %v3168, %v3168
        %v3593 = vpack.c.bf16 %v3175, %v3175
        %v3594 = vpack.c.bf16 %v3182, %v3182
        %v3595 = vpack.c.bf16 %v3189, %v3189
        %v3596 = vpack.c.bf16 %v3196, %v3196
        %v3597 = vpack.c.bf16 %v3203, %v3203
        %v3598 = vpack.c.bf16 %v3210, %v3210
        %v3599 = vpack.c.bf16 %v3217, %v3217
        %v3600 = vpack.c.bf16 %v3224, %v3224
        %v3601 = vpack.c.bf16 %v3231, %v3231
        %v3602 = vpack.c.bf16 %v3238, %v3238
        %v3603 = vpack.c.bf16 %v3245, %v3245
        %v3604 = vpack.c.bf16 %v3252, %v3252
        %v3605 = vpack.c.bf16 %v3259, %v3259
        %v3606 = vpack.c.bf16 %v3266, %v3266
        %v3607 = vpack.c.bf16 %v3273, %v3273
        %v3608 = vpack.c.bf16 %v3280, %v3280
        %v3609 = vpack.c.bf16 %v3287, %v3287
        %v3610 = vpack.c.bf16 %v3294, %v3294
        %v3611 = vpack.c.bf16 %v3301, %v3301
        %v3612 = vpack.c.bf16 %v3308, %v3308
        %v3613 = vpack.c.bf16 %v3315, %v3315
        %v3614 = vpack.c.bf16 %v3322, %v3322
        %v3615 = vpack.c.bf16 %v3329, %v3329
        %v3616 = vpack.c.bf16 %v3336, %v3336
        %v3617 = vpack.c.bf16 %v3343, %v3343
        %v3618 = vpack.c.bf16 %v3350, %v3350
        %v3619 = vpack.c.bf16 %v3357, %v3357
        %v3620 = vpack.c.bf16 %v3364, %v3364
        %v3621 = vpack.c.bf16 %v3371, %v3371
        %v3622 = vpack.c.bf16 %v3378, %v3378
        %v3623 = vpack.c.bf16 %v3385, %v3385
        %v3624 = vpack.c.bf16 %v3392, %v3392
        %v3625 = vpack.c.bf16 %v3399, %v3399
        %v3626 = vpack.c.bf16 %v3406, %v3406
        %v3627 = vpack.c.bf16 %v3413, %v3413
        %v3628 = vpack.c.bf16 %v3420, %v3420
        %v3629 = vpack.c.bf16 %v3427, %v3427
        %v3630 = vpack.c.bf16 %v3434, %v3434
        %v3631 = vpack.c.bf16 %v3441, %v3441
        %v3632 = vpack.c.bf16 %v3448, %v3448
        %v3633 = vpack.c.bf16 %v3455, %v3455
        %v3634 = vpack.c.bf16 %v3462, %v3462
        %v3635 = vpack.c.bf16 %v3469, %v3469
        %v3636 = vpack.c.bf16 %v3476, %v3476
        %v3637 = vpack.c.bf16 %v3483, %v3483
        %v3638 = vpack.c.bf16 %v3490, %v3490
        %v3639 = vpack.c.bf16 %v3497, %v3497
        %v3640 = vpack.c.bf16 %v3504, %v3504
        %v3641 = vpack.c.bf16 %v3511, %v3511
        %v3642 = vpack.c.bf16 %v3518, %v3518
        %v3643 = vpack.c.bf16 %v3525, %v3525
        %v3644 = vpack.c.bf16 %v3532, %v3532
        %v3645 = vpack.c.bf16 %v3539, %v3539
        %v3646 = vpack.c.bf16 %v3546, %v3546
        %v3647 = vpack.c.bf16 %v3553, %v3553
        %v3648 = vpack.c.bf16 %v3560, %v3560
        %v3649 = vpack.c.bf16 %v3567, %v3567
        %v3650 = vpack.c.bf16 %v3574, %v3574
        %v3651 = vpack.c.bf16 %v3581, %v3581
        %v3652 = vpack.c.bf16 %v3588, %v3588
        %v3717 = vunpack.c.l.b16 %v3589
        %v3718 = vunpack.c.l.b16 %v3590
        %v3719 = vunpack.c.l.b16 %v3591
        %v3720 = vunpack.c.l.b16 %v3592
        %v3721 = vunpack.c.l.b16 %v3593
        %v3722 = vunpack.c.l.b16 %v3594
        %v3723 = vunpack.c.l.b16 %v3595
        %v3724 = vunpack.c.l.b16 %v3596
        %v3725 = vunpack.c.l.b16 %v3597
        %v3726 = vunpack.c.l.b16 %v3598
        %v3727 = vunpack.c.l.b16 %v3599
        %v3728 = vunpack.c.l.b16 %v3600
        %v3729 = vunpack.c.l.b16 %v3601
        %v3730 = vunpack.c.l.b16 %v3602
        %v3731 = vunpack.c.l.b16 %v3603
        %v3732 = vunpack.c.l.b16 %v3604
        %v3733 = vunpack.c.l.b16 %v3605
        %v3734 = vunpack.c.l.b16 %v3606
        %v3735 = vunpack.c.l.b16 %v3607
        %v3736 = vunpack.c.l.b16 %v3608
        %v3737 = vunpack.c.l.b16 %v3609
        %v3738 = vunpack.c.l.b16 %v3610
        %v3739 = vunpack.c.l.b16 %v3611
        %v3740 = vunpack.c.l.b16 %v3612
        %v3741 = vunpack.c.l.b16 %v3613
        %v3742 = vunpack.c.l.b16 %v3614
        %v3743 = vunpack.c.l.b16 %v3615
        %v3744 = vunpack.c.l.b16 %v3616
        %v3745 = vunpack.c.l.b16 %v3617
        %v3746 = vunpack.c.l.b16 %v3618
        %v3747 = vunpack.c.l.b16 %v3619
        %v3748 = vunpack.c.l.b16 %v3620
        %v3749 = vunpack.c.l.b16 %v3621
        %v3750 = vunpack.c.l.b16 %v3622
        %v3751 = vunpack.c.l.b16 %v3623
        %v3752 = vunpack.c.l.b16 %v3624
        %v3753 = vunpack.c.l.b16 %v3625
        %v3754 = vunpack.c.l.b16 %v3626
        %v3755 = vunpack.c.l.b16 %v3627
        %v3756 = vunpack.c.l.b16 %v3628
        %v3757 = vunpack.c.l.b16 %v3629
        %v3758 = vunpack.c.l.b16 %v3630
        %v3759 = vunpack.c.l.b16 %v3631
        %v3760 = vunpack.c.l.b16 %v3632
        %v3761 = vunpack.c.l.b16 %v3633
        %v3762 = vunpack.c.l.b16 %v3634
        %v3763 = vunpack.c.l.b16 %v3635
        %v3764 = vunpack.c.l.b16 %v3636
        %v3765 = vunpack.c.l.b16 %v3637
        %v3766 = vunpack.c.l.b16 %v3638
        %v3767 = vunpack.c.l.b16 %v3639
        %v3768 = vunpack.c.l.b16 %v3640
        %v3769 = vunpack.c.l.b16 %v3641
        %v3770 = vunpack.c.l.b16 %v3642
        %v3771 = vunpack.c.l.b16 %v3643
        %v3772 = vunpack.c.l.b16 %v3644
        %v3773 = vunpack.c.l.b16 %v3645
        %v3774 = vunpack.c.l.b16 %v3646
        %v3775 = vunpack.c.l.b16 %v3647
        %v3776 = vunpack.c.l.b16 %v3648
        %v3777 = vunpack.c.l.b16 %v3649
        %v3778 = vunpack.c.l.b16 %v3650
        %v3779 = vunpack.c.l.b16 %v3651
        %v3780 = vunpack.c.l.b16 %v3652
        %v3781 = vsel %vm1080, %v3718, %v3717
        %v3782 = vsel %vm1084, %v3719, %v3781
        %v3783 = vsel %vm1088, %v3720, %v3782
        %vm3784 = vcmask 1044484
        %v3785 = vsel %vm3784, %v3721, %v3783
        %vm3786 = vcmask 1045509
        %v3787 = vsel %vm3786, %v3722, %v3785
        %vm3788 = vcmask 1046534
        %v3789 = vsel %vm3788, %v3723, %v3787
        %vm3790 = vcmask 1047559
        %v3791 = vsel %vm3790, %v3724, %v3789
        %v3792 = vsel %vm1080, %v3726, %v3725
        %v3793 = vsel %vm1084, %v3727, %v3792
        %v3794 = vsel %vm1088, %v3728, %v3793
        %v3795 = vsel %vm3784, %v3729, %v3794
        %v3796 = vsel %vm3786, %v3730, %v3795
        %v3797 = vsel %vm3788, %v3731, %v3796
        %v3798 = vsel %vm3790, %v3732, %v3797
        %v3799 = vsel %vm1080, %v3734, %v3733
        %v3800 = vsel %vm1084, %v3735, %v3799
        %v3801 = vsel %vm1088, %v3736, %v3800
        %v3802 = vsel %vm3784, %v3737, %v3801
        %v3803 = vsel %vm3786, %v3738, %v3802
        %v3804 = vsel %vm3788, %v3739, %v3803
        %v3805 = vsel %vm3790, %v3740, %v3804
        %v3806 = vsel %vm1080, %v3742, %v3741
        %v3807 = vsel %vm1084, %v3743, %v3806
        %v3808 = vsel %vm1088, %v3744, %v3807
        %v3809 = vsel %vm3784, %v3745, %v3808
        %v3810 = vsel %vm3786, %v3746, %v3809
        %v3811 = vsel %vm3788, %v3747, %v3810
        %v3812 = vsel %vm3790, %v3748, %v3811
        %v3813 = vsel %vm1080, %v3750, %v3749
        %v3814 = vsel %vm1084, %v3751, %v3813
        %v3815 = vsel %vm1088, %v3752, %v3814
        %v3816 = vsel %vm3784, %v3753, %v3815
        %v3817 = vsel %vm3786, %v3754, %v3816
        %v3818 = vsel %vm3788, %v3755, %v3817
        %v3819 = vsel %vm3790, %v3756, %v3818
        %v3820 = vsel %vm1080, %v3758, %v3757
        %v3821 = vsel %vm1084, %v3759, %v3820
        %v3822 = vsel %vm1088, %v3760, %v3821
        %v3823 = vsel %vm3784, %v3761, %v3822
        %v3824 = vsel %vm3786, %v3762, %v3823
        %v3825 = vsel %vm3788, %v3763, %v3824
        %v3826 = vsel %vm3790, %v3764, %v3825
        %v3827 = vsel %vm1080, %v3766, %v3765
        %v3828 = vsel %vm1084, %v3767, %v3827
        %v3829 = vsel %vm1088, %v3768, %v3828
        %v3830 = vsel %vm3784, %v3769, %v3829
        %v3831 = vsel %vm3786, %v3770, %v3830
        %v3832 = vsel %vm3788, %v3771, %v3831
        %v3833 = vsel %vm3790, %v3772, %v3832
        %v3834 = vsel %vm1080, %v3774, %v3773
        %v3835 = vsel %vm1084, %v3775, %v3834
        %v3836 = vsel %vm1088, %v3776, %v3835
        %v3837 = vsel %vm3784, %v3777, %v3836
        %v3838 = vsel %vm3786, %v3778, %v3837
        %v3839 = vsel %vm3788, %v3779, %v3838
        %v3840 = vsel %vm3790, %v3780, %v3839
        %v3841 = vpack.c.b16 %v3791, %v3791
        %v3842 = vpack.c.b16 %v3798, %v3798
        %v3843 = vpack.c.b16 %v3805, %v3805
        %v3844 = vpack.c.b16 %v3812, %v3812
        %v3845 = vpack.c.b16 %v3819, %v3819
        %v3846 = vpack.c.b16 %v3826, %v3826
        %v3847 = vpack.c.b16 %v3833, %v3833
        %v3848 = vpack.c.b16 %v3840, %v3840
        %vm3857 = vcmask 519168
        %3858 = vst.msk [vmem:[%s276] sm:$0xf] %vm3857, %v3841
        %3859 = vst.msk [vmem:[%s276 + $0x4] sm:$0xf] %vm3857, %v3842
        %3860 = vst.msk [vmem:[%s276 + $0x8] sm:$0xf] %vm3857, %v3843
        %3861 = vst.msk [vmem:[%s276 + $0xc] sm:$0xf] %vm3857, %v3844
        %3862 = vst.msk [vmem:[%s276 + $0x10] sm:$0xf] %vm3857, %v3845
        %3863 = vst.msk [vmem:[%s276 + $0x14] sm:$0xf] %vm3857, %v3846
        %3864 = vst.msk [vmem:[%s276 + $0x18] sm:$0xf] %vm3857, %v3847
        %3865 = vst.msk [vmem:[%s276 + $0x1c] sm:$0xf] %vm3857, %v3848
        %s3866 = smul.u32 8, %s23
        %p3867 = scmp.lt.s32.totalorder %s22, 1
        %s3868 = scalar_select %p3867, %s22, 1
        %p3869 = scmp.lt.s32.totalorder %s3866, 7
        %s3870 = scalar_select %p3869, %s3866, 7
        %s3871 = smul.addr %s3868, 8
        %s3872 = sadd.s32 %s3870, %s3871
        %s3873 = smul.addr %s3872, 4
        %s3874 = scalar_lea.vmem %s5, %s3873
        // Predicated region
        $region49: #{feature_extractor.6} parent=39 // pred_check
          %p3875 = pneg %p160
        $region50: #{feature_extractor.6} parent=39 // pred_check_branch
          %3877 = sbr.rel (%p3875) target = $region52
        $region51: #{feature_extractor.6} parent=39 // pred_region
          %s3878 = smul.u32 8, %s23
        $region52: #{feature_extractor.6} parent=39 // pred_fallthru
          _
      $region40: #{feature_extractor.6} parent=5 // pred_fallthru
        _
      %p3879 = scmp.le.s32.totalorder 2, %s13
      // Predicated region
      $region53: #{feature_extractor.6} parent=5 // pred_check
        %p3880 = pneg %p3879
      $region54: #{feature_extractor.6} parent=5 // pred_check_branch
        %3882 = sbr.rel (%p3880) target = $region56
      $region55: #{feature_extractor.6} parent=5 // pred_region
        %s3883 = ssub.s32 %s13, 2
        // Predicated region
        $region57: #{feature_extractor.6} parent=55 // pred_check
          %p3884 = pneg %p166
        $region58: #{feature_extractor.6} parent=55 // pred_check_branch
          %3886 = sbr.rel (%p3884) target = $region60
        $region59: #{feature_extractor.6} parent=55 // pred_region
          %s3887 = smul.u32 8, %s25
          %p3888 = scmp.lt.s32.totalorder %s24, 1
          %s3889 = scalar_select %p3888, %s24, 1
          %p3890 = scmp.lt.s32.totalorder %s3887, 7
          %s3891 = scalar_select %p3890, %s3887, 7
          %s3892 = smul.addr %s3889, 8
          %s3893 = sadd.s32 %s3891, %s3892
          %s3894 = smul.addr %s3893, 4
          %s3895 = scalar_lea.vmem %s5, %s3894
        $region60: #{feature_extractor.6} parent=55 // pred_fallthru
          _
      $region56: #{feature_extractor.6} parent=5 // pred_fallthru
        _
    $region6: #{feature_extractor.6} parent=1 // loop_footer
      %s17 = sadd.s32 1, %s13
    $region7: #{feature_extractor.6} parent=1 // loop_footer_branch
      %12 = sbr.rel target = $region3
    $region8: #{feature_extractor.6} parent=1 // loop_exit
      _
    %3896 = vsyncpa [#allocation3], 1
    %s3897 = scalar_lea.sflag [#allocation3], 1
    %3898 = vsyncpa %s3897, 1
    %3899 = vsyncpa [#allocation5], 1

// kernel: feature_extractor.9
$region0: #{feature_extractor.9}
  #allocation0 [shape = 'u32[]', space=smem, size = 0x4, offset = 0x4, fixed_abs, tag = 'smem constant byte address 0x4 - core index']
  #allocation1 [shape = 'u32[72,128]{1,0:T(1,128)}', space=vmem, size = 0x9000, scoped, tag = 'internal scratch']
  %s0 = inlined_call_operand.vmem [shape: bf16[2,4,4,256], index: 0, kind: input, shape index: {}, may-alias: {0,1,2}]
  %s1 = inlined_call_operand.vmem [shape: bf16[2,4,4,256], index: 1, kind: input, shape index: {}, may-alias: {0,1,2}]
  %s2 = inlined_call_operand.vmem [shape: bf16[2,4,4,256], index: 2, kind: input, shape index: {}, may-alias: {0,1,2}]
  %s3 = inlined_call_operand.vmem [shape: bf16[3,768,256], index: 3, kind: input, shape index: {}]
  %s4 = inlined_call_operand.vmem [shape: f32[1,256], index: 4, kind: input, shape index: {}]
  %s5 = inlined_call_operand.vmem [shape: bf16[2,4,4,256], index: 5, kind: output, shape index: {}]
  %s6 = sld [smem:[#allocation0]]
  $region53: #{feature_extractor.9} parent=0
    _
  %s8 = ssub.s32 1, %s6
  %s9 = scalar_select 0, %s8, %s6
  loop: start=0, step=1, limit=4
  $region2: #{feature_extractor.9} parent=0 // loop_pre_header
    _
  $region3: #{feature_extractor.9} parent=0 // loop_header
    %s11 = sphi 0, %s15
    %p12 = scmp.ge.s32.totalorder %s11, 4
    %s18 = sphi 0, %s30
    %s19 = sphi 0, %s26
    %s20 = sphi 0, %s18
    %s21 = sphi 0, %s19
    %s22 = sphi 0, %s20
    %s23 = sphi 0, %s21
    %s35 = sphi 0, %s37
    %s38 = sphi 0, %s35
    %s39 = sphi 0, %s38
    %s55 = sphi 0, %s39
    %s71 = sphi 0, %s73
    %s74 = sphi 0, %s71
    %s75 = sphi 0, %s74
    %s91 = sphi 0, %s75
    %s107 = sphi 0, %s109
    %s110 = sphi 0, %s107
    %s111 = sphi 0, %s110
    %s127 = sphi 0, %s111
    %s131 = sphi 0, %s131
    %s133 = sphi 0, %s131
    %s134 = sphi 0, %s133
    %s148 = sphi 0, %s134
    %s152 = sphi 0, %s152
    %s154 = sphi 0, %s152
    %s155 = sphi 0, %s154
    %s169 = sphi 0, %s155
    %s177 = sphi 0, %s179
    %s180 = sphi 0, %s177
    %s181 = sphi 0, %s180
    %s197 = sphi 0, %s181
  $region4: #{feature_extractor.9} parent=0 // loop_header_branch
    %14 = sbr.rel (%p12) target = $region8
  $region5: #{feature_extractor.9} parent=0 // loop_body
    %s16 = ssub.s32 %s11, 1
    %s17 = ssub.s32 %s11, 2
    %s24 = sadd.s32 1, %s19
    %p25 = scmp.ge.s32.totalorder %s24, 1
    %s26 = scalar_select %p25, 0, %s24
    %s27 = sadd.s32 1, %s18
    %s28 = scalar_select %p25, %s27, %s18
    %p29 = scmp.ge.s32.totalorder %s28, 2
    %s30 = scalar_select %p29, 0, %s28
    %s31 = ssub.s32 %s18, %s30
    %s32 = ssub.s32 %s19, %s26
    %s33 = sor.u32 %s31, %s32
    %p34 = scmp.eq.s32.totalorder %s33, 0
    %s36 = sadd.s32 %s35, 1
    %s37 = scalar_select %p34, %s35, %s36
    %p40 = pneg %p34
    %p41 = scmp.eq.s32.totalorder %s11, 1
    %p42 = por %p40, %p41
    %p43 = scmp.ne.s32.totalorder %s35, %s38
    %p44 = scmp.eq.s32.totalorder %s11, 0
    %p45 = por %p43, %p44
    %p46 = scmp.ne.s32.totalorder %s35, %s38
    %p47 = scmp.eq.s32.totalorder %s16, 1
    %p48 = por %p46, %p47
    %p49 = scmp.ne.s32.totalorder %s38, %s39
    %p50 = scmp.eq.s32.totalorder %s16, 0
    %p51 = por %p49, %p50
    %p52 = scmp.ne.s32.totalorder %s38, %s39
    %p53 = scmp.eq.s32.totalorder %s17, 1
    %p54 = por %p52, %p53
    %p56 = scmp.ne.s32.totalorder %s39, %s55
    %p57 = scmp.eq.s32.totalorder %s17, 0
    %p58 = por %p56, %p57
    %s59 = smul.u32 %s19, 4
    %s60 = ssub.s32 %s59, 1
    %p61 = scmp.gt.s32.totalorder %s60, 0
    %s62 = scalar_select %p61, %s60, 0
    %s63 = smul.u32 %s26, 4
    %s64 = ssub.s32 %s63, 1
    %p65 = scmp.gt.s32.totalorder %s64, 0
    %s66 = scalar_select %p65, %s64, 0
    %s67 = ssub.s32 %s18, %s30
    %s68 = ssub.s32 %s62, %s66
    %s69 = sor.u32 %s67, %s68
    %p70 = scmp.eq.s32.totalorder %s69, 0
    %s72 = sadd.s32 %s71, 1
    %s73 = scalar_select %p70, %s71, %s72
    %p76 = pneg %p70
    %p77 = scmp.eq.s32.totalorder %s11, 1
    %p78 = por %p76, %p77
    %p79 = scmp.ne.s32.totalorder %s71, %s74
    %p80 = scmp.eq.s32.totalorder %s11, 0
    %p81 = por %p79, %p80
    %p82 = scmp.ne.s32.totalorder %s71, %s74
    %p83 = scmp.eq.s32.totalorder %s16, 1
    %p84 = por %p82, %p83
    %p85 = scmp.ne.s32.totalorder %s74, %s75
    %p86 = scmp.eq.s32.totalorder %s16, 0
    %p87 = por %p85, %p86
    %p88 = scmp.ne.s32.totalorder %s74, %s75
    %p89 = scmp.eq.s32.totalorder %s17, 1
    %p90 = por %p88, %p89
    %p92 = scmp.ne.s32.totalorder %s75, %s91
    %p93 = scmp.eq.s32.totalorder %s17, 0
    %p94 = por %p92, %p93
    %s95 = smul.u32 %s19, 4
    %s96 = sadd.s32 %s95, 4
    %p97 = scmp.lt.s32.totalorder %s96, 3
    %s98 = scalar_select %p97, %s96, 3
    %s99 = smul.u32 %s26, 4
    %s100 = sadd.s32 %s99, 4
    %p101 = scmp.lt.s32.totalorder %s100, 3
    %s102 = scalar_select %p101, %s100, 3
    %s103 = ssub.s32 %s18, %s30
    %s104 = ssub.s32 %s98, %s102
    %s105 = sor.u32 %s103, %s104
    %p106 = scmp.eq.s32.totalorder %s105, 0
    %s108 = sadd.s32 %s107, 1
    %s109 = scalar_select %p106, %s107, %s108
    %p112 = pneg %p106
    %p113 = scmp.eq.s32.totalorder %s11, 1
    %p114 = por %p112, %p113
    %p115 = scmp.ne.s32.totalorder %s107, %s110
    %p116 = scmp.eq.s32.totalorder %s11, 0
    %p117 = por %p115, %p116
    %p118 = scmp.ne.s32.totalorder %s107, %s110
    %p119 = scmp.eq.s32.totalorder %s16, 1
    %p120 = por %p118, %p119
    %p121 = scmp.ne.s32.totalorder %s110, %s111
    %p122 = scmp.eq.s32.totalorder %s16, 0
    %p123 = por %p121, %p122
    %p124 = scmp.ne.s32.totalorder %s110, %s111
    %p125 = scmp.eq.s32.totalorder %s17, 1
    %p126 = por %p124, %p125
    %p128 = scmp.ne.s32.totalorder %s111, %s127
    %p129 = scmp.eq.s32.totalorder %s17, 0
    %p130 = por %p128, %p129
    %s132 = sadd.s32 %s131, 1
    %p135 = scmp.eq.s32.totalorder %s11, 1
    %p136 = scmp.ne.s32.totalorder %s131, %s133
    %p137 = scmp.eq.s32.totalorder %s11, 0
    %p138 = por %p136, %p137
    %p139 = scmp.ne.s32.totalorder %s131, %s133
    %p140 = scmp.eq.s32.totalorder %s16, 1
    %p141 = por %p139, %p140
    %p142 = scmp.ne.s32.totalorder %s133, %s134
    %p143 = scmp.eq.s32.totalorder %s16, 0
    %p144 = por %p142, %p143
    %p145 = scmp.ne.s32.totalorder %s133, %s134
    %p146 = scmp.eq.s32.totalorder %s17, 1
    %p147 = por %p145, %p146
    %p149 = scmp.ne.s32.totalorder %s134, %s148
    %p150 = scmp.eq.s32.totalorder %s17, 0
    %p151 = por %p149, %p150
    %s153 = sadd.s32 %s152, 1
    %p156 = scmp.eq.s32.totalorder %s11, 1
    %p157 = scmp.ne.s32.totalorder %s152, %s154
    %p158 = scmp.eq.s32.totalorder %s11, 0
    %p159 = por %p157, %p158
    %p160 = scmp.ne.s32.totalorder %s152, %s154
    %p161 = scmp.eq.s32.totalorder %s16, 1
    %p162 = por %p160, %p161
    %p163 = scmp.ne.s32.totalorder %s154, %s155
    %p164 = scmp.eq.s32.totalorder %s16, 0
    %p165 = por %p163, %p164
    %p166 = scmp.ne.s32.totalorder %s154, %s155
    %p167 = scmp.eq.s32.totalorder %s17, 1
    %p168 = por %p166, %p167
    %p170 = scmp.ne.s32.totalorder %s155, %s169
    %p171 = scmp.eq.s32.totalorder %s17, 0
    %p172 = por %p170, %p171
    %s173 = ssub.s32 %s18, %s30
    %s174 = ssub.s32 %s19, %s26
    %s175 = sor.u32 %s173, %s174
    %p176 = scmp.eq.s32.totalorder %s175, 0
    %s178 = sadd.s32 %s177, 1
    %s179 = scalar_select %p176, %s177, %s178
    %p182 = pneg %p176
    %p183 = scmp.eq.s32.totalorder %s11, 1
    %p184 = por %p182, %p183
    %p185 = scmp.ne.s32.totalorder %s177, %s180
    %p186 = scmp.eq.s32.totalorder %s11, 0
    %p187 = por %p185, %p186
    %p188 = scmp.ne.s32.totalorder %s177, %s180
    %p189 = scmp.eq.s32.totalorder %s16, 1
    %p190 = por %p188, %p189
    %p191 = scmp.ne.s32.totalorder %s180, %s181
    %p192 = scmp.eq.s32.totalorder %s16, 0
    %p193 = por %p191, %p192
    %p194 = scmp.ne.s32.totalorder %s180, %s181
    %p195 = scmp.eq.s32.totalorder %s17, 1
    %p196 = por %p194, %p195
    %p198 = scmp.ne.s32.totalorder %s181, %s197
    %p199 = scmp.eq.s32.totalorder %s17, 0
    %p200 = por %p198, %p199
    %p201 = scmp.le.s32.totalorder 1, %s11
    %p202 = scmp.lt.s32.totalorder %s11, 3
    %p203 = pnand %p201, %p202
    %p204 = pneg %p203
    // Predicated region
    $region9: #{feature_extractor.9} parent=5 // pred_check
      _
    $region10: #{feature_extractor.9} parent=5 // pred_check_branch
      %206 = sbr.rel (%p203) target = $region12
    $region11: #{feature_extractor.9} parent=5 // pred_region
      %s207 = ssub.s32 %s11, 1
      // Predicated region
      $region13: #{feature_extractor.9} parent=11 // pred_check
        %p208 = pneg %p144
      $region14: #{feature_extractor.9} parent=11 // pred_check_branch
        %210 = sbr.rel (%p208) target = $region16
      $region15: #{feature_extractor.9} parent=11 // pred_region
        _
      $region16: #{feature_extractor.9} parent=11 // pred_fallthru
        _
      // Predicated region
      $region17: #{feature_extractor.9} parent=11 // pred_check
        %p211 = pneg %p165
      $region18: #{feature_extractor.9} parent=11 // pred_check_branch
        %213 = sbr.rel (%p211) target = $region20
      $region19: #{feature_extractor.9} parent=11 // pred_region
        _
      $region20: #{feature_extractor.9} parent=11 // pred_fallthru
        _
    $region12: #{feature_extractor.9} parent=5 // pred_fallthru
      _
    %p214 = scmp.lt.s32.totalorder %s11, 2
    // Predicated region
    $region21: #{feature_extractor.9} parent=5 // pred_check
      %p215 = pneg %p214
    $region22: #{feature_extractor.9} parent=5 // pred_check_branch
      %217 = sbr.rel (%p215) target = $region24
    $region23: #{feature_extractor.9} parent=5 // pred_region
      // Predicated region
      $region25: #{feature_extractor.9} parent=23 // pred_check
        %p218 = pneg %p45
      $region26: #{feature_extractor.9} parent=23 // pred_check_branch
        %220 = sbr.rel (%p218) target = $region28
      $region27: #{feature_extractor.9} parent=23 // pred_region
        %s221 = smul.u32 4, %s19
        %p222 = scmp.lt.s32.totalorder %s18, 1
        %s223 = scalar_select %p222, %s18, 1
        %p224 = scmp.lt.s32.totalorder %s221, 3
        %s225 = scalar_select %p224, %s221, 3
        %s226 = smul.addr %s225, 2
        %s227 = smul.addr %s223, 8
        %s228 = sadd.s32 %s226, %s227
        %s229 = smul.addr %s228, 2
        %s230 = scalar_lea.vmem %s0, %s229
        %s231 = smul.u32 4, %s19
      $region28: #{feature_extractor.9} parent=23 // pred_fallthru
        _
      // Predicated region
      $region29: #{feature_extractor.9} parent=23 // pred_check
        %p232 = pneg %p81
      $region30: #{feature_extractor.9} parent=23 // pred_check_branch
        %234 = sbr.rel (%p232) target = $region32
      $region31: #{feature_extractor.9} parent=23 // pred_region
        %s235 = smul.u32 %s19, 4
        %s236 = ssub.s32 %s235, 1
        %p237 = scmp.gt.s32.totalorder %s236, 0
        %s238 = scalar_select %p237, %s236, 0
        %p239 = scmp.lt.s32.totalorder %s18, 1
        %s240 = scalar_select %p239, %s18, 1
        %p241 = scmp.lt.s32.totalorder %s238, 3
        %s242 = scalar_select %p241, %s238, 3
        %s243 = smul.addr %s242, 2
        %s244 = smul.addr %s240, 8
        %s245 = sadd.s32 %s243, %s244
        %s246 = smul.addr %s245, 2
        %s247 = scalar_lea.vmem %s1, %s246
        %s248 = smul.u32 %s19, 4
        %s249 = ssub.s32 %s248, 1
        %p250 = scmp.gt.s32.totalorder %s249, 0
        %s251 = scalar_select %p250, %s249, 0
      $region32: #{feature_extractor.9} parent=23 // pred_fallthru
        _
      // Predicated region
      $region33: #{feature_extractor.9} parent=23 // pred_check
        %p252 = pneg %p117
      $region34: #{feature_extractor.9} parent=23 // pred_check_branch
        %254 = sbr.rel (%p252) target = $region36
      $region35: #{feature_extractor.9} parent=23 // pred_region
        %s255 = smul.u32 %s19, 4
        %s256 = sadd.s32 %s255, 4
        %p257 = scmp.lt.s32.totalorder %s256, 3
        %s258 = scalar_select %p257, %s256, 3
        %p259 = scmp.lt.s32.totalorder %s18, 1
        %s260 = scalar_select %p259, %s18, 1
        %p261 = scmp.lt.s32.totalorder %s258, 3
        %s262 = scalar_select %p261, %s258, 3
        %s263 = smul.addr %s262, 2
        %s264 = smul.addr %s260, 8
        %s265 = sadd.s32 %s263, %s264
        %s266 = smul.addr %s265, 2
        %s267 = scalar_lea.vmem %s2, %s266
        %s268 = smul.u32 %s19, 4
        %s269 = sadd.s32 %s268, 4
        %p270 = scmp.lt.s32.totalorder %s269, 3
        %s271 = scalar_select %p270, %s269, 3
      $region36: #{feature_extractor.9} parent=23 // pred_fallthru
        _
    $region24: #{feature_extractor.9} parent=5 // pred_fallthru
      _
    %p272 = scmp.le.s32.totalorder 1, %s11
    %p273 = scmp.lt.s32.totalorder %s11, 3
    %p274 = pnand %p272, %p273
    %p275 = pneg %p274
    // Predicated region
    $region37: #{feature_extractor.9} parent=5 // pred_check
      _
    $region38: #{feature_extractor.9} parent=5 // pred_check_branch
      %277 = sbr.rel (%p274) target = $region40
    $region39: #{feature_extractor.9} parent=5 // pred_region
      %s278 = ssub.s32 %s11, 1
      %s279 = smul.u32 4, %s21
      %p280 = scmp.lt.s32.totalorder %s20, 1
      %s281 = scalar_select %p280, %s20, 1
      %p282 = scmp.lt.s32.totalorder %s279, 3
      %s283 = scalar_select %p282, %s279, 3
      %s284 = smul.addr %s283, 2
      %s285 = smul.addr %s281, 8
      %s286 = sadd.s32 %s284, %s285
      %s287 = smul.addr %s286, 2
      %s288 = scalar_lea.vmem %s0, %s287
      %p289 = pneg %p51
      %p290 = pneg %p48
      %s291 = smul.u32 %s21, 4
      %s292 = ssub.s32 %s291, 1
      %p293 = scmp.gt.s32.totalorder %s292, 0
      %s294 = scalar_select %p293, %s292, 0
      %p295 = scmp.lt.s32.totalorder %s20, 1
      %s296 = scalar_select %p295, %s20, 1
      %p297 = scmp.lt.s32.totalorder %s294, 3
      %s298 = scalar_select %p297, %s294, 3
      %s299 = smul.addr %s298, 2
      %s300 = smul.addr %s296, 8
      %s301 = sadd.s32 %s299, %s300
      %s302 = smul.addr %s301, 2
      %s303 = scalar_lea.vmem %s1, %s302
      %p304 = pneg %p87
      %p305 = pneg %p84
      %s306 = smul.u32 %s21, 4
      %s307 = sadd.s32 %s306, 4
      %p308 = scmp.lt.s32.totalorder %s307, 3
      %s309 = scalar_select %p308, %s307, 3
      %p310 = scmp.lt.s32.totalorder %s20, 1
      %s311 = scalar_select %p310, %s20, 1
      %p312 = scmp.lt.s32.totalorder %s309, 3
      %s313 = scalar_select %p312, %s309, 3
      %s314 = smul.addr %s313, 2
      %s315 = smul.addr %s311, 8
      %s316 = sadd.s32 %s314, %s315
      %s317 = smul.addr %s316, 2
      %s318 = scalar_lea.vmem %s2, %s317
      %p319 = pneg %p123
      %p320 = pneg %p120
      %p321 = pneg %p144
      %p322 = pneg %p141
      %p323 = pneg %p165
      %p324 = pneg %p162
      %p325 = pneg %p193
      %p326 = pneg %p190
      %s327 = smul.u32 4, %s21
      %p328 = scmp.lt.s32.totalorder %s20, 1
      %s329 = scalar_select %p328, %s20, 1
      %p330 = scmp.lt.s32.totalorder %s327, 3
      %s331 = scalar_select %p330, %s327, 3
      %s332 = smul.addr %s331, 2
      %s333 = smul.addr %s329, 8
      %s334 = sadd.s32 %s332, %s333
      %s335 = smul.addr %s334, 2
      %s336 = scalar_lea.vmem %s5, %s335
      %s337 = smul.u32 4, %s21
      %p338 = scmp.lt.s32.totalorder %s20, 1
      %s339 = scalar_select %p338, %s20, 1
      %p340 = scmp.lt.s32.totalorder %s337, 3
      %s341 = scalar_select %p340, %s337, 3
      %s342 = smul.addr %s341, 2
      %s343 = smul.addr %s339, 8
      %s344 = sadd.s32 %s342, %s343
      %s345 = smul.addr %s344, 2
      %s346 = scalar_lea.vmem %s0, %s345
      %s347 = smul.u32 4, %s21
      %s348 = smul.u32 %s21, 4
      %s349 = ssub.s32 %s348, 1
      %p350 = scmp.gt.s32.totalorder %s349, 0
      %s351 = scalar_select %p350, %s349, 0
      %p352 = scmp.lt.s32.totalorder %s20, 1
      %s353 = scalar_select %p352, %s20, 1
      %p354 = scmp.lt.s32.totalorder %s351, 3
      %s355 = scalar_select %p354, %s351, 3
      %s356 = smul.addr %s355, 2
      %s357 = smul.addr %s353, 8
      %s358 = sadd.s32 %s356, %s357
      %s359 = smul.addr %s358, 2
      %s360 = scalar_lea.vmem %s1, %s359
      %s361 = smul.u32 %s21, 4
      %s362 = ssub.s32 %s361, 1
      %p363 = scmp.gt.s32.totalorder %s362, 0
      %s364 = scalar_select %p363, %s362, 0
      %s365 = smul.u32 %s21, 4
      %s366 = sadd.s32 %s365, 4
      %p367 = scmp.lt.s32.totalorder %s366, 3
      %s368 = scalar_select %p367, %s366, 3
      %p369 = scmp.lt.s32.totalorder %s20, 1
      %s370 = scalar_select %p369, %s20, 1
      %p371 = scmp.lt.s32.totalorder %s368, 3
      %s372 = scalar_select %p371, %s368, 3
      %s373 = smul.addr %s372, 2
      %s374 = smul.addr %s370, 8
      %s375 = sadd.s32 %s373, %s374
      %s376 = smul.addr %s375, 2
      %s377 = scalar_lea.vmem %s2, %s376
      %s378 = smul.u32 %s21, 4
      %s379 = sadd.s32 %s378, 4
      %p380 = scmp.lt.s32.totalorder %s379, 3
      %s381 = scalar_select %p380, %s379, 3
      %s382 = smul.u32 4, %s21
      %p383 = scmp.lt.s32.totalorder %s20, 1
      %s384 = scalar_select %p383, %s20, 1
      %p385 = scmp.lt.s32.totalorder %s382, 3
      %s386 = scalar_select %p385, %s382, 3
      %s387 = smul.addr %s386, 2
      %s388 = smul.addr %s384, 8
      %s389 = sadd.s32 %s387, %s388
      %s390 = smul.addr %s389, 2
      %s391 = scalar_lea.vmem %s5, %s390
      %s392 = smul.u32 4, %s21
      %p395 = scmp.gt.s32.totalorder %s21, 0
      %v396 = vld [vmem:[%s360] sm:$0xf]
      %s397 = scalar_select %p395, 1, 0
      %v398 = vstv %s397
      %vm399 = vcmp.eq.s32.totalorder %v398, 1
      %v400 = vsel %vm399, 1, 0
      %v401 = vpack.c.b16 %v400, %v400
      %v402 = vunpack.c.l.b16 %v401
      %v403 = vunpack.c.h.b16 %v401
      %v404 = vunpack.c.l.b16 0
      %v405 = vunpack.c.h.b16 0
      %vm406 = vcmp.ne.s32.totalorder %v402, %v404
      %vm407 = vcmp.ne.s32.totalorder %v403, %v405
      %vm408 = vmpackc.low %vm407, %vm406
      %v409 = vsel %vm408, %v396, 0
      %p410 = scmp.lt.s32.totalorder %s21, 0
      %v411 = vld [vmem:[%s377] sm:$0xf]
      %s412 = scalar_select %p410, 1, 0
      %v413 = vstv %s412
      %vm414 = vcmp.eq.s32.totalorder %v413, 1
      %v415 = vsel %vm414, 1, 0
      %v416 = vpack.c.b16 %v415, %v415
      %v417 = vunpack.c.l.b16 %v416
      %v418 = vunpack.c.h.b16 %v416
      %v419 = vunpack.c.l.b16 0
      %v420 = vunpack.c.h.b16 0
      %vm421 = vcmp.ne.s32.totalorder %v417, %v419
      %vm422 = vcmp.ne.s32.totalorder %v418, %v420
      %vm423 = vmpackc.low %vm422, %vm421
      %v424 = vsel %vm423, %v411, 0
      %v425 = vld [vmem:[%s346] sm:$0xf]
      %v426 = vld [vmem:[%s346 + $0x4] sm:$0xf]
      %v427 = vld [vmem:[%s346 + $0x8] sm:$0xf]
      %v428 = vld [vmem:[%s346 + $0xc] sm:$0xf]
      %v429 = vld [vmem:[%s3] sm:$0xff]
      %v430 = vld [vmem:[%s3 + $0x8] sm:$0xff]
      %v431 = vld [vmem:[%s3 + $0x10] sm:$0xff]
      %v432 = vld [vmem:[%s3 + $0x18] sm:$0xff]
      %v433 = vld [vmem:[%s3 + $0x20] sm:$0xff]
      %v434 = vld [vmem:[%s3 + $0x28] sm:$0xff]
      %v435 = vld [vmem:[%s3 + $0x30] sm:$0xff]
      %v436 = vld [vmem:[%s3 + $0x38] sm:$0xff]
      %v437 = vld [vmem:[%s3 + $0x40] sm:$0xff]
      %v438 = vld [vmem:[%s3 + $0x48] sm:$0xff]
      %v439 = vld [vmem:[%s3 + $0x50] sm:$0xff]
      %v440 = vld [vmem:[%s3 + $0x58] sm:$0xff]
      %v441 = vld [vmem:[%s3 + $0x60] sm:$0xff]
      %v442 = vld [vmem:[%s3 + $0x68] sm:$0xff]
      %v443 = vld [vmem:[%s3 + $0x70] sm:$0xff]
      %v444 = vld [vmem:[%s3 + $0x78] sm:$0xff]
      %v445 = vld [vmem:[%s3 + $0x80] sm:$0xff]
      %v446 = vld [vmem:[%s3 + $0x88] sm:$0xff]
      %v447 = vld [vmem:[%s3 + $0x90] sm:$0xff]
      %v448 = vld [vmem:[%s3 + $0x98] sm:$0xff]
      %v449 = vld [vmem:[%s3 + $0xa0] sm:$0xff]
      %v450 = vld [vmem:[%s3 + $0xa8] sm:$0xff]
      %v451 = vld [vmem:[%s3 + $0xb0] sm:$0xff]
      %v452 = vld [vmem:[%s3 + $0xb8] sm:$0xff]
      %v453 = vld [vmem:[%s3 + $0xc0] sm:$0xff]
      %v454 = vld [vmem:[%s3 + $0xc8] sm:$0xff]
      %v455 = vld [vmem:[%s3 + $0xd0] sm:$0xff]
      %v456 = vld [vmem:[%s3 + $0xd8] sm:$0xff]
      %v457 = vld [vmem:[%s3 + $0xe0] sm:$0xff]
      %v458 = vld [vmem:[%s3 + $0xe8] sm:$0xff]
      %v459 = vld [vmem:[%s3 + $0xf0] sm:$0xff]
      %v460 = vld [vmem:[%s3 + $0xf8] sm:$0xff]
      %v461 = vld [vmem:[%s3 + $0x100] sm:$0xff]
      %v462 = vld [vmem:[%s3 + $0x108] sm:$0xff]
      %v463 = vld [vmem:[%s3 + $0x110] sm:$0xff]
      %v464 = vld [vmem:[%s3 + $0x118] sm:$0xff]
      %v465 = vld [vmem:[%s3 + $0x120] sm:$0xff]
      %v466 = vld [vmem:[%s3 + $0x128] sm:$0xff]
      %v467 = vld [vmem:[%s3 + $0x130] sm:$0xff]
      %v468 = vld [vmem:[%s3 + $0x138] sm:$0xff]
      %v469 = vld [vmem:[%s3 + $0x140] sm:$0xff]
      %v470 = vld [vmem:[%s3 + $0x148] sm:$0xff]
      %v471 = vld [vmem:[%s3 + $0x150] sm:$0xff]
      %v472 = vld [vmem:[%s3 + $0x158] sm:$0xff]
      %v473 = vld [vmem:[%s3 + $0x160] sm:$0xff]
      %v474 = vld [vmem:[%s3 + $0x168] sm:$0xff]
      %v475 = vld [vmem:[%s3 + $0x170] sm:$0xff]
      %v476 = vld [vmem:[%s3 + $0x178] sm:$0xff]
      %v477 = vld [vmem:[%s3 + $0x180] sm:$0xff]
      %v478 = vld [vmem:[%s3 + $0x188] sm:$0xff]
      %v479 = vld [vmem:[%s3 + $0x190] sm:$0xff]
      %v480 = vld [vmem:[%s3 + $0x198] sm:$0xff]
      %v481 = vld [vmem:[%s3 + $0x1a0] sm:$0xff]
      %v482 = vld [vmem:[%s3 + $0x1a8] sm:$0xff]
      %v483 = vld [vmem:[%s3 + $0x1b0] sm:$0xff]
      %v484 = vld [vmem:[%s3 + $0x1b8] sm:$0xff]
      %v485 = vld [vmem:[%s3 + $0x1c0] sm:$0xff]
      %v486 = vld [vmem:[%s3 + $0x1c8] sm:$0xff]
      %v487 = vld [vmem:[%s3 + $0x1d0] sm:$0xff]
      %v488 = vld [vmem:[%s3 + $0x1d8] sm:$0xff]
      %v489 = vld [vmem:[%s3 + $0x1e0] sm:$0xff]
      %v490 = vld [vmem:[%s3 + $0x1e8] sm:$0xff]
      %v491 = vld [vmem:[%s3 + $0x1f0] sm:$0xff]
      %v492 = vld [vmem:[%s3 + $0x1f8] sm:$0xff]
      %v493 = vld [vmem:[%s3 + $0x200] sm:$0xff]
      %v494 = vld [vmem:[%s3 + $0x208] sm:$0xff]
      %v495 = vld [vmem:[%s3 + $0x210] sm:$0xff]
      %v496 = vld [vmem:[%s3 + $0x218] sm:$0xff]
      %v497 = vld [vmem:[%s3 + $0x220] sm:$0xff]
      %v498 = vld [vmem:[%s3 + $0x228] sm:$0xff]
      %v499 = vld [vmem:[%s3 + $0x230] sm:$0xff]
      %v500 = vld [vmem:[%s3 + $0x238] sm:$0xff]
      %v501 = vld [vmem:[%s3 + $0x240] sm:$0xff]
      %v502 = vld [vmem:[%s3 + $0x248] sm:$0xff]
      %v503 = vld [vmem:[%s3 + $0x250] sm:$0xff]
      %v504 = vld [vmem:[%s3 + $0x258] sm:$0xff]
      %v505 = vld [vmem:[%s3 + $0x260] sm:$0xff]
      %v506 = vld [vmem:[%s3 + $0x268] sm:$0xff]
      %v507 = vld [vmem:[%s3 + $0x270] sm:$0xff]
      %v508 = vld [vmem:[%s3 + $0x278] sm:$0xff]
      %v509 = vld [vmem:[%s3 + $0x280] sm:$0xff]
      %v510 = vld [vmem:[%s3 + $0x288] sm:$0xff]
      %v511 = vld [vmem:[%s3 + $0x290] sm:$0xff]
      %v512 = vld [vmem:[%s3 + $0x298] sm:$0xff]
      %v513 = vld [vmem:[%s3 + $0x2a0] sm:$0xff]
      %v514 = vld [vmem:[%s3 + $0x2a8] sm:$0xff]
      %v515 = vld [vmem:[%s3 + $0x2b0] sm:$0xff]
      %v516 = vld [vmem:[%s3 + $0x2b8] sm:$0xff]
      %v517 = vld [vmem:[%s3 + $0x2c0] sm:$0xff]
      %v518 = vld [vmem:[%s3 + $0x2c8] sm:$0xff]
      %v519 = vld [vmem:[%s3 + $0x2d0] sm:$0xff]
      %v520 = vld [vmem:[%s3 + $0x2d8] sm:$0xff]
      %v521 = vld [vmem:[%s3 + $0x2e0] sm:$0xff]
      %v522 = vld [vmem:[%s3 + $0x2e8] sm:$0xff]
      %v523 = vld [vmem:[%s3 + $0x2f0] sm:$0xff]
      %v524 = vld [vmem:[%s3 + $0x2f8] sm:$0xff]
      %v525 = vld [vmem:[%s3 + $0x300] sm:$0xff]
      %v526 = vld [vmem:[%s3 + $0x308] sm:$0xff]
      %v527 = vld [vmem:[%s3 + $0x310] sm:$0xff]
      %v528 = vld [vmem:[%s3 + $0x318] sm:$0xff]
      %v529 = vld [vmem:[%s3 + $0x320] sm:$0xff]
      %v530 = vld [vmem:[%s3 + $0x328] sm:$0xff]
      %v531 = vld [vmem:[%s3 + $0x330] sm:$0xff]
      %v532 = vld [vmem:[%s3 + $0x338] sm:$0xff]
      %v533 = vld [vmem:[%s3 + $0x340] sm:$0xff]
      %v534 = vld [vmem:[%s3 + $0x348] sm:$0xff]
      %v535 = vld [vmem:[%s3 + $0x350] sm:$0xff]
      %v536 = vld [vmem:[%s3 + $0x358] sm:$0xff]
      %v537 = vld [vmem:[%s3 + $0x360] sm:$0xff]
      %v538 = vld [vmem:[%s3 + $0x368] sm:$0xff]
      %v539 = vld [vmem:[%s3 + $0x370] sm:$0xff]
      %v540 = vld [vmem:[%s3 + $0x378] sm:$0xff]
      %v541 = vld [vmem:[%s3 + $0x380] sm:$0xff]
      %v542 = vld [vmem:[%s3 + $0x388] sm:$0xff]
      %v543 = vld [vmem:[%s3 + $0x390] sm:$0xff]
      %v544 = vld [vmem:[%s3 + $0x398] sm:$0xff]
      %v545 = vld [vmem:[%s3 + $0x3a0] sm:$0xff]
      %v546 = vld [vmem:[%s3 + $0x3a8] sm:$0xff]
      %v547 = vld [vmem:[%s3 + $0x3b0] sm:$0xff]
      %v548 = vld [vmem:[%s3 + $0x3b8] sm:$0xff]
      %v549 = vld [vmem:[%s3 + $0x3c0] sm:$0xff]
      %v550 = vld [vmem:[%s3 + $0x3c8] sm:$0xff]
      %v551 = vld [vmem:[%s3 + $0x3d0] sm:$0xff]
      %v552 = vld [vmem:[%s3 + $0x3d8] sm:$0xff]
      %v553 = vld [vmem:[%s3 + $0x3e0] sm:$0xff]
      %v554 = vld [vmem:[%s3 + $0x3e8] sm:$0xff]
      %v555 = vld [vmem:[%s3 + $0x3f0] sm:$0xff]
      %v556 = vld [vmem:[%s3 + $0x3f8] sm:$0xff]
      %v557 = vld [vmem:[%s3 + $0x400] sm:$0xff]
      %v558 = vld [vmem:[%s3 + $0x408] sm:$0xff]
      %v559 = vld [vmem:[%s3 + $0x410] sm:$0xff]
      %v560 = vld [vmem:[%s3 + $0x418] sm:$0xff]
      %v561 = vld [vmem:[%s3 + $0x420] sm:$0xff]
      %v562 = vld [vmem:[%s3 + $0x428] sm:$0xff]
      %v563 = vld [vmem:[%s3 + $0x430] sm:$0xff]
      %v564 = vld [vmem:[%s3 + $0x438] sm:$0xff]
      %v565 = vld [vmem:[%s3 + $0x440] sm:$0xff]
      %v566 = vld [vmem:[%s3 + $0x448] sm:$0xff]
      %v567 = vld [vmem:[%s3 + $0x450] sm:$0xff]
      %v568 = vld [vmem:[%s3 + $0x458] sm:$0xff]
      %v569 = vld [vmem:[%s3 + $0x460] sm:$0xff]
      %v570 = vld [vmem:[%s3 + $0x468] sm:$0xff]
      %v571 = vld [vmem:[%s3 + $0x470] sm:$0xff]
      %v572 = vld [vmem:[%s3 + $0x478] sm:$0xff]
      %v573 = vld [vmem:[%s3 + $0x480] sm:$0xff]
      %v574 = vld [vmem:[%s3 + $0x488] sm:$0xff]
      %v575 = vld [vmem:[%s3 + $0x490] sm:$0xff]
      %v576 = vld [vmem:[%s3 + $0x498] sm:$0xff]
      %v577 = vld [vmem:[%s3 + $0x4a0] sm:$0xff]
      %v578 = vld [vmem:[%s3 + $0x4a8] sm:$0xff]
      %v579 = vld [vmem:[%s3 + $0x4b0] sm:$0xff]
      %v580 = vld [vmem:[%s3 + $0x4b8] sm:$0xff]
      %v581 = vld [vmem:[%s3 + $0x4c0] sm:$0xff]
      %v582 = vld [vmem:[%s3 + $0x4c8] sm:$0xff]
      %v583 = vld [vmem:[%s3 + $0x4d0] sm:$0xff]
      %v584 = vld [vmem:[%s3 + $0x4d8] sm:$0xff]
      %v585 = vld [vmem:[%s3 + $0x4e0] sm:$0xff]
      %v586 = vld [vmem:[%s3 + $0x4e8] sm:$0xff]
      %v587 = vld [vmem:[%s3 + $0x4f0] sm:$0xff]
      %v588 = vld [vmem:[%s3 + $0x4f8] sm:$0xff]
      %v589 = vld [vmem:[%s3 + $0x500] sm:$0xff]
      %v590 = vld [vmem:[%s3 + $0x508] sm:$0xff]
      %v591 = vld [vmem:[%s3 + $0x510] sm:$0xff]
      %v592 = vld [vmem:[%s3 + $0x518] sm:$0xff]
      %v593 = vld [vmem:[%s3 + $0x520] sm:$0xff]
      %v594 = vld [vmem:[%s3 + $0x528] sm:$0xff]
      %v595 = vld [vmem:[%s3 + $0x530] sm:$0xff]
      %v596 = vld [vmem:[%s3 + $0x538] sm:$0xff]
      %v597 = vld [vmem:[%s3 + $0x540] sm:$0xff]
      %v598 = vld [vmem:[%s3 + $0x548] sm:$0xff]
      %v599 = vld [vmem:[%s3 + $0x550] sm:$0xff]
      %v600 = vld [vmem:[%s3 + $0x558] sm:$0xff]
      %v601 = vld [vmem:[%s3 + $0x560] sm:$0xff]
      %v602 = vld [vmem:[%s3 + $0x568] sm:$0xff]
      %v603 = vld [vmem:[%s3 + $0x570] sm:$0xff]
      %v604 = vld [vmem:[%s3 + $0x578] sm:$0xff]
      %v605 = vld [vmem:[%s3 + $0x580] sm:$0xff]
      %v606 = vld [vmem:[%s3 + $0x588] sm:$0xff]
      %v607 = vld [vmem:[%s3 + $0x590] sm:$0xff]
      %v608 = vld [vmem:[%s3 + $0x598] sm:$0xff]
      %v609 = vld [vmem:[%s3 + $0x5a0] sm:$0xff]
      %v610 = vld [vmem:[%s3 + $0x5a8] sm:$0xff]
      %v611 = vld [vmem:[%s3 + $0x5b0] sm:$0xff]
      %v612 = vld [vmem:[%s3 + $0x5b8] sm:$0xff]
      %v613 = vld [vmem:[%s3 + $0x5c0] sm:$0xff]
      %v614 = vld [vmem:[%s3 + $0x5c8] sm:$0xff]
      %v615 = vld [vmem:[%s3 + $0x5d0] sm:$0xff]
      %v616 = vld [vmem:[%s3 + $0x5d8] sm:$0xff]
      %v617 = vld [vmem:[%s3 + $0x5e0] sm:$0xff]
      %v618 = vld [vmem:[%s3 + $0x5e8] sm:$0xff]
      %v619 = vld [vmem:[%s3 + $0x5f0] sm:$0xff]
      %v620 = vld [vmem:[%s3 + $0x5f8] sm:$0xff]
      %v621 = vld [vmem:[%s3 + $0x600] sm:$0xff]
      %v622 = vld [vmem:[%s3 + $0x608] sm:$0xff]
      %v623 = vld [vmem:[%s3 + $0x610] sm:$0xff]
      %v624 = vld [vmem:[%s3 + $0x618] sm:$0xff]
      %v625 = vld [vmem:[%s3 + $0x620] sm:$0xff]
      %v626 = vld [vmem:[%s3 + $0x628] sm:$0xff]
      %v627 = vld [vmem:[%s3 + $0x630] sm:$0xff]
      %v628 = vld [vmem:[%s3 + $0x638] sm:$0xff]
      %v629 = vld [vmem:[%s3 + $0x640] sm:$0xff]
      %v630 = vld [vmem:[%s3 + $0x648] sm:$0xff]
      %v631 = vld [vmem:[%s3 + $0x650] sm:$0xff]
      %v632 = vld [vmem:[%s3 + $0x658] sm:$0xff]
      %v633 = vld [vmem:[%s3 + $0x660] sm:$0xff]
      %v634 = vld [vmem:[%s3 + $0x668] sm:$0xff]
      %v635 = vld [vmem:[%s3 + $0x670] sm:$0xff]
      %v636 = vld [vmem:[%s3 + $0x678] sm:$0xff]
      %v637 = vld [vmem:[%s3 + $0x680] sm:$0xff]
      %v638 = vld [vmem:[%s3 + $0x688] sm:$0xff]
      %v639 = vld [vmem:[%s3 + $0x690] sm:$0xff]
      %v640 = vld [vmem:[%s3 + $0x698] sm:$0xff]
      %v641 = vld [vmem:[%s3 + $0x6a0] sm:$0xff]
      %v642 = vld [vmem:[%s3 + $0x6a8] sm:$0xff]
      %v643 = vld [vmem:[%s3 + $0x6b0] sm:$0xff]
      %v644 = vld [vmem:[%s3 + $0x6b8] sm:$0xff]
      %v645 = vld [vmem:[%s3 + $0x6c0] sm:$0xff]
      %v646 = vld [vmem:[%s3 + $0x6c8] sm:$0xff]
      %v647 = vld [vmem:[%s3 + $0x6d0] sm:$0xff]
      %v648 = vld [vmem:[%s3 + $0x6d8] sm:$0xff]
      %v649 = vld [vmem:[%s3 + $0x6e0] sm:$0xff]
      %v650 = vld [vmem:[%s3 + $0x6e8] sm:$0xff]
      %v651 = vld [vmem:[%s3 + $0x6f0] sm:$0xff]
      %v652 = vld [vmem:[%s3 + $0x6f8] sm:$0xff]
      %v653 = vld [vmem:[%s3 + $0x700] sm:$0xff]
      %v654 = vld [vmem:[%s3 + $0x708] sm:$0xff]
      %v655 = vld [vmem:[%s3 + $0x710] sm:$0xff]
      %v656 = vld [vmem:[%s3 + $0x718] sm:$0xff]
      %v657 = vld [vmem:[%s3 + $0x720] sm:$0xff]
      %v658 = vld [vmem:[%s3 + $0x728] sm:$0xff]
      %v659 = vld [vmem:[%s3 + $0x730] sm:$0xff]
      %v660 = vld [vmem:[%s3 + $0x738] sm:$0xff]
      %v661 = vld [vmem:[%s3 + $0x740] sm:$0xff]
      %v662 = vld [vmem:[%s3 + $0x748] sm:$0xff]
      %v663 = vld [vmem:[%s3 + $0x750] sm:$0xff]
      %v664 = vld [vmem:[%s3 + $0x758] sm:$0xff]
      %v665 = vld [vmem:[%s3 + $0x760] sm:$0xff]
      %v666 = vld [vmem:[%s3 + $0x768] sm:$0xff]
      %v667 = vld [vmem:[%s3 + $0x770] sm:$0xff]
      %v668 = vld [vmem:[%s3 + $0x778] sm:$0xff]
      %v669 = vld [vmem:[%s3 + $0x780] sm:$0xff]
      %v670 = vld [vmem:[%s3 + $0x788] sm:$0xff]
      %v671 = vld [vmem:[%s3 + $0x790] sm:$0xff]
      %v672 = vld [vmem:[%s3 + $0x798] sm:$0xff]
      %v673 = vld [vmem:[%s3 + $0x7a0] sm:$0xff]
      %v674 = vld [vmem:[%s3 + $0x7a8] sm:$0xff]
      %v675 = vld [vmem:[%s3 + $0x7b0] sm:$0xff]
      %v676 = vld [vmem:[%s3 + $0x7b8] sm:$0xff]
      %v677 = vld [vmem:[%s3 + $0x7c0] sm:$0xff]
      %v678 = vld [vmem:[%s3 + $0x7c8] sm:$0xff]
      %v679 = vld [vmem:[%s3 + $0x7d0] sm:$0xff]
      %v680 = vld [vmem:[%s3 + $0x7d8] sm:$0xff]
      %v681 = vld [vmem:[%s3 + $0x7e0] sm:$0xff]
      %v682 = vld [vmem:[%s3 + $0x7e8] sm:$0xff]
      %v683 = vld [vmem:[%s3 + $0x7f0] sm:$0xff]
      %v684 = vld [vmem:[%s3 + $0x7f8] sm:$0xff]
      %v685 = vld [vmem:[%s3 + $0x800] sm:$0xff]
      %v686 = vld [vmem:[%s3 + $0x808] sm:$0xff]
      %v687 = vld [vmem:[%s3 + $0x810] sm:$0xff]
      %v688 = vld [vmem:[%s3 + $0x818] sm:$0xff]
      %v689 = vld [vmem:[%s3 + $0x820] sm:$0xff]
      %v690 = vld [vmem:[%s3 + $0x828] sm:$0xff]
      %v691 = vld [vmem:[%s3 + $0x830] sm:$0xff]
      %v692 = vld [vmem:[%s3 + $0x838] sm:$0xff]
      %v693 = vld [vmem:[%s3 + $0x840] sm:$0xff]
      %v694 = vld [vmem:[%s3 + $0x848] sm:$0xff]
      %v695 = vld [vmem:[%s3 + $0x850] sm:$0xff]
      %v696 = vld [vmem:[%s3 + $0x858] sm:$0xff]
      %v697 = vld [vmem:[%s3 + $0x860] sm:$0xff]
      %v698 = vld [vmem:[%s3 + $0x868] sm:$0xff]
      %v699 = vld [vmem:[%s3 + $0x870] sm:$0xff]
      %v700 = vld [vmem:[%s3 + $0x878] sm:$0xff]
      %v701 = vld [vmem:[%s3 + $0x880] sm:$0xff]
      %v702 = vld [vmem:[%s3 + $0x888] sm:$0xff]
      %v703 = vld [vmem:[%s3 + $0x890] sm:$0xff]
      %v704 = vld [vmem:[%s3 + $0x898] sm:$0xff]
      %v705 = vld [vmem:[%s3 + $0x8a0] sm:$0xff]
      %v706 = vld [vmem:[%s3 + $0x8a8] sm:$0xff]
      %v707 = vld [vmem:[%s3 + $0x8b0] sm:$0xff]
      %v708 = vld [vmem:[%s3 + $0x8b8] sm:$0xff]
      %v709 = vld [vmem:[%s3 + $0x8c0] sm:$0xff]
      %v710 = vld [vmem:[%s3 + $0x8c8] sm:$0xff]
      %v711 = vld [vmem:[%s3 + $0x8d0] sm:$0xff]
      %v712 = vld [vmem:[%s3 + $0x8d8] sm:$0xff]
      %v713 = vld [vmem:[%s3 + $0x8e0] sm:$0xff]
      %v714 = vld [vmem:[%s3 + $0x8e8] sm:$0xff]
      %v715 = vld [vmem:[%s3 + $0x8f0] sm:$0xff]
      %v716 = vld [vmem:[%s3 + $0x8f8] sm:$0xff]
      %v717 = vld [vmem:[%s4] sm:$0x3]
      %719 = vst [vmem:[#allocation1] ss:$4 sm:$0xff] %v409
      %v720 = vld.sshfl [vmem:[#allocation1] sm:$0xff pattern:$0x73625140]
      %v721 = vld.sshfl [vmem:[#allocation1 + $0x8] sm:$0xff pattern:$0x73625140]
      %s723 = scalar_lea.vmem [#allocation1], 32
      %724 = vst [vmem:[%s723] ss:$4 sm:$0xff] %v425
      %v725 = vld.sshfl [vmem:[#allocation1 + $0x20] sm:$0xff pattern:$0x73625140]
      %v726 = vld.sshfl [vmem:[#allocation1 + $0x28] sm:$0xff pattern:$0x73625140]
      %728 = vst [vmem:[#allocation1] ss:$4 sm:$0xff] %v426
      %v729 = vld.sshfl [vmem:[#allocation1] sm:$0xff pattern:$0x73625140]
      %v730 = vld.sshfl [vmem:[#allocation1 + $0x8] sm:$0xff pattern:$0x73625140]
      %732 = vst [vmem:[%s723] ss:$4 sm:$0xff] %v427
      %v733 = vld.sshfl [vmem:[#allocation1 + $0x20] sm:$0xff pattern:$0x73625140]
      %v734 = vld.sshfl [vmem:[#allocation1 + $0x28] sm:$0xff pattern:$0x73625140]
      %736 = vst [vmem:[#allocation1] ss:$4 sm:$0xff] %v428
      %v737 = vld.sshfl [vmem:[#allocation1] sm:$0xff pattern:$0x73625140]
      %v738 = vld.sshfl [vmem:[#allocation1 + $0x8] sm:$0xff pattern:$0x73625140]
      %740 = vst [vmem:[%s723] ss:$4 sm:$0xff] %v424
      %v741 = vld.sshfl [vmem:[#allocation1 + $0x20] sm:$0xff pattern:$0x73625140]
      %v742 = vld.sshfl [vmem:[#allocation1 + $0x28] sm:$0xff pattern:$0x73625140]
      %v743 = vshrl.u32 %v720, 16
      %v745 = vrot.slane %v743, 7
      %v746 = vshll.u32 %v720, 16
      %v748 = vor.u32 %v745, %v746
      %v749 = vshrl.u32 %v721, 16
      %v751 = vrot.slane %v749, 7
      %v752 = vshll.u32 %v721, 16
      %v754 = vor.u32 %v751, %v752
      %v755 = vshrl.u32 %v725, 16
      %v757 = vrot.slane %v755, 7
      %v758 = vshll.u32 %v725, 16
      %v760 = vor.u32 %v757, %v758
      %v761 = vshrl.u32 %v726, 16
      %v763 = vrot.slane %v761, 7
      %v764 = vshll.u32 %v726, 16
      %v766 = vor.u32 %v763, %v764
      %v767 = vshrl.u32 %v729, 16
      %v769 = vrot.slane %v767, 7
      %v770 = vshll.u32 %v729, 16
      %v772 = vor.u32 %v769, %v770
      %v773 = vshrl.u32 %v730, 16
      %v775 = vrot.slane %v773, 7
      %v776 = vshll.u32 %v730, 16
      %v778 = vor.u32 %v775, %v776
      %v779 = vshrl.u32 %v733, 16
      %v781 = vrot.slane %v779, 7
      %v782 = vshll.u32 %v733, 16
      %v784 = vor.u32 %v781, %v782
      %v785 = vshrl.u32 %v734, 16
      %v787 = vrot.slane %v785, 7
      %v788 = vshll.u32 %v734, 16
      %v790 = vor.u32 %v787, %v788
      %v791 = vshrl.u32 %v737, 16
      %v793 = vrot.slane %v791, 7
      %v794 = vshll.u32 %v737, 16
      %v796 = vor.u32 %v793, %v794
      %v797 = vshrl.u32 %v738, 16
      %v799 = vrot.slane %v797, 7
      %v800 = vshll.u32 %v738, 16
      %v802 = vor.u32 %v799, %v800
      %v803 = vshrl.u32 %v741, 16
      %v805 = vrot.slane %v803, 7
      %v806 = vshll.u32 %v741, 16
      %v808 = vor.u32 %v805, %v806
      %v809 = vshrl.u32 %v742, 16
      %v811 = vrot.slane %v809, 7
      %v812 = vshll.u32 %v742, 16
      %v814 = vor.u32 %v811, %v812
      %vm827 = vcmask 1040384
      %vm828 = vsmask.f32 256
      %vm829 = vmand %vm827, %vm828
      %v830 = vsel %vm829, 0, %v748
      %v831 = vsel %vm829, 0, %v754
      %v832 = vsel %vm829, 0, %v760
      %v833 = vsel %vm829, 0, %v766
      %v834 = vsel %vm829, 0, %v772
      %v835 = vsel %vm829, 0, %v778
      %v836 = vsel %vm829, 0, %v784
      %v837 = vsel %vm829, 0, %v790
      %v838 = vsel %vm829, 0, %v796
      %v839 = vsel %vm829, 0, %v802
      %v840 = vsel %vm829, 0, %v808
      %v841 = vsel %vm829, 0, %v814
      %842 = vst [vmem:[#allocation1] ss:$4 sm:$0xff] %v409
      %v843 = vld.sshfl [vmem:[#allocation1] sm:$0xff pattern:$0x73625140]
      %v844 = vld.sshfl [vmem:[#allocation1 + $0x8] sm:$0xff pattern:$0x73625140]
      %s845 = scalar_lea.vmem [#allocation1], 32
      %846 = vst [vmem:[%s845] ss:$4 sm:$0xff] %v425
      %v847 = vld.sshfl [vmem:[#allocation1 + $0x20] sm:$0xff pattern:$0x73625140]
      %v848 = vld.sshfl [vmem:[#allocation1 + $0x28] sm:$0xff pattern:$0x73625140]
      %849 = vst [vmem:[#allocation1] ss:$4 sm:$0xff] %v426
      %v850 = vld.sshfl [vmem:[#allocation1] sm:$0xff pattern:$0x73625140]
      %v851 = vld.sshfl [vmem:[#allocation1 + $0x8] sm:$0xff pattern:$0x73625140]
      %852 = vst [vmem:[%s845] ss:$4 sm:$0xff] %v427
      %v853 = vld.sshfl [vmem:[#allocation1 + $0x20] sm:$0xff pattern:$0x73625140]
      %v854 = vld.sshfl [vmem:[#allocation1 + $0x28] sm:$0xff pattern:$0x73625140]
      %855 = vst [vmem:[#allocation1] ss:$4 sm:$0xff] %v428
      %v856 = vld.sshfl [vmem:[#allocation1] sm:$0xff pattern:$0x73625140]
      %v857 = vld.sshfl [vmem:[#allocation1 + $0x8] sm:$0xff pattern:$0x73625140]
      %858 = vst [vmem:[%s845] ss:$4 sm:$0xff] %v424
      %v859 = vld.sshfl [vmem:[#allocation1 + $0x20] sm:$0xff pattern:$0x73625140]
      %v860 = vld.sshfl [vmem:[#allocation1 + $0x28] sm:$0xff pattern:$0x73625140]
      %v861 = vshrl.u32 %v843, 16
      %v863 = vshll.u32 %v843, 16
      %v865 = vrot.slane %v863, 1
      %v866 = vor.u32 %v861, %v865
      %v867 = vshrl.u32 %v844, 16
      %v869 = vshll.u32 %v844, 16
      %v871 = vrot.slane %v869, 1
      %v872 = vor.u32 %v867, %v871
      %v873 = vshrl.u32 %v847, 16
      %v875 = vshll.u32 %v847, 16
      %v877 = vrot.slane %v875, 1
      %v878 = vor.u32 %v873, %v877
      %v879 = vshrl.u32 %v848, 16
      %v881 = vshll.u32 %v848, 16
      %v883 = vrot.slane %v881, 1
      %v884 = vor.u32 %v879, %v883
      %v885 = vshrl.u32 %v850, 16
      %v887 = vshll.u32 %v850, 16
      %v889 = vrot.slane %v887, 1
      %v890 = vor.u32 %v885, %v889
      %v891 = vshrl.u32 %v851, 16
      %v893 = vshll.u32 %v851, 16
      %v895 = vrot.slane %v893, 1
      %v896 = vor.u32 %v891, %v895
      %v897 = vshrl.u32 %v853, 16
      %v899 = vshll.u32 %v853, 16
      %v901 = vrot.slane %v899, 1
      %v902 = vor.u32 %v897, %v901
      %v903 = vshrl.u32 %v854, 16
      %v905 = vshll.u32 %v854, 16
      %v907 = vrot.slane %v905, 1
      %v908 = vor.u32 %v903, %v907
      %v909 = vshrl.u32 %v856, 16
      %v911 = vshll.u32 %v856, 16
      %v913 = vrot.slane %v911, 1
      %v914 = vor.u32 %v909, %v913
      %v915 = vshrl.u32 %v857, 16
      %v917 = vshll.u32 %v857, 16
      %v919 = vrot.slane %v917, 1
      %v920 = vor.u32 %v915, %v919
      %v921 = vshrl.u32 %v859, 16
      %v923 = vshll.u32 %v859, 16
      %v925 = vrot.slane %v923, 1
      %v926 = vor.u32 %v921, %v925
      %v927 = vshrl.u32 %v860, 16
      %v929 = vshll.u32 %v860, 16
      %v931 = vrot.slane %v929, 1
      %v932 = vor.u32 %v927, %v931
      %vm945 = vcmask 1041408
      %vm946 = vsmask.f32 1280
      %vm947 = vmand %vm945, %vm946
      %v948 = vsel %vm947, %v866, 0
      %v949 = vsel %vm947, %v872, 0
      %v950 = vsel %vm947, %v878, 0
      %v951 = vsel %vm947, %v884, 0
      %v952 = vsel %vm947, %v890, 0
      %v953 = vsel %vm947, %v896, 0
      %v954 = vsel %vm947, %v902, 0
      %v955 = vsel %vm947, %v908, 0
      %v956 = vsel %vm947, %v914, 0
      %v957 = vsel %vm947, %v920, 0
      %v958 = vsel %vm947, %v926, 0
      %v959 = vsel %vm947, %v932, 0
      %960 = vst [vmem:[#allocation1] ss:$4 sm:$0xff] %v409
      %v961 = vld.sshfl [vmem:[#allocation1] sm:$0xff pattern:$0x73625140]
      %v963 = vld.sshfl [vmem:[#allocation1 + $0x8] sm:$0xff pattern:$0x73625140]
      %s965 = scalar_lea.vmem [#allocation1], 32
      %966 = vst [vmem:[%s965] ss:$4 sm:$0xff] %v425
      %v967 = vld.sshfl [vmem:[#allocation1 + $0x20] sm:$0xff pattern:$0x73625140]
      %v969 = vld.sshfl [vmem:[#allocation1 + $0x28] sm:$0xff pattern:$0x73625140]
      %971 = vst [vmem:[#allocation1] ss:$4 sm:$0xff] %v426
      %v972 = vld.sshfl [vmem:[#allocation1] sm:$0xff pattern:$0x73625140]
      %v974 = vld.sshfl [vmem:[#allocation1 + $0x8] sm:$0xff pattern:$0x73625140]
      %976 = vst [vmem:[%s965] ss:$4 sm:$0xff] %v427
      %v977 = vld.sshfl [vmem:[#allocation1 + $0x20] sm:$0xff pattern:$0x73625140]
      %v979 = vld.sshfl [vmem:[#allocation1 + $0x28] sm:$0xff pattern:$0x73625140]
      %981 = vst [vmem:[#allocation1] ss:$4 sm:$0xff] %v428
      %v982 = vld.sshfl [vmem:[#allocation1] sm:$0xff pattern:$0x73625140]
      %v984 = vld.sshfl [vmem:[#allocation1 + $0x8] sm:$0xff pattern:$0x73625140]
      %986 = vst [vmem:[%s965] ss:$4 sm:$0xff] %v424
      %v987 = vld.sshfl [vmem:[#allocation1 + $0x20] sm:$0xff pattern:$0x73625140]
      %v989 = vld.sshfl [vmem:[#allocation1 + $0x28] sm:$0xff pattern:$0x73625140]
      %v999 = vrot.slane %v831, 6
      %v1000 = vrot.slane %v961, 4
      %v1001 = vrot.slane %v963, 2
      %v1002 = vrot.slane %v949, 6
      %v1003 = vrot.slane %v833, 6
      %v1004 = vrot.slane %v967, 4
      %v1005 = vrot.slane %v969, 2
      %v1006 = vrot.slane %v951, 6
      %v1007 = vrot.slane %v835, 6
      %v1008 = vrot.slane %v972, 4
      %v1009 = vrot.slane %v974, 2
      %v1010 = vrot.slane %v953, 6
      %v1011 = vrot.slane %v837, 6
      %v1012 = vrot.slane %v977, 4
      %v1013 = vrot.slane %v979, 2
      %v1014 = vrot.slane %v955, 6
      %vm1015 = vcmask 1041408
      %v1018 = vsel %vm1015, %v830, %v999
      %vm1019 = vcmask 1045508
      %v1022 = vsel %vm1019, %v1000, %v1001
      %vm1023 = vcmask 1043456
      %v1024 = vsel %vm1023, %v1018, %v1022
      %v1027 = vsel %vm1015, %v948, %v1002
      %v1030 = vsel %vm1015, %v832, %v1003
      %v1033 = vsel %vm1019, %v1004, %v1005
      %v1034 = vsel %vm1023, %v1030, %v1033
      %v1037 = vsel %vm1015, %v950, %v1006
      %v1040 = vsel %vm1015, %v834, %v1007
      %v1043 = vsel %vm1019, %v1008, %v1009
      %v1044 = vsel %vm1023, %v1040, %v1043
      %v1047 = vsel %vm1015, %v952, %v1010
      %v1050 = vsel %vm1015, %v836, %v1011
      %v1053 = vsel %vm1019, %v1012, %v1013
      %v1054 = vsel %vm1023, %v1050, %v1053
      %v1057 = vsel %vm1015, %v954, %v1014
      %v1060 = vrot.slane %v839, 6
      %v1061 = vrot.slane %v982, 4
      %v1062 = vrot.slane %v984, 2
      %v1063 = vrot.slane %v957, 6
      %v1066 = vsel %vm1015, %v838, %v1060
      %v1069 = vsel %vm1019, %v1061, %v1062
      %v1070 = vsel %vm1023, %v1066, %v1069
      %v1073 = vsel %vm1015, %v956, %v1063
      %1074 = vst [vmem:[#allocation1] ss:$4 sm:$0xff] %v1034
      %s1075 = scalar_lea.vmem [#allocation1], 1
      %1076 = vst [vmem:[%s1075] ss:$4 sm:$0xff] %v1044
      %s1077 = scalar_lea.vmem [#allocation1], 2
      %1078 = vst [vmem:[%s1077] ss:$4 sm:$0xff] %v1054
      %s1079 = scalar_lea.vmem [#allocation1], 3
      %1080 = vst [vmem:[%s1079] ss:$4 sm:$0xff] %v1070
      %s1081 = scalar_lea.vmem [#allocation1], 32
      %1082 = vst [vmem:[%s1081] ss:$4 sm:$0xff] %v1037
      %s1083 = scalar_lea.vmem [#allocation1], 33
      %1084 = vst [vmem:[%s1083] ss:$4 sm:$0xff] %v1047
      %s1085 = scalar_lea.vmem [#allocation1], 34
      %1086 = vst [vmem:[%s1085] ss:$4 sm:$0xff] %v1057
      %s1087 = scalar_lea.vmem [#allocation1], 35
      %1088 = vst [vmem:[%s1087] ss:$4 sm:$0xff] %v1073
      %v1089 = vld.sshfl [vmem:[#allocation1] sm:$0xff pattern:$0x73625140]
      %v1090 = vld.sshfl [vmem:[#allocation1 + $0x8] sm:$0xff pattern:$0x73625140]
      %v1091 = vld.sshfl [vmem:[#allocation1 + $0x10] sm:$0xff pattern:$0x73625140]
      %v1092 = vld.sshfl [vmem:[#allocation1 + $0x18] sm:$0xff pattern:$0x73625140]
      %v1093 = vld.sshfl [vmem:[#allocation1 + $0x20] sm:$0xff pattern:$0x73625140]
      %v1094 = vld.sshfl [vmem:[#allocation1 + $0x28] sm:$0xff pattern:$0x73625140]
      %v1197 = vunpack.c.l.b16 %v525
      %v1198 = vunpack.c.h.b16 %v525
      %v1199 = vunpack.c.l.b16 %v526
      %v1200 = vunpack.c.h.b16 %v526
      %v1201 = vunpack.c.l.b16 %v527
      %v1202 = vunpack.c.h.b16 %v527
      %v1203 = vunpack.c.l.b16 %v528
      %v1204 = vunpack.c.h.b16 %v528
      %v1205 = vunpack.c.l.b16 %v529
      %v1206 = vunpack.c.h.b16 %v529
      %v1207 = vunpack.c.l.b16 %v530
      %v1208 = vunpack.c.h.b16 %v530
      %v1209 = vunpack.c.l.b16 %v531
      %v1210 = vunpack.c.h.b16 %v531
      %v1211 = vunpack.c.l.b16 %v532
      %v1212 = vunpack.c.h.b16 %v532
      %v1213 = vunpack.c.l.b16 %v533
      %v1214 = vunpack.c.h.b16 %v533
      %v1215 = vunpack.c.l.b16 %v534
      %v1216 = vunpack.c.h.b16 %v534
      %v1217 = vunpack.c.l.b16 %v535
      %v1218 = vunpack.c.h.b16 %v535
      %v1219 = vunpack.c.l.b16 %v536
      %v1220 = vunpack.c.h.b16 %v536
      %v1221 = vunpack.c.l.b16 %v537
      %v1222 = vunpack.c.h.b16 %v537
      %v1223 = vunpack.c.l.b16 %v538
      %v1224 = vunpack.c.h.b16 %v538
      %v1225 = vunpack.c.l.b16 %v539
      %v1226 = vunpack.c.h.b16 %v539
      %v1227 = vunpack.c.l.b16 %v540
      %v1228 = vunpack.c.h.b16 %v540
      %v1229 = vunpack.c.l.b16 %v541
      %v1230 = vunpack.c.h.b16 %v541
      %v1231 = vunpack.c.l.b16 %v542
      %v1232 = vunpack.c.h.b16 %v542
      %v1233 = vunpack.c.l.b16 %v543
      %v1234 = vunpack.c.h.b16 %v543
      %v1235 = vunpack.c.l.b16 %v544
      %v1236 = vunpack.c.h.b16 %v544
      %v1237 = vunpack.c.l.b16 %v545
      %v1238 = vunpack.c.h.b16 %v545
      %v1239 = vunpack.c.l.b16 %v546
      %v1240 = vunpack.c.h.b16 %v546
      %v1241 = vunpack.c.l.b16 %v547
      %v1242 = vunpack.c.h.b16 %v547
      %v1243 = vunpack.c.l.b16 %v548
      %v1244 = vunpack.c.h.b16 %v548
      %v1245 = vunpack.c.l.b16 %v549
      %v1246 = vunpack.c.h.b16 %v549
      %v1247 = vunpack.c.l.b16 %v550
      %v1248 = vunpack.c.h.b16 %v550
      %v1249 = vunpack.c.l.b16 %v551
      %v1250 = vunpack.c.h.b16 %v551
      %v1251 = vunpack.c.l.b16 %v552
      %v1252 = vunpack.c.h.b16 %v552
      %v1253 = vunpack.c.l.b16 %v553
      %v1254 = vunpack.c.h.b16 %v553
      %v1255 = vunpack.c.l.b16 %v554
      %v1256 = vunpack.c.h.b16 %v554
      %v1257 = vunpack.c.l.b16 %v555
      %v1258 = vunpack.c.h.b16 %v555
      %v1259 = vunpack.c.l.b16 %v556
      %v1260 = vunpack.c.h.b16 %v556
      %v1261 = vunpack.c.l.b16 %v557
      %v1262 = vunpack.c.h.b16 %v557
      %v1263 = vunpack.c.l.b16 %v558
      %v1264 = vunpack.c.h.b16 %v558
      %v1265 = vunpack.c.l.b16 %v559
      %v1266 = vunpack.c.h.b16 %v559
      %v1267 = vunpack.c.l.b16 %v560
      %v1268 = vunpack.c.h.b16 %v560
      %v1269 = vunpack.c.l.b16 %v561
      %v1270 = vunpack.c.h.b16 %v561
      %v1271 = vunpack.c.l.b16 %v562
      %v1272 = vunpack.c.h.b16 %v562
      %v1273 = vunpack.c.l.b16 %v563
      %v1274 = vunpack.c.h.b16 %v563
      %v1275 = vunpack.c.l.b16 %v564
      %v1276 = vunpack.c.h.b16 %v564
      %v1277 = vunpack.c.l.b16 %v565
      %v1278 = vunpack.c.h.b16 %v565
      %v1279 = vunpack.c.l.b16 %v566
      %v1280 = vunpack.c.h.b16 %v566
      %v1281 = vunpack.c.l.b16 %v567
      %v1282 = vunpack.c.h.b16 %v567
      %v1283 = vunpack.c.l.b16 %v568
      %v1284 = vunpack.c.h.b16 %v568
      %v1285 = vunpack.c.l.b16 %v569
      %v1286 = vunpack.c.h.b16 %v569
      %v1287 = vunpack.c.l.b16 %v570
      %v1288 = vunpack.c.h.b16 %v570
      %v1289 = vunpack.c.l.b16 %v571
      %v1290 = vunpack.c.h.b16 %v571
      %v1291 = vunpack.c.l.b16 %v572
      %v1292 = vunpack.c.h.b16 %v572
      %v1293 = vunpack.c.l.b16 %v573
      %v1294 = vunpack.c.h.b16 %v573
      %v1295 = vunpack.c.l.b16 %v574
      %v1296 = vunpack.c.h.b16 %v574
      %v1297 = vunpack.c.l.b16 %v575
      %v1298 = vunpack.c.h.b16 %v575
      %v1299 = vunpack.c.l.b16 %v576
      %v1300 = vunpack.c.h.b16 %v576
      %v1301 = vunpack.c.l.b16 %v577
      %v1302 = vunpack.c.h.b16 %v577
      %v1303 = vunpack.c.l.b16 %v578
      %v1304 = vunpack.c.h.b16 %v578
      %v1305 = vunpack.c.l.b16 %v579
      %v1306 = vunpack.c.h.b16 %v579
      %v1307 = vunpack.c.l.b16 %v580
      %v1308 = vunpack.c.h.b16 %v580
      %v1309 = vunpack.c.l.b16 %v581
      %v1310 = vunpack.c.h.b16 %v581
      %v1311 = vunpack.c.l.b16 %v582
      %v1312 = vunpack.c.h.b16 %v582
      %v1313 = vunpack.c.l.b16 %v583
      %v1314 = vunpack.c.h.b16 %v583
      %v1315 = vunpack.c.l.b16 %v584
      %v1316 = vunpack.c.h.b16 %v584
      %v1317 = vunpack.c.l.b16 %v585
      %v1318 = vunpack.c.h.b16 %v585
      %v1319 = vunpack.c.l.b16 %v586
      %v1320 = vunpack.c.h.b16 %v586
      %v1321 = vunpack.c.l.b16 %v587
      %v1322 = vunpack.c.h.b16 %v587
      %v1323 = vunpack.c.l.b16 %v588
      %v1324 = vunpack.c.h.b16 %v588
      %v1325 = vunpack.c.l.b16 %v589
      %v1326 = vunpack.c.h.b16 %v589
      %v1327 = vunpack.c.l.b16 %v590
      %v1328 = vunpack.c.h.b16 %v590
      %v1329 = vunpack.c.l.b16 %v591
      %v1330 = vunpack.c.h.b16 %v591
      %v1331 = vunpack.c.l.b16 %v592
      %v1332 = vunpack.c.h.b16 %v592
      %v1333 = vunpack.c.l.b16 %v593
      %v1334 = vunpack.c.h.b16 %v593
      %v1335 = vunpack.c.l.b16 %v594
      %v1336 = vunpack.c.h.b16 %v594
      %v1337 = vunpack.c.l.b16 %v595
      %v1338 = vunpack.c.h.b16 %v595
      %v1339 = vunpack.c.l.b16 %v596
      %v1340 = vunpack.c.h.b16 %v596
      %v1341 = vunpack.c.l.b16 %v597
      %v1342 = vunpack.c.h.b16 %v597
      %v1343 = vunpack.c.l.b16 %v598
      %v1344 = vunpack.c.h.b16 %v598
      %v1345 = vunpack.c.l.b16 %v599
      %v1346 = vunpack.c.h.b16 %v599
      %v1347 = vunpack.c.l.b16 %v600
      %v1348 = vunpack.c.h.b16 %v600
      %v1349 = vunpack.c.l.b16 %v601
      %v1350 = vunpack.c.h.b16 %v601
      %v1351 = vunpack.c.l.b16 %v602
      %v1352 = vunpack.c.h.b16 %v602
      %v1353 = vunpack.c.l.b16 %v603
      %v1354 = vunpack.c.h.b16 %v603
      %v1355 = vunpack.c.l.b16 %v604
      %v1356 = vunpack.c.h.b16 %v604
      %v1357 = vunpack.c.l.b16 %v605
      %v1358 = vunpack.c.h.b16 %v605
      %v1359 = vunpack.c.l.b16 %v606
      %v1360 = vunpack.c.h.b16 %v606
      %v1361 = vunpack.c.l.b16 %v607
      %v1362 = vunpack.c.h.b16 %v607
      %v1363 = vunpack.c.l.b16 %v608
      %v1364 = vunpack.c.h.b16 %v608
      %v1365 = vunpack.c.l.b16 %v609
      %v1366 = vunpack.c.h.b16 %v609
      %v1367 = vunpack.c.l.b16 %v610
      %v1368 = vunpack.c.h.b16 %v610
      %v1369 = vunpack.c.l.b16 %v611
      %v1370 = vunpack.c.h.b16 %v611
      %v1371 = vunpack.c.l.b16 %v612
      %v1372 = vunpack.c.h.b16 %v612
      %v1373 = vunpack.c.l.b16 %v613
      %v1374 = vunpack.c.h.b16 %v613
      %v1375 = vunpack.c.l.b16 %v614
      %v1376 = vunpack.c.h.b16 %v614
      %v1377 = vunpack.c.l.b16 %v615
      %v1378 = vunpack.c.h.b16 %v615
      %v1379 = vunpack.c.l.b16 %v616
      %v1380 = vunpack.c.h.b16 %v616
      %v1381 = vunpack.c.l.b16 %v617
      %v1382 = vunpack.c.h.b16 %v617
      %v1383 = vunpack.c.l.b16 %v618
      %v1384 = vunpack.c.h.b16 %v618
      %v1385 = vunpack.c.l.b16 %v619
      %v1386 = vunpack.c.h.b16 %v619
      %v1387 = vunpack.c.l.b16 %v620
      %v1388 = vunpack.c.h.b16 %v620
      %v1389 = vpack.c.b16 %v1199, %v1197
      %v1390 = vpack.c.b16 %v1200, %v1198
      %v1391 = vpack.c.b16 %v1203, %v1201
      %v1392 = vpack.c.b16 %v1204, %v1202
      %v1393 = vpack.c.b16 %v1207, %v1205
      %v1394 = vpack.c.b16 %v1208, %v1206
      %v1395 = vpack.c.b16 %v1211, %v1209
      %v1396 = vpack.c.b16 %v1212, %v1210
      %v1397 = vpack.c.b16 %v1215, %v1213
      %v1398 = vpack.c.b16 %v1216, %v1214
      %v1399 = vpack.c.b16 %v1219, %v1217
      %v1400 = vpack.c.b16 %v1220, %v1218
      %v1401 = vpack.c.b16 %v1223, %v1221
      %v1402 = vpack.c.b16 %v1224, %v1222
      %v1403 = vpack.c.b16 %v1227, %v1225
      %v1404 = vpack.c.b16 %v1228, %v1226
      %v1405 = vpack.c.b16 %v1231, %v1229
      %v1406 = vpack.c.b16 %v1232, %v1230
      %v1407 = vpack.c.b16 %v1235, %v1233
      %v1408 = vpack.c.b16 %v1236, %v1234
      %v1409 = vpack.c.b16 %v1239, %v1237
      %v1410 = vpack.c.b16 %v1240, %v1238
      %v1411 = vpack.c.b16 %v1243, %v1241
      %v1412 = vpack.c.b16 %v1244, %v1242
      %v1413 = vpack.c.b16 %v1247, %v1245
      %v1414 = vpack.c.b16 %v1248, %v1246
      %v1415 = vpack.c.b16 %v1251, %v1249
      %v1416 = vpack.c.b16 %v1252, %v1250
      %v1417 = vpack.c.b16 %v1255, %v1253
      %v1418 = vpack.c.b16 %v1256, %v1254
      %v1419 = vpack.c.b16 %v1259, %v1257
      %v1420 = vpack.c.b16 %v1260, %v1258
      %v1421 = vpack.c.b16 %v1263, %v1261
      %v1422 = vpack.c.b16 %v1264, %v1262
      %v1423 = vpack.c.b16 %v1267, %v1265
      %v1424 = vpack.c.b16 %v1268, %v1266
      %v1425 = vpack.c.b16 %v1271, %v1269
      %v1426 = vpack.c.b16 %v1272, %v1270
      %v1427 = vpack.c.b16 %v1275, %v1273
      %v1428 = vpack.c.b16 %v1276, %v1274
      %v1429 = vpack.c.b16 %v1279, %v1277
      %v1430 = vpack.c.b16 %v1280, %v1278
      %v1431 = vpack.c.b16 %v1283, %v1281
      %v1432 = vpack.c.b16 %v1284, %v1282
      %v1433 = vpack.c.b16 %v1287, %v1285
      %v1434 = vpack.c.b16 %v1288, %v1286
      %v1435 = vpack.c.b16 %v1291, %v1289
      %v1436 = vpack.c.b16 %v1292, %v1290
      %v1437 = vpack.c.b16 %v1295, %v1293
      %v1438 = vpack.c.b16 %v1296, %v1294
      %v1439 = vpack.c.b16 %v1299, %v1297
      %v1440 = vpack.c.b16 %v1300, %v1298
      %v1441 = vpack.c.b16 %v1303, %v1301
      %v1442 = vpack.c.b16 %v1304, %v1302
      %v1443 = vpack.c.b16 %v1307, %v1305
      %v1444 = vpack.c.b16 %v1308, %v1306
      %v1445 = vpack.c.b16 %v1311, %v1309
      %v1446 = vpack.c.b16 %v1312, %v1310
      %v1447 = vpack.c.b16 %v1315, %v1313
      %v1448 = vpack.c.b16 %v1316, %v1314
      %v1449 = vpack.c.b16 %v1319, %v1317
      %v1450 = vpack.c.b16 %v1320, %v1318
      %v1451 = vpack.c.b16 %v1323, %v1321
      %v1452 = vpack.c.b16 %v1324, %v1322
      %v1453 = vpack.c.b16 %v1327, %v1325
      %v1454 = vpack.c.b16 %v1328, %v1326
      %v1455 = vpack.c.b16 %v1331, %v1329
      %v1456 = vpack.c.b16 %v1332, %v1330
      %v1457 = vpack.c.b16 %v1335, %v1333
      %v1458 = vpack.c.b16 %v1336, %v1334
      %v1459 = vpack.c.b16 %v1339, %v1337
      %v1460 = vpack.c.b16 %v1340, %v1338
      %v1461 = vpack.c.b16 %v1343, %v1341
      %v1462 = vpack.c.b16 %v1344, %v1342
      %v1463 = vpack.c.b16 %v1347, %v1345
      %v1464 = vpack.c.b16 %v1348, %v1346
      %v1465 = vpack.c.b16 %v1351, %v1349
      %v1466 = vpack.c.b16 %v1352, %v1350
      %v1467 = vpack.c.b16 %v1355, %v1353
      %v1468 = vpack.c.b16 %v1356, %v1354
      %v1469 = vpack.c.b16 %v1359, %v1357
      %v1470 = vpack.c.b16 %v1360, %v1358
      %v1471 = vpack.c.b16 %v1363, %v1361
      %v1472 = vpack.c.b16 %v1364, %v1362
      %v1473 = vpack.c.b16 %v1367, %v1365
      %v1474 = vpack.c.b16 %v1368, %v1366
      %v1475 = vpack.c.b16 %v1371, %v1369
      %v1476 = vpack.c.b16 %v1372, %v1370
      %v1477 = vpack.c.b16 %v1375, %v1373
      %v1478 = vpack.c.b16 %v1376, %v1374
      %v1479 = vpack.c.b16 %v1379, %v1377
      %v1480 = vpack.c.b16 %v1380, %v1378
      %v1481 = vpack.c.b16 %v1383, %v1381
      %v1482 = vpack.c.b16 %v1384, %v1382
      %v1483 = vpack.c.b16 %v1387, %v1385
      %v1484 = vpack.c.b16 %v1388, %v1386
      %1581 = vmatpush.bf16.msra.mxu0 %v1403
      %1582 = vmatpush.bf16.msra.mxu0 %v1401
      %1583 = vmatpush.bf16.msra.mxu0 %v1399
      %1584 = vmatpush.bf16.msra.mxu0 %v1397
      %1585 = vmatpush.bf16.msra.mxu0 %v1395
      %1586 = vmatpush.bf16.msra.mxu0 %v1393
      %1587 = vmatpush.bf16.msra.mxu0 %v1391
      %1588 = vmatpush.bf16.msra.mxu0 %v1389
      %1589 = vmatmul.bf16.gmra.mxu0 %v1089
      %v1590 = vpop.f32.mrf.mxu0
      %v1591 = vadd.f32 0.0, %v1590
      %v1592 = vpop.f32.mrf.mxu0
      %v1593 = vadd.f32 0.0, %v1592
      %1594 = vdwg.mxu0
      %1595 = vmatpush.bf16.msra.mxu0 %v1419
      %1596 = vmatpush.bf16.msra.mxu0 %v1417
      %1597 = vmatpush.bf16.msra.mxu0 %v1415
      %1598 = vmatpush.bf16.msra.mxu0 %v1413
      %1599 = vmatpush.bf16.msra.mxu0 %v1411
      %1600 = vmatpush.bf16.msra.mxu0 %v1409
      %1601 = vmatpush.bf16.msra.mxu0 %v1407
      %1602 = vmatpush.bf16.msra.mxu0 %v1405
      %1603 = vmatmul.bf16.gmra.mxu0 %v1090
      %v1604 = vpop.f32.mrf.mxu0
      %v1605 = vadd.f32 %v1591, %v1604
      %v1606 = vpop.f32.mrf.mxu0
      %v1607 = vadd.f32 %v1593, %v1606
      %1608 = vdwg.mxu0
      %1609 = vmatpush.bf16.msra.mxu0 %v1435
      %1610 = vmatpush.bf16.msra.mxu0 %v1433
      %1611 = vmatpush.bf16.msra.mxu0 %v1431
      %1612 = vmatpush.bf16.msra.mxu0 %v1429
      %1613 = vmatpush.bf16.msra.mxu0 %v1427
      %1614 = vmatpush.bf16.msra.mxu0 %v1425
      %1615 = vmatpush.bf16.msra.mxu0 %v1423
      %1616 = vmatpush.bf16.msra.mxu0 %v1421
      %1617 = vmatmul.bf16.gmra.mxu0 %v1091
      %v1618 = vpop.f32.mrf.mxu0
      %v1619 = vadd.f32 %v1605, %v1618
      %v1620 = vpop.f32.mrf.mxu0
      %v1621 = vadd.f32 %v1607, %v1620
      %1622 = vdwg.mxu0
      %1623 = vmatpush.bf16.msra.mxu0 %v1451
      %1624 = vmatpush.bf16.msra.mxu0 %v1449
      %1625 = vmatpush.bf16.msra.mxu0 %v1447
      %1626 = vmatpush.bf16.msra.mxu0 %v1445
      %1627 = vmatpush.bf16.msra.mxu0 %v1443
      %1628 = vmatpush.bf16.msra.mxu0 %v1441
      %1629 = vmatpush.bf16.msra.mxu0 %v1439
      %1630 = vmatpush.bf16.msra.mxu0 %v1437
      %1631 = vmatmul.bf16.gmra.mxu0 %v1092
      %v1632 = vpop.f32.mrf.mxu0
      %v1633 = vadd.f32 %v1619, %v1632
      %v1634 = vpop.f32.mrf.mxu0
      %v1635 = vadd.f32 %v1621, %v1634
      %1636 = vdwg.mxu0
      %1637 = vmatpush.bf16.msra.mxu0 %v1467
      %1638 = vmatpush.bf16.msra.mxu0 %v1465
      %1639 = vmatpush.bf16.msra.mxu0 %v1463
      %1640 = vmatpush.bf16.msra.mxu0 %v1461
      %1641 = vmatpush.bf16.msra.mxu0 %v1459
      %1642 = vmatpush.bf16.msra.mxu0 %v1457
      %1643 = vmatpush.bf16.msra.mxu0 %v1455
      %1644 = vmatpush.bf16.msra.mxu0 %v1453
      %1645 = vmatmul.bf16.gmra.mxu0 %v1093
      %v1646 = vpop.f32.mrf.mxu0
      %v1647 = vadd.f32 %v1633, %v1646
      %v1648 = vpop.f32.mrf.mxu0
      %v1649 = vadd.f32 %v1635, %v1648
      %1650 = vdwg.mxu0
      %1651 = vmatpush.bf16.msra.mxu0 %v1483
      %1652 = vmatpush.bf16.msra.mxu0 %v1481
      %1653 = vmatpush.bf16.msra.mxu0 %v1479
      %1654 = vmatpush.bf16.msra.mxu0 %v1477
      %1655 = vmatpush.bf16.msra.mxu0 %v1475
      %1656 = vmatpush.bf16.msra.mxu0 %v1473
      %1657 = vmatpush.bf16.msra.mxu0 %v1471
      %1658 = vmatpush.bf16.msra.mxu0 %v1469
      %1659 = vmatmul.bf16.gmra.mxu0 %v1094
      %v1660 = vpop.f32.mrf.mxu0
      %v1661 = vadd.f32 %v1647, %v1660
      %v1662 = vpop.f32.mrf.mxu0
      %v1663 = vadd.f32 %v1649, %v1662
      %1664 = vdwg.mxu0
      %1665 = vmatpush.bf16.msra.mxu0 %v1404
      %1666 = vmatpush.bf16.msra.mxu0 %v1402
      %1667 = vmatpush.bf16.msra.mxu0 %v1400
      %1668 = vmatpush.bf16.msra.mxu0 %v1398
      %1669 = vmatpush.bf16.msra.mxu0 %v1396
      %1670 = vmatpush.bf16.msra.mxu0 %v1394
      %1671 = vmatpush.bf16.msra.mxu0 %v1392
      %1672 = vmatpush.bf16.msra.mxu0 %v1390
      %1673 = vmatmul.bf16.gmra.mxu0 %v1089
      %v1674 = vpop.f32.mrf.mxu0
      %v1675 = vadd.f32 0.0, %v1674
      %v1676 = vpop.f32.mrf.mxu0
      %v1677 = vadd.f32 0.0, %v1676
      %1678 = vdwg.mxu0
      %1679 = vmatpush.bf16.msra.mxu0 %v1420
      %1680 = vmatpush.bf16.msra.mxu0 %v1418
      %1681 = vmatpush.bf16.msra.mxu0 %v1416
      %1682 = vmatpush.bf16.msra.mxu0 %v1414
      %1683 = vmatpush.bf16.msra.mxu0 %v1412
      %1684 = vmatpush.bf16.msra.mxu0 %v1410
      %1685 = vmatpush.bf16.msra.mxu0 %v1408
      %1686 = vmatpush.bf16.msra.mxu0 %v1406
      %1687 = vmatmul.bf16.gmra.mxu0 %v1090
      %v1688 = vpop.f32.mrf.mxu0
      %v1689 = vadd.f32 %v1675, %v1688
      %v1690 = vpop.f32.mrf.mxu0
      %v1691 = vadd.f32 %v1677, %v1690
      %1692 = vdwg.mxu0
      %1693 = vmatpush.bf16.msra.mxu0 %v1436
      %1694 = vmatpush.bf16.msra.mxu0 %v1434
      %1695 = vmatpush.bf16.msra.mxu0 %v1432
      %1696 = vmatpush.bf16.msra.mxu0 %v1430
      %1697 = vmatpush.bf16.msra.mxu0 %v1428
      %1698 = vmatpush.bf16.msra.mxu0 %v1426
      %1699 = vmatpush.bf16.msra.mxu0 %v1424
      %1700 = vmatpush.bf16.msra.mxu0 %v1422
      %1701 = vmatmul.bf16.gmra.mxu0 %v1091
      %v1702 = vpop.f32.mrf.mxu0
      %v1703 = vadd.f32 %v1689, %v1702
      %v1704 = vpop.f32.mrf.mxu0
      %v1705 = vadd.f32 %v1691, %v1704
      %1706 = vdwg.mxu0
      %1707 = vmatpush.bf16.msra.mxu0 %v1452
      %1708 = vmatpush.bf16.msra.mxu0 %v1450
      %1709 = vmatpush.bf16.msra.mxu0 %v1448
      %1710 = vmatpush.bf16.msra.mxu0 %v1446
      %1711 = vmatpush.bf16.msra.mxu0 %v1444
      %1712 = vmatpush.bf16.msra.mxu0 %v1442
      %1713 = vmatpush.bf16.msra.mxu0 %v1440
      %1714 = vmatpush.bf16.msra.mxu0 %v1438
      %1715 = vmatmul.bf16.gmra.mxu0 %v1092
      %v1716 = vpop.f32.mrf.mxu0
      %v1717 = vadd.f32 %v1703, %v1716
      %v1718 = vpop.f32.mrf.mxu0
      %v1719 = vadd.f32 %v1705, %v1718
      %1720 = vdwg.mxu0
      %1721 = vmatpush.bf16.msra.mxu0 %v1468
      %1722 = vmatpush.bf16.msra.mxu0 %v1466
      %1723 = vmatpush.bf16.msra.mxu0 %v1464
      %1724 = vmatpush.bf16.msra.mxu0 %v1462
      %1725 = vmatpush.bf16.msra.mxu0 %v1460
      %1726 = vmatpush.bf16.msra.mxu0 %v1458
      %1727 = vmatpush.bf16.msra.mxu0 %v1456
      %1728 = vmatpush.bf16.msra.mxu0 %v1454
      %1729 = vmatmul.bf16.gmra.mxu0 %v1093
      %v1730 = vpop.f32.mrf.mxu0
      %v1731 = vadd.f32 %v1717, %v1730
      %v1732 = vpop.f32.mrf.mxu0
      %v1733 = vadd.f32 %v1719, %v1732
      %1734 = vdwg.mxu0
      %1735 = vmatpush.bf16.msra.mxu0 %v1484
      %1736 = vmatpush.bf16.msra.mxu0 %v1482
      %1737 = vmatpush.bf16.msra.mxu0 %v1480
      %1738 = vmatpush.bf16.msra.mxu0 %v1478
      %1739 = vmatpush.bf16.msra.mxu0 %v1476
      %1740 = vmatpush.bf16.msra.mxu0 %v1474
      %1741 = vmatpush.bf16.msra.mxu0 %v1472
      %1742 = vmatpush.bf16.msra.mxu0 %v1470
      %1743 = vmatmul.bf16.gmra.mxu0 %v1094
      %v1744 = vpop.f32.mrf.mxu0
      %v1745 = vadd.f32 %v1731, %v1744
      %v1746 = vpop.f32.mrf.mxu0
      %v1747 = vadd.f32 %v1733, %v1746
      %1748 = vdwg.mxu0
      %1749 = vst [vmem:[#allocation1] ss:$4 sm:$0xff] %v1024
      %s1750 = scalar_lea.vmem [#allocation1], 1
      %1751 = vst [vmem:[%s1750] ss:$4 sm:$0xff] %v1034
      %s1752 = scalar_lea.vmem [#allocation1], 2
      %1753 = vst [vmem:[%s1752] ss:$4 sm:$0xff] %v1044
      %s1754 = scalar_lea.vmem [#allocation1], 3
      %1755 = vst [vmem:[%s1754] ss:$4 sm:$0xff] %v1054
      %s1756 = scalar_lea.vmem [#allocation1], 32
      %1757 = vst [vmem:[%s1756] ss:$4 sm:$0xff] %v1027
      %s1758 = scalar_lea.vmem [#allocation1], 33
      %1759 = vst [vmem:[%s1758] ss:$4 sm:$0xff] %v1037
      %s1760 = scalar_lea.vmem [#allocation1], 34
      %1761 = vst [vmem:[%s1760] ss:$4 sm:$0xff] %v1047
      %s1762 = scalar_lea.vmem [#allocation1], 35
      %1763 = vst [vmem:[%s1762] ss:$4 sm:$0xff] %v1057
      %v1764 = vld.sshfl [vmem:[#allocation1] sm:$0xff pattern:$0x73625140]
      %v1765 = vld.sshfl [vmem:[#allocation1 + $0x8] sm:$0xff pattern:$0x73625140]
      %v1766 = vld.sshfl [vmem:[#allocation1 + $0x10] sm:$0xff pattern:$0x73625140]
      %v1767 = vld.sshfl [vmem:[#allocation1 + $0x18] sm:$0xff pattern:$0x73625140]
      %v1768 = vld.sshfl [vmem:[#allocation1 + $0x20] sm:$0xff pattern:$0x73625140]
      %v1769 = vld.sshfl [vmem:[#allocation1 + $0x28] sm:$0xff pattern:$0x73625140]
      %v1872 = vunpack.c.l.b16 %v429
      %v1873 = vunpack.c.h.b16 %v429
      %v1874 = vunpack.c.l.b16 %v430
      %v1875 = vunpack.c.h.b16 %v430
      %v1876 = vunpack.c.l.b16 %v431
      %v1877 = vunpack.c.h.b16 %v431
      %v1878 = vunpack.c.l.b16 %v432
      %v1879 = vunpack.c.h.b16 %v432
      %v1880 = vunpack.c.l.b16 %v433
      %v1881 = vunpack.c.h.b16 %v433
      %v1882 = vunpack.c.l.b16 %v434
      %v1883 = vunpack.c.h.b16 %v434
      %v1884 = vunpack.c.l.b16 %v435
      %v1885 = vunpack.c.h.b16 %v435
      %v1886 = vunpack.c.l.b16 %v436
      %v1887 = vunpack.c.h.b16 %v436
      %v1888 = vunpack.c.l.b16 %v437
      %v1889 = vunpack.c.h.b16 %v437
      %v1890 = vunpack.c.l.b16 %v438
      %v1891 = vunpack.c.h.b16 %v438
      %v1892 = vunpack.c.l.b16 %v439
      %v1893 = vunpack.c.h.b16 %v439
      %v1894 = vunpack.c.l.b16 %v440
      %v1895 = vunpack.c.h.b16 %v440
      %v1896 = vunpack.c.l.b16 %v441
      %v1897 = vunpack.c.h.b16 %v441
      %v1898 = vunpack.c.l.b16 %v442
      %v1899 = vunpack.c.h.b16 %v442
      %v1900 = vunpack.c.l.b16 %v443
      %v1901 = vunpack.c.h.b16 %v443
      %v1902 = vunpack.c.l.b16 %v444
      %v1903 = vunpack.c.h.b16 %v444
      %v1904 = vunpack.c.l.b16 %v445
      %v1905 = vunpack.c.h.b16 %v445
      %v1906 = vunpack.c.l.b16 %v446
      %v1907 = vunpack.c.h.b16 %v446
      %v1908 = vunpack.c.l.b16 %v447
      %v1909 = vunpack.c.h.b16 %v447
      %v1910 = vunpack.c.l.b16 %v448
      %v1911 = vunpack.c.h.b16 %v448
      %v1912 = vunpack.c.l.b16 %v449
      %v1913 = vunpack.c.h.b16 %v449
      %v1914 = vunpack.c.l.b16 %v450
      %v1915 = vunpack.c.h.b16 %v450
      %v1916 = vunpack.c.l.b16 %v451
      %v1917 = vunpack.c.h.b16 %v451
      %v1918 = vunpack.c.l.b16 %v452
      %v1919 = vunpack.c.h.b16 %v452
      %v1920 = vunpack.c.l.b16 %v453
      %v1921 = vunpack.c.h.b16 %v453
      %v1922 = vunpack.c.l.b16 %v454
      %v1923 = vunpack.c.h.b16 %v454
      %v1924 = vunpack.c.l.b16 %v455
      %v1925 = vunpack.c.h.b16 %v455
      %v1926 = vunpack.c.l.b16 %v456
      %v1927 = vunpack.c.h.b16 %v456
      %v1928 = vunpack.c.l.b16 %v457
      %v1929 = vunpack.c.h.b16 %v457
      %v1930 = vunpack.c.l.b16 %v458
      %v1931 = vunpack.c.h.b16 %v458
      %v1932 = vunpack.c.l.b16 %v459
      %v1933 = vunpack.c.h.b16 %v459
      %v1934 = vunpack.c.l.b16 %v460
      %v1935 = vunpack.c.h.b16 %v460
      %v1936 = vunpack.c.l.b16 %v461
      %v1937 = vunpack.c.h.b16 %v461
      %v1938 = vunpack.c.l.b16 %v462
      %v1939 = vunpack.c.h.b16 %v462
      %v1940 = vunpack.c.l.b16 %v463
      %v1941 = vunpack.c.h.b16 %v463
      %v1942 = vunpack.c.l.b16 %v464
      %v1943 = vunpack.c.h.b16 %v464
      %v1944 = vunpack.c.l.b16 %v465
      %v1945 = vunpack.c.h.b16 %v465
      %v1946 = vunpack.c.l.b16 %v466
      %v1947 = vunpack.c.h.b16 %v466
      %v1948 = vunpack.c.l.b16 %v467
      %v1949 = vunpack.c.h.b16 %v467
      %v1950 = vunpack.c.l.b16 %v468
      %v1951 = vunpack.c.h.b16 %v468
      %v1952 = vunpack.c.l.b16 %v469
      %v1953 = vunpack.c.h.b16 %v469
      %v1954 = vunpack.c.l.b16 %v470
      %v1955 = vunpack.c.h.b16 %v470
      %v1956 = vunpack.c.l.b16 %v471
      %v1957 = vunpack.c.h.b16 %v471
      %v1958 = vunpack.c.l.b16 %v472
      %v1959 = vunpack.c.h.b16 %v472
      %v1960 = vunpack.c.l.b16 %v473
      %v1961 = vunpack.c.h.b16 %v473
      %v1962 = vunpack.c.l.b16 %v474
      %v1963 = vunpack.c.h.b16 %v474
      %v1964 = vunpack.c.l.b16 %v475
      %v1965 = vunpack.c.h.b16 %v475
      %v1966 = vunpack.c.l.b16 %v476
      %v1967 = vunpack.c.h.b16 %v476
      %v1968 = vunpack.c.l.b16 %v477
      %v1969 = vunpack.c.h.b16 %v477
      %v1970 = vunpack.c.l.b16 %v478
      %v1971 = vunpack.c.h.b16 %v478
      %v1972 = vunpack.c.l.b16 %v479
      %v1973 = vunpack.c.h.b16 %v479
      %v1974 = vunpack.c.l.b16 %v480
      %v1975 = vunpack.c.h.b16 %v480
      %v1976 = vunpack.c.l.b16 %v481
      %v1977 = vunpack.c.h.b16 %v481
      %v1978 = vunpack.c.l.b16 %v482
      %v1979 = vunpack.c.h.b16 %v482
      %v1980 = vunpack.c.l.b16 %v483
      %v1981 = vunpack.c.h.b16 %v483
      %v1982 = vunpack.c.l.b16 %v484
      %v1983 = vunpack.c.h.b16 %v484
      %v1984 = vunpack.c.l.b16 %v485
      %v1985 = vunpack.c.h.b16 %v485
      %v1986 = vunpack.c.l.b16 %v486
      %v1987 = vunpack.c.h.b16 %v486
      %v1988 = vunpack.c.l.b16 %v487
      %v1989 = vunpack.c.h.b16 %v487
      %v1990 = vunpack.c.l.b16 %v488
      %v1991 = vunpack.c.h.b16 %v488
      %v1992 = vunpack.c.l.b16 %v489
      %v1993 = vunpack.c.h.b16 %v489
      %v1994 = vunpack.c.l.b16 %v490
      %v1995 = vunpack.c.h.b16 %v490
      %v1996 = vunpack.c.l.b16 %v491
      %v1997 = vunpack.c.h.b16 %v491
      %v1998 = vunpack.c.l.b16 %v492
      %v1999 = vunpack.c.h.b16 %v492
      %v2000 = vunpack.c.l.b16 %v493
      %v2001 = vunpack.c.h.b16 %v493
      %v2002 = vunpack.c.l.b16 %v494
      %v2003 = vunpack.c.h.b16 %v494
      %v2004 = vunpack.c.l.b16 %v495
      %v2005 = vunpack.c.h.b16 %v495
      %v2006 = vunpack.c.l.b16 %v496
      %v2007 = vunpack.c.h.b16 %v496
      %v2008 = vunpack.c.l.b16 %v497
      %v2009 = vunpack.c.h.b16 %v497
      %v2010 = vunpack.c.l.b16 %v498
      %v2011 = vunpack.c.h.b16 %v498
      %v2012 = vunpack.c.l.b16 %v499
      %v2013 = vunpack.c.h.b16 %v499
      %v2014 = vunpack.c.l.b16 %v500
      %v2015 = vunpack.c.h.b16 %v500
      %v2016 = vunpack.c.l.b16 %v501
      %v2017 = vunpack.c.h.b16 %v501
      %v2018 = vunpack.c.l.b16 %v502
      %v2019 = vunpack.c.h.b16 %v502
      %v2020 = vunpack.c.l.b16 %v503
      %v2021 = vunpack.c.h.b16 %v503
      %v2022 = vunpack.c.l.b16 %v504
      %v2023 = vunpack.c.h.b16 %v504
      %v2024 = vunpack.c.l.b16 %v505
      %v2025 = vunpack.c.h.b16 %v505
      %v2026 = vunpack.c.l.b16 %v506
      %v2027 = vunpack.c.h.b16 %v506
      %v2028 = vunpack.c.l.b16 %v507
      %v2029 = vunpack.c.h.b16 %v507
      %v2030 = vunpack.c.l.b16 %v508
      %v2031 = vunpack.c.h.b16 %v508
      %v2032 = vunpack.c.l.b16 %v509
      %v2033 = vunpack.c.h.b16 %v509
      %v2034 = vunpack.c.l.b16 %v510
      %v2035 = vunpack.c.h.b16 %v510
      %v2036 = vunpack.c.l.b16 %v511
      %v2037 = vunpack.c.h.b16 %v511
      %v2038 = vunpack.c.l.b16 %v512
      %v2039 = vunpack.c.h.b16 %v512
      %v2040 = vunpack.c.l.b16 %v513
      %v2041 = vunpack.c.h.b16 %v513
      %v2042 = vunpack.c.l.b16 %v514
      %v2043 = vunpack.c.h.b16 %v514
      %v2044 = vunpack.c.l.b16 %v515
      %v2045 = vunpack.c.h.b16 %v515
      %v2046 = vunpack.c.l.b16 %v516
      %v2047 = vunpack.c.h.b16 %v516
      %v2048 = vunpack.c.l.b16 %v517
      %v2049 = vunpack.c.h.b16 %v517
      %v2050 = vunpack.c.l.b16 %v518
      %v2051 = vunpack.c.h.b16 %v518
      %v2052 = vunpack.c.l.b16 %v519
      %v2053 = vunpack.c.h.b16 %v519
      %v2054 = vunpack.c.l.b16 %v520
      %v2055 = vunpack.c.h.b16 %v520
      %v2056 = vunpack.c.l.b16 %v521
      %v2057 = vunpack.c.h.b16 %v521
      %v2058 = vunpack.c.l.b16 %v522
      %v2059 = vunpack.c.h.b16 %v522
      %v2060 = vunpack.c.l.b16 %v523
      %v2061 = vunpack.c.h.b16 %v523
      %v2062 = vunpack.c.l.b16 %v524
      %v2063 = vunpack.c.h.b16 %v524
      %v2064 = vpack.c.b16 %v1874, %v1872
      %v2065 = vpack.c.b16 %v1875, %v1873
      %v2066 = vpack.c.b16 %v1878, %v1876
      %v2067 = vpack.c.b16 %v1879, %v1877
      %v2068 = vpack.c.b16 %v1882, %v1880
      %v2069 = vpack.c.b16 %v1883, %v1881
      %v2070 = vpack.c.b16 %v1886, %v1884
      %v2071 = vpack.c.b16 %v1887, %v1885
      %v2072 = vpack.c.b16 %v1890, %v1888
      %v2073 = vpack.c.b16 %v1891, %v1889
      %v2074 = vpack.c.b16 %v1894, %v1892
      %v2075 = vpack.c.b16 %v1895, %v1893
      %v2076 = vpack.c.b16 %v1898, %v1896
      %v2077 = vpack.c.b16 %v1899, %v1897
      %v2078 = vpack.c.b16 %v1902, %v1900
      %v2079 = vpack.c.b16 %v1903, %v1901
      %v2080 = vpack.c.b16 %v1906, %v1904
      %v2081 = vpack.c.b16 %v1907, %v1905
      %v2082 = vpack.c.b16 %v1910, %v1908
      %v2083 = vpack.c.b16 %v1911, %v1909
      %v2084 = vpack.c.b16 %v1914, %v1912
      %v2085 = vpack.c.b16 %v1915, %v1913
      %v2086 = vpack.c.b16 %v1918, %v1916
      %v2087 = vpack.c.b16 %v1919, %v1917
      %v2088 = vpack.c.b16 %v1922, %v1920
      %v2089 = vpack.c.b16 %v1923, %v1921
      %v2090 = vpack.c.b16 %v1926, %v1924
      %v2091 = vpack.c.b16 %v1927, %v1925
      %v2092 = vpack.c.b16 %v1930, %v1928
      %v2093 = vpack.c.b16 %v1931, %v1929
      %v2094 = vpack.c.b16 %v1934, %v1932
      %v2095 = vpack.c.b16 %v1935, %v1933
      %v2096 = vpack.c.b16 %v1938, %v1936
      %v2097 = vpack.c.b16 %v1939, %v1937
      %v2098 = vpack.c.b16 %v1942, %v1940
      %v2099 = vpack.c.b16 %v1943, %v1941
      %v2100 = vpack.c.b16 %v1946, %v1944
      %v2101 = vpack.c.b16 %v1947, %v1945
      %v2102 = vpack.c.b16 %v1950, %v1948
      %v2103 = vpack.c.b16 %v1951, %v1949
      %v2104 = vpack.c.b16 %v1954, %v1952
      %v2105 = vpack.c.b16 %v1955, %v1953
      %v2106 = vpack.c.b16 %v1958, %v1956
      %v2107 = vpack.c.b16 %v1959, %v1957
      %v2108 = vpack.c.b16 %v1962, %v1960
      %v2109 = vpack.c.b16 %v1963, %v1961
      %v2110 = vpack.c.b16 %v1966, %v1964
      %v2111 = vpack.c.b16 %v1967, %v1965
      %v2112 = vpack.c.b16 %v1970, %v1968
      %v2113 = vpack.c.b16 %v1971, %v1969
      %v2114 = vpack.c.b16 %v1974, %v1972
      %v2115 = vpack.c.b16 %v1975, %v1973
      %v2116 = vpack.c.b16 %v1978, %v1976
      %v2117 = vpack.c.b16 %v1979, %v1977
      %v2118 = vpack.c.b16 %v1982, %v1980
      %v2119 = vpack.c.b16 %v1983, %v1981
      %v2120 = vpack.c.b16 %v1986, %v1984
      %v2121 = vpack.c.b16 %v1987, %v1985
      %v2122 = vpack.c.b16 %v1990, %v1988
      %v2123 = vpack.c.b16 %v1991, %v1989
      %v2124 = vpack.c.b16 %v1994, %v1992
      %v2125 = vpack.c.b16 %v1995, %v1993
      %v2126 = vpack.c.b16 %v1998, %v1996
      %v2127 = vpack.c.b16 %v1999, %v1997
      %v2128 = vpack.c.b16 %v2002, %v2000
      %v2129 = vpack.c.b16 %v2003, %v2001
      %v2130 = vpack.c.b16 %v2006, %v2004
      %v2131 = vpack.c.b16 %v2007, %v2005
      %v2132 = vpack.c.b16 %v2010, %v2008
      %v2133 = vpack.c.b16 %v2011, %v2009
      %v2134 = vpack.c.b16 %v2014, %v2012
      %v2135 = vpack.c.b16 %v2015, %v2013
      %v2136 = vpack.c.b16 %v2018, %v2016
      %v2137 = vpack.c.b16 %v2019, %v2017
      %v2138 = vpack.c.b16 %v2022, %v2020
      %v2139 = vpack.c.b16 %v2023, %v2021
      %v2140 = vpack.c.b16 %v2026, %v2024
      %v2141 = vpack.c.b16 %v2027, %v2025
      %v2142 = vpack.c.b16 %v2030, %v2028
      %v2143 = vpack.c.b16 %v2031, %v2029
      %v2144 = vpack.c.b16 %v2034, %v2032
      %v2145 = vpack.c.b16 %v2035, %v2033
      %v2146 = vpack.c.b16 %v2038, %v2036
      %v2147 = vpack.c.b16 %v2039, %v2037
      %v2148 = vpack.c.b16 %v2042, %v2040
      %v2149 = vpack.c.b16 %v2043, %v2041
      %v2150 = vpack.c.b16 %v2046, %v2044
      %v2151 = vpack.c.b16 %v2047, %v2045
      %v2152 = vpack.c.b16 %v2050, %v2048
      %v2153 = vpack.c.b16 %v2051, %v2049
      %v2154 = vpack.c.b16 %v2054, %v2052
      %v2155 = vpack.c.b16 %v2055, %v2053
      %v2156 = vpack.c.b16 %v2058, %v2056
      %v2157 = vpack.c.b16 %v2059, %v2057
      %v2158 = vpack.c.b16 %v2062, %v2060
      %v2159 = vpack.c.b16 %v2063, %v2061
      %2256 = vmatpush.bf16.msra.mxu0 %v2078
      %2257 = vmatpush.bf16.msra.mxu0 %v2076
      %2258 = vmatpush.bf16.msra.mxu0 %v2074
      %2259 = vmatpush.bf16.msra.mxu0 %v2072
      %2260 = vmatpush.bf16.msra.mxu0 %v2070
      %2261 = vmatpush.bf16.msra.mxu0 %v2068
      %2262 = vmatpush.bf16.msra.mxu0 %v2066
      %2263 = vmatpush.bf16.msra.mxu0 %v2064
      %2264 = vmatmul.bf16.gmra.mxu0 %v1764
      %v2265 = vpop.f32.mrf.mxu0
      %v2266 = vadd.f32 %v1661, %v2265
      %v2267 = vpop.f32.mrf.mxu0
      %v2268 = vadd.f32 %v1663, %v2267
      %2269 = vdwg.mxu0
      %2270 = vmatpush.bf16.msra.mxu0 %v2094
      %2271 = vmatpush.bf16.msra.mxu0 %v2092
      %2272 = vmatpush.bf16.msra.mxu0 %v2090
      %2273 = vmatpush.bf16.msra.mxu0 %v2088
      %2274 = vmatpush.bf16.msra.mxu0 %v2086
      %2275 = vmatpush.bf16.msra.mxu0 %v2084
      %2276 = vmatpush.bf16.msra.mxu0 %v2082
      %2277 = vmatpush.bf16.msra.mxu0 %v2080
      %2278 = vmatmul.bf16.gmra.mxu0 %v1765
      %v2279 = vpop.f32.mrf.mxu0
      %v2280 = vadd.f32 %v2266, %v2279
      %v2281 = vpop.f32.mrf.mxu0
      %v2282 = vadd.f32 %v2268, %v2281
      %2283 = vdwg.mxu0
      %2284 = vmatpush.bf16.msra.mxu0 %v2110
      %2285 = vmatpush.bf16.msra.mxu0 %v2108
      %2286 = vmatpush.bf16.msra.mxu0 %v2106
      %2287 = vmatpush.bf16.msra.mxu0 %v2104
      %2288 = vmatpush.bf16.msra.mxu0 %v2102
      %2289 = vmatpush.bf16.msra.mxu0 %v2100
      %2290 = vmatpush.bf16.msra.mxu0 %v2098
      %2291 = vmatpush.bf16.msra.mxu0 %v2096
      %2292 = vmatmul.bf16.gmra.mxu0 %v1766
      %v2293 = vpop.f32.mrf.mxu0
      %v2294 = vadd.f32 %v2280, %v2293
      %v2295 = vpop.f32.mrf.mxu0
      %v2296 = vadd.f32 %v2282, %v2295
      %2297 = vdwg.mxu0
      %2298 = vmatpush.bf16.msra.mxu0 %v2126
      %2299 = vmatpush.bf16.msra.mxu0 %v2124
      %2300 = vmatpush.bf16.msra.mxu0 %v2122
      %2301 = vmatpush.bf16.msra.mxu0 %v2120
      %2302 = vmatpush.bf16.msra.mxu0 %v2118
      %2303 = vmatpush.bf16.msra.mxu0 %v2116
      %2304 = vmatpush.bf16.msra.mxu0 %v2114
      %2305 = vmatpush.bf16.msra.mxu0 %v2112
      %2306 = vmatmul.bf16.gmra.mxu0 %v1767
      %v2307 = vpop.f32.mrf.mxu0
      %v2308 = vadd.f32 %v2294, %v2307
      %v2309 = vpop.f32.mrf.mxu0
      %v2310 = vadd.f32 %v2296, %v2309
      %2311 = vdwg.mxu0
      %2312 = vmatpush.bf16.msra.mxu0 %v2142
      %2313 = vmatpush.bf16.msra.mxu0 %v2140
      %2314 = vmatpush.bf16.msra.mxu0 %v2138
      %2315 = vmatpush.bf16.msra.mxu0 %v2136
      %2316 = vmatpush.bf16.msra.mxu0 %v2134
      %2317 = vmatpush.bf16.msra.mxu0 %v2132
      %2318 = vmatpush.bf16.msra.mxu0 %v2130
      %2319 = vmatpush.bf16.msra.mxu0 %v2128
      %2320 = vmatmul.bf16.gmra.mxu0 %v1768
      %v2321 = vpop.f32.mrf.mxu0
      %v2322 = vadd.f32 %v2308, %v2321
      %v2323 = vpop.f32.mrf.mxu0
      %v2324 = vadd.f32 %v2310, %v2323
      %2325 = vdwg.mxu0
      %2326 = vmatpush.bf16.msra.mxu0 %v2158
      %2327 = vmatpush.bf16.msra.mxu0 %v2156
      %2328 = vmatpush.bf16.msra.mxu0 %v2154
      %2329 = vmatpush.bf16.msra.mxu0 %v2152
      %2330 = vmatpush.bf16.msra.mxu0 %v2150
      %2331 = vmatpush.bf16.msra.mxu0 %v2148
      %2332 = vmatpush.bf16.msra.mxu0 %v2146
      %2333 = vmatpush.bf16.msra.mxu0 %v2144
      %2334 = vmatmul.bf16.gmra.mxu0 %v1769
      %v2335 = vpop.f32.mrf.mxu0
      %v2336 = vadd.f32 %v2322, %v2335
      %v2337 = vpop.f32.mrf.mxu0
      %v2338 = vadd.f32 %v2324, %v2337
      %2339 = vdwg.mxu0
      %2340 = vmatpush.bf16.msra.mxu0 %v2079
      %2341 = vmatpush.bf16.msra.mxu0 %v2077
      %2342 = vmatpush.bf16.msra.mxu0 %v2075
      %2343 = vmatpush.bf16.msra.mxu0 %v2073
      %2344 = vmatpush.bf16.msra.mxu0 %v2071
      %2345 = vmatpush.bf16.msra.mxu0 %v2069
      %2346 = vmatpush.bf16.msra.mxu0 %v2067
      %2347 = vmatpush.bf16.msra.mxu0 %v2065
      %2348 = vmatmul.bf16.gmra.mxu0 %v1764
      %v2349 = vpop.f32.mrf.mxu0
      %v2350 = vadd.f32 %v1745, %v2349
      %v2351 = vpop.f32.mrf.mxu0
      %v2352 = vadd.f32 %v1747, %v2351
      %2353 = vdwg.mxu0
      %2354 = vmatpush.bf16.msra.mxu0 %v2095
      %2355 = vmatpush.bf16.msra.mxu0 %v2093
      %2356 = vmatpush.bf16.msra.mxu0 %v2091
      %2357 = vmatpush.bf16.msra.mxu0 %v2089
      %2358 = vmatpush.bf16.msra.mxu0 %v2087
      %2359 = vmatpush.bf16.msra.mxu0 %v2085
      %2360 = vmatpush.bf16.msra.mxu0 %v2083
      %2361 = vmatpush.bf16.msra.mxu0 %v2081
      %2362 = vmatmul.bf16.gmra.mxu0 %v1765
      %v2363 = vpop.f32.mrf.mxu0
      %v2364 = vadd.f32 %v2350, %v2363
      %v2365 = vpop.f32.mrf.mxu0
      %v2366 = vadd.f32 %v2352, %v2365
      %2367 = vdwg.mxu0
      %2368 = vmatpush.bf16.msra.mxu0 %v2111
      %2369 = vmatpush.bf16.msra.mxu0 %v2109
      %2370 = vmatpush.bf16.msra.mxu0 %v2107
      %2371 = vmatpush.bf16.msra.mxu0 %v2105
      %2372 = vmatpush.bf16.msra.mxu0 %v2103
      %2373 = vmatpush.bf16.msra.mxu0 %v2101
      %2374 = vmatpush.bf16.msra.mxu0 %v2099
      %2375 = vmatpush.bf16.msra.mxu0 %v2097
      %2376 = vmatmul.bf16.gmra.mxu0 %v1766
      %v2377 = vpop.f32.mrf.mxu0
      %v2378 = vadd.f32 %v2364, %v2377
      %v2379 = vpop.f32.mrf.mxu0
      %v2380 = vadd.f32 %v2366, %v2379
      %2381 = vdwg.mxu0
      %2382 = vmatpush.bf16.msra.mxu0 %v2127
      %2383 = vmatpush.bf16.msra.mxu0 %v2125
      %2384 = vmatpush.bf16.msra.mxu0 %v2123
      %2385 = vmatpush.bf16.msra.mxu0 %v2121
      %2386 = vmatpush.bf16.msra.mxu0 %v2119
      %2387 = vmatpush.bf16.msra.mxu0 %v2117
      %2388 = vmatpush.bf16.msra.mxu0 %v2115
      %2389 = vmatpush.bf16.msra.mxu0 %v2113
      %2390 = vmatmul.bf16.gmra.mxu0 %v1767
      %v2391 = vpop.f32.mrf.mxu0
      %v2392 = vadd.f32 %v2378, %v2391
      %v2393 = vpop.f32.mrf.mxu0
      %v2394 = vadd.f32 %v2380, %v2393
      %2395 = vdwg.mxu0
      %2396 = vmatpush.bf16.msra.mxu0 %v2143
      %2397 = vmatpush.bf16.msra.mxu0 %v2141
      %2398 = vmatpush.bf16.msra.mxu0 %v2139
      %2399 = vmatpush.bf16.msra.mxu0 %v2137
      %2400 = vmatpush.bf16.msra.mxu0 %v2135
      %2401 = vmatpush.bf16.msra.mxu0 %v2133
      %2402 = vmatpush.bf16.msra.mxu0 %v2131
      %2403 = vmatpush.bf16.msra.mxu0 %v2129
      %2404 = vmatmul.bf16.gmra.mxu0 %v1768
      %v2405 = vpop.f32.mrf.mxu0
      %v2406 = vadd.f32 %v2392, %v2405
      %v2407 = vpop.f32.mrf.mxu0
      %v2408 = vadd.f32 %v2394, %v2407
      %2409 = vdwg.mxu0
      %2410 = vmatpush.bf16.msra.mxu0 %v2159
      %2411 = vmatpush.bf16.msra.mxu0 %v2157
      %2412 = vmatpush.bf16.msra.mxu0 %v2155
      %2413 = vmatpush.bf16.msra.mxu0 %v2153
      %2414 = vmatpush.bf16.msra.mxu0 %v2151
      %2415 = vmatpush.bf16.msra.mxu0 %v2149
      %2416 = vmatpush.bf16.msra.mxu0 %v2147
      %2417 = vmatpush.bf16.msra.mxu0 %v2145
      %2418 = vmatmul.bf16.gmra.mxu0 %v1769
      %v2419 = vpop.f32.mrf.mxu0
      %v2420 = vadd.f32 %v2406, %v2419
      %v2421 = vpop.f32.mrf.mxu0
      %v2422 = vadd.f32 %v2408, %v2421
      %2423 = vdwg.mxu0
      %v2426 = vrot.slane %v841, 6
      %v2427 = vrot.slane %v987, 4
      %v2428 = vrot.slane %v989, 2
      %v2429 = vrot.slane %v959, 6
      %v2432 = vsel %vm1015, %v840, %v2426
      %v2435 = vsel %vm1019, %v2427, %v2428
      %v2436 = vsel %vm1023, %v2432, %v2435
      %v2439 = vsel %vm1015, %v958, %v2429
      %2440 = vst [vmem:[#allocation1] ss:$4 sm:$0xff] %v1044
      %s2441 = scalar_lea.vmem [#allocation1], 1
      %2442 = vst [vmem:[%s2441] ss:$4 sm:$0xff] %v1054
      %s2443 = scalar_lea.vmem [#allocation1], 2
      %2444 = vst [vmem:[%s2443] ss:$4 sm:$0xff] %v1070
      %s2445 = scalar_lea.vmem [#allocation1], 3
      %2446 = vst [vmem:[%s2445] ss:$4 sm:$0xff] %v2436
      %s2447 = scalar_lea.vmem [#allocation1], 32
      %2448 = vst [vmem:[%s2447] ss:$4 sm:$0xff] %v1047
      %s2449 = scalar_lea.vmem [#allocation1], 33
      %2450 = vst [vmem:[%s2449] ss:$4 sm:$0xff] %v1057
      %s2451 = scalar_lea.vmem [#allocation1], 34
      %2452 = vst [vmem:[%s2451] ss:$4 sm:$0xff] %v1073
      %s2453 = scalar_lea.vmem [#allocation1], 35
      %2454 = vst [vmem:[%s2453] ss:$4 sm:$0xff] %v2439
      %v2455 = vld.sshfl [vmem:[#allocation1] sm:$0xff pattern:$0x73625140]
      %v2456 = vld.sshfl [vmem:[#allocation1 + $0x8] sm:$0xff pattern:$0x73625140]
      %v2457 = vld.sshfl [vmem:[#allocation1 + $0x10] sm:$0xff pattern:$0x73625140]
      %v2458 = vld.sshfl [vmem:[#allocation1 + $0x18] sm:$0xff pattern:$0x73625140]
      %v2459 = vld.sshfl [vmem:[#allocation1 + $0x20] sm:$0xff pattern:$0x73625140]
      %v2460 = vld.sshfl [vmem:[#allocation1 + $0x28] sm:$0xff pattern:$0x73625140]
      %v2563 = vunpack.c.l.b16 %v621
      %v2564 = vunpack.c.h.b16 %v621
      %v2565 = vunpack.c.l.b16 %v622
      %v2566 = vunpack.c.h.b16 %v622
      %v2567 = vunpack.c.l.b16 %v623
      %v2568 = vunpack.c.h.b16 %v623
      %v2569 = vunpack.c.l.b16 %v624
      %v2570 = vunpack.c.h.b16 %v624
      %v2571 = vunpack.c.l.b16 %v625
      %v2572 = vunpack.c.h.b16 %v625
      %v2573 = vunpack.c.l.b16 %v626
      %v2574 = vunpack.c.h.b16 %v626
      %v2575 = vunpack.c.l.b16 %v627
      %v2576 = vunpack.c.h.b16 %v627
      %v2577 = vunpack.c.l.b16 %v628
      %v2578 = vunpack.c.h.b16 %v628
      %v2579 = vunpack.c.l.b16 %v629
      %v2580 = vunpack.c.h.b16 %v629
      %v2581 = vunpack.c.l.b16 %v630
      %v2582 = vunpack.c.h.b16 %v630
      %v2583 = vunpack.c.l.b16 %v631
      %v2584 = vunpack.c.h.b16 %v631
      %v2585 = vunpack.c.l.b16 %v632
      %v2586 = vunpack.c.h.b16 %v632
      %v2587 = vunpack.c.l.b16 %v633
      %v2588 = vunpack.c.h.b16 %v633
      %v2589 = vunpack.c.l.b16 %v634
      %v2590 = vunpack.c.h.b16 %v634
      %v2591 = vunpack.c.l.b16 %v635
      %v2592 = vunpack.c.h.b16 %v635
      %v2593 = vunpack.c.l.b16 %v636
      %v2594 = vunpack.c.h.b16 %v636
      %v2595 = vunpack.c.l.b16 %v637
      %v2596 = vunpack.c.h.b16 %v637
      %v2597 = vunpack.c.l.b16 %v638
      %v2598 = vunpack.c.h.b16 %v638
      %v2599 = vunpack.c.l.b16 %v639
      %v2600 = vunpack.c.h.b16 %v639
      %v2601 = vunpack.c.l.b16 %v640
      %v2602 = vunpack.c.h.b16 %v640
      %v2603 = vunpack.c.l.b16 %v641
      %v2604 = vunpack.c.h.b16 %v641
      %v2605 = vunpack.c.l.b16 %v642
      %v2606 = vunpack.c.h.b16 %v642
      %v2607 = vunpack.c.l.b16 %v643
      %v2608 = vunpack.c.h.b16 %v643
      %v2609 = vunpack.c.l.b16 %v644
      %v2610 = vunpack.c.h.b16 %v644
      %v2611 = vunpack.c.l.b16 %v645
      %v2612 = vunpack.c.h.b16 %v645
      %v2613 = vunpack.c.l.b16 %v646
      %v2614 = vunpack.c.h.b16 %v646
      %v2615 = vunpack.c.l.b16 %v647
      %v2616 = vunpack.c.h.b16 %v647
      %v2617 = vunpack.c.l.b16 %v648
      %v2618 = vunpack.c.h.b16 %v648
      %v2619 = vunpack.c.l.b16 %v649
      %v2620 = vunpack.c.h.b16 %v649
      %v2621 = vunpack.c.l.b16 %v650
      %v2622 = vunpack.c.h.b16 %v650
      %v2623 = vunpack.c.l.b16 %v651
      %v2624 = vunpack.c.h.b16 %v651
      %v2625 = vunpack.c.l.b16 %v652
      %v2626 = vunpack.c.h.b16 %v652
      %v2627 = vunpack.c.l.b16 %v653
      %v2628 = vunpack.c.h.b16 %v653
      %v2629 = vunpack.c.l.b16 %v654
      %v2630 = vunpack.c.h.b16 %v654
      %v2631 = vunpack.c.l.b16 %v655
      %v2632 = vunpack.c.h.b16 %v655
      %v2633 = vunpack.c.l.b16 %v656
      %v2634 = vunpack.c.h.b16 %v656
      %v2635 = vunpack.c.l.b16 %v657
      %v2636 = vunpack.c.h.b16 %v657
      %v2637 = vunpack.c.l.b16 %v658
      %v2638 = vunpack.c.h.b16 %v658
      %v2639 = vunpack.c.l.b16 %v659
      %v2640 = vunpack.c.h.b16 %v659
      %v2641 = vunpack.c.l.b16 %v660
      %v2642 = vunpack.c.h.b16 %v660
      %v2643 = vunpack.c.l.b16 %v661
      %v2644 = vunpack.c.h.b16 %v661
      %v2645 = vunpack.c.l.b16 %v662
      %v2646 = vunpack.c.h.b16 %v662
      %v2647 = vunpack.c.l.b16 %v663
      %v2648 = vunpack.c.h.b16 %v663
      %v2649 = vunpack.c.l.b16 %v664
      %v2650 = vunpack.c.h.b16 %v664
      %v2651 = vunpack.c.l.b16 %v665
      %v2652 = vunpack.c.h.b16 %v665
      %v2653 = vunpack.c.l.b16 %v666
      %v2654 = vunpack.c.h.b16 %v666
      %v2655 = vunpack.c.l.b16 %v667
      %v2656 = vunpack.c.h.b16 %v667
      %v2657 = vunpack.c.l.b16 %v668
      %v2658 = vunpack.c.h.b16 %v668
      %v2659 = vunpack.c.l.b16 %v669
      %v2660 = vunpack.c.h.b16 %v669
      %v2661 = vunpack.c.l.b16 %v670
      %v2662 = vunpack.c.h.b16 %v670
      %v2663 = vunpack.c.l.b16 %v671
      %v2664 = vunpack.c.h.b16 %v671
      %v2665 = vunpack.c.l.b16 %v672
      %v2666 = vunpack.c.h.b16 %v672
      %v2667 = vunpack.c.l.b16 %v673
      %v2668 = vunpack.c.h.b16 %v673
      %v2669 = vunpack.c.l.b16 %v674
      %v2670 = vunpack.c.h.b16 %v674
      %v2671 = vunpack.c.l.b16 %v675
      %v2672 = vunpack.c.h.b16 %v675
      %v2673 = vunpack.c.l.b16 %v676
      %v2674 = vunpack.c.h.b16 %v676
      %v2675 = vunpack.c.l.b16 %v677
      %v2676 = vunpack.c.h.b16 %v677
      %v2677 = vunpack.c.l.b16 %v678
      %v2678 = vunpack.c.h.b16 %v678
      %v2679 = vunpack.c.l.b16 %v679
      %v2680 = vunpack.c.h.b16 %v679
      %v2681 = vunpack.c.l.b16 %v680
      %v2682 = vunpack.c.h.b16 %v680
      %v2683 = vunpack.c.l.b16 %v681
      %v2684 = vunpack.c.h.b16 %v681
      %v2685 = vunpack.c.l.b16 %v682
      %v2686 = vunpack.c.h.b16 %v682
      %v2687 = vunpack.c.l.b16 %v683
      %v2688 = vunpack.c.h.b16 %v683
      %v2689 = vunpack.c.l.b16 %v684
      %v2690 = vunpack.c.h.b16 %v684
      %v2691 = vunpack.c.l.b16 %v685
      %v2692 = vunpack.c.h.b16 %v685
      %v2693 = vunpack.c.l.b16 %v686
      %v2694 = vunpack.c.h.b16 %v686
      %v2695 = vunpack.c.l.b16 %v687
      %v2696 = vunpack.c.h.b16 %v687
      %v2697 = vunpack.c.l.b16 %v688
      %v2698 = vunpack.c.h.b16 %v688
      %v2699 = vunpack.c.l.b16 %v689
      %v2700 = vunpack.c.h.b16 %v689
      %v2701 = vunpack.c.l.b16 %v690
      %v2702 = vunpack.c.h.b16 %v690
      %v2703 = vunpack.c.l.b16 %v691
      %v2704 = vunpack.c.h.b16 %v691
      %v2705 = vunpack.c.l.b16 %v692
      %v2706 = vunpack.c.h.b16 %v692
      %v2707 = vunpack.c.l.b16 %v693
      %v2708 = vunpack.c.h.b16 %v693
      %v2709 = vunpack.c.l.b16 %v694
      %v2710 = vunpack.c.h.b16 %v694
      %v2711 = vunpack.c.l.b16 %v695
      %v2712 = vunpack.c.h.b16 %v695
      %v2713 = vunpack.c.l.b16 %v696
      %v2714 = vunpack.c.h.b16 %v696
      %v2715 = vunpack.c.l.b16 %v697
      %v2716 = vunpack.c.h.b16 %v697
      %v2717 = vunpack.c.l.b16 %v698
      %v2718 = vunpack.c.h.b16 %v698
      %v2719 = vunpack.c.l.b16 %v699
      %v2720 = vunpack.c.h.b16 %v699
      %v2721 = vunpack.c.l.b16 %v700
      %v2722 = vunpack.c.h.b16 %v700
      %v2723 = vunpack.c.l.b16 %v701
      %v2724 = vunpack.c.h.b16 %v701
      %v2725 = vunpack.c.l.b16 %v702
      %v2726 = vunpack.c.h.b16 %v702
      %v2727 = vunpack.c.l.b16 %v703
      %v2728 = vunpack.c.h.b16 %v703
      %v2729 = vunpack.c.l.b16 %v704
      %v2730 = vunpack.c.h.b16 %v704
      %v2731 = vunpack.c.l.b16 %v705
      %v2732 = vunpack.c.h.b16 %v705
      %v2733 = vunpack.c.l.b16 %v706
      %v2734 = vunpack.c.h.b16 %v706
      %v2735 = vunpack.c.l.b16 %v707
      %v2736 = vunpack.c.h.b16 %v707
      %v2737 = vunpack.c.l.b16 %v708
      %v2738 = vunpack.c.h.b16 %v708
      %v2739 = vunpack.c.l.b16 %v709
      %v2740 = vunpack.c.h.b16 %v709
      %v2741 = vunpack.c.l.b16 %v710
      %v2742 = vunpack.c.h.b16 %v710
      %v2743 = vunpack.c.l.b16 %v711
      %v2744 = vunpack.c.h.b16 %v711
      %v2745 = vunpack.c.l.b16 %v712
      %v2746 = vunpack.c.h.b16 %v712
      %v2747 = vunpack.c.l.b16 %v713
      %v2748 = vunpack.c.h.b16 %v713
      %v2749 = vunpack.c.l.b16 %v714
      %v2750 = vunpack.c.h.b16 %v714
      %v2751 = vunpack.c.l.b16 %v715
      %v2752 = vunpack.c.h.b16 %v715
      %v2753 = vunpack.c.l.b16 %v716
      %v2754 = vunpack.c.h.b16 %v716
      %v2755 = vpack.c.b16 %v2565, %v2563
      %v2756 = vpack.c.b16 %v2566, %v2564
      %v2757 = vpack.c.b16 %v2569, %v2567
      %v2758 = vpack.c.b16 %v2570, %v2568
      %v2759 = vpack.c.b16 %v2573, %v2571
      %v2760 = vpack.c.b16 %v2574, %v2572
      %v2761 = vpack.c.b16 %v2577, %v2575
      %v2762 = vpack.c.b16 %v2578, %v2576
      %v2763 = vpack.c.b16 %v2581, %v2579
      %v2764 = vpack.c.b16 %v2582, %v2580
      %v2765 = vpack.c.b16 %v2585, %v2583
      %v2766 = vpack.c.b16 %v2586, %v2584
      %v2767 = vpack.c.b16 %v2589, %v2587
      %v2768 = vpack.c.b16 %v2590, %v2588
      %v2769 = vpack.c.b16 %v2593, %v2591
      %v2770 = vpack.c.b16 %v2594, %v2592
      %v2771 = vpack.c.b16 %v2597, %v2595
      %v2772 = vpack.c.b16 %v2598, %v2596
      %v2773 = vpack.c.b16 %v2601, %v2599
      %v2774 = vpack.c.b16 %v2602, %v2600
      %v2775 = vpack.c.b16 %v2605, %v2603
      %v2776 = vpack.c.b16 %v2606, %v2604
      %v2777 = vpack.c.b16 %v2609, %v2607
      %v2778 = vpack.c.b16 %v2610, %v2608
      %v2779 = vpack.c.b16 %v2613, %v2611
      %v2780 = vpack.c.b16 %v2614, %v2612
      %v2781 = vpack.c.b16 %v2617, %v2615
      %v2782 = vpack.c.b16 %v2618, %v2616
      %v2783 = vpack.c.b16 %v2621, %v2619
      %v2784 = vpack.c.b16 %v2622, %v2620
      %v2785 = vpack.c.b16 %v2625, %v2623
      %v2786 = vpack.c.b16 %v2626, %v2624
      %v2787 = vpack.c.b16 %v2629, %v2627
      %v2788 = vpack.c.b16 %v2630, %v2628
      %v2789 = vpack.c.b16 %v2633, %v2631
      %v2790 = vpack.c.b16 %v2634, %v2632
      %v2791 = vpack.c.b16 %v2637, %v2635
      %v2792 = vpack.c.b16 %v2638, %v2636
      %v2793 = vpack.c.b16 %v2641, %v2639
      %v2794 = vpack.c.b16 %v2642, %v2640
      %v2795 = vpack.c.b16 %v2645, %v2643
      %v2796 = vpack.c.b16 %v2646, %v2644
      %v2797 = vpack.c.b16 %v2649, %v2647
      %v2798 = vpack.c.b16 %v2650, %v2648
      %v2799 = vpack.c.b16 %v2653, %v2651
      %v2800 = vpack.c.b16 %v2654, %v2652
      %v2801 = vpack.c.b16 %v2657, %v2655
      %v2802 = vpack.c.b16 %v2658, %v2656
      %v2803 = vpack.c.b16 %v2661, %v2659
      %v2804 = vpack.c.b16 %v2662, %v2660
      %v2805 = vpack.c.b16 %v2665, %v2663
      %v2806 = vpack.c.b16 %v2666, %v2664
      %v2807 = vpack.c.b16 %v2669, %v2667
      %v2808 = vpack.c.b16 %v2670, %v2668
      %v2809 = vpack.c.b16 %v2673, %v2671
      %v2810 = vpack.c.b16 %v2674, %v2672
      %v2811 = vpack.c.b16 %v2677, %v2675
      %v2812 = vpack.c.b16 %v2678, %v2676
      %v2813 = vpack.c.b16 %v2681, %v2679
      %v2814 = vpack.c.b16 %v2682, %v2680
      %v2815 = vpack.c.b16 %v2685, %v2683
      %v2816 = vpack.c.b16 %v2686, %v2684
      %v2817 = vpack.c.b16 %v2689, %v2687
      %v2818 = vpack.c.b16 %v2690, %v2688
      %v2819 = vpack.c.b16 %v2693, %v2691
      %v2820 = vpack.c.b16 %v2694, %v2692
      %v2821 = vpack.c.b16 %v2697, %v2695
      %v2822 = vpack.c.b16 %v2698, %v2696
      %v2823 = vpack.c.b16 %v2701, %v2699
      %v2824 = vpack.c.b16 %v2702, %v2700
      %v2825 = vpack.c.b16 %v2705, %v2703
      %v2826 = vpack.c.b16 %v2706, %v2704
      %v2827 = vpack.c.b16 %v2709, %v2707
      %v2828 = vpack.c.b16 %v2710, %v2708
      %v2829 = vpack.c.b16 %v2713, %v2711
      %v2830 = vpack.c.b16 %v2714, %v2712
      %v2831 = vpack.c.b16 %v2717, %v2715
      %v2832 = vpack.c.b16 %v2718, %v2716
      %v2833 = vpack.c.b16 %v2721, %v2719
      %v2834 = vpack.c.b16 %v2722, %v2720
      %v2835 = vpack.c.b16 %v2725, %v2723
      %v2836 = vpack.c.b16 %v2726, %v2724
      %v2837 = vpack.c.b16 %v2729, %v2727
      %v2838 = vpack.c.b16 %v2730, %v2728
      %v2839 = vpack.c.b16 %v2733, %v2731
      %v2840 = vpack.c.b16 %v2734, %v2732
      %v2841 = vpack.c.b16 %v2737, %v2735
      %v2842 = vpack.c.b16 %v2738, %v2736
      %v2843 = vpack.c.b16 %v2741, %v2739
      %v2844 = vpack.c.b16 %v2742, %v2740
      %v2845 = vpack.c.b16 %v2745, %v2743
      %v2846 = vpack.c.b16 %v2746, %v2744
      %v2847 = vpack.c.b16 %v2749, %v2747
      %v2848 = vpack.c.b16 %v2750, %v2748
      %v2849 = vpack.c.b16 %v2753, %v2751
      %v2850 = vpack.c.b16 %v2754, %v2752
      %2947 = vmatpush.bf16.msra.mxu0 %v2769
      %2948 = vmatpush.bf16.msra.mxu0 %v2767
      %2949 = vmatpush.bf16.msra.mxu0 %v2765
      %2950 = vmatpush.bf16.msra.mxu0 %v2763
      %2951 = vmatpush.bf16.msra.mxu0 %v2761
      %2952 = vmatpush.bf16.msra.mxu0 %v2759
      %2953 = vmatpush.bf16.msra.mxu0 %v2757
      %2954 = vmatpush.bf16.msra.mxu0 %v2755
      %2955 = vmatmul.bf16.gmra.mxu0 %v2455
      %v2956 = vpop.f32.mrf.mxu0
      %v2957 = vadd.f32 0.0, %v2956
      %v2958 = vpop.f32.mrf.mxu0
      %v2959 = vadd.f32 0.0, %v2958
      %2960 = vdwg.mxu0
      %2961 = vmatpush.bf16.msra.mxu0 %v2785
      %2962 = vmatpush.bf16.msra.mxu0 %v2783
      %2963 = vmatpush.bf16.msra.mxu0 %v2781
      %2964 = vmatpush.bf16.msra.mxu0 %v2779
      %2965 = vmatpush.bf16.msra.mxu0 %v2777
      %2966 = vmatpush.bf16.msra.mxu0 %v2775
      %2967 = vmatpush.bf16.msra.mxu0 %v2773
      %2968 = vmatpush.bf16.msra.mxu0 %v2771
      %2969 = vmatmul.bf16.gmra.mxu0 %v2456
      %v2970 = vpop.f32.mrf.mxu0
      %v2971 = vadd.f32 %v2957, %v2970
      %v2972 = vpop.f32.mrf.mxu0
      %v2973 = vadd.f32 %v2959, %v2972
      %2974 = vdwg.mxu0
      %2975 = vmatpush.bf16.msra.mxu0 %v2801
      %2976 = vmatpush.bf16.msra.mxu0 %v2799
      %2977 = vmatpush.bf16.msra.mxu0 %v2797
      %2978 = vmatpush.bf16.msra.mxu0 %v2795
      %2979 = vmatpush.bf16.msra.mxu0 %v2793
      %2980 = vmatpush.bf16.msra.mxu0 %v2791
      %2981 = vmatpush.bf16.msra.mxu0 %v2789
      %2982 = vmatpush.bf16.msra.mxu0 %v2787
      %2983 = vmatmul.bf16.gmra.mxu0 %v2457
      %v2984 = vpop.f32.mrf.mxu0
      %v2985 = vadd.f32 %v2971, %v2984
      %v2986 = vpop.f32.mrf.mxu0
      %v2987 = vadd.f32 %v2973, %v2986
      %2988 = vdwg.mxu0
      %2989 = vmatpush.bf16.msra.mxu0 %v2817
      %2990 = vmatpush.bf16.msra.mxu0 %v2815
      %2991 = vmatpush.bf16.msra.mxu0 %v2813
      %2992 = vmatpush.bf16.msra.mxu0 %v2811
      %2993 = vmatpush.bf16.msra.mxu0 %v2809
      %2994 = vmatpush.bf16.msra.mxu0 %v2807
      %2995 = vmatpush.bf16.msra.mxu0 %v2805
      %2996 = vmatpush.bf16.msra.mxu0 %v2803
      %2997 = vmatmul.bf16.gmra.mxu0 %v2458
      %v2998 = vpop.f32.mrf.mxu0
      %v2999 = vadd.f32 %v2985, %v2998
      %v3000 = vpop.f32.mrf.mxu0
      %v3001 = vadd.f32 %v2987, %v3000
      %3002 = vdwg.mxu0
      %3003 = vmatpush.bf16.msra.mxu0 %v2833
      %3004 = vmatpush.bf16.msra.mxu0 %v2831
      %3005 = vmatpush.bf16.msra.mxu0 %v2829
      %3006 = vmatpush.bf16.msra.mxu0 %v2827
      %3007 = vmatpush.bf16.msra.mxu0 %v2825
      %3008 = vmatpush.bf16.msra.mxu0 %v2823
      %3009 = vmatpush.bf16.msra.mxu0 %v2821
      %3010 = vmatpush.bf16.msra.mxu0 %v2819
      %3011 = vmatmul.bf16.gmra.mxu0 %v2459
      %v3012 = vpop.f32.mrf.mxu0
      %v3013 = vadd.f32 %v2999, %v3012
      %v3014 = vpop.f32.mrf.mxu0
      %v3015 = vadd.f32 %v3001, %v3014
      %3016 = vdwg.mxu0
      %3017 = vmatpush.bf16.msra.mxu0 %v2849
      %3018 = vmatpush.bf16.msra.mxu0 %v2847
      %3019 = vmatpush.bf16.msra.mxu0 %v2845
      %3020 = vmatpush.bf16.msra.mxu0 %v2843
      %3021 = vmatpush.bf16.msra.mxu0 %v2841
      %3022 = vmatpush.bf16.msra.mxu0 %v2839
      %3023 = vmatpush.bf16.msra.mxu0 %v2837
      %3024 = vmatpush.bf16.msra.mxu0 %v2835
      %3025 = vmatmul.bf16.gmra.mxu0 %v2460
      %v3026 = vpop.f32.mrf.mxu0
      %v3027 = vadd.f32 %v3013, %v3026
      %v3028 = vpop.f32.mrf.mxu0
      %v3029 = vadd.f32 %v3015, %v3028
      %3030 = vdwg.mxu0
      %3031 = vmatpush.bf16.msra.mxu0 %v2770
      %3032 = vmatpush.bf16.msra.mxu0 %v2768
      %3033 = vmatpush.bf16.msra.mxu0 %v2766
      %3034 = vmatpush.bf16.msra.mxu0 %v2764
      %3035 = vmatpush.bf16.msra.mxu0 %v2762
      %3036 = vmatpush.bf16.msra.mxu0 %v2760
      %3037 = vmatpush.bf16.msra.mxu0 %v2758
      %3038 = vmatpush.bf16.msra.mxu0 %v2756
      %3039 = vmatmul.bf16.gmra.mxu0 %v2455
      %v3040 = vpop.f32.mrf.mxu0
      %v3041 = vadd.f32 0.0, %v3040
      %v3042 = vpop.f32.mrf.mxu0
      %v3043 = vadd.f32 0.0, %v3042
      %3044 = vdwg.mxu0
      %3045 = vmatpush.bf16.msra.mxu0 %v2786
      %3046 = vmatpush.bf16.msra.mxu0 %v2784
      %3047 = vmatpush.bf16.msra.mxu0 %v2782
      %3048 = vmatpush.bf16.msra.mxu0 %v2780
      %3049 = vmatpush.bf16.msra.mxu0 %v2778
      %3050 = vmatpush.bf16.msra.mxu0 %v2776
      %3051 = vmatpush.bf16.msra.mxu0 %v2774
      %3052 = vmatpush.bf16.msra.mxu0 %v2772
      %3053 = vmatmul.bf16.gmra.mxu0 %v2456
      %v3054 = vpop.f32.mrf.mxu0
      %v3055 = vadd.f32 %v3041, %v3054
      %v3056 = vpop.f32.mrf.mxu0
      %v3057 = vadd.f32 %v3043, %v3056
      %3058 = vdwg.mxu0
      %3059 = vmatpush.bf16.msra.mxu0 %v2802
      %3060 = vmatpush.bf16.msra.mxu0 %v2800
      %3061 = vmatpush.bf16.msra.mxu0 %v2798
      %3062 = vmatpush.bf16.msra.mxu0 %v2796
      %3063 = vmatpush.bf16.msra.mxu0 %v2794
      %3064 = vmatpush.bf16.msra.mxu0 %v2792
      %3065 = vmatpush.bf16.msra.mxu0 %v2790
      %3066 = vmatpush.bf16.msra.mxu0 %v2788
      %3067 = vmatmul.bf16.gmra.mxu0 %v2457
      %v3068 = vpop.f32.mrf.mxu0
      %v3069 = vadd.f32 %v3055, %v3068
      %v3070 = vpop.f32.mrf.mxu0
      %v3071 = vadd.f32 %v3057, %v3070
      %3072 = vdwg.mxu0
      %3073 = vmatpush.bf16.msra.mxu0 %v2818
      %3074 = vmatpush.bf16.msra.mxu0 %v2816
      %3075 = vmatpush.bf16.msra.mxu0 %v2814
      %3076 = vmatpush.bf16.msra.mxu0 %v2812
      %3077 = vmatpush.bf16.msra.mxu0 %v2810
      %3078 = vmatpush.bf16.msra.mxu0 %v2808
      %3079 = vmatpush.bf16.msra.mxu0 %v2806
      %3080 = vmatpush.bf16.msra.mxu0 %v2804
      %3081 = vmatmul.bf16.gmra.mxu0 %v2458
      %v3082 = vpop.f32.mrf.mxu0
      %v3083 = vadd.f32 %v3069, %v3082
      %v3084 = vpop.f32.mrf.mxu0
      %v3085 = vadd.f32 %v3071, %v3084
      %3086 = vdwg.mxu0
      %3087 = vmatpush.bf16.msra.mxu0 %v2834
      %3088 = vmatpush.bf16.msra.mxu0 %v2832
      %3089 = vmatpush.bf16.msra.mxu0 %v2830
      %3090 = vmatpush.bf16.msra.mxu0 %v2828
      %3091 = vmatpush.bf16.msra.mxu0 %v2826
      %3092 = vmatpush.bf16.msra.mxu0 %v2824
      %3093 = vmatpush.bf16.msra.mxu0 %v2822
      %3094 = vmatpush.bf16.msra.mxu0 %v2820
      %3095 = vmatmul.bf16.gmra.mxu0 %v2459
      %v3096 = vpop.f32.mrf.mxu0
      %v3097 = vadd.f32 %v3083, %v3096
      %v3098 = vpop.f32.mrf.mxu0
      %v3099 = vadd.f32 %v3085, %v3098
      %3100 = vdwg.mxu0
      %3101 = vmatpush.bf16.msra.mxu0 %v2850
      %3102 = vmatpush.bf16.msra.mxu0 %v2848
      %3103 = vmatpush.bf16.msra.mxu0 %v2846
      %3104 = vmatpush.bf16.msra.mxu0 %v2844
      %3105 = vmatpush.bf16.msra.mxu0 %v2842
      %3106 = vmatpush.bf16.msra.mxu0 %v2840
      %3107 = vmatpush.bf16.msra.mxu0 %v2838
      %3108 = vmatpush.bf16.msra.mxu0 %v2836
      %3109 = vmatmul.bf16.gmra.mxu0 %v2460
      %v3110 = vpop.f32.mrf.mxu0
      %v3111 = vadd.f32 %v3097, %v3110
      %v3112 = vpop.f32.mrf.mxu0
      %v3113 = vadd.f32 %v3099, %v3112
      %3114 = vdwg.mxu0
      %v3115 = vadd.f32 %v2336, %v3027
      %v3116 = vadd.f32 %v2420, %v3111
      %v3117 = vadd.f32 %v2338, %v3029
      %v3118 = vadd.f32 %v2422, %v3113
      %v3120 = vperm.slane %v717, 0
      %v3121 = vperm.slane %v717, 1
      %v3124 = vadd.f32 %v3115, %v3120
      %v3125 = vadd.f32 %v3116, %v3121
      %v3126 = vadd.f32 %v3117, %v3120
      %v3127 = vadd.f32 %v3118, %v3121
      %v3128 = vmax.f32 %v3124, 0.0
      %v3129 = vmax.f32 %v3125, 0.0
      %v3130 = vmax.f32 %v3126, 0.0
      %v3131 = vmax.f32 %v3127, 0.0
      %v3136 = vrot.slane %v3129, 4
      %v3137 = vrot.slane %v3131, 4
      %v3138 = vsel %vm1023, %v3128, %v3136
      %v3139 = vsel %vm1023, %v3136, %v3128
      %v3140 = vrot.slane %v3139, 4
      %v3141 = vsel %vm1023, %v3130, %v3137
      %v3142 = vsel %vm1023, %v3137, %v3130
      %v3143 = vrot.slane %v3142, 4
      %3144 = vst [vmem:[#allocation1] ss:$2 sm:$0xff] %v3138
      %v3145 = vld.sshfl [vmem:[#allocation1] sm:$0xff pattern:$0x75316420]
      %v3146 = vld.sshfl [vmem:[#allocation1 + $0x8] sm:$0xff pattern:$0x75316420]
      %s3147 = scalar_lea.vmem [#allocation1], 16
      %3148 = vst [vmem:[%s3147] ss:$2 sm:$0xff] %v3140
      %v3149 = vld.sshfl [vmem:[#allocation1 + $0x10] sm:$0xff pattern:$0x75316420]
      %v3150 = vld.sshfl [vmem:[#allocation1 + $0x18] sm:$0xff pattern:$0x75316420]
      %s3151 = scalar_lea.vmem [#allocation1], 32
      %3152 = vst [vmem:[%s3151] ss:$2 sm:$0xff] %v3141
      %v3153 = vld.sshfl [vmem:[#allocation1 + $0x20] sm:$0xff pattern:$0x75316420]
      %v3154 = vld.sshfl [vmem:[#allocation1 + $0x28] sm:$0xff pattern:$0x75316420]
      %s3155 = scalar_lea.vmem [#allocation1], 48
      %3156 = vst [vmem:[%s3155] ss:$2 sm:$0xff] %v3143
      %v3157 = vld.sshfl [vmem:[#allocation1 + $0x30] sm:$0xff pattern:$0x75316420]
      %v3158 = vld.sshfl [vmem:[#allocation1 + $0x38] sm:$0xff pattern:$0x75316420]
      %v3167 = vpack.c.bf16 %v3146, %v3145
      %v3168 = vpack.c.bf16 %v3150, %v3149
      %v3169 = vpack.c.bf16 %v3154, %v3153
      %v3170 = vpack.c.bf16 %v3158, %v3157
      %v3175 = vrot.slane %v3167, 2
      %v3176 = vrot.slane %v3168, 2
      %v3177 = vrot.slane %v3169, 2
      %v3178 = vrot.slane %v3170, 2
      %v3181 = vsel %vm1015, %v3167, %v3175
      %v3184 = vsel %vm1015, %v3168, %v3176
      %v3187 = vsel %vm1015, %v3169, %v3177
      %v3190 = vsel %vm1015, %v3170, %v3178
      %3195 = vst [vmem:[%s391] sm:$0xf] %v3181
      %3196 = vst [vmem:[%s391 + $0x4] sm:$0xf] %v3184
      %3197 = vst [vmem:[%s391 + $0x8] sm:$0xf] %v3187
      %3198 = vst [vmem:[%s391 + $0xc] sm:$0xf] %v3190
      %s3199 = smul.u32 4, %s21
      %p3200 = scmp.lt.s32.totalorder %s20, 1
      %s3201 = scalar_select %p3200, %s20, 1
      %p3202 = scmp.lt.s32.totalorder %s3199, 3
      %s3203 = scalar_select %p3202, %s3199, 3
      %s3204 = smul.addr %s3203, 2
      %s3205 = smul.addr %s3201, 8
      %s3206 = sadd.s32 %s3204, %s3205
      %s3207 = smul.addr %s3206, 2
      %s3208 = scalar_lea.vmem %s5, %s3207
      // Predicated region
      $region41: #{feature_extractor.9} parent=39 // pred_check
        %p3209 = pneg %p190
      $region42: #{feature_extractor.9} parent=39 // pred_check_branch
        %3211 = sbr.rel (%p3209) target = $region44
      $region43: #{feature_extractor.9} parent=39 // pred_region
        %s3212 = smul.u32 4, %s21
      $region44: #{feature_extractor.9} parent=39 // pred_fallthru
        _
    $region40: #{feature_extractor.9} parent=5 // pred_fallthru
      _
    %p3213 = scmp.le.s32.totalorder 2, %s11
    // Predicated region
    $region45: #{feature_extractor.9} parent=5 // pred_check
      %p3214 = pneg %p3213
    $region46: #{feature_extractor.9} parent=5 // pred_check_branch
      %3216 = sbr.rel (%p3214) target = $region48
    $region47: #{feature_extractor.9} parent=5 // pred_region
      %s3217 = ssub.s32 %s11, 2
      // Predicated region
      $region49: #{feature_extractor.9} parent=47 // pred_check
        %p3218 = pneg %p196
      $region50: #{feature_extractor.9} parent=47 // pred_check_branch
        %3220 = sbr.rel (%p3218) target = $region52
      $region51: #{feature_extractor.9} parent=47 // pred_region
        %s3221 = smul.u32 4, %s23
        %p3222 = scmp.lt.s32.totalorder %s22, 1
        %s3223 = scalar_select %p3222, %s22, 1
        %p3224 = scmp.lt.s32.totalorder %s3221, 3
        %s3225 = scalar_select %p3224, %s3221, 3
        %s3226 = smul.addr %s3225, 2
        %s3227 = smul.addr %s3223, 8
        %s3228 = sadd.s32 %s3226, %s3227
        %s3229 = smul.addr %s3228, 2
        %s3230 = scalar_lea.vmem %s5, %s3229
      $region52: #{feature_extractor.9} parent=47 // pred_fallthru
        _
    $region48: #{feature_extractor.9} parent=5 // pred_fallthru
      _
  $region6: #{feature_extractor.9} parent=0 // loop_footer
    %s15 = sadd.s32 1, %s11
  $region7: #{feature_extractor.9} parent=0 // loop_footer_branch
    %10 = sbr.rel target = $region3
  $region8: #{feature_extractor.9} parent=0 // loop_exit
    _

</llo_original>
